<compile_context>
chip_gen: v6e
topology: v6e:2x2x1
jax: 0.10.0
libtpu: 0.0.40
codegen_flags: <defaults>
</compile_context>

<pallas_src>
import functools

import jax
import jax.numpy as jnp
from jax.experimental import pallas as pl
from jax.experimental.pallas import tpu as pltpu

# 32 MiB: raises v5e's 16 MiB scoped default, matches v6e's, and leaves
# headroom under v7x's 64 MiB physical VMEM (inputs are double-buffered).
_VMEM_LIMIT = 32 * 1024 * 1024


def _pick_tile(dim, target, align):
    """Largest `align`-aligned divisor of `dim` that is <= target, else full dim."""
    if dim <= target:
        return dim
    t = (target // align) * align
    while t >= align:
        if dim % t == 0:
            return t
        t -= align
    return dim


# --------------------------------------------------------------------------
# Generic tiled linear: bf16 operands on the MXU, f32 accumulator in VMEM.
# --------------------------------------------------------------------------
def _linear_kernel(x_ref, w_ref, b_ref, o_ref, acc_ref, *, relu):
    @pl.when(pl.program_id(2) == 0)
    def _():
        acc_ref[...] = jnp.zeros_like(acc_ref)

    acc_ref[...] += jnp.dot(x_ref[...], w_ref[...],
                            preferred_element_type=jnp.float32)

    @pl.when(pl.program_id(2) == pl.num_programs(2) - 1)
    def _():
        y = acc_ref[...] + b_ref[...]
        if relu:
            y = jnp.maximum(y, 0.0)
        o_ref[...] = y.astype(o_ref.dtype)


def linear(x, w, b, relu=False, out_dtype=jnp.float32):
    """x: [..., K] @ w: [K, N] + b: [N] via a tiled Pallas matmul kernel."""
    orig_shape = x.shape
    K = orig_shape[-1]
    N = w.shape[-1]
    x2 = x.reshape(-1, K).astype(jnp.bfloat16)
    w2 = w.astype(jnp.bfloat16)
    b2 = b.reshape(1, N).astype(jnp.float32)
    M = x2.shape[0]
    tm = _pick_tile(M, 256, 16)
    tn = _pick_tile(N, 512, 128)   # larger, lane-dense N tile (v6e note)
    tk = _pick_tile(K, 512, 128)
    out = pl.pallas_call(
        functools.partial(_linear_kernel, relu=relu),
        out_shape=jax.ShapeDtypeStruct((M, N), out_dtype),
        grid=(M // tm, N // tn, K // tk),
        in_specs=[
            pl.BlockSpec((tm, tk), lambda i, j, k: (i, k)),
            pl.BlockSpec((tk, tn), lambda i, j, k: (k, j)),
            pl.BlockSpec((1, tn), lambda i, j, k: (0, j)),
        ],
        out_specs=pl.BlockSpec((tm, tn), lambda i, j, k: (i, j)),
        scratch_shapes=[pltpu.VMEM((tm, tn), jnp.float32)],
        compiler_params=pltpu.CompilerParams(
            dimension_semantics=("parallel", "parallel", "arbitrary"),
            vmem_limit_bytes=_VMEM_LIMIT),
        cost_estimate=pl.CostEstimate(
            flops=2 * M * N * K, transcendentals=0,
            bytes_accessed=(M * K + K * N) * 2 + (M * N + N) * 4),
    )(x2, w2, b2)
    return out.reshape(orig_shape[:-1] + (N,))


# --------------------------------------------------------------------------
# Fused projection: (x [+ pos]) @ W + b, result split into separate outputs.
# W is the pre-concatenated QK / KV / single weight; outputs default to bf16.
# --------------------------------------------------------------------------
def _proj_kernel(*refs, splits, has_add, relu):
    if has_add:
        x_ref, a_ref, w_ref, b_ref = refs[:4]
        out_refs = refs[4:]
        x = x_ref[...] + a_ref[...]
    else:
        x_ref, w_ref, b_ref = refs[:3]
        out_refs = refs[3:]
        x = x_ref[...]
    y = jnp.dot(x.astype(jnp.bfloat16), w_ref[...],
                preferred_element_type=jnp.float32) + b_ref[...]
    if relu:
        y = jnp.maximum(y, 0.0)
    off = 0
    for r, s in zip(out_refs, splits):
        r[...] = y[:, off:off + s].astype(r.dtype)
        off += s


def fused_proj(x, w, b, *, add=None, splits=None, out_dtype=jnp.bfloat16,
               relu=False):
    lead = x.shape[:-1]
    K = x.shape[-1]
    N = w.shape[-1]
    if splits is None:
        splits = (N,)
    assert sum(splits) == N
    M = 1
    for d in lead:
        M *= d
    tm = _pick_tile(M, 256, 16)
    x2 = x.reshape(M, K).astype(jnp.float32)
    args = [x2]
    in_specs = [pl.BlockSpec((tm, K), lambda i: (i, 0))]
    if add is not None:
        a2 = jnp.broadcast_to(add, lead + (K,)).reshape(M, K).astype(jnp.float32)
        args.append(a2)
        in_specs.append(pl.BlockSpec((tm, K), lambda i: (i, 0)))
    args.append(w.astype(jnp.bfloat16))
    args.append(b.reshape(1, N).astype(jnp.float32))
    in_specs.append(pl.BlockSpec((K, N), lambda i: (0, 0)))
    in_specs.append(pl.BlockSpec((1, N), lambda i: (0, 0)))
    out_shape = tuple(jax.ShapeDtypeStruct((M, s), out_dtype) for s in splits)
    out_specs = tuple(pl.BlockSpec((tm, s), lambda i: (i, 0)) for s in splits)
    outs = pl.pallas_call(
        functools.partial(_proj_kernel, splits=splits,
                          has_add=add is not None, relu=relu),
        out_shape=out_shape, grid=(M // tm,),
        in_specs=in_specs, out_specs=out_specs,
        compiler_params=pltpu.CompilerParams(
            dimension_semantics=("parallel",), vmem_limit_bytes=_VMEM_LIMIT),
        cost_estimate=pl.CostEstimate(
            flops=2 * M * K * N, transcendentals=0,
            bytes_accessed=(M * K * 4 + K * N * 2 + M * N * 2 + N * 4)),
    )(*args)
    return tuple(o.reshape(lead + (s,)) for o, s in zip(outs, splits))


# --------------------------------------------------------------------------
# Fused MHA sublayer: softmax attention + out-proj + residual + LayerNorm.
# Grid = (B, Lq/tq): per-step score tensor is only [tq, Lk] f32 per head, so
# VMEM stays bounded at DETR scale and v7x gets >= 2 parallel grid steps.
# --------------------------------------------------------------------------
def _mha_kernel(q_ref, k_ref, v_ref, wo_ref, bo_ref, r_ref, g_ref, bt_ref,
                o_ref, *maybe_attn, num_heads, eps):
    a_ref = maybe_attn[0] if maybe_attn else None
    q = q_ref[0]                        # [tq, D] bf16 (scale folded into wq)
    k = k_ref[0]                        # [Lk, D] bf16
    v = v_ref[0]                        # [Lk, D] bf16
    D = q.shape[-1]
    dh = D // num_heads
    ctx_parts = []
    # TODO(synk): with dh << 128 each per-head QK^T only fills part of the MXU
    # contraction depth; a block-diagonal multi-head packing would raise MXU
    # utilisation further.
    for h in range(num_heads):
        sl = slice(h * dh, (h + 1) * dh)
        s = jax.lax.dot_general(q[:, sl], k[:, sl], (((1,), (1,)), ((), ())),
                                preferred_element_type=jnp.float32)  # [tq, Lk]
        s = s - jnp.max(s, axis=-1, keepdims=True)
        e = jnp.exp(s)
        denom = jnp.sum(e, axis=-1, keepdims=True)
        if a_ref is not None:
            p = e / denom                 # exact: these probs are exported
            a_ref[0, h] = p.astype(a_ref.dtype)
        else:
            p = e * pl.reciprocal(denom, approx=True)
        ctx_parts.append(jnp.dot(p.astype(v.dtype), v[:, sl],
                                 preferred_element_type=jnp.float32))
    ctx = jnp.concatenate(ctx_parts, axis=-1)            # [tq, D] f32, in VMEM
    y = jnp.dot(ctx.astype(jnp.bfloat16), wo_ref[...],
                preferred_element_type=jnp.float32) + bo_ref[...]
    z = r_ref[0] + y
    mu = jnp.mean(z, axis=-1, keepdims=True)
    var = jnp.mean((z - mu) ** 2, axis=-1, keepdims=True)
    zn = (z - mu) * jax.lax.rsqrt(var + eps)
    o_ref[0] = (zn * g_ref[...] + bt_ref[...]).astype(o_ref.dtype)


def mha_fused(q, k, v, res, wo, bo, gamma, beta, *, num_heads, need_attn,
              eps=1e-5):
    """Post-norm MHA sublayer: LN(res + OutProj(Attn(q, k, v)))."""
    B, Lq, D = q.shape
    Lk = k.shape[1]
    tq = _pick_tile(Lq, 128, 16)
    dh = D // num_heads
    in_specs = [
        pl.BlockSpec((1, tq, D), lambda b, i: (b, i, 0)),   # q
        pl.BlockSpec((1, Lk, D), lambda b, i: (b, 0, 0)),   # k
        pl.BlockSpec((1, Lk, D), lambda b, i: (b, 0, 0)),   # v
        pl.BlockSpec((D, D), lambda b, i: (0, 0)),          # wo
        pl.BlockSpec((1, D), lambda b, i: (0, 0)),          # bo
        pl.BlockSpec((1, tq, D), lambda b, i: (b, i, 0)),   # residual
        pl.BlockSpec((1, D), lambda b, i: (0, 0)),          # gamma
        pl.BlockSpec((1, D), lambda b, i: (0, 0)),          # beta
    ]
    # TODO(synk): at toy d_model=32 the q/k/v loads and the output store are
    # lane-masked; at DETR scale (d_model=256) they are lane-dense.
    o_shape = jax.ShapeDtypeStruct((B, Lq, D), jnp.float32)
    o_spec = pl.BlockSpec((1, tq, D), lambda b, i: (b, i, 0))
    cparams = pltpu.CompilerParams(
        dimension_semantics=("parallel", "parallel"),
        vmem_limit_bytes=_VMEM_LIMIT)
    kern = functools.partial(_mha_kernel, num_heads=num_heads, eps=eps)
    args = (q.astype(jnp.bfloat16), k.astype(jnp.bfloat16),
            v.astype(jnp.bfloat16), wo.astype(jnp.bfloat16),
            bo.reshape(1, D).astype(jnp.float32), res.astype(jnp.float32),
            gamma.reshape(1, D).astype(jnp.float32),
            beta.reshape(1, D).astype(jnp.float32))
    flops = 4 * B * num_heads * Lq * Lk * dh + 2 * B * Lq * D * D
    base_bytes = 2 * B * (Lq + 2 * Lk) * D + 8 * B * Lq * D + 2 * D * D
    if need_attn:
        out, attn = pl.pallas_call(
            kern,
            out_shape=(o_shape,
                       jax.ShapeDtypeStruct((B, num_heads, Lq, Lk),
                                            jnp.float32)),
            grid=(B, Lq // tq),
            in_specs=in_specs,
            out_specs=(o_spec,
                       pl.BlockSpec((1, num_heads, tq, Lk),
                                    lambda b, i: (b, 0, i, 0))),
            compiler_params=cparams,
            cost_estimate=pl.CostEstimate(
                flops=flops, transcendentals=B * num_heads * Lq * Lk,
                bytes_accessed=base_bytes + 4 * B * num_heads * Lq * Lk),
        )(*args)
        return out, attn
    out = pl.pallas_call(
        kern, out_shape=o_shape, grid=(B, Lq // tq),
        in_specs=in_specs, out_specs=o_spec, compiler_params=cparams,
        cost_estimate=pl.CostEstimate(
            flops=flops, transcendentals=B * num_heads * Lq * Lk,
            bytes_accessed=base_bytes),
    )(*args)
    return out, None


# --------------------------------------------------------------------------
# Fused FFN: LayerNorm(x + relu(x @ w1 + b1) @ w2 + b2); optional second
# LayerNorm (decoder-level norm producing `hs`) on the result in-kernel.
# The [tm, dff] intermediate never leaves VMEM.
# --------------------------------------------------------------------------
def _ffn_kernel(x_ref, w1_ref, b1_ref, w2_ref, b2_ref, g_ref, bt_ref, *rest,
                eps, has_second):
    if has_second:
        g2_ref, bt2_ref, o_ref, o2_ref = rest
    else:
        (o_ref,) = rest
    x = x_ref[...]                                       # [tm, D] f32 residual
    h = jnp.dot(x.astype(jnp.bfloat16), w1_ref[...],
                preferred_element_type=jnp.float32) + b1_ref[...]
    h = jnp.maximum(h, 0.0)
    y = jnp.dot(h.astype(jnp.bfloat16), w2_ref[...],
                preferred_element_type=jnp.float32) + b2_ref[...]
    z = x + y
    mu = jnp.mean(z, axis=-1, keepdims=True)
    var = jnp.mean((z - mu) ** 2, axis=-1, keepdims=True)
    out = (z - mu) * jax.lax.rsqrt(var + eps) * g_ref[...] + bt_ref[...]
    o_ref[...] = out.astype(o_ref.dtype)
    if has_second:
        mu2 = jnp.mean(out, axis=-1, keepdims=True)
        var2 = jnp.mean((out - mu2) ** 2, axis=-1, keepdims=True)
        out2 = (out - mu2) * jax.lax.rsqrt(var2 + eps) * g2_ref[...] + bt2_ref[...]
        o2_ref[...] = out2.astype(o2_ref.dtype)


def ffn_residual_layernorm(x, w1, b1, w2, b2, gamma, beta, *,
                           second_norm=None, eps=1e-5):
    B, L, D = x.shape
    F = w1.shape[-1]
    M = B * L
    x2 = x.reshape(M, D).astype(jnp.float32)
    # tm capped at 256 (v7x 64 MiB VMEM budget) and 16-aligned (bf16 packing).
    tm = _pick_tile(M, 256, 16)
    args = [x2, w1.astype(jnp.bfloat16), b1.reshape(1, F).astype(jnp.float32),
            w2.astype(jnp.bfloat16), b2.reshape(1, D).astype(jnp.float32),
            gamma.reshape(1, D).astype(jnp.float32),
            beta.reshape(1, D).astype(jnp.float32)]
    in_specs = [
        pl.BlockSpec((tm, D), lambda i: (i, 0)),
        pl.BlockSpec((D, F), lambda i: (0, 0)),
        pl.BlockSpec((1, F), lambda i: (0, 0)),
        pl.BlockSpec((F, D), lambda i: (0, 0)),
        pl.BlockSpec((1, D), lambda i: (0, 0)),
        pl.BlockSpec((1, D), lambda i: (0, 0)),
        pl.BlockSpec((1, D), lambda i: (0, 0)),
    ]
    has_second = second_norm is not None
    n_out = 2 if has_second else 1
    if has_second:
        g2, bt2 = second_norm
        args += [g2.reshape(1, D).astype(jnp.float32),
                 bt2.reshape(1, D).astype(jnp.float32)]
        in_specs += [pl.BlockSpec((1, D), lambda i: (0, 0)),
                     pl.BlockSpec((1, D), lambda i: (0, 0))]
        out_shape = (jax.ShapeDtypeStruct((M, D), jnp.float32),
                     jax.ShapeDtypeStruct((M, D), jnp.float32))
        out_specs = (pl.BlockSpec((tm, D), lambda i: (i, 0)),
                     pl.BlockSpec((tm, D), lambda i: (i, 0)))
    else:
        out_shape = jax.ShapeDtypeStruct((M, D), jnp.float32)
        out_specs = pl.BlockSpec((tm, D), lambda i: (i, 0))
    res = pl.pallas_call(
        functools.partial(_ffn_kernel, eps=eps, has_second=has_second),
        out_shape=out_shape, grid=(M // tm,),
        in_specs=in_specs, out_specs=out_specs,
        compiler_params=pltpu.CompilerParams(
            dimension_semantics=("parallel",), vmem_limit_bytes=_VMEM_LIMIT),
        cost_estimate=pl.CostEstimate(
            flops=4 * M * D * F, transcendentals=0,
            bytes_accessed=4 * D * F + 4 * (F + (5 + 2 * n_out) * D)
            + 4 * M * D * (1 + n_out)),
    )(*args)
    if has_second:
        return res[0].reshape(B, L, D), res[1].reshape(B, L, D)
    return res.reshape(B, L, D), None


# --------------------------------------------------------------------------
# Glue: positional embedding, params, forward pass
# --------------------------------------------------------------------------
def position_embedding_sine(B, H, W, d_model, temperature=10000.0):
    num_pos_feats = d_model // 2
    eps = 1e-6
    scale = 2.0 * jnp.pi
    y = jnp.arange(1, H + 1, dtype=jnp.float32) / (H + eps) * scale
    x = jnp.arange(1, W + 1, dtype=jnp.float32) / (W + eps) * scale
    dim_t = jnp.arange(num_pos_feats, dtype=jnp.float32)
    dim_t = temperature ** (2.0 * jnp.floor(dim_t / 2.0) / num_pos_feats)
    pos_x = x[:, None] / dim_t[None, :]
    pos_y = y[:, None] / dim_t[None, :]
    pos_x = jnp.stack([jnp.sin(pos_x[:, 0::2]), jnp.cos(pos_x[:, 1::2])],
                      axis=2).reshape(W, -1)
    pos_y = jnp.stack([jnp.sin(pos_y[:, 0::2]), jnp.cos(pos_y[:, 1::2])],
                      axis=2).reshape(H, -1)
    pos = jnp.concatenate(
        [
            jnp.broadcast_to(pos_y[:, None, :], (H, W, num_pos_feats)),
            jnp.broadcast_to(pos_x[None, :, :], (H, W, num_pos_feats)),
        ],
        axis=-1,
    )                                                        # [H, W, d_model]
    return jnp.broadcast_to(pos[None], (B, H, W, d_model)).reshape(B, H * W, d_model)


def init_params(key, *, in_ch, num_channels, d_model, num_heads, dff,
                num_enc_layers, num_dec_layers, num_queries):
    keys = iter(jax.random.split(key, 512))

    def dense(shape):
        return 0.02 * jax.random.normal(next(keys), shape, dtype=jnp.float32)

    zeros = lambda s: jnp.zeros(s, jnp.float32)
    ones = lambda s: jnp.ones(s, jnp.float32)
    scale = float(d_model // num_heads) ** -0.5

    def mha_self():
        wq, wk, wv, wo = (dense((d_model, d_model)) for _ in range(4))
        bq, bk, bv, bo = (zeros((d_model,)) for _ in range(4))
        # Pre-concatenated Q|K projection (q_in == k_in at the call site) with
        # the 1/sqrt(dh) softmax scale folded into the Q half (weight + bias).
        return dict(wqk=jnp.concatenate([wq * scale, wk], axis=1),
                    bqk=jnp.concatenate([bq * scale, bk]),
                    wv=wv, bv=bv, wo=wo, bo=bo)

    def mha_cross():
        wq, wk, wv, wo = (dense((d_model, d_model)) for _ in range(4))
        bq, bk, bv, bo = (zeros((d_model,)) for _ in range(4))
        # Pre-concatenated K|V projection (k_in == v_in); scale folded into Q.
        return dict(wq=wq * scale, bq=bq * scale,
                    wkv=jnp.concatenate([wk, wv], axis=1),
                    bkv=jnp.concatenate([bk, bv]),
                    wo=wo, bo=bo)

    def enc_layer():
        return dict(self_attn=mha_self(),
                    lin1_w=dense((d_model, dff)), lin1_b=zeros((dff,)),
                    lin2_w=dense((dff, d_model)), lin2_b=zeros((d_model,)),
                    norm1_g=ones((d_model,)), norm1_b=zeros((d_model,)),
                    norm2_g=ones((d_model,)), norm2_b=zeros((d_model,)))

    def dec_layer():
        return dict(self_attn=mha_self(), cross_attn=mha_cross(),
                    lin1_w=dense((d_model, dff)), lin1_b=zeros((dff,)),
                    lin2_w=dense((dff, d_model)), lin2_b=zeros((d_model,)),
                    norm1_g=ones((d_model,)), norm1_b=zeros((d_model,)),
                    norm2_g=ones((d_model,)), norm2_b=zeros((d_model,)),
                    norm3_g=ones((d_model,)), norm3_b=zeros((d_model,)))

    return dict(
        backbone=dict(w=dense((in_ch, num_channels)), b=zeros((num_channels,))),
        input_proj=dict(w=dense((num_channels, d_model)), b=zeros((d_model,))),
        query_embed=dense((num_queries, d_model)),
        presence_w=dense((d_model, 1)), presence_b=zeros((1,)),
        dec_norm_g=ones((d_model,)), dec_norm_b=zeros((d_model,)),
        encoder=[enc_layer() for _ in range(num_enc_layers)],
        decoder=[dec_layer() for _ in range(num_dec_layers)],
    )


def intr_forward(params, samples, *, num_heads):
    """samples: [B, 3, H, W] (NCHW, like PyTorch)."""
    B, C, H, W = samples.shape
    x = samples.transpose(0, 2, 3, 1).reshape(B, H * W, C)        # [B, HW, 3]

    # ----- backbone (synthetic): 1x1 conv + ReLU; mask is all-valid -----
    # TODO(synk): the real ResNet backbone + NestedTensor padding mask are
    # replaced by a 1x1-conv stand-in with an all-False mask, so no
    # key_padding_mask is added to the attention scores.
    feat = linear(x, params["backbone"]["w"], params["backbone"]["b"], relu=True)

    d_model = params["input_proj"]["w"].shape[1]
    pos = position_embedding_sine(B, H, W, d_model)

    # ----- input_proj: 1x1 conv num_channels -> hidden_dim -----
    src = linear(feat, params["input_proj"]["w"], params["input_proj"]["b"])

    # ----- transformer encoder (post-norm, DETR style) -----
    memory = src
    for p in params["encoder"]:
        sa = p["self_attn"]
        q, k = fused_proj(memory, sa["wqk"], sa["bqk"], add=pos,
                          splits=(d_model, d_model))       # pos-add folded in
        (v,) = fused_proj(memory, sa["wv"], sa["bv"])
        memory, _ = mha_fused(q, k, v, memory, sa["wo"], sa["bo"],
                              p["norm1_g"], p["norm1_b"],
                              num_heads=num_heads, need_attn=False)
        memory, _ = ffn_residual_layernorm(
            memory, p["lin1_w"], p["lin1_b"], p["lin2_w"], p["lin2_b"],
            p["norm2_g"], p["norm2_b"])

    # ----- transformer decoder (no spatial pos_embed added in decoder) -----
    Q = params["query_embed"].shape[0]
    query_pos = jnp.broadcast_to(params["query_embed"][None], (B, Q, d_model))
    tgt = jnp.zeros((B, Q, d_model), jnp.float32)
    hs_list, attn_list = [], []
    for p in params["decoder"]:
        sa = p["self_attn"]
        q, k = fused_proj(tgt, sa["wqk"], sa["bqk"], add=query_pos,
                          splits=(d_model, d_model))
        (v,) = fused_proj(tgt, sa["wv"], sa["bv"])
        tgt, _ = mha_fused(q, k, v, tgt, sa["wo"], sa["bo"],
                           p["norm1_g"], p["norm1_b"],
                           num_heads=num_heads, need_attn=False)
        ca = p["cross_attn"]
        (qc,) = fused_proj(tgt, ca["wq"], ca["bq"], add=query_pos)
        kc, vc = fused_proj(memory, ca["wkv"], ca["bkv"],
                            splits=(d_model, d_model))
        tgt, attn = mha_fused(qc, kc, vc, tgt, ca["wo"], ca["bo"],
                              p["norm2_g"], p["norm2_b"],
                              num_heads=num_heads, need_attn=True)
        tgt, hs_l = ffn_residual_layernorm(
            tgt, p["lin1_w"], p["lin1_b"], p["lin2_w"], p["lin2_b"],
            p["norm3_g"], p["norm3_b"],
            second_norm=(params["dec_norm_g"], params["dec_norm_b"]))
        hs_list.append(hs_l)
        attn_list.append(attn)

    hs = jnp.stack(hs_list, axis=0)                    # [dec_layers, B, Q, d]
    attention_scores = jnp.stack(attn_list, axis=0)    # [dec_layers, B, heads, Q, HW]
    avg_attention_scores = attention_scores.mean(axis=2)
    encoder_output = memory.reshape(B, H, W, d_model).transpose(0, 3, 1, 2)

    # presence_vector: N=1 head in plain jnp -- a pallas launch with a 1-lane
    # masked output would be store-slot bound for no benefit.
    query_logits = (jnp.einsum("bqd,dn->bqn", hs[-1], params["presence_w"])
                    + params["presence_b"])
    out = {"query_logits": query_logits.squeeze(-1)}
    return out, encoder_output, hs, attention_scores, avg_attention_scores


# --------------------------------------------------------------------------
if __name__ == "__main__":
    key = jax.random.PRNGKey(0)
    pkey, xkey = jax.random.split(key)

    B, H, W = 2, 8, 8
    in_ch = 3
    num_channels = 4        # backbone.num_channels
    d_model = 32            # transformer.d_model
    num_heads = 4
    dff = 64
    num_enc_layers = 1
    num_dec_layers = 2
    num_queries = 8         # number of classes

    params = init_params(pkey, in_ch=in_ch, num_channels=num_channels,
                         d_model=d_model, num_heads=num_heads, dff=dff,
                         num_enc_layers=num_enc_layers,
                         num_dec_layers=num_dec_layers,
                         num_queries=num_queries)
    samples = jax.random.normal(xkey, (B, in_ch, H, W), dtype=jnp.float32)

    fwd = jax.jit(functools.partial(intr_forward, num_heads=num_heads))
    outputs = jax.block_until_ready(fwd(params, samples))

    out, encoder_output, hs, attention_scores, avg_attention_scores = outputs
    assert out["query_logits"].shape == (B, num_queries)
    assert encoder_output.shape == (B, d_model, H, W)
    assert hs.shape == (num_dec_layers, B, num_queries, d_model)
    assert attention_scores.shape == (num_dec_layers, B, num_heads, num_queries, H * W)
    assert avg_attention_scores.shape == (num_dec_layers, B, num_queries, H * W)
    assert bool(jnp.all(jnp.isfinite(out["query_logits"])))
    assert bool(jnp.all(jnp.isfinite(attention_scores)))
    # exported attention probabilities use an exact divide -> rows sum to 1
    row_sums = attention_scores.sum(-1)
    assert bool(jnp.all(jnp.abs(row_sums - 1.0) < 1e-3))

    print("KERNEL_OK")
</pallas_src>

<mosaic_0001>
module attributes {stable_mosaic.version = 11 : i64} {
  func.func @_linear_kernel(%arg0: i32, %arg1: i32, %arg2: i32, %arg3: memref<128x3xbf16, #tpu.memory_space<vmem>>, %arg4: memref<3x4xbf16, #tpu.memory_space<vmem>>, %arg5: memref<1x4xf32, #tpu.memory_space<vmem>>, %arg6: memref<128x4xf32, #tpu.memory_space<vmem>>, %arg7: memref<128x4xf32, #tpu.memory_space<vmem>>) attributes {dimension_semantics = [#tpu.dimension_semantics<parallel>, #tpu.dimension_semantics<parallel>, #tpu.dimension_semantics<arbitrary>], iteration_bounds = array<i64: 1, 1, 1>, scalar_prefetch = 0 : i64, scratch_operands = 1 : i64, tpu.core_type = #tpu.core_type<tc>, window_params = [{transform_indices = @transform_0, window_bounds = array<i64: 128, 3>}, {transform_indices = @transform_1, window_bounds = array<i64: 3, 4>}, {transform_indices = @transform_2, window_bounds = array<i64: 1, 4>}, {transform_indices = @transform_3, window_bounds = array<i64: 128, 4>}]} {
    %c0_i32 = arith.constant 0 : i32
    %0 = arith.cmpi eq, %arg2, %c0_i32 : i32
    %1 = arith.extui %0 : i1 to i32
    %c0_i32_0 = arith.constant 0 : i32
    %2 = arith.cmpi ne, %1, %c0_i32_0 : i32
    scf.if %2 {
      %cst_10 = arith.constant 0.000000e+00 : f32
      %12 = vector.broadcast %cst_10 : f32 to vector<128x4xf32>
      %c0_11 = arith.constant 0 : index
      %c0_12 = arith.constant 0 : index
      %13 = vector.load %arg7[%c0_11, %c0_12] : memref<128x4xf32, #tpu.memory_space<vmem>>, vector<128x4xf32>
      tpu.vector_store %arg7[%c0_11, %c0_12], %12 {strides = array<i32>} : memref<128x4xf32, #tpu.memory_space<vmem>>, vector<128x4xf32>,
    } else {
    }
    %c0 = arith.constant 0 : index
    %c0_1 = arith.constant 0 : index
    %3 = vector.load %arg7[%c0, %c0_1] : memref<128x4xf32, #tpu.memory_space<vmem>>, vector<128x4xf32>
    %c0_2 = arith.constant 0 : index
    %c0_3 = arith.constant 0 : index
    %4 = vector.load %arg3[%c0_2, %c0_3] : memref<128x3xbf16, #tpu.memory_space<vmem>>, vector<128x3xbf16>
    %c0_4 = arith.constant 0 : index
    %c0_5 = arith.constant 0 : index
    %5 = vector.load %arg4[%c0_4, %c0_5] : memref<3x4xbf16, #tpu.memory_space<vmem>>, vector<3x4xbf16>
    %cst = arith.constant dense<0.000000e+00> : vector<128x4xf32>
    %6 = tpu.matmul %4, %5, %cst {dimension_numbers = #tpu.dot_dimension_numbers<[1], [0], [0], [1], [0, 0, 1, 1], [], []>} : vector<128x3xbf16>, vector<3x4xbf16>, vector<128x4xf32> -> vector<128x4xf32>
    %7 = arith.addf %3, %6 : vector<128x4xf32>
    %c0_6 = arith.constant 0 : index
    %c0_7 = arith.constant 0 : index
    %8 = vector.load %arg7[%c0_6, %c0_7] : memref<128x4xf32, #tpu.memory_space<vmem>>, vector<128x4xf32>
    tpu.vector_store %arg7[%c0_6, %c0_7], %7 {strides = array<i32>} : memref<128x4xf32, #tpu.memory_space<vmem>>, vector<128x4xf32>,
    %c0_i32_8 = arith.constant 0 : i32
    %9 = arith.cmpi eq, %arg2, %c0_i32_8 : i32
    %10 = arith.extui %9 : i1 to i32
    %c0_i32_9 = arith.constant 0 : i32
    %11 = arith.cmpi ne, %10, %c0_i32_9 : i32
    scf.if %11 {
      %c0_10 = arith.constant 0 : index
      %c0_11 = arith.constant 0 : index
      %12 = vector.load %arg7[%c0_10, %c0_11] : memref<128x4xf32, #tpu.memory_space<vmem>>, vector<128x4xf32>
      %c0_12 = arith.constant 0 : index
      %c0_13 = arith.constant 0 : index
      %13 = vector.load %arg5[%c0_12, %c0_13] : memref<1x4xf32, #tpu.memory_space<vmem>>, vector<1x4xf32>
      %14 = vector.broadcast %13 : vector<1x4xf32> to vector<128x4xf32>
      %15 = arith.addf %12, %14 : vector<128x4xf32>
      %cst_14 = arith.constant 0.000000e+00 : f32
      %16 = vector.broadcast %cst_14 : f32 to vector<128x4xf32>
      %17 = arith.maximumf %15, %16 : vector<128x4xf32>
      %c0_15 = arith.constant 0 : index
      %c0_16 = arith.constant 0 : index
      %18 = vector.load %arg6[%c0_15, %c0_16] : memref<128x4xf32, #tpu.memory_space<vmem>>, vector<128x4xf32>
      tpu.vector_store %arg6[%c0_15, %c0_16], %17 {strides = array<i32>} : memref<128x4xf32, #tpu.memory_space<vmem>>, vector<128x4xf32>,
    } else {
    }
    return
  }
  func.func @transform_0(%arg0: i32, %arg1: i32, %arg2: i32) -> (i32, i32) {
    %c0_i32 = arith.constant 0 : i32
    return %arg0, %arg2 : i32, i32
  }
  func.func @transform_1(%arg0: i32, %arg1: i32, %arg2: i32) -> (i32, i32) {
    %c0_i32 = arith.constant 0 : i32
    return %arg2, %arg1 : i32, i32
  }
  func.func @transform_2(%arg0: i32, %arg1: i32, %arg2: i32) -> (i32, i32) {
    %c0_i32 = arith.constant 0 : i32
    %c0_i32_0 = arith.constant 0 : i32
    return %c0_i32, %arg1 : i32, i32
  }
  func.func @transform_3(%arg0: i32, %arg1: i32, %arg2: i32) -> (i32, i32) {
    %c0_i32 = arith.constant 0 : i32
    return %arg0, %arg1 : i32, i32
  }
}

module attributes {stable_mosaic.version = 11 : i64} {
  func.func @_linear_kernel(%arg0: i32, %arg1: i32, %arg2: i32, %arg3: memref<128x4xbf16, #tpu.memory_space<vmem>>, %arg4: memref<4x32xbf16, #tpu.memory_space<vmem>>, %arg5: memref<1x32xf32, #tpu.memory_space<vmem>>, %arg6: memref<128x32xf32, #tpu.memory_space<vmem>>, %arg7: memref<128x32xf32, #tpu.memory_space<vmem>>) attributes {dimension_semantics = [#tpu.dimension_semantics<parallel>, #tpu.dimension_semantics<parallel>, #tpu.dimension_semantics<arbitrary>], iteration_bounds = array<i64: 1, 1, 1>, scalar_prefetch = 0 : i64, scratch_operands = 1 : i64, tpu.core_type = #tpu.core_type<tc>, window_params = [{transform_indices = @transform_0, window_bounds = array<i64: 128, 4>}, {transform_indices = @transform_1, window_bounds = array<i64: 4, 32>}, {transform_indices = @transform_2, window_bounds = array<i64: 1, 32>}, {transform_indices = @transform_3, window_bounds = array<i64: 128, 32>}]} {
    %c0_i32 = arith.constant 0 : i32
    %0 = arith.cmpi eq, %arg2, %c0_i32 : i32
    %1 = arith.extui %0 : i1 to i32
    %c0_i32_0 = arith.constant 0 : i32
    %2 = arith.cmpi ne, %1, %c0_i32_0 : i32
    scf.if %2 {
      %cst_10 = arith.constant 0.000000e+00 : f32
      %12 = vector.broadcast %cst_10 : f32 to vector<128x32xf32>
      %c0_11 = arith.constant 0 : index
      %c0_12 = arith.constant 0 : index
      %13 = vector.load %arg7[%c0_11, %c0_12] : memref<128x32xf32, #tpu.memory_space<vmem>>, vector<128x32xf32>
      tpu.vector_store %arg7[%c0_11, %c0_12], %12 {strides = array<i32>} : memref<128x32xf32, #tpu.memory_space<vmem>>, vector<128x32xf32>,
    } else {
    }
    %c0 = arith.constant 0 : index
    %c0_1 = arith.constant 0 : index
    %3 = vector.load %arg7[%c0, %c0_1] : memref<128x32xf32, #tpu.memory_space<vmem>>, vector<128x32xf32>
    %c0_2 = arith.constant 0 : index
    %c0_3 = arith.constant 0 : index
    %4 = vector.load %arg3[%c0_2, %c0_3] : memref<128x4xbf16, #tpu.memory_space<vmem>>, vector<128x4xbf16>
    %c0_4 = arith.constant 0 : index
    %c0_5 = arith.constant 0 : index
    %5 = vector.load %arg4[%c0_4, %c0_5] : memref<4x32xbf16, #tpu.memory_space<vmem>>, vector<4x32xbf16>
    %cst = arith.constant dense<0.000000e+00> : vector<128x32xf32>
    %6 = tpu.matmul %4, %5, %cst {dimension_numbers = #tpu.dot_dimension_numbers<[1], [0], [0], [1], [0, 0, 1, 1], [], []>} : vector<128x4xbf16>, vector<4x32xbf16>, vector<128x32xf32> -> vector<128x32xf32>
    %7 = arith.addf %3, %6 : vector<128x32xf32>
    %c0_6 = arith.constant 0 : index
    %c0_7 = arith.constant 0 : index
    %8 = vector.load %arg7[%c0_6, %c0_7] : memref<128x32xf32, #tpu.memory_space<vmem>>, vector<128x32xf32>
    tpu.vector_store %arg7[%c0_6, %c0_7], %7 {strides = array<i32>} : memref<128x32xf32, #tpu.memory_space<vmem>>, vector<128x32xf32>,
    %c0_i32_8 = arith.constant 0 : i32
    %9 = arith.cmpi eq, %arg2, %c0_i32_8 : i32
    %10 = arith.extui %9 : i1 to i32
    %c0_i32_9 = arith.constant 0 : i32
    %11 = arith.cmpi ne, %10, %c0_i32_9 : i32
    scf.if %11 {
      %c0_10 = arith.constant 0 : index
      %c0_11 = arith.constant 0 : index
      %12 = vector.load %arg7[%c0_10, %c0_11] : memref<128x32xf32, #tpu.memory_space<vmem>>, vector<128x32xf32>
      %c0_12 = arith.constant 0 : index
      %c0_13 = arith.constant 0 : index
      %13 = vector.load %arg5[%c0_12, %c0_13] : memref<1x32xf32, #tpu.memory_space<vmem>>, vector<1x32xf32>
      %14 = vector.broadcast %13 : vector<1x32xf32> to vector<128x32xf32>
      %15 = arith.addf %12, %14 : vector<128x32xf32>
      %c0_14 = arith.constant 0 : index
      %c0_15 = arith.constant 0 : index
      %16 = vector.load %arg6[%c0_14, %c0_15] : memref<128x32xf32, #tpu.memory_space<vmem>>, vector<128x32xf32>
      tpu.vector_store %arg6[%c0_14, %c0_15], %15 {strides = array<i32>} : memref<128x32xf32, #tpu.memory_space<vmem>>, vector<128x32xf32>,
    } else {
    }
    return
  }
  func.func @transform_0(%arg0: i32, %arg1: i32, %arg2: i32) -> (i32, i32) {
    %c0_i32 = arith.constant 0 : i32
    return %arg0, %arg2 : i32, i32
  }
  func.func @transform_1(%arg0: i32, %arg1: i32, %arg2: i32) -> (i32, i32) {
    %c0_i32 = arith.constant 0 : i32
    return %arg2, %arg1 : i32, i32
  }
  func.func @transform_2(%arg0: i32, %arg1: i32, %arg2: i32) -> (i32, i32) {
    %c0_i32 = arith.constant 0 : i32
    %c0_i32_0 = arith.constant 0 : i32
    return %c0_i32, %arg1 : i32, i32
  }
  func.func @transform_3(%arg0: i32, %arg1: i32, %arg2: i32) -> (i32, i32) {
    %c0_i32 = arith.constant 0 : i32
    return %arg0, %arg1 : i32, i32
  }
}

module attributes {stable_mosaic.version = 11 : i64} {
  func.func @_proj_kernel(%arg0: i32, %arg1: memref<128x32xf32, #tpu.memory_space<vmem>>, %arg2: memref<32x32xbf16, #tpu.memory_space<vmem>>, %arg3: memref<1x32xf32, #tpu.memory_space<vmem>>, %arg4: memref<128x32xbf16, #tpu.memory_space<vmem>>) attributes {dimension_semantics = [#tpu.dimension_semantics<parallel>], iteration_bounds = array<i64: 1>, scalar_prefetch = 0 : i64, scratch_operands = 0 : i64, tpu.core_type = #tpu.core_type<tc>, window_params = [{transform_indices = @transform_0, window_bounds = array<i64: 128, 32>}, {pipeline_mode = #tpu.pipeline_mode<synchronous>, transform_indices = @transform_1, window_bounds = array<i64: 32, 32>}, {pipeline_mode = #tpu.pipeline_mode<synchronous>, transform_indices = @transform_2, window_bounds = array<i64: 1, 32>}, {transform_indices = @transform_3, window_bounds = array<i64: 128, 32>}]} {
    %c0 = arith.constant 0 : index
    %c0_0 = arith.constant 0 : index
    %0 = vector.load %arg1[%c0, %c0_0] : memref<128x32xf32, #tpu.memory_space<vmem>>, vector<128x32xf32>
    %1 = arith.truncf %0 : vector<128x32xf32> to vector<128x32xbf16>
    %c0_1 = arith.constant 0 : index
    %c0_2 = arith.constant 0 : index
    %2 = vector.load %arg2[%c0_1, %c0_2] : memref<32x32xbf16, #tpu.memory_space<vmem>>, vector<32x32xbf16>
    %cst = arith.constant dense<0.000000e+00> : vector<128x32xf32>
    %3 = tpu.matmul %1, %2, %cst {dimension_numbers = #tpu.dot_dimension_numbers<[1], [0], [0], [1], [0, 0, 1, 1], [], []>} : vector<128x32xbf16>, vector<32x32xbf16>, vector<128x32xf32> -> vector<128x32xf32>
    %c0_3 = arith.constant 0 : index
    %c0_4 = arith.constant 0 : index
    %4 = vector.load %arg3[%c0_3, %c0_4] : memref<1x32xf32, #tpu.memory_space<vmem>>, vector<1x32xf32>
    %5 = vector.broadcast %4 : vector<1x32xf32> to vector<128x32xf32>
    %6 = arith.addf %3, %5 : vector<128x32xf32>
    %7 = arith.truncf %6 : vector<128x32xf32> to vector<128x32xbf16>
    %c0_5 = arith.constant 0 : index
    %c0_6 = arith.constant 0 : index
    %8 = vector.load %arg4[%c0_5, %c0_6] : memref<128x32xbf16, #tpu.memory_space<vmem>>, vector<128x32xbf16>
    tpu.vector_store %arg4[%c0_5, %c0_6], %7 {strides = array<i32>} : memref<128x32xbf16, #tpu.memory_space<vmem>>, vector<128x32xbf16>,
    return
  }
  func.func @transform_0(%arg0: i32) -> (i32, i32) {
    %c0_i32 = arith.constant 0 : i32
    %c0_i32_0 = arith.constant 0 : i32
    return %arg0, %c0_i32 : i32, i32
  }
  func.func @transform_1(%arg0: i32) -> (i32, i32) {
    %c0_i32 = arith.constant 0 : i32
    %c0_i32_0 = arith.constant 0 : i32
    %c0_i32_1 = arith.constant 0 : i32
    return %c0_i32, %c0_i32_0 : i32, i32
  }
  func.func @transform_2(%arg0: i32) -> (i32, i32) {
    %c0_i32 = arith.constant 0 : i32
    %c0_i32_0 = arith.constant 0 : i32
    %c0_i32_1 = arith.constant 0 : i32
    return %c0_i32, %c0_i32_0 : i32, i32
  }
  func.func @transform_3(%arg0: i32) -> (i32, i32) {
    %c0_i32 = arith.constant 0 : i32
    %c0_i32_0 = arith.constant 0 : i32
    return %arg0, %c0_i32 : i32, i32
  }
}

module attributes {stable_mosaic.version = 11 : i64} {
  func.func @_proj_kernel(%arg0: i32, %arg1: memref<128x32xf32, #tpu.memory_space<vmem>>, %arg2: memref<128x32xf32, #tpu.memory_space<vmem>>, %arg3: memref<32x64xbf16, #tpu.memory_space<vmem>>, %arg4: memref<1x64xf32, #tpu.memory_space<vmem>>, %arg5: memref<128x32xbf16, #tpu.memory_space<vmem>>, %arg6: memref<128x32xbf16, #tpu.memory_space<vmem>>) attributes {dimension_semantics = [#tpu.dimension_semantics<parallel>], iteration_bounds = array<i64: 1>, scalar_prefetch = 0 : i64, scratch_operands = 0 : i64, tpu.core_type = #tpu.core_type<tc>, window_params = [{transform_indices = @transform_0, window_bounds = array<i64: 128, 32>}, {transform_indices = @transform_1, window_bounds = array<i64: 128, 32>}, {pipeline_mode = #tpu.pipeline_mode<synchronous>, transform_indices = @transform_2, window_bounds = array<i64: 32, 64>}, {pipeline_mode = #tpu.pipeline_mode<synchronous>, transform_indices = @transform_3, window_bounds = array<i64: 1, 64>}, {transform_indices = @transform_4, window_bounds = array<i64: 128, 32>}, {transform_indices = @transform_5, window_bounds = array<i64: 128, 32>}]} {
    %c0 = arith.constant 0 : index
    %c0_0 = arith.constant 0 : index
    %0 = vector.load %arg1[%c0, %c0_0] : memref<128x32xf32, #tpu.memory_space<vmem>>, vector<128x32xf32>
    %c0_1 = arith.constant 0 : index
    %c0_2 = arith.constant 0 : index
    %1 = vector.load %arg2[%c0_1, %c0_2] : memref<128x32xf32, #tpu.memory_space<vmem>>, vector<128x32xf32>
    %2 = arith.addf %0, %1 : vector<128x32xf32>
    %3 = arith.truncf %2 : vector<128x32xf32> to vector<128x32xbf16>
    %c0_3 = arith.constant 0 : index
    %c0_4 = arith.constant 0 : index
    %4 = vector.load %arg3[%c0_3, %c0_4] : memref<32x64xbf16, #tpu.memory_space<vmem>>, vector<32x64xbf16>
    %cst = arith.constant dense<0.000000e+00> : vector<128x64xf32>
    %5 = tpu.matmul %3, %4, %cst {dimension_numbers = #tpu.dot_dimension_numbers<[1], [0], [0], [1], [0, 0, 1, 1], [], []>} : vector<128x32xbf16>, vector<32x64xbf16>, vector<128x64xf32> -> vector<128x64xf32>
    %c0_5 = arith.constant 0 : index
    %c0_6 = arith.constant 0 : index
    %6 = vector.load %arg4[%c0_5, %c0_6] : memref<1x64xf32, #tpu.memory_space<vmem>>, vector<1x64xf32>
    %7 = vector.broadcast %6 : vector<1x64xf32> to vector<128x64xf32>
    %8 = arith.addf %5, %7 : vector<128x64xf32>
    %9 = vector.extract_strided_slice %8 {offsets = [0, 0], sizes = [128, 32], strides = [1, 1]} : vector<128x64xf32> to vector<128x32xf32>
    %10 = arith.truncf %9 : vector<128x32xf32> to vector<128x32xbf16>
    %c0_7 = arith.constant 0 : index
    %c0_8 = arith.constant 0 : index
    %11 = vector.load %arg5[%c0_7, %c0_8] : memref<128x32xbf16, #tpu.memory_space<vmem>>, vector<128x32xbf16>
    tpu.vector_store %arg5[%c0_7, %c0_8], %10 {strides = array<i32>} : memref<128x32xbf16, #tpu.memory_space<vmem>>, vector<128x32xbf16>,
    %12 = vector.extract_strided_slice %8 {offsets = [0, 32], sizes = [128, 32], strides = [1, 1]} : vector<128x64xf32> to vector<128x32xf32>
    %13 = arith.truncf %12 : vector<128x32xf32> to vector<128x32xbf16>
    %c0_9 = arith.constant 0 : index
    %c0_10 = arith.constant 0 : index
    %14 = vector.load %arg6[%c0_9, %c0_10] : memref<128x32xbf16, #tpu.memory_space<vmem>>, vector<128x32xbf16>
    tpu.vector_store %arg6[%c0_9, %c0_10], %13 {strides = array<i32>} : memref<128x32xbf16, #tpu.memory_space<vmem>>, vector<128x32xbf16>,
    return
  }
  func.func @transform_0(%arg0: i32) -> (i32, i32) {
    %c0_i32 = arith.constant 0 : i32
    %c0_i32_0 = arith.constant 0 : i32
    return %arg0, %c0_i32 : i32, i32
  }
  func.func @transform_1(%arg0: i32) -> (i32, i32) {
    %c0_i32 = arith.constant 0 : i32
    %c0_i32_0 = arith.constant 0 : i32
    return %arg0, %c0_i32 : i32, i32
  }
  func.func @transform_2(%arg0: i32) -> (i32, i32) {
    %c0_i32 = arith.constant 0 : i32
    %c0_i32_0 = arith.constant 0 : i32
    %c0_i32_1 = arith.constant 0 : i32
    return %c0_i32, %c0_i32_0 : i32, i32
  }
  func.func @transform_3(%arg0: i32) -> (i32, i32) {
    %c0_i32 = arith.constant 0 : i32
    %c0_i32_0 = arith.constant 0 : i32
    %c0_i32_1 = arith.constant 0 : i32
    return %c0_i32, %c0_i32_0 : i32, i32
  }
  func.func @transform_4(%arg0: i32) -> (i32, i32) {
    %c0_i32 = arith.constant 0 : i32
    %c0_i32_0 = arith.constant 0 : i32
    return %arg0, %c0_i32 : i32, i32
  }
  func.func @transform_5(%arg0: i32) -> (i32, i32) {
    %c0_i32 = arith.constant 0 : i32
    %c0_i32_0 = arith.constant 0 : i32
    return %arg0, %c0_i32 : i32, i32
  }
}

module attributes {stable_mosaic.version = 11 : i64} {
  func.func @_mha_kernel(%arg0: i32, %arg1: i32, %arg2: memref<1x64x32xbf16, #tpu.memory_space<vmem>>, %arg3: memref<1x64x32xbf16, #tpu.memory_space<vmem>>, %arg4: memref<1x64x32xbf16, #tpu.memory_space<vmem>>, %arg5: memref<32x32xbf16, #tpu.memory_space<vmem>>, %arg6: memref<1x32xf32, #tpu.memory_space<vmem>>, %arg7: memref<1x64x32xf32, #tpu.memory_space<vmem>>, %arg8: memref<1x32xf32, #tpu.memory_space<vmem>>, %arg9: memref<1x32xf32, #tpu.memory_space<vmem>>, %arg10: memref<1x64x32xf32, #tpu.memory_space<vmem>>) attributes {dimension_semantics = [#tpu.dimension_semantics<parallel>, #tpu.dimension_semantics<parallel>], iteration_bounds = array<i64: 2, 1>, scalar_prefetch = 0 : i64, scratch_operands = 0 : i64, tpu.core_type = #tpu.core_type<tc>, window_params = [{transform_indices = @transform_0, window_bounds = array<i64: 1, 64, 32>}, {transform_indices = @transform_1, window_bounds = array<i64: 1, 64, 32>}, {transform_indices = @transform_2, window_bounds = array<i64: 1, 64, 32>}, {pipeline_mode = #tpu.pipeline_mode<synchronous>, transform_indices = @transform_3, window_bounds = array<i64: 32, 32>}, {pipeline_mode = #tpu.pipeline_mode<synchronous>, transform_indices = @transform_4, window_bounds = array<i64: 1, 32>}, {transform_indices = @transform_5, window_bounds = array<i64: 1, 64, 32>}, {pipeline_mode = #tpu.pipeline_mode<synchronous>, transform_indices = @transform_6, window_bounds = array<i64: 1, 32>}, {pipeline_mode = #tpu.pipeline_mode<synchronous>, transform_indices = @transform_7, window_bounds = array<i64: 1, 32>}, {transform_indices = @transform_8, window_bounds = array<i64: 1, 64, 32>}]} {
    %c0 = arith.constant 0 : index
    %c0_0 = arith.constant 0 : index
    %c0_1 = arith.constant 0 : index
    %0 = vector.load %arg2[%c0, %c0_0, %c0_1] : memref<1x64x32xbf16, #tpu.memory_space<vmem>>, vector<1x64x32xbf16>
    %1 = vector.shape_cast %0 : vector<1x64x32xbf16> to vector<64x32xbf16>
    %c0_2 = arith.constant 0 : index
    %c0_3 = arith.constant 0 : index
    %c0_4 = arith.constant 0 : index
    %2 = vector.load %arg3[%c0_2, %c0_3, %c0_4] : memref<1x64x32xbf16, #tpu.memory_space<vmem>>, vector<1x64x32xbf16>
    %3 = vector.shape_cast %2 : vector<1x64x32xbf16> to vector<64x32xbf16>
    %c0_5 = arith.constant 0 : index
    %c0_6 = arith.constant 0 : index
    %c0_7 = arith.constant 0 : index
    %4 = vector.load %arg4[%c0_5, %c0_6, %c0_7] : memref<1x64x32xbf16, #tpu.memory_space<vmem>>, vector<1x64x32xbf16>
    %5 = vector.shape_cast %4 : vector<1x64x32xbf16> to vector<64x32xbf16>
    %6 = vector.extract_strided_slice %1 {offsets = [0, 0], sizes = [64, 8], strides = [1, 1]} : vector<64x32xbf16> to vector<64x8xbf16>
    %7 = vector.extract_strided_slice %3 {offsets = [0, 0], sizes = [64, 8], strides = [1, 1]} : vector<64x32xbf16> to vector<64x8xbf16>
    %cst = arith.constant dense<0.000000e+00> : vector<64x64xf32>
    %8 = tpu.matmul %6, %7, %cst {dimension_numbers = #tpu.dot_dimension_numbers<[1], [1], [0], [0], [0, 0, 1, 0], [], []>} : vector<64x8xbf16>, vector<64x8xbf16>, vector<64x64xf32> -> vector<64x64xf32>
    %cst_8 = arith.constant dense<0xFF800000> : vector<64xf32>
    %9 = vector.multi_reduction <maximumf>, %8, %cst_8 [1] : vector<64x64xf32> to vector<64xf32>
    %10 = vector.shape_cast %9 : vector<64xf32> to vector<64x1xf32>
    %11 = vector.broadcast %10 : vector<64x1xf32> to vector<64x64xf32>
    %12 = arith.subf %8, %11 : vector<64x64xf32>
    %13 = math.exp %12 : vector<64x64xf32>
    %cst_9 = arith.constant dense<0.000000e+00> : vector<64xf32>
    %14 = vector.multi_reduction <add>, %13, %cst_9 [1] : vector<64x64xf32> to vector<64xf32>
    %15 = vector.shape_cast %14 : vector<64xf32> to vector<64x1xf32>
    %16 = tpu.reciprocal %15 {approx = true} : vector<64x1xf32> -> vector<64x1xf32>
    %17 = vector.broadcast %16 : vector<64x1xf32> to vector<64x64xf32>
    %18 = arith.mulf %13, %17 : vector<64x64xf32>
    %19 = arith.truncf %18 : vector<64x64xf32> to vector<64x64xbf16>
    %20 = vector.extract_strided_slice %5 {offsets = [0, 0], sizes = [64, 8], strides = [1, 1]} : vector<64x32xbf16> to vector<64x8xbf16>
    %cst_10 = arith.constant dense<0.000000e+00> : vector<64x8xf32>
    %21 = tpu.matmul %19, %20, %cst_10 {dimension_numbers = #tpu.dot_dimension_numbers<[1], [0], [0], [1], [0, 0, 1, 1], [], []>} : vector<64x64xbf16>, vector<64x8xbf16>, vector<64x8xf32> -> vector<64x8xf32>
    %22 = vector.extract_strided_slice %1 {offsets = [0, 8], sizes = [64, 8], strides = [1, 1]} : vector<64x32xbf16> to vector<64x8xbf16>
    %23 = vector.extract_strided_slice %3 {offsets = [0, 8], sizes = [64, 8], strides = [1, 1]} : vector<64x32xbf16> to vector<64x8xbf16>
    %cst_11 = arith.constant dense<0.000000e+00> : vector<64x64xf32>
    %24 = tpu.matmul %22, %23, %cst_11 {dimension_numbers = #tpu.dot_dimension_numbers<[1], [1], [0], [0], [0, 0, 1, 0], [], []>} : vector<64x8xbf16>, vector<64x8xbf16>, vector<64x64xf32> -> vector<64x64xf32>
    %cst_12 = arith.constant dense<0xFF800000> : vector<64xf32>
    %25 = vector.multi_reduction <maximumf>, %24, %cst_12 [1] : vector<64x64xf32> to vector<64xf32>
    %26 = vector.shape_cast %25 : vector<64xf32> to vector<64x1xf32>
    %27 = vector.broadcast %26 : vector<64x1xf32> to vector<64x64xf32>
    %28 = arith.subf %24, %27 : vector<64x64xf32>
    %29 = math.exp %28 : vector<64x64xf32>
    %cst_13 = arith.constant dense<0.000000e+00> : vector<64xf32>
    %30 = vector.multi_reduction <add>, %29, %cst_13 [1] : vector<64x64xf32> to vector<64xf32>
    %31 = vector.shape_cast %30 : vector<64xf32> to vector<64x1xf32>
    %32 = tpu.reciprocal %31 {approx = true} : vector<64x1xf32> -> vector<64x1xf32>
    %33 = vector.broadcast %32 : vector<64x1xf32> to vector<64x64xf32>
    %34 = arith.mulf %29, %33 : vector<64x64xf32>
    %35 = arith.truncf %34 : vector<64x64xf32> to vector<64x64xbf16>
    %36 = vector.extract_strided_slice %5 {offsets = [0, 8], sizes = [64, 8], strides = [1, 1]} : vector<64x32xbf16> to vector<64x8xbf16>
    %cst_14 = arith.constant dense<0.000000e+00> : vector<64x8xf32>
    %37 = tpu.matmul %35, %36, %cst_14 {dimension_numbers = #tpu.dot_dimension_numbers<[1], [0], [0], [1], [0, 0, 1, 1], [], []>} : vector<64x64xbf16>, vector<64x8xbf16>, vector<64x8xf32> -> vector<64x8xf32>
    %38 = vector.extract_strided_slice %1 {offsets = [0, 16], sizes = [64, 8], strides = [1, 1]} : vector<64x32xbf16> to vector<64x8xbf16>
    %39 = vector.extract_strided_slice %3 {offsets = [0, 16], sizes = [64, 8], strides = [1, 1]} : vector<64x32xbf16> to vector<64x8xbf16>
    %cst_15 = arith.constant dense<0.000000e+00> : vector<64x64xf32>
    %40 = tpu.matmul %38, %39, %cst_15 {dimension_numbers = #tpu.dot_dimension_numbers<[1], [1], [0], [0], [0, 0, 1, 0], [], []>} : vector<64x8xbf16>, vector<64x8xbf16>, vector<64x64xf32> -> vector<64x64xf32>
    %cst_16 = arith.constant dense<0xFF800000> : vector<64xf32>
    %41 = vector.multi_reduction <maximumf>, %40, %cst_16 [1] : vector<64x64xf32> to vector<64xf32>
    %42 = vector.shape_cast %41 : vector<64xf32> to vector<64x1xf32>
    %43 = vector.broadcast %42 : vector<64x1xf32> to vector<64x64xf32>
    %44 = arith.subf %40, %43 : vector<64x64xf32>
    %45 = math.exp %44 : vector<64x64xf32>
    %cst_17 = arith.constant dense<0.000000e+00> : vector<64xf32>
    %46 = vector.multi_reduction <add>, %45, %cst_17 [1] : vector<64x64xf32> to vector<64xf32>
    %47 = vector.shape_cast %46 : vector<64xf32> to vector<64x1xf32>
    %48 = tpu.reciprocal %47 {approx = true} : vector<64x1xf32> -> vector<64x1xf32>
    %49 = vector.broadcast %48 : vector<64x1xf32> to vector<64x64xf32>
    %50 = arith.mulf %45, %49 : vector<64x64xf32>
    %51 = arith.truncf %50 : vector<64x64xf32> to vector<64x64xbf16>
    %52 = vector.extract_strided_slice %5 {offsets = [0, 16], sizes = [64, 8], strides = [1, 1]} : vector<64x32xbf16> to vector<64x8xbf16>
    %cst_18 = arith.constant dense<0.000000e+00> : vector<64x8xf32>
    %53 = tpu.matmul %51, %52, %cst_18 {dimension_numbers = #tpu.dot_dimension_numbers<[1], [0], [0], [1], [0, 0, 1, 1], [], []>} : vector<64x64xbf16>, vector<64x8xbf16>, vector<64x8xf32> -> vector<64x8xf32>
    %54 = vector.extract_strided_slice %1 {offsets = [0, 24], sizes = [64, 8], strides = [1, 1]} : vector<64x32xbf16> to vector<64x8xbf16>
    %55 = vector.extract_strided_slice %3 {offsets = [0, 24], sizes = [64, 8], strides = [1, 1]} : vector<64x32xbf16> to vector<64x8xbf16>
    %cst_19 = arith.constant dense<0.000000e+00> : vector<64x64xf32>
    %56 = tpu.matmul %54, %55, %cst_19 {dimension_numbers = #tpu.dot_dimension_numbers<[1], [1], [0], [0], [0, 0, 1, 0], [], []>} : vector<64x8xbf16>, vector<64x8xbf16>, vector<64x64xf32> -> vector<64x64xf32>
    %cst_20 = arith.constant dense<0xFF800000> : vector<64xf32>
    %57 = vector.multi_reduction <maximumf>, %56, %cst_20 [1] : vector<64x64xf32> to vector<64xf32>
    %58 = vector.shape_cast %57 : vector<64xf32> to vector<64x1xf32>
    %59 = vector.broadcast %58 : vector<64x1xf32> to vector<64x64xf32>
    %60 = arith.subf %56, %59 : vector<64x64xf32>
    %61 = math.exp %60 : vector<64x64xf32>
    %cst_21 = arith.constant dense<0.000000e+00> : vector<64xf32>
    %62 = vector.multi_reduction <add>, %61, %cst_21 [1] : vector<64x64xf32> to vector<64xf32>
    %63 = vector.shape_cast %62 : vector<64xf32> to vector<64x1xf32>
    %64 = tpu.reciprocal %63 {approx = true} : vector<64x1xf32> -> vector<64x1xf32>
    %65 = vector.broadcast %64 : vector<64x1xf32> to vector<64x64xf32>
    %66 = arith.mulf %61, %65 : vector<64x64xf32>
    %67 = arith.truncf %66 : vector<64x64xf32> to vector<64x64xbf16>
    %68 = vector.extract_strided_slice %5 {offsets = [0, 24], sizes = [64, 8], strides = [1, 1]} : vector<64x32xbf16> to vector<64x8xbf16>
    %cst_22 = arith.constant dense<0.000000e+00> : vector<64x8xf32>
    %69 = tpu.matmul %67, %68, %cst_22 {dimension_numbers = #tpu.dot_dimension_numbers<[1], [0], [0], [1], [0, 0, 1, 1], [], []>} : vector<64x64xbf16>, vector<64x8xbf16>, vector<64x8xf32> -> vector<64x8xf32>
    %70 = tpu.concatenate %21, %37, %53, %69 in 1 : vector<64x8xf32>, vector<64x8xf32>, vector<64x8xf32>, vector<64x8xf32> -> vector<64x32xf32>
    %71 = arith.truncf %70 : vector<64x32xf32> to vector<64x32xbf16>
    %c0_23 = arith.constant 0 : index
    %c0_24 = arith.constant 0 : index
    %72 = vector.load %arg5[%c0_23, %c0_24] : memref<32x32xbf16, #tpu.memory_space<vmem>>, vector<32x32xbf16>
    %cst_25 = arith.constant dense<0.000000e+00> : vector<64x32xf32>
    %73 = tpu.matmul %71, %72, %cst_25 {dimension_numbers = #tpu.dot_dimension_numbers<[1], [0], [0], [1], [0, 0, 1, 1], [], []>} : vector<64x32xbf16>, vector<32x32xbf16>, vector<64x32xf32> -> vector<64x32xf32>
    %c0_26 = arith.constant 0 : index
    %c0_27 = arith.constant 0 : index
    %74 = vector.load %arg6[%c0_26, %c0_27] : memref<1x32xf32, #tpu.memory_space<vmem>>, vector<1x32xf32>
    %75 = vector.broadcast %74 : vector<1x32xf32> to vector<64x32xf32>
    %76 = arith.addf %73, %75 : vector<64x32xf32>
    %c0_28 = arith.constant 0 : index
    %c0_29 = arith.constant 0 : index
    %c0_30 = arith.constant 0 : index
    %77 = vector.load %arg7[%c0_28, %c0_29, %c0_30] : memref<1x64x32xf32, #tpu.memory_space<vmem>>, vector<1x64x32xf32>
    %78 = vector.shape_cast %77 : vector<1x64x32xf32> to vector<64x32xf32>
    %79 = arith.addf %78, %76 : vector<64x32xf32>
    %cst_31 = arith.constant dense<0.000000e+00> : vector<64xf32>
    %80 = vector.multi_reduction <add>, %79, %cst_31 [1] : vector<64x32xf32> to vector<64xf32>
    %81 = vector.shape_cast %80 : vector<64xf32> to vector<64x1xf32>
    %cst_32 = arith.constant 3.200000e+01 : f32
    %82 = vector.broadcast %cst_32 : f32 to vector<64x1xf32>
    %83 = arith.divf %81, %82 : vector<64x1xf32>
    %84 = vector.broadcast %83 : vector<64x1xf32> to vector<64x32xf32>
    %85 = arith.subf %79, %84 : vector<64x32xf32>
    %86 = arith.mulf %85, %85 : vector<64x32xf32>
    %cst_33 = arith.constant dense<0.000000e+00> : vector<64xf32>
    %87 = vector.multi_reduction <add>, %86, %cst_33 [1] : vector<64x32xf32> to vector<64xf32>
    %88 = vector.shape_cast %87 : vector<64xf32> to vector<64x1xf32>
    %cst_34 = arith.constant 3.200000e+01 : f32
    %89 = vector.broadcast %cst_34 : f32 to vector<64x1xf32>
    %90 = arith.divf %88, %89 : vector<64x1xf32>
    %91 = vector.broadcast %83 : vector<64x1xf32> to vector<64x32xf32>
    %92 = arith.subf %79, %91 : vector<64x32xf32>
    %cst_35 = arith.constant 9.99999974E-6 : f32
    %93 = vector.broadcast %cst_35 : f32 to vector<64x1xf32>
    %94 = arith.addf %90, %93 : vector<64x1xf32>
    %95 = math.rsqrt %94 : vector<64x1xf32>
    %96 = vector.broadcast %95 : vector<64x1xf32> to vector<64x32xf32>
    %97 = arith.mulf %92, %96 : vector<64x32xf32>
    %c0_36 = arith.constant 0 : index
    %c0_37 = arith.constant 0 : index
    %98 = vector.load %arg8[%c0_36, %c0_37] : memref<1x32xf32, #tpu.memory_space<vmem>>, vector<1x32xf32>
    %99 = vector.broadcast %98 : vector<1x32xf32> to vector<64x32xf32>
    %100 = arith.mulf %97, %99 : vector<64x32xf32>
    %c0_38 = arith.constant 0 : index
    %c0_39 = arith.constant 0 : index
    %101 = vector.load %arg9[%c0_38, %c0_39] : memref<1x32xf32, #tpu.memory_space<vmem>>, vector<1x32xf32>
    %102 = vector.broadcast %101 : vector<1x32xf32> to vector<64x32xf32>
    %103 = arith.addf %100, %102 : vector<64x32xf32>
    %c0_40 = arith.constant 0 : index
    %c0_41 = arith.constant 0 : index
    %c0_42 = arith.constant 0 : index
    %104 = vector.load %arg10[%c0_40, %c0_41, %c0_42] : memref<1x64x32xf32, #tpu.memory_space<vmem>>, vector<1x64x32xf32>
    %105 = vector.shape_cast %104 : vector<1x64x32xf32> to vector<64x32xf32>
    %106 = vector.shape_cast %103 : vector<64x32xf32> to vector<1x64x32xf32>
    tpu.vector_store %arg10[%c0_40, %c0_41, %c0_42], %106 {strides = array<i32>} : memref<1x64x32xf32, #tpu.memory_space<vmem>>, vector<1x64x32xf32>,
    return
  }
  func.func @transform_0(%arg0: i32, %arg1: i32) -> (i32, i32, i32) {
    %c0_i32 = arith.constant 0 : i32
    %c0_i32_0 = arith.constant 0 : i32
    return %arg0, %arg1, %c0_i32 : i32, i32, i32
  }
  func.func @transform_1(%arg0: i32, %arg1: i32) -> (i32, i32, i32) {
    %c0_i32 = arith.constant 0 : i32
    %c0_i32_0 = arith.constant 0 : i32
    %c0_i32_1 = arith.constant 0 : i32
    return %arg0, %c0_i32, %c0_i32_0 : i32, i32, i32
  }
  func.func @transform_2(%arg0: i32, %arg1: i32) -> (i32, i32, i32) {
    %c0_i32 = arith.constant 0 : i32
    %c0_i32_0 = arith.constant 0 : i32
    %c0_i32_1 = arith.constant 0 : i32
    return %arg0, %c0_i32, %c0_i32_0 : i32, i32, i32
  }
  func.func @transform_3(%arg0: i32, %arg1: i32) -> (i32, i32) {
    %c0_i32 = arith.constant 0 : i32
    %c0_i32_0 = arith.constant 0 : i32
    %c0_i32_1 = arith.constant 0 : i32
    return %c0_i32, %c0_i32_0 : i32, i32
  }
  func.func @transform_4(%arg0: i32, %arg1: i32) -> (i32, i32) {
    %c0_i32 = arith.constant 0 : i32
    %c0_i32_0 = arith.constant 0 : i32
    %c0_i32_1 = arith.constant 0 : i32
    return %c0_i32, %c0_i32_0 : i32, i32
  }
  func.func @transform_5(%arg0: i32, %arg1: i32) -> (i32, i32, i32) {
    %c0_i32 = arith.constant 0 : i32
    %c0_i32_0 = arith.constant 0 : i32
    return %arg0, %arg1, %c0_i32 : i32, i32, i32
  }
  func.func @transform_6(%arg0: i32, %arg1: i32) -> (i32, i32) {
    %c0_i32 = arith.constant 0 : i32
    %c0_i32_0 = arith.constant 0 : i32
    %c0_i32_1 = arith.constant 0 : i32
    return %c0_i32, %c0_i32_0 : i32, i32
  }
  func.func @transform_7(%arg0: i32, %arg1: i32) -> (i32, i32) {
    %c0_i32 = arith.constant 0 : i32
    %c0_i32_0 = arith.constant 0 : i32
    %c0_i32_1 = arith.constant 0 : i32
    return %c0_i32, %c0_i32_0 : i32, i32
  }
  func.func @transform_8(%arg0: i32, %arg1: i32) -> (i32, i32, i32) {
    %c0_i32 = arith.constant 0 : i32
    %c0_i32_0 = arith.constant 0 : i32
    return %arg0, %arg1, %c0_i32 : i32, i32, i32
  }
}

module attributes {stable_mosaic.version = 11 : i64} {
  func.func @_proj_kernel(%arg0: i32, %arg1: memref<128x32xf32, #tpu.memory_space<vmem>>, %arg2: memref<32x64xbf16, #tpu.memory_space<vmem>>, %arg3: memref<1x64xf32, #tpu.memory_space<vmem>>, %arg4: memref<128x32xbf16, #tpu.memory_space<vmem>>, %arg5: memref<128x32xbf16, #tpu.memory_space<vmem>>) attributes {dimension_semantics = [#tpu.dimension_semantics<parallel>], iteration_bounds = array<i64: 1>, scalar_prefetch = 0 : i64, scratch_operands = 0 : i64, tpu.core_type = #tpu.core_type<tc>, window_params = [{transform_indices = @transform_0, window_bounds = array<i64: 128, 32>}, {pipeline_mode = #tpu.pipeline_mode<synchronous>, transform_indices = @transform_1, window_bounds = array<i64: 32, 64>}, {pipeline_mode = #tpu.pipeline_mode<synchronous>, transform_indices = @transform_2, window_bounds = array<i64: 1, 64>}, {transform_indices = @transform_3, window_bounds = array<i64: 128, 32>}, {transform_indices = @transform_4, window_bounds = array<i64: 128, 32>}]} {
    %c0 = arith.constant 0 : index
    %c0_0 = arith.constant 0 : index
    %0 = vector.load %arg1[%c0, %c0_0] : memref<128x32xf32, #tpu.memory_space<vmem>>, vector<128x32xf32>
    %1 = arith.truncf %0 : vector<128x32xf32> to vector<128x32xbf16>
    %c0_1 = arith.constant 0 : index
    %c0_2 = arith.constant 0 : index
    %2 = vector.load %arg2[%c0_1, %c0_2] : memref<32x64xbf16, #tpu.memory_space<vmem>>, vector<32x64xbf16>
    %cst = arith.constant dense<0.000000e+00> : vector<128x64xf32>
    %3 = tpu.matmul %1, %2, %cst {dimension_numbers = #tpu.dot_dimension_numbers<[1], [0], [0], [1], [0, 0, 1, 1], [], []>} : vector<128x32xbf16>, vector<32x64xbf16>, vector<128x64xf32> -> vector<128x64xf32>
    %c0_3 = arith.constant 0 : index
    %c0_4 = arith.constant 0 : index
    %4 = vector.load %arg3[%c0_3, %c0_4] : memref<1x64xf32, #tpu.memory_space<vmem>>, vector<1x64xf32>
    %5 = vector.broadcast %4 : vector<1x64xf32> to vector<128x64xf32>
    %6 = arith.addf %3, %5 : vector<128x64xf32>
    %7 = vector.extract_strided_slice %6 {offsets = [0, 0], sizes = [128, 32], strides = [1, 1]} : vector<128x64xf32> to vector<128x32xf32>
    %8 = arith.truncf %7 : vector<128x32xf32> to vector<128x32xbf16>
    %c0_5 = arith.constant 0 : index
    %c0_6 = arith.constant 0 : index
    %9 = vector.load %arg4[%c0_5, %c0_6] : memref<128x32xbf16, #tpu.memory_space<vmem>>, vector<128x32xbf16>
    tpu.vector_store %arg4[%c0_5, %c0_6], %8 {strides = array<i32>} : memref<128x32xbf16, #tpu.memory_space<vmem>>, vector<128x32xbf16>,
    %10 = vector.extract_strided_slice %6 {offsets = [0, 32], sizes = [128, 32], strides = [1, 1]} : vector<128x64xf32> to vector<128x32xf32>
    %11 = arith.truncf %10 : vector<128x32xf32> to vector<128x32xbf16>
    %c0_7 = arith.constant 0 : index
    %c0_8 = arith.constant 0 : index
    %12 = vector.load %arg5[%c0_7, %c0_8] : memref<128x32xbf16, #tpu.memory_space<vmem>>, vector<128x32xbf16>
    tpu.vector_store %arg5[%c0_7, %c0_8], %11 {strides = array<i32>} : memref<128x32xbf16, #tpu.memory_space<vmem>>, vector<128x32xbf16>,
    return
  }
  func.func @transform_0(%arg0: i32) -> (i32, i32) {
    %c0_i32 = arith.constant 0 : i32
    %c0_i32_0 = arith.constant 0 : i32
    return %arg0, %c0_i32 : i32, i32
  }
  func.func @transform_1(%arg0: i32) -> (i32, i32) {
    %c0_i32 = arith.constant 0 : i32
    %c0_i32_0 = arith.constant 0 : i32
    %c0_i32_1 = arith.constant 0 : i32
    return %c0_i32, %c0_i32_0 : i32, i32
  }
  func.func @transform_2(%arg0: i32) -> (i32, i32) {
    %c0_i32 = arith.constant 0 : i32
    %c0_i32_0 = arith.constant 0 : i32
    %c0_i32_1 = arith.constant 0 : i32
    return %c0_i32, %c0_i32_0 : i32, i32
  }
  func.func @transform_3(%arg0: i32) -> (i32, i32) {
    %c0_i32 = arith.constant 0 : i32
    %c0_i32_0 = arith.constant 0 : i32
    return %arg0, %c0_i32 : i32, i32
  }
  func.func @transform_4(%arg0: i32) -> (i32, i32) {
    %c0_i32 = arith.constant 0 : i32
    %c0_i32_0 = arith.constant 0 : i32
    return %arg0, %c0_i32 : i32, i32
  }
}

module attributes {stable_mosaic.version = 11 : i64} {
  func.func @_ffn_kernel(%arg0: i32, %arg1: memref<128x32xf32, #tpu.memory_space<vmem>>, %arg2: memref<32x64xbf16, #tpu.memory_space<vmem>>, %arg3: memref<1x64xf32, #tpu.memory_space<vmem>>, %arg4: memref<64x32xbf16, #tpu.memory_space<vmem>>, %arg5: memref<1x32xf32, #tpu.memory_space<vmem>>, %arg6: memref<1x32xf32, #tpu.memory_space<vmem>>, %arg7: memref<1x32xf32, #tpu.memory_space<vmem>>, %arg8: memref<128x32xf32, #tpu.memory_space<vmem>>) attributes {dimension_semantics = [#tpu.dimension_semantics<parallel>], iteration_bounds = array<i64: 1>, scalar_prefetch = 0 : i64, scratch_operands = 0 : i64, tpu.core_type = #tpu.core_type<tc>, window_params = [{transform_indices = @transform_0, window_bounds = array<i64: 128, 32>}, {pipeline_mode = #tpu.pipeline_mode<synchronous>, transform_indices = @transform_1, window_bounds = array<i64: 32, 64>}, {pipeline_mode = #tpu.pipeline_mode<synchronous>, transform_indices = @transform_2, window_bounds = array<i64: 1, 64>}, {pipeline_mode = #tpu.pipeline_mode<synchronous>, transform_indices = @transform_3, window_bounds = array<i64: 64, 32>}, {pipeline_mode = #tpu.pipeline_mode<synchronous>, transform_indices = @transform_4, window_bounds = array<i64: 1, 32>}, {pipeline_mode = #tpu.pipeline_mode<synchronous>, transform_indices = @transform_5, window_bounds = array<i64: 1, 32>}, {pipeline_mode = #tpu.pipeline_mode<synchronous>, transform_indices = @transform_6, window_bounds = array<i64: 1, 32>}, {transform_indices = @transform_7, window_bounds = array<i64: 128, 32>}]} {
    %c0 = arith.constant 0 : index
    %c0_0 = arith.constant 0 : index
    %0 = vector.load %arg1[%c0, %c0_0] : memref<128x32xf32, #tpu.memory_space<vmem>>, vector<128x32xf32>
    %1 = arith.truncf %0 : vector<128x32xf32> to vector<128x32xbf16>
    %c0_1 = arith.constant 0 : index
    %c0_2 = arith.constant 0 : index
    %2 = vector.load %arg2[%c0_1, %c0_2] : memref<32x64xbf16, #tpu.memory_space<vmem>>, vector<32x64xbf16>
    %cst = arith.constant dense<0.000000e+00> : vector<128x64xf32>
    %3 = tpu.matmul %1, %2, %cst {dimension_numbers = #tpu.dot_dimension_numbers<[1], [0], [0], [1], [0, 0, 1, 1], [], []>} : vector<128x32xbf16>, vector<32x64xbf16>, vector<128x64xf32> -> vector<128x64xf32>
    %c0_3 = arith.constant 0 : index
    %c0_4 = arith.constant 0 : index
    %4 = vector.load %arg3[%c0_3, %c0_4] : memref<1x64xf32, #tpu.memory_space<vmem>>, vector<1x64xf32>
    %5 = vector.broadcast %4 : vector<1x64xf32> to vector<128x64xf32>
    %6 = arith.addf %3, %5 : vector<128x64xf32>
    %cst_5 = arith.constant 0.000000e+00 : f32
    %7 = vector.broadcast %cst_5 : f32 to vector<128x64xf32>
    %8 = arith.maximumf %6, %7 : vector<128x64xf32>
    %9 = arith.truncf %8 : vector<128x64xf32> to vector<128x64xbf16>
    %c0_6 = arith.constant 0 : index
    %c0_7 = arith.constant 0 : index
    %10 = vector.load %arg4[%c0_6, %c0_7] : memref<64x32xbf16, #tpu.memory_space<vmem>>, vector<64x32xbf16>
    %cst_8 = arith.constant dense<0.000000e+00> : vector<128x32xf32>
    %11 = tpu.matmul %9, %10, %cst_8 {dimension_numbers = #tpu.dot_dimension_numbers<[1], [0], [0], [1], [0, 0, 1, 1], [], []>} : vector<128x64xbf16>, vector<64x32xbf16>, vector<128x32xf32> -> vector<128x32xf32>
    %c0_9 = arith.constant 0 : index
    %c0_10 = arith.constant 0 : index
    %12 = vector.load %arg5[%c0_9, %c0_10] : memref<1x32xf32, #tpu.memory_space<vmem>>, vector<1x32xf32>
    %13 = vector.broadcast %12 : vector<1x32xf32> to vector<128x32xf32>
    %14 = arith.addf %11, %13 : vector<128x32xf32>
    %15 = arith.addf %0, %14 : vector<128x32xf32>
    %cst_11 = arith.constant dense<0.000000e+00> : vector<128xf32>
    %16 = vector.multi_reduction <add>, %15, %cst_11 [1] : vector<128x32xf32> to vector<128xf32>
    %17 = vector.shape_cast %16 : vector<128xf32> to vector<128x1xf32>
    %cst_12 = arith.constant 3.200000e+01 : f32
    %18 = vector.broadcast %cst_12 : f32 to vector<128x1xf32>
    %19 = arith.divf %17, %18 : vector<128x1xf32>
    %20 = vector.broadcast %19 : vector<128x1xf32> to vector<128x32xf32>
    %21 = arith.subf %15, %20 : vector<128x32xf32>
    %22 = arith.mulf %21, %21 : vector<128x32xf32>
    %cst_13 = arith.constant dense<0.000000e+00> : vector<128xf32>
    %23 = vector.multi_reduction <add>, %22, %cst_13 [1] : vector<128x32xf32> to vector<128xf32>
    %24 = vector.shape_cast %23 : vector<128xf32> to vector<128x1xf32>
    %cst_14 = arith.constant 3.200000e+01 : f32
    %25 = vector.broadcast %cst_14 : f32 to vector<128x1xf32>
    %26 = arith.divf %24, %25 : vector<128x1xf32>
    %27 = vector.broadcast %19 : vector<128x1xf32> to vector<128x32xf32>
    %28 = arith.subf %15, %27 : vector<128x32xf32>
    %cst_15 = arith.constant 9.99999974E-6 : f32
    %29 = vector.broadcast %cst_15 : f32 to vector<128x1xf32>
    %30 = arith.addf %26, %29 : vector<128x1xf32>
    %31 = math.rsqrt %30 : vector<128x1xf32>
    %32 = vector.broadcast %31 : vector<128x1xf32> to vector<128x32xf32>
    %33 = arith.mulf %28, %32 : vector<128x32xf32>
    %c0_16 = arith.constant 0 : index
    %c0_17 = arith.constant 0 : index
    %34 = vector.load %arg6[%c0_16, %c0_17] : memref<1x32xf32, #tpu.memory_space<vmem>>, vector<1x32xf32>
    %35 = vector.broadcast %34 : vector<1x32xf32> to vector<128x32xf32>
    %36 = arith.mulf %33, %35 : vector<128x32xf32>
    %c0_18 = arith.constant 0 : index
    %c0_19 = arith.constant 0 : index
    %37 = vector.load %arg7[%c0_18, %c0_19] : memref<1x32xf32, #tpu.memory_space<vmem>>, vector<1x32xf32>
    %38 = vector.broadcast %37 : vector<1x32xf32> to vector<128x32xf32>
    %39 = arith.addf %36, %38 : vector<128x32xf32>
    %c0_20 = arith.constant 0 : index
    %c0_21 = arith.constant 0 : index
    %40 = vector.load %arg8[%c0_20, %c0_21] : memref<128x32xf32, #tpu.memory_space<vmem>>, vector<128x32xf32>
    tpu.vector_store %arg8[%c0_20, %c0_21], %39 {strides = array<i32>} : memref<128x32xf32, #tpu.memory_space<vmem>>, vector<128x32xf32>,
    return
  }
  func.func @transform_0(%arg0: i32) -> (i32, i32) {
    %c0_i32 = arith.constant 0 : i32
    %c0_i32_0 = arith.constant 0 : i32
    return %arg0, %c0_i32 : i32, i32
  }
  func.func @transform_1(%arg0: i32) -> (i32, i32) {
    %c0_i32 = arith.constant 0 : i32
    %c0_i32_0 = arith.constant 0 : i32
    %c0_i32_1 = arith.constant 0 : i32
    return %c0_i32, %c0_i32_0 : i32, i32
  }
  func.func @transform_2(%arg0: i32) -> (i32, i32) {
    %c0_i32 = arith.constant 0 : i32
    %c0_i32_0 = arith.constant 0 : i32
    %c0_i32_1 = arith.constant 0 : i32
    return %c0_i32, %c0_i32_0 : i32, i32
  }
  func.func @transform_3(%arg0: i32) -> (i32, i32) {
    %c0_i32 = arith.constant 0 : i32
    %c0_i32_0 = arith.constant 0 : i32
    %c0_i32_1 = arith.constant 0 : i32
    return %c0_i32, %c0_i32_0 : i32, i32
  }
  func.func @transform_4(%arg0: i32) -> (i32, i32) {
    %c0_i32 = arith.constant 0 : i32
    %c0_i32_0 = arith.constant 0 : i32
    %c0_i32_1 = arith.constant 0 : i32
    return %c0_i32, %c0_i32_0 : i32, i32
  }
  func.func @transform_5(%arg0: i32) -> (i32, i32) {
    %c0_i32 = arith.constant 0 : i32
    %c0_i32_0 = arith.constant 0 : i32
    %c0_i32_1 = arith.constant 0 : i32
    return %c0_i32, %c0_i32_0 : i32, i32
  }
  func.func @transform_6(%arg0: i32) -> (i32, i32) {
    %c0_i32 = arith.constant 0 : i32
    %c0_i32_0 = arith.constant 0 : i32
    %c0_i32_1 = arith.constant 0 : i32
    return %c0_i32, %c0_i32_0 : i32, i32
  }
  func.func @transform_7(%arg0: i32) -> (i32, i32) {
    %c0_i32 = arith.constant 0 : i32
    %c0_i32_0 = arith.constant 0 : i32
    return %arg0, %c0_i32 : i32, i32
  }
}

module attributes {stable_mosaic.version = 11 : i64} {
  func.func @_proj_kernel(%arg0: i32, %arg1: memref<16x32xf32, #tpu.memory_space<vmem>>, %arg2: memref<16x32xf32, #tpu.memory_space<vmem>>, %arg3: memref<32x64xbf16, #tpu.memory_space<vmem>>, %arg4: memref<1x64xf32, #tpu.memory_space<vmem>>, %arg5: memref<16x32xbf16, #tpu.memory_space<vmem>>, %arg6: memref<16x32xbf16, #tpu.memory_space<vmem>>) attributes {dimension_semantics = [#tpu.dimension_semantics<parallel>], iteration_bounds = array<i64: 1>, scalar_prefetch = 0 : i64, scratch_operands = 0 : i64, tpu.core_type = #tpu.core_type<tc>, window_params = [{transform_indices = @transform_0, window_bounds = array<i64: 16, 32>}, {transform_indices = @transform_1, window_bounds = array<i64: 16, 32>}, {pipeline_mode = #tpu.pipeline_mode<synchronous>, transform_indices = @transform_2, window_bounds = array<i64: 32, 64>}, {pipeline_mode = #tpu.pipeline_mode<synchronous>, transform_indices = @transform_3, window_bounds = array<i64: 1, 64>}, {transform_indices = @transform_4, window_bounds = array<i64: 16, 32>}, {transform_indices = @transform_5, window_bounds = array<i64: 16, 32>}]} {
    %c0 = arith.constant 0 : index
    %c0_0 = arith.constant 0 : index
    %0 = vector.load %arg1[%c0, %c0_0] : memref<16x32xf32, #tpu.memory_space<vmem>>, vector<16x32xf32>
    %c0_1 = arith.constant 0 : index
    %c0_2 = arith.constant 0 : index
    %1 = vector.load %arg2[%c0_1, %c0_2] : memref<16x32xf32, #tpu.memory_space<vmem>>, vector<16x32xf32>
    %2 = arith.addf %0, %1 : vector<16x32xf32>
    %3 = arith.truncf %2 : vector<16x32xf32> to vector<16x32xbf16>
    %c0_3 = arith.constant 0 : index
    %c0_4 = arith.constant 0 : index
    %4 = vector.load %arg3[%c0_3, %c0_4] : memref<32x64xbf16, #tpu.memory_space<vmem>>, vector<32x64xbf16>
    %cst = arith.constant dense<0.000000e+00> : vector<16x64xf32>
    %5 = tpu.matmul %3, %4, %cst {dimension_numbers = #tpu.dot_dimension_numbers<[1], [0], [0], [1], [0, 0, 1, 1], [], []>} : vector<16x32xbf16>, vector<32x64xbf16>, vector<16x64xf32> -> vector<16x64xf32>
    %c0_5 = arith.constant 0 : index
    %c0_6 = arith.constant 0 : index
    %6 = vector.load %arg4[%c0_5, %c0_6] : memref<1x64xf32, #tpu.memory_space<vmem>>, vector<1x64xf32>
    %7 = vector.broadcast %6 : vector<1x64xf32> to vector<16x64xf32>
    %8 = arith.addf %5, %7 : vector<16x64xf32>
    %9 = vector.extract_strided_slice %8 {offsets = [0, 0], sizes = [16, 32], strides = [1, 1]} : vector<16x64xf32> to vector<16x32xf32>
    %10 = arith.truncf %9 : vector<16x32xf32> to vector<16x32xbf16>
    %c0_7 = arith.constant 0 : index
    %c0_8 = arith.constant 0 : index
    %11 = vector.load %arg5[%c0_7, %c0_8] : memref<16x32xbf16, #tpu.memory_space<vmem>>, vector<16x32xbf16>
    tpu.vector_store %arg5[%c0_7, %c0_8], %10 {strides = array<i32>} : memref<16x32xbf16, #tpu.memory_space<vmem>>, vector<16x32xbf16>,
    %12 = vector.extract_strided_slice %8 {offsets = [0, 32], sizes = [16, 32], strides = [1, 1]} : vector<16x64xf32> to vector<16x32xf32>
    %13 = arith.truncf %12 : vector<16x32xf32> to vector<16x32xbf16>
    %c0_9 = arith.constant 0 : index
    %c0_10 = arith.constant 0 : index
    %14 = vector.load %arg6[%c0_9, %c0_10] : memref<16x32xbf16, #tpu.memory_space<vmem>>, vector<16x32xbf16>
    tpu.vector_store %arg6[%c0_9, %c0_10], %13 {strides = array<i32>} : memref<16x32xbf16, #tpu.memory_space<vmem>>, vector<16x32xbf16>,
    return
  }
  func.func @transform_0(%arg0: i32) -> (i32, i32) {
    %c0_i32 = arith.constant 0 : i32
    %c0_i32_0 = arith.constant 0 : i32
    return %arg0, %c0_i32 : i32, i32
  }
  func.func @transform_1(%arg0: i32) -> (i32, i32) {
    %c0_i32 = arith.constant 0 : i32
    %c0_i32_0 = arith.constant 0 : i32
    return %arg0, %c0_i32 : i32, i32
  }
  func.func @transform_2(%arg0: i32) -> (i32, i32) {
    %c0_i32 = arith.constant 0 : i32
    %c0_i32_0 = arith.constant 0 : i32
    %c0_i32_1 = arith.constant 0 : i32
    return %c0_i32, %c0_i32_0 : i32, i32
  }
  func.func @transform_3(%arg0: i32) -> (i32, i32) {
    %c0_i32 = arith.constant 0 : i32
    %c0_i32_0 = arith.constant 0 : i32
    %c0_i32_1 = arith.constant 0 : i32
    return %c0_i32, %c0_i32_0 : i32, i32
  }
  func.func @transform_4(%arg0: i32) -> (i32, i32) {
    %c0_i32 = arith.constant 0 : i32
    %c0_i32_0 = arith.constant 0 : i32
    return %arg0, %c0_i32 : i32, i32
  }
  func.func @transform_5(%arg0: i32) -> (i32, i32) {
    %c0_i32 = arith.constant 0 : i32
    %c0_i32_0 = arith.constant 0 : i32
    return %arg0, %c0_i32 : i32, i32
  }
}

module attributes {stable_mosaic.version = 11 : i64} {
  func.func @_proj_kernel(%arg0: i32, %arg1: memref<16x32xf32, #tpu.memory_space<vmem>>, %arg2: memref<32x32xbf16, #tpu.memory_space<vmem>>, %arg3: memref<1x32xf32, #tpu.memory_space<vmem>>, %arg4: memref<16x32xbf16, #tpu.memory_space<vmem>>) attributes {dimension_semantics = [#tpu.dimension_semantics<parallel>], iteration_bounds = array<i64: 1>, scalar_prefetch = 0 : i64, scratch_operands = 0 : i64, tpu.core_type = #tpu.core_type<tc>, window_params = [{transform_indices = @transform_0, window_bounds = array<i64: 16, 32>}, {pipeline_mode = #tpu.pipeline_mode<synchronous>, transform_indices = @transform_1, window_bounds = array<i64: 32, 32>}, {pipeline_mode = #tpu.pipeline_mode<synchronous>, transform_indices = @transform_2, window_bounds = array<i64: 1, 32>}, {transform_indices = @transform_3, window_bounds = array<i64: 16, 32>}]} {
    %c0 = arith.constant 0 : index
    %c0_0 = arith.constant 0 : index
    %0 = vector.load %arg1[%c0, %c0_0] : memref<16x32xf32, #tpu.memory_space<vmem>>, vector<16x32xf32>
    %1 = arith.truncf %0 : vector<16x32xf32> to vector<16x32xbf16>
    %c0_1 = arith.constant 0 : index
    %c0_2 = arith.constant 0 : index
    %2 = vector.load %arg2[%c0_1, %c0_2] : memref<32x32xbf16, #tpu.memory_space<vmem>>, vector<32x32xbf16>
    %cst = arith.constant dense<0.000000e+00> : vector<16x32xf32>
    %3 = tpu.matmul %1, %2, %cst {dimension_numbers = #tpu.dot_dimension_numbers<[1], [0], [0], [1], [0, 0, 1, 1], [], []>} : vector<16x32xbf16>, vector<32x32xbf16>, vector<16x32xf32> -> vector<16x32xf32>
    %c0_3 = arith.constant 0 : index
    %c0_4 = arith.constant 0 : index
    %4 = vector.load %arg3[%c0_3, %c0_4] : memref<1x32xf32, #tpu.memory_space<vmem>>, vector<1x32xf32>
    %5 = vector.broadcast %4 : vector<1x32xf32> to vector<16x32xf32>
    %6 = arith.addf %3, %5 : vector<16x32xf32>
    %7 = arith.truncf %6 : vector<16x32xf32> to vector<16x32xbf16>
    %c0_5 = arith.constant 0 : index
    %c0_6 = arith.constant 0 : index
    %8 = vector.load %arg4[%c0_5, %c0_6] : memref<16x32xbf16, #tpu.memory_space<vmem>>, vector<16x32xbf16>
    tpu.vector_store %arg4[%c0_5, %c0_6], %7 {strides = array<i32>} : memref<16x32xbf16, #tpu.memory_space<vmem>>, vector<16x32xbf16>,
    return
  }
  func.func @transform_0(%arg0: i32) -> (i32, i32) {
    %c0_i32 = arith.constant 0 : i32
    %c0_i32_0 = arith.constant 0 : i32
    return %arg0, %c0_i32 : i32, i32
  }
  func.func @transform_1(%arg0: i32) -> (i32, i32) {
    %c0_i32 = arith.constant 0 : i32
    %c0_i32_0 = arith.constant 0 : i32
    %c0_i32_1 = arith.constant 0 : i32
    return %c0_i32, %c0_i32_0 : i32, i32
  }
  func.func @transform_2(%arg0: i32) -> (i32, i32) {
    %c0_i32 = arith.constant 0 : i32
    %c0_i32_0 = arith.constant 0 : i32
    %c0_i32_1 = arith.constant 0 : i32
    return %c0_i32, %c0_i32_0 : i32, i32
  }
  func.func @transform_3(%arg0: i32) -> (i32, i32) {
    %c0_i32 = arith.constant 0 : i32
    %c0_i32_0 = arith.constant 0 : i32
    return %arg0, %c0_i32 : i32, i32
  }
}

module attributes {stable_mosaic.version = 11 : i64} {
  func.func @_mha_kernel(%arg0: i32, %arg1: i32, %arg2: memref<1x8x32xbf16, #tpu.memory_space<vmem>>, %arg3: memref<1x8x32xbf16, #tpu.memory_space<vmem>>, %arg4: memref<1x8x32xbf16, #tpu.memory_space<vmem>>, %arg5: memref<32x32xbf16, #tpu.memory_space<vmem>>, %arg6: memref<1x32xf32, #tpu.memory_space<vmem>>, %arg7: memref<1x8x32xf32, #tpu.memory_space<vmem>>, %arg8: memref<1x32xf32, #tpu.memory_space<vmem>>, %arg9: memref<1x32xf32, #tpu.memory_space<vmem>>, %arg10: memref<1x8x32xf32, #tpu.memory_space<vmem>>) attributes {dimension_semantics = [#tpu.dimension_semantics<parallel>, #tpu.dimension_semantics<parallel>], iteration_bounds = array<i64: 2, 1>, scalar_prefetch = 0 : i64, scratch_operands = 0 : i64, tpu.core_type = #tpu.core_type<tc>, window_params = [{transform_indices = @transform_0, window_bounds = array<i64: 1, 8, 32>}, {transform_indices = @transform_1, window_bounds = array<i64: 1, 8, 32>}, {transform_indices = @transform_2, window_bounds = array<i64: 1, 8, 32>}, {pipeline_mode = #tpu.pipeline_mode<synchronous>, transform_indices = @transform_3, window_bounds = array<i64: 32, 32>}, {pipeline_mode = #tpu.pipeline_mode<synchronous>, transform_indices = @transform_4, window_bounds = array<i64: 1, 32>}, {transform_indices = @transform_5, window_bounds = array<i64: 1, 8, 32>}, {pipeline_mode = #tpu.pipeline_mode<synchronous>, transform_indices = @transform_6, window_bounds = array<i64: 1, 32>}, {pipeline_mode = #tpu.pipeline_mode<synchronous>, transform_indices = @transform_7, window_bounds = array<i64: 1, 32>}, {transform_indices = @transform_8, window_bounds = array<i64: 1, 8, 32>}]} {
    %c0 = arith.constant 0 : index
    %c0_0 = arith.constant 0 : index
    %c0_1 = arith.constant 0 : index
    %0 = vector.load %arg2[%c0, %c0_0, %c0_1] : memref<1x8x32xbf16, #tpu.memory_space<vmem>>, vector<1x8x32xbf16>
    %1 = vector.shape_cast %0 : vector<1x8x32xbf16> to vector<8x32xbf16>
    %c0_2 = arith.constant 0 : index
    %c0_3 = arith.constant 0 : index
    %c0_4 = arith.constant 0 : index
    %2 = vector.load %arg3[%c0_2, %c0_3, %c0_4] : memref<1x8x32xbf16, #tpu.memory_space<vmem>>, vector<1x8x32xbf16>
    %3 = vector.shape_cast %2 : vector<1x8x32xbf16> to vector<8x32xbf16>
    %c0_5 = arith.constant 0 : index
    %c0_6 = arith.constant 0 : index
    %c0_7 = arith.constant 0 : index
    %4 = vector.load %arg4[%c0_5, %c0_6, %c0_7] : memref<1x8x32xbf16, #tpu.memory_space<vmem>>, vector<1x8x32xbf16>
    %5 = vector.shape_cast %4 : vector<1x8x32xbf16> to vector<8x32xbf16>
    %6 = vector.extract_strided_slice %1 {offsets = [0, 0], sizes = [8, 8], strides = [1, 1]} : vector<8x32xbf16> to vector<8x8xbf16>
    %7 = vector.extract_strided_slice %3 {offsets = [0, 0], sizes = [8, 8], strides = [1, 1]} : vector<8x32xbf16> to vector<8x8xbf16>
    %cst = arith.constant dense<0.000000e+00> : vector<8x8xf32>
    %8 = tpu.matmul %6, %7, %cst {dimension_numbers = #tpu.dot_dimension_numbers<[1], [1], [0], [0], [0, 0, 1, 0], [], []>} : vector<8x8xbf16>, vector<8x8xbf16>, vector<8x8xf32> -> vector<8x8xf32>
    %cst_8 = arith.constant dense<0xFF800000> : vector<8xf32>
    %9 = vector.multi_reduction <maximumf>, %8, %cst_8 [1] : vector<8x8xf32> to vector<8xf32>
    %10 = vector.shape_cast %9 : vector<8xf32> to vector<8x1xf32>
    %11 = vector.broadcast %10 : vector<8x1xf32> to vector<8x8xf32>
    %12 = arith.subf %8, %11 : vector<8x8xf32>
    %13 = math.exp %12 : vector<8x8xf32>
    %cst_9 = arith.constant dense<0.000000e+00> : vector<8xf32>
    %14 = vector.multi_reduction <add>, %13, %cst_9 [1] : vector<8x8xf32> to vector<8xf32>
    %15 = vector.shape_cast %14 : vector<8xf32> to vector<8x1xf32>
    %16 = tpu.reciprocal %15 {approx = true} : vector<8x1xf32> -> vector<8x1xf32>
    %17 = vector.broadcast %16 : vector<8x1xf32> to vector<8x8xf32>
    %18 = arith.mulf %13, %17 : vector<8x8xf32>
    %19 = arith.truncf %18 : vector<8x8xf32> to vector<8x8xbf16>
    %20 = vector.extract_strided_slice %5 {offsets = [0, 0], sizes = [8, 8], strides = [1, 1]} : vector<8x32xbf16> to vector<8x8xbf16>
    %cst_10 = arith.constant dense<0.000000e+00> : vector<8x8xf32>
    %21 = tpu.matmul %19, %20, %cst_10 {dimension_numbers = #tpu.dot_dimension_numbers<[1], [0], [0], [1], [0, 0, 1, 1], [], []>} : vector<8x8xbf16>, vector<8x8xbf16>, vector<8x8xf32> -> vector<8x8xf32>
    %22 = vector.extract_strided_slice %1 {offsets = [0, 8], sizes = [8, 8], strides = [1, 1]} : vector<8x32xbf16> to vector<8x8xbf16>
    %23 = vector.extract_strided_slice %3 {offsets = [0, 8], sizes = [8, 8], strides = [1, 1]} : vector<8x32xbf16> to vector<8x8xbf16>
    %cst_11 = arith.constant dense<0.000000e+00> : vector<8x8xf32>
    %24 = tpu.matmul %22, %23, %cst_11 {dimension_numbers = #tpu.dot_dimension_numbers<[1], [1], [0], [0], [0, 0, 1, 0], [], []>} : vector<8x8xbf16>, vector<8x8xbf16>, vector<8x8xf32> -> vector<8x8xf32>
    %cst_12 = arith.constant dense<0xFF800000> : vector<8xf32>
    %25 = vector.multi_reduction <maximumf>, %24, %cst_12 [1] : vector<8x8xf32> to vector<8xf32>
    %26 = vector.shape_cast %25 : vector<8xf32> to vector<8x1xf32>
    %27 = vector.broadcast %26 : vector<8x1xf32> to vector<8x8xf32>
    %28 = arith.subf %24, %27 : vector<8x8xf32>
    %29 = math.exp %28 : vector<8x8xf32>
    %cst_13 = arith.constant dense<0.000000e+00> : vector<8xf32>
    %30 = vector.multi_reduction <add>, %29, %cst_13 [1] : vector<8x8xf32> to vector<8xf32>
    %31 = vector.shape_cast %30 : vector<8xf32> to vector<8x1xf32>
    %32 = tpu.reciprocal %31 {approx = true} : vector<8x1xf32> -> vector<8x1xf32>
    %33 = vector.broadcast %32 : vector<8x1xf32> to vector<8x8xf32>
    %34 = arith.mulf %29, %33 : vector<8x8xf32>
    %35 = arith.truncf %34 : vector<8x8xf32> to vector<8x8xbf16>
    %36 = vector.extract_strided_slice %5 {offsets = [0, 8], sizes = [8, 8], strides = [1, 1]} : vector<8x32xbf16> to vector<8x8xbf16>
    %cst_14 = arith.constant dense<0.000000e+00> : vector<8x8xf32>
    %37 = tpu.matmul %35, %36, %cst_14 {dimension_numbers = #tpu.dot_dimension_numbers<[1], [0], [0], [1], [0, 0, 1, 1], [], []>} : vector<8x8xbf16>, vector<8x8xbf16>, vector<8x8xf32> -> vector<8x8xf32>
    %38 = vector.extract_strided_slice %1 {offsets = [0, 16], sizes = [8, 8], strides = [1, 1]} : vector<8x32xbf16> to vector<8x8xbf16>
    %39 = vector.extract_strided_slice %3 {offsets = [0, 16], sizes = [8, 8], strides = [1, 1]} : vector<8x32xbf16> to vector<8x8xbf16>
    %cst_15 = arith.constant dense<0.000000e+00> : vector<8x8xf32>
    %40 = tpu.matmul %38, %39, %cst_15 {dimension_numbers = #tpu.dot_dimension_numbers<[1], [1], [0], [0], [0, 0, 1, 0], [], []>} : vector<8x8xbf16>, vector<8x8xbf16>, vector<8x8xf32> -> vector<8x8xf32>
    %cst_16 = arith.constant dense<0xFF800000> : vector<8xf32>
    %41 = vector.multi_reduction <maximumf>, %40, %cst_16 [1] : vector<8x8xf32> to vector<8xf32>
    %42 = vector.shape_cast %41 : vector<8xf32> to vector<8x1xf32>
    %43 = vector.broadcast %42 : vector<8x1xf32> to vector<8x8xf32>
    %44 = arith.subf %40, %43 : vector<8x8xf32>
    %45 = math.exp %44 : vector<8x8xf32>
    %cst_17 = arith.constant dense<0.000000e+00> : vector<8xf32>
    %46 = vector.multi_reduction <add>, %45, %cst_17 [1] : vector<8x8xf32> to vector<8xf32>
    %47 = vector.shape_cast %46 : vector<8xf32> to vector<8x1xf32>
    %48 = tpu.reciprocal %47 {approx = true} : vector<8x1xf32> -> vector<8x1xf32>
    %49 = vector.broadcast %48 : vector<8x1xf32> to vector<8x8xf32>
    %50 = arith.mulf %45, %49 : vector<8x8xf32>
    %51 = arith.truncf %50 : vector<8x8xf32> to vector<8x8xbf16>
    %52 = vector.extract_strided_slice %5 {offsets = [0, 16], sizes = [8, 8], strides = [1, 1]} : vector<8x32xbf16> to vector<8x8xbf16>
    %cst_18 = arith.constant dense<0.000000e+00> : vector<8x8xf32>
    %53 = tpu.matmul %51, %52, %cst_18 {dimension_numbers = #tpu.dot_dimension_numbers<[1], [0], [0], [1], [0, 0, 1, 1], [], []>} : vector<8x8xbf16>, vector<8x8xbf16>, vector<8x8xf32> -> vector<8x8xf32>
    %54 = vector.extract_strided_slice %1 {offsets = [0, 24], sizes = [8, 8], strides = [1, 1]} : vector<8x32xbf16> to vector<8x8xbf16>
    %55 = vector.extract_strided_slice %3 {offsets = [0, 24], sizes = [8, 8], strides = [1, 1]} : vector<8x32xbf16> to vector<8x8xbf16>
    %cst_19 = arith.constant dense<0.000000e+00> : vector<8x8xf32>
    %56 = tpu.matmul %54, %55, %cst_19 {dimension_numbers = #tpu.dot_dimension_numbers<[1], [1], [0], [0], [0, 0, 1, 0], [], []>} : vector<8x8xbf16>, vector<8x8xbf16>, vector<8x8xf32> -> vector<8x8xf32>
    %cst_20 = arith.constant dense<0xFF800000> : vector<8xf32>
    %57 = vector.multi_reduction <maximumf>, %56, %cst_20 [1] : vector<8x8xf32> to vector<8xf32>
    %58 = vector.shape_cast %57 : vector<8xf32> to vector<8x1xf32>
    %59 = vector.broadcast %58 : vector<8x1xf32> to vector<8x8xf32>
    %60 = arith.subf %56, %59 : vector<8x8xf32>
    %61 = math.exp %60 : vector<8x8xf32>
    %cst_21 = arith.constant dense<0.000000e+00> : vector<8xf32>
    %62 = vector.multi_reduction <add>, %61, %cst_21 [1] : vector<8x8xf32> to vector<8xf32>
    %63 = vector.shape_cast %62 : vector<8xf32> to vector<8x1xf32>
    %64 = tpu.reciprocal %63 {approx = true} : vector<8x1xf32> -> vector<8x1xf32>
    %65 = vector.broadcast %64 : vector<8x1xf32> to vector<8x8xf32>
    %66 = arith.mulf %61, %65 : vector<8x8xf32>
    %67 = arith.truncf %66 : vector<8x8xf32> to vector<8x8xbf16>
    %68 = vector.extract_strided_slice %5 {offsets = [0, 24], sizes = [8, 8], strides = [1, 1]} : vector<8x32xbf16> to vector<8x8xbf16>
    %cst_22 = arith.constant dense<0.000000e+00> : vector<8x8xf32>
    %69 = tpu.matmul %67, %68, %cst_22 {dimension_numbers = #tpu.dot_dimension_numbers<[1], [0], [0], [1], [0, 0, 1, 1], [], []>} : vector<8x8xbf16>, vector<8x8xbf16>, vector<8x8xf32> -> vector<8x8xf32>
    %70 = tpu.concatenate %21, %37, %53, %69 in 1 : vector<8x8xf32>, vector<8x8xf32>, vector<8x8xf32>, vector<8x8xf32> -> vector<8x32xf32>
    %71 = arith.truncf %70 : vector<8x32xf32> to vector<8x32xbf16>
    %c0_23 = arith.constant 0 : index
    %c0_24 = arith.constant 0 : index
    %72 = vector.load %arg5[%c0_23, %c0_24] : memref<32x32xbf16, #tpu.memory_space<vmem>>, vector<32x32xbf16>
    %cst_25 = arith.constant dense<0.000000e+00> : vector<8x32xf32>
    %73 = tpu.matmul %71, %72, %cst_25 {dimension_numbers = #tpu.dot_dimension_numbers<[1], [0], [0], [1], [0, 0, 1, 1], [], []>} : vector<8x32xbf16>, vector<32x32xbf16>, vector<8x32xf32> -> vector<8x32xf32>
    %c0_26 = arith.constant 0 : index
    %c0_27 = arith.constant 0 : index
    %74 = vector.load %arg6[%c0_26, %c0_27] : memref<1x32xf32, #tpu.memory_space<vmem>>, vector<1x32xf32>
    %75 = vector.broadcast %74 : vector<1x32xf32> to vector<8x32xf32>
    %76 = arith.addf %73, %75 : vector<8x32xf32>
    %c0_28 = arith.constant 0 : index
    %c0_29 = arith.constant 0 : index
    %c0_30 = arith.constant 0 : index
    %77 = vector.load %arg7[%c0_28, %c0_29, %c0_30] : memref<1x8x32xf32, #tpu.memory_space<vmem>>, vector<1x8x32xf32>
    %78 = vector.shape_cast %77 : vector<1x8x32xf32> to vector<8x32xf32>
    %79 = arith.addf %78, %76 : vector<8x32xf32>
    %cst_31 = arith.constant dense<0.000000e+00> : vector<8xf32>
    %80 = vector.multi_reduction <add>, %79, %cst_31 [1] : vector<8x32xf32> to vector<8xf32>
    %81 = vector.shape_cast %80 : vector<8xf32> to vector<8x1xf32>
    %cst_32 = arith.constant 3.200000e+01 : f32
    %82 = vector.broadcast %cst_32 : f32 to vector<8x1xf32>
    %83 = arith.divf %81, %82 : vector<8x1xf32>
    %84 = vector.broadcast %83 : vector<8x1xf32> to vector<8x32xf32>
    %85 = arith.subf %79, %84 : vector<8x32xf32>
    %86 = arith.mulf %85, %85 : vector<8x32xf32>
    %cst_33 = arith.constant dense<0.000000e+00> : vector<8xf32>
    %87 = vector.multi_reduction <add>, %86, %cst_33 [1] : vector<8x32xf32> to vector<8xf32>
    %88 = vector.shape_cast %87 : vector<8xf32> to vector<8x1xf32>
    %cst_34 = arith.constant 3.200000e+01 : f32
    %89 = vector.broadcast %cst_34 : f32 to vector<8x1xf32>
    %90 = arith.divf %88, %89 : vector<8x1xf32>
    %91 = vector.broadcast %83 : vector<8x1xf32> to vector<8x32xf32>
    %92 = arith.subf %79, %91 : vector<8x32xf32>
    %cst_35 = arith.constant 9.99999974E-6 : f32
    %93 = vector.broadcast %cst_35 : f32 to vector<8x1xf32>
    %94 = arith.addf %90, %93 : vector<8x1xf32>
    %95 = math.rsqrt %94 : vector<8x1xf32>
    %96 = vector.broadcast %95 : vector<8x1xf32> to vector<8x32xf32>
    %97 = arith.mulf %92, %96 : vector<8x32xf32>
    %c0_36 = arith.constant 0 : index
    %c0_37 = arith.constant 0 : index
    %98 = vector.load %arg8[%c0_36, %c0_37] : memref<1x32xf32, #tpu.memory_space<vmem>>, vector<1x32xf32>
    %99 = vector.broadcast %98 : vector<1x32xf32> to vector<8x32xf32>
    %100 = arith.mulf %97, %99 : vector<8x32xf32>
    %c0_38 = arith.constant 0 : index
    %c0_39 = arith.constant 0 : index
    %101 = vector.load %arg9[%c0_38, %c0_39] : memref<1x32xf32, #tpu.memory_space<vmem>>, vector<1x32xf32>
    %102 = vector.broadcast %101 : vector<1x32xf32> to vector<8x32xf32>
    %103 = arith.addf %100, %102 : vector<8x32xf32>
    %c0_40 = arith.constant 0 : index
    %c0_41 = arith.constant 0 : index
    %c0_42 = arith.constant 0 : index
    %104 = vector.load %arg10[%c0_40, %c0_41, %c0_42] : memref<1x8x32xf32, #tpu.memory_space<vmem>>, vector<1x8x32xf32>
    %105 = vector.shape_cast %104 : vector<1x8x32xf32> to vector<8x32xf32>
    %106 = vector.shape_cast %103 : vector<8x32xf32> to vector<1x8x32xf32>
    tpu.vector_store %arg10[%c0_40, %c0_41, %c0_42], %106 {strides = array<i32>} : memref<1x8x32xf32, #tpu.memory_space<vmem>>, vector<1x8x32xf32>,
    return
  }
  func.func @transform_0(%arg0: i32, %arg1: i32) -> (i32, i32, i32) {
    %c0_i32 = arith.constant 0 : i32
    %c0_i32_0 = arith.constant 0 : i32
    return %arg0, %arg1, %c0_i32 : i32, i32, i32
  }
  func.func @transform_1(%arg0: i32, %arg1: i32) -> (i32, i32, i32) {
    %c0_i32 = arith.constant 0 : i32
    %c0_i32_0 = arith.constant 0 : i32
    %c0_i32_1 = arith.constant 0 : i32
    return %arg0, %c0_i32, %c0_i32_0 : i32, i32, i32
  }
  func.func @transform_2(%arg0: i32, %arg1: i32) -> (i32, i32, i32) {
    %c0_i32 = arith.constant 0 : i32
    %c0_i32_0 = arith.constant 0 : i32
    %c0_i32_1 = arith.constant 0 : i32
    return %arg0, %c0_i32, %c0_i32_0 : i32, i32, i32
  }
  func.func @transform_3(%arg0: i32, %arg1: i32) -> (i32, i32) {
    %c0_i32 = arith.constant 0 : i32
    %c0_i32_0 = arith.constant 0 : i32
    %c0_i32_1 = arith.constant 0 : i32
    return %c0_i32, %c0_i32_0 : i32, i32
  }
  func.func @transform_4(%arg0: i32, %arg1: i32) -> (i32, i32) {
    %c0_i32 = arith.constant 0 : i32
    %c0_i32_0 = arith.constant 0 : i32
    %c0_i32_1 = arith.constant 0 : i32
    return %c0_i32, %c0_i32_0 : i32, i32
  }
  func.func @transform_5(%arg0: i32, %arg1: i32) -> (i32, i32, i32) {
    %c0_i32 = arith.constant 0 : i32
    %c0_i32_0 = arith.constant 0 : i32
    return %arg0, %arg1, %c0_i32 : i32, i32, i32
  }
  func.func @transform_6(%arg0: i32, %arg1: i32) -> (i32, i32) {
    %c0_i32 = arith.constant 0 : i32
    %c0_i32_0 = arith.constant 0 : i32
    %c0_i32_1 = arith.constant 0 : i32
    return %c0_i32, %c0_i32_0 : i32, i32
  }
  func.func @transform_7(%arg0: i32, %arg1: i32) -> (i32, i32) {
    %c0_i32 = arith.constant 0 : i32
    %c0_i32_0 = arith.constant 0 : i32
    %c0_i32_1 = arith.constant 0 : i32
    return %c0_i32, %c0_i32_0 : i32, i32
  }
  func.func @transform_8(%arg0: i32, %arg1: i32) -> (i32, i32, i32) {
    %c0_i32 = arith.constant 0 : i32
    %c0_i32_0 = arith.constant 0 : i32
    return %arg0, %arg1, %c0_i32 : i32, i32, i32
  }
}

module attributes {stable_mosaic.version = 11 : i64} {
  func.func @_proj_kernel(%arg0: i32, %arg1: memref<16x32xf32, #tpu.memory_space<vmem>>, %arg2: memref<16x32xf32, #tpu.memory_space<vmem>>, %arg3: memref<32x32xbf16, #tpu.memory_space<vmem>>, %arg4: memref<1x32xf32, #tpu.memory_space<vmem>>, %arg5: memref<16x32xbf16, #tpu.memory_space<vmem>>) attributes {dimension_semantics = [#tpu.dimension_semantics<parallel>], iteration_bounds = array<i64: 1>, scalar_prefetch = 0 : i64, scratch_operands = 0 : i64, tpu.core_type = #tpu.core_type<tc>, window_params = [{transform_indices = @transform_0, window_bounds = array<i64: 16, 32>}, {transform_indices = @transform_1, window_bounds = array<i64: 16, 32>}, {pipeline_mode = #tpu.pipeline_mode<synchronous>, transform_indices = @transform_2, window_bounds = array<i64: 32, 32>}, {pipeline_mode = #tpu.pipeline_mode<synchronous>, transform_indices = @transform_3, window_bounds = array<i64: 1, 32>}, {transform_indices = @transform_4, window_bounds = array<i64: 16, 32>}]} {
    %c0 = arith.constant 0 : index
    %c0_0 = arith.constant 0 : index
    %0 = vector.load %arg1[%c0, %c0_0] : memref<16x32xf32, #tpu.memory_space<vmem>>, vector<16x32xf32>
    %c0_1 = arith.constant 0 : index
    %c0_2 = arith.constant 0 : index
    %1 = vector.load %arg2[%c0_1, %c0_2] : memref<16x32xf32, #tpu.memory_space<vmem>>, vector<16x32xf32>
    %2 = arith.addf %0, %1 : vector<16x32xf32>
    %3 = arith.truncf %2 : vector<16x32xf32> to vector<16x32xbf16>
    %c0_3 = arith.constant 0 : index
    %c0_4 = arith.constant 0 : index
    %4 = vector.load %arg3[%c0_3, %c0_4] : memref<32x32xbf16, #tpu.memory_space<vmem>>, vector<32x32xbf16>
    %cst = arith.constant dense<0.000000e+00> : vector<16x32xf32>
    %5 = tpu.matmul %3, %4, %cst {dimension_numbers = #tpu.dot_dimension_numbers<[1], [0], [0], [1], [0, 0, 1, 1], [], []>} : vector<16x32xbf16>, vector<32x32xbf16>, vector<16x32xf32> -> vector<16x32xf32>
    %c0_5 = arith.constant 0 : index
    %c0_6 = arith.constant 0 : index
    %6 = vector.load %arg4[%c0_5, %c0_6] : memref<1x32xf32, #tpu.memory_space<vmem>>, vector<1x32xf32>
    %7 = vector.broadcast %6 : vector<1x32xf32> to vector<16x32xf32>
    %8 = arith.addf %5, %7 : vector<16x32xf32>
    %9 = arith.truncf %8 : vector<16x32xf32> to vector<16x32xbf16>
    %c0_7 = arith.constant 0 : index
    %c0_8 = arith.constant 0 : index
    %10 = vector.load %arg5[%c0_7, %c0_8] : memref<16x32xbf16, #tpu.memory_space<vmem>>, vector<16x32xbf16>
    tpu.vector_store %arg5[%c0_7, %c0_8], %9 {strides = array<i32>} : memref<16x32xbf16, #tpu.memory_space<vmem>>, vector<16x32xbf16>,
    return
  }
  func.func @transform_0(%arg0: i32) -> (i32, i32) {
    %c0_i32 = arith.constant 0 : i32
    %c0_i32_0 = arith.constant 0 : i32
    return %arg0, %c0_i32 : i32, i32
  }
  func.func @transform_1(%arg0: i32) -> (i32, i32) {
    %c0_i32 = arith.constant 0 : i32
    %c0_i32_0 = arith.constant 0 : i32
    return %arg0, %c0_i32 : i32, i32
  }
  func.func @transform_2(%arg0: i32) -> (i32, i32) {
    %c0_i32 = arith.constant 0 : i32
    %c0_i32_0 = arith.constant 0 : i32
    %c0_i32_1 = arith.constant 0 : i32
    return %c0_i32, %c0_i32_0 : i32, i32
  }
  func.func @transform_3(%arg0: i32) -> (i32, i32) {
    %c0_i32 = arith.constant 0 : i32
    %c0_i32_0 = arith.constant 0 : i32
    %c0_i32_1 = arith.constant 0 : i32
    return %c0_i32, %c0_i32_0 : i32, i32
  }
  func.func @transform_4(%arg0: i32) -> (i32, i32) {
    %c0_i32 = arith.constant 0 : i32
    %c0_i32_0 = arith.constant 0 : i32
    return %arg0, %c0_i32 : i32, i32
  }
}

module attributes {stable_mosaic.version = 11 : i64} {
  func.func @_ffn_kernel(%arg0: i32, %arg1: memref<16x32xf32, #tpu.memory_space<vmem>>, %arg2: memref<32x64xbf16, #tpu.memory_space<vmem>>, %arg3: memref<1x64xf32, #tpu.memory_space<vmem>>, %arg4: memref<64x32xbf16, #tpu.memory_space<vmem>>, %arg5: memref<1x32xf32, #tpu.memory_space<vmem>>, %arg6: memref<1x32xf32, #tpu.memory_space<vmem>>, %arg7: memref<1x32xf32, #tpu.memory_space<vmem>>, %arg8: memref<1x32xf32, #tpu.memory_space<vmem>>, %arg9: memref<1x32xf32, #tpu.memory_space<vmem>>, %arg10: memref<16x32xf32, #tpu.memory_space<vmem>>, %arg11: memref<16x32xf32, #tpu.memory_space<vmem>>) attributes {dimension_semantics = [#tpu.dimension_semantics<parallel>], iteration_bounds = array<i64: 1>, scalar_prefetch = 0 : i64, scratch_operands = 0 : i64, tpu.core_type = #tpu.core_type<tc>, window_params = [{transform_indices = @transform_0, window_bounds = array<i64: 16, 32>}, {pipeline_mode = #tpu.pipeline_mode<synchronous>, transform_indices = @transform_1, window_bounds = array<i64: 32, 64>}, {pipeline_mode = #tpu.pipeline_mode<synchronous>, transform_indices = @transform_2, window_bounds = array<i64: 1, 64>}, {pipeline_mode = #tpu.pipeline_mode<synchronous>, transform_indices = @transform_3, window_bounds = array<i64: 64, 32>}, {pipeline_mode = #tpu.pipeline_mode<synchronous>, transform_indices = @transform_4, window_bounds = array<i64: 1, 32>}, {pipeline_mode = #tpu.pipeline_mode<synchronous>, transform_indices = @transform_5, window_bounds = array<i64: 1, 32>}, {pipeline_mode = #tpu.pipeline_mode<synchronous>, transform_indices = @transform_6, window_bounds = array<i64: 1, 32>}, {pipeline_mode = #tpu.pipeline_mode<synchronous>, transform_indices = @transform_7, window_bounds = array<i64: 1, 32>}, {pipeline_mode = #tpu.pipeline_mode<synchronous>, transform_indices = @transform_8, window_bounds = array<i64: 1, 32>}, {transform_indices = @transform_9, window_bounds = array<i64: 16, 32>}, {transform_indices = @transform_10, window_bounds = array<i64: 16, 32>}]} {
    %c0 = arith.constant 0 : index
    %c0_0 = arith.constant 0 : index
    %0 = vector.load %arg1[%c0, %c0_0] : memref<16x32xf32, #tpu.memory_space<vmem>>, vector<16x32xf32>
    %1 = arith.truncf %0 : vector<16x32xf32> to vector<16x32xbf16>
    %c0_1 = arith.constant 0 : index
    %c0_2 = arith.constant 0 : index
    %2 = vector.load %arg2[%c0_1, %c0_2] : memref<32x64xbf16, #tpu.memory_space<vmem>>, vector<32x64xbf16>
    %cst = arith.constant dense<0.000000e+00> : vector<16x64xf32>
    %3 = tpu.matmul %1, %2, %cst {dimension_numbers = #tpu.dot_dimension_numbers<[1], [0], [0], [1], [0, 0, 1, 1], [], []>} : vector<16x32xbf16>, vector<32x64xbf16>, vector<16x64xf32> -> vector<16x64xf32>
    %c0_3 = arith.constant 0 : index
    %c0_4 = arith.constant 0 : index
    %4 = vector.load %arg3[%c0_3, %c0_4] : memref<1x64xf32, #tpu.memory_space<vmem>>, vector<1x64xf32>
    %5 = vector.broadcast %4 : vector<1x64xf32> to vector<16x64xf32>
    %6 = arith.addf %3, %5 : vector<16x64xf32>
    %cst_5 = arith.constant 0.000000e+00 : f32
    %7 = vector.broadcast %cst_5 : f32 to vector<16x64xf32>
    %8 = arith.maximumf %6, %7 : vector<16x64xf32>
    %9 = arith.truncf %8 : vector<16x64xf32> to vector<16x64xbf16>
    %c0_6 = arith.constant 0 : index
    %c0_7 = arith.constant 0 : index
    %10 = vector.load %arg4[%c0_6, %c0_7] : memref<64x32xbf16, #tpu.memory_space<vmem>>, vector<64x32xbf16>
    %cst_8 = arith.constant dense<0.000000e+00> : vector<16x32xf32>
    %11 = tpu.matmul %9, %10, %cst_8 {dimension_numbers = #tpu.dot_dimension_numbers<[1], [0], [0], [1], [0, 0, 1, 1], [], []>} : vector<16x64xbf16>, vector<64x32xbf16>, vector<16x32xf32> -> vector<16x32xf32>
    %c0_9 = arith.constant 0 : index
    %c0_10 = arith.constant 0 : index
    %12 = vector.load %arg5[%c0_9, %c0_10] : memref<1x32xf32, #tpu.memory_space<vmem>>, vector<1x32xf32>
    %13 = vector.broadcast %12 : vector<1x32xf32> to vector<16x32xf32>
    %14 = arith.addf %11, %13 : vector<16x32xf32>
    %15 = arith.addf %0, %14 : vector<16x32xf32>
    %cst_11 = arith.constant dense<0.000000e+00> : vector<16xf32>
    %16 = vector.multi_reduction <add>, %15, %cst_11 [1] : vector<16x32xf32> to vector<16xf32>
    %17 = vector.shape_cast %16 : vector<16xf32> to vector<16x1xf32>
    %cst_12 = arith.constant 3.200000e+01 : f32
    %18 = vector.broadcast %cst_12 : f32 to vector<16x1xf32>
    %19 = arith.divf %17, %18 : vector<16x1xf32>
    %20 = vector.broadcast %19 : vector<16x1xf32> to vector<16x32xf32>
    %21 = arith.subf %15, %20 : vector<16x32xf32>
    %22 = arith.mulf %21, %21 : vector<16x32xf32>
    %cst_13 = arith.constant dense<0.000000e+00> : vector<16xf32>
    %23 = vector.multi_reduction <add>, %22, %cst_13 [1] : vector<16x32xf32> to vector<16xf32>
    %24 = vector.shape_cast %23 : vector<16xf32> to vector<16x1xf32>
    %cst_14 = arith.constant 3.200000e+01 : f32
    %25 = vector.broadcast %cst_14 : f32 to vector<16x1xf32>
    %26 = arith.divf %24, %25 : vector<16x1xf32>
    %27 = vector.broadcast %19 : vector<16x1xf32> to vector<16x32xf32>
    %28 = arith.subf %15, %27 : vector<16x32xf32>
    %cst_15 = arith.constant 9.99999974E-6 : f32
    %29 = vector.broadcast %cst_15 : f32 to vector<16x1xf32>
    %30 = arith.addf %26, %29 : vector<16x1xf32>
    %31 = math.rsqrt %30 : vector<16x1xf32>
    %32 = vector.broadcast %31 : vector<16x1xf32> to vector<16x32xf32>
    %33 = arith.mulf %28, %32 : vector<16x32xf32>
    %c0_16 = arith.constant 0 : index
    %c0_17 = arith.constant 0 : index
    %34 = vector.load %arg6[%c0_16, %c0_17] : memref<1x32xf32, #tpu.memory_space<vmem>>, vector<1x32xf32>
    %35 = vector.broadcast %34 : vector<1x32xf32> to vector<16x32xf32>
    %36 = arith.mulf %33, %35 : vector<16x32xf32>
    %c0_18 = arith.constant 0 : index
    %c0_19 = arith.constant 0 : index
    %37 = vector.load %arg7[%c0_18, %c0_19] : memref<1x32xf32, #tpu.memory_space<vmem>>, vector<1x32xf32>
    %38 = vector.broadcast %37 : vector<1x32xf32> to vector<16x32xf32>
    %39 = arith.addf %36, %38 : vector<16x32xf32>
    %c0_20 = arith.constant 0 : index
    %c0_21 = arith.constant 0 : index
    %40 = vector.load %arg10[%c0_20, %c0_21] : memref<16x32xf32, #tpu.memory_space<vmem>>, vector<16x32xf32>
    tpu.vector_store %arg10[%c0_20, %c0_21], %39 {strides = array<i32>} : memref<16x32xf32, #tpu.memory_space<vmem>>, vector<16x32xf32>,
    %cst_22 = arith.constant dense<0.000000e+00> : vector<16xf32>
    %41 = vector.multi_reduction <add>, %39, %cst_22 [1] : vector<16x32xf32> to vector<16xf32>
    %42 = vector.shape_cast %41 : vector<16xf32> to vector<16x1xf32>
    %cst_23 = arith.constant 3.200000e+01 : f32
    %43 = vector.broadcast %cst_23 : f32 to vector<16x1xf32>
    %44 = arith.divf %42, %43 : vector<16x1xf32>
    %45 = vector.broadcast %44 : vector<16x1xf32> to vector<16x32xf32>
    %46 = arith.subf %39, %45 : vector<16x32xf32>
    %47 = arith.mulf %46, %46 : vector<16x32xf32>
    %cst_24 = arith.constant dense<0.000000e+00> : vector<16xf32>
    %48 = vector.multi_reduction <add>, %47, %cst_24 [1] : vector<16x32xf32> to vector<16xf32>
    %49 = vector.shape_cast %48 : vector<16xf32> to vector<16x1xf32>
    %cst_25 = arith.constant 3.200000e+01 : f32
    %50 = vector.broadcast %cst_25 : f32 to vector<16x1xf32>
    %51 = arith.divf %49, %50 : vector<16x1xf32>
    %52 = vector.broadcast %44 : vector<16x1xf32> to vector<16x32xf32>
    %53 = arith.subf %39, %52 : vector<16x32xf32>
    %cst_26 = arith.constant 9.99999974E-6 : f32
    %54 = vector.broadcast %cst_26 : f32 to vector<16x1xf32>
    %55 = arith.addf %51, %54 : vector<16x1xf32>
    %56 = math.rsqrt %55 : vector<16x1xf32>
    %57 = vector.broadcast %56 : vector<16x1xf32> to vector<16x32xf32>
    %58 = arith.mulf %53, %57 : vector<16x32xf32>
    %c0_27 = arith.constant 0 : index
    %c0_28 = arith.constant 0 : index
    %59 = vector.load %arg8[%c0_27, %c0_28] : memref<1x32xf32, #tpu.memory_space<vmem>>, vector<1x32xf32>
    %60 = vector.broadcast %59 : vector<1x32xf32> to vector<16x32xf32>
    %61 = arith.mulf %58, %60 : vector<16x32xf32>
    %c0_29 = arith.constant 0 : index
    %c0_30 = arith.constant 0 : index
    %62 = vector.load %arg9[%c0_29, %c0_30] : memref<1x32xf32, #tpu.memory_space<vmem>>, vector<1x32xf32>
    %63 = vector.broadcast %62 : vector<1x32xf32> to vector<16x32xf32>
    %64 = arith.addf %61, %63 : vector<16x32xf32>
    %c0_31 = arith.constant 0 : index
    %c0_32 = arith.constant 0 : index
    %65 = vector.load %arg11[%c0_31, %c0_32] : memref<16x32xf32, #tpu.memory_space<vmem>>, vector<16x32xf32>
    tpu.vector_store %arg11[%c0_31, %c0_32], %64 {strides = array<i32>} : memref<16x32xf32, #tpu.memory_space<vmem>>, vector<16x32xf32>,
    return
  }
  func.func @transform_0(%arg0: i32) -> (i32, i32) {
    %c0_i32 = arith.constant 0 : i32
    %c0_i32_0 = arith.constant 0 : i32
    return %arg0, %c0_i32 : i32, i32
  }
  func.func @transform_1(%arg0: i32) -> (i32, i32) {
    %c0_i32 = arith.constant 0 : i32
    %c0_i32_0 = arith.constant 0 : i32
    %c0_i32_1 = arith.constant 0 : i32
    return %c0_i32, %c0_i32_0 : i32, i32
  }
  func.func @transform_2(%arg0: i32) -> (i32, i32) {
    %c0_i32 = arith.constant 0 : i32
    %c0_i32_0 = arith.constant 0 : i32
    %c0_i32_1 = arith.constant 0 : i32
    return %c0_i32, %c0_i32_0 : i32, i32
  }
  func.func @transform_3(%arg0: i32) -> (i32, i32) {
    %c0_i32 = arith.constant 0 : i32
    %c0_i32_0 = arith.constant 0 : i32
    %c0_i32_1 = arith.constant 0 : i32
    return %c0_i32, %c0_i32_0 : i32, i32
  }
  func.func @transform_4(%arg0: i32) -> (i32, i32) {
    %c0_i32 = arith.constant 0 : i32
    %c0_i32_0 = arith.constant 0 : i32
    %c0_i32_1 = arith.constant 0 : i32
    return %c0_i32, %c0_i32_0 : i32, i32
  }
  func.func @transform_5(%arg0: i32) -> (i32, i32) {
    %c0_i32 = arith.constant 0 : i32
    %c0_i32_0 = arith.constant 0 : i32
    %c0_i32_1 = arith.constant 0 : i32
    return %c0_i32, %c0_i32_0 : i32, i32
  }
  func.func @transform_6(%arg0: i32) -> (i32, i32) {
    %c0_i32 = arith.constant 0 : i32
    %c0_i32_0 = arith.constant 0 : i32
    %c0_i32_1 = arith.constant 0 : i32
    return %c0_i32, %c0_i32_0 : i32, i32
  }
  func.func @transform_7(%arg0: i32) -> (i32, i32) {
    %c0_i32 = arith.constant 0 : i32
    %c0_i32_0 = arith.constant 0 : i32
    %c0_i32_1 = arith.constant 0 : i32
    return %c0_i32, %c0_i32_0 : i32, i32
  }
  func.func @transform_8(%arg0: i32) -> (i32, i32) {
    %c0_i32 = arith.constant 0 : i32
    %c0_i32_0 = arith.constant 0 : i32
    %c0_i32_1 = arith.constant 0 : i32
    return %c0_i32, %c0_i32_0 : i32, i32
  }
  func.func @transform_9(%arg0: i32) -> (i32, i32) {
    %c0_i32 = arith.constant 0 : i32
    %c0_i32_0 = arith.constant 0 : i32
    return %arg0, %c0_i32 : i32, i32
  }
  func.func @transform_10(%arg0: i32) -> (i32, i32) {
    %c0_i32 = arith.constant 0 : i32
    %c0_i32_0 = arith.constant 0 : i32
    return %arg0, %c0_i32 : i32, i32
  }
}

module attributes {stable_mosaic.version = 11 : i64} {
  func.func @_mha_kernel(%arg0: i32, %arg1: i32, %arg2: memref<1x8x32xbf16, #tpu.memory_space<vmem>>, %arg3: memref<1x64x32xbf16, #tpu.memory_space<vmem>>, %arg4: memref<1x64x32xbf16, #tpu.memory_space<vmem>>, %arg5: memref<32x32xbf16, #tpu.memory_space<vmem>>, %arg6: memref<1x32xf32, #tpu.memory_space<vmem>>, %arg7: memref<1x8x32xf32, #tpu.memory_space<vmem>>, %arg8: memref<1x32xf32, #tpu.memory_space<vmem>>, %arg9: memref<1x32xf32, #tpu.memory_space<vmem>>, %arg10: memref<1x8x32xf32, #tpu.memory_space<vmem>>, %arg11: memref<1x4x8x64xf32, #tpu.memory_space<vmem>>) attributes {dimension_semantics = [#tpu.dimension_semantics<parallel>, #tpu.dimension_semantics<parallel>], iteration_bounds = array<i64: 2, 1>, scalar_prefetch = 0 : i64, scratch_operands = 0 : i64, tpu.core_type = #tpu.core_type<tc>, window_params = [{transform_indices = @transform_0, window_bounds = array<i64: 1, 8, 32>}, {transform_indices = @transform_1, window_bounds = array<i64: 1, 64, 32>}, {transform_indices = @transform_2, window_bounds = array<i64: 1, 64, 32>}, {pipeline_mode = #tpu.pipeline_mode<synchronous>, transform_indices = @transform_3, window_bounds = array<i64: 32, 32>}, {pipeline_mode = #tpu.pipeline_mode<synchronous>, transform_indices = @transform_4, window_bounds = array<i64: 1, 32>}, {transform_indices = @transform_5, window_bounds = array<i64: 1, 8, 32>}, {pipeline_mode = #tpu.pipeline_mode<synchronous>, transform_indices = @transform_6, window_bounds = array<i64: 1, 32>}, {pipeline_mode = #tpu.pipeline_mode<synchronous>, transform_indices = @transform_7, window_bounds = array<i64: 1, 32>}, {transform_indices = @transform_8, window_bounds = array<i64: 1, 8, 32>}, {transform_indices = @transform_9, window_bounds = array<i64: 1, 4, 8, 64>}]} {
    %c0 = arith.constant 0 : index
    %c0_0 = arith.constant 0 : index
    %c0_1 = arith.constant 0 : index
    %0 = vector.load %arg2[%c0, %c0_0, %c0_1] : memref<1x8x32xbf16, #tpu.memory_space<vmem>>, vector<1x8x32xbf16>
    %1 = vector.shape_cast %0 : vector<1x8x32xbf16> to vector<8x32xbf16>
    %c0_2 = arith.constant 0 : index
    %c0_3 = arith.constant 0 : index
    %c0_4 = arith.constant 0 : index
    %2 = vector.load %arg3[%c0_2, %c0_3, %c0_4] : memref<1x64x32xbf16, #tpu.memory_space<vmem>>, vector<1x64x32xbf16>
    %3 = vector.shape_cast %2 : vector<1x64x32xbf16> to vector<64x32xbf16>
    %c0_5 = arith.constant 0 : index
    %c0_6 = arith.constant 0 : index
    %c0_7 = arith.constant 0 : index
    %4 = vector.load %arg4[%c0_5, %c0_6, %c0_7] : memref<1x64x32xbf16, #tpu.memory_space<vmem>>, vector<1x64x32xbf16>
    %5 = vector.shape_cast %4 : vector<1x64x32xbf16> to vector<64x32xbf16>
    %6 = vector.extract_strided_slice %1 {offsets = [0, 0], sizes = [8, 8], strides = [1, 1]} : vector<8x32xbf16> to vector<8x8xbf16>
    %7 = vector.extract_strided_slice %3 {offsets = [0, 0], sizes = [64, 8], strides = [1, 1]} : vector<64x32xbf16> to vector<64x8xbf16>
    %cst = arith.constant dense<0.000000e+00> : vector<8x64xf32>
    %8 = tpu.matmul %6, %7, %cst {dimension_numbers = #tpu.dot_dimension_numbers<[1], [1], [0], [0], [0, 0, 1, 0], [], []>} : vector<8x8xbf16>, vector<64x8xbf16>, vector<8x64xf32> -> vector<8x64xf32>
    %cst_8 = arith.constant dense<0xFF800000> : vector<8xf32>
    %9 = vector.multi_reduction <maximumf>, %8, %cst_8 [1] : vector<8x64xf32> to vector<8xf32>
    %10 = vector.shape_cast %9 : vector<8xf32> to vector<8x1xf32>
    %11 = vector.broadcast %10 : vector<8x1xf32> to vector<8x64xf32>
    %12 = arith.subf %8, %11 : vector<8x64xf32>
    %13 = math.exp %12 : vector<8x64xf32>
    %cst_9 = arith.constant dense<0.000000e+00> : vector<8xf32>
    %14 = vector.multi_reduction <add>, %13, %cst_9 [1] : vector<8x64xf32> to vector<8xf32>
    %15 = vector.shape_cast %14 : vector<8xf32> to vector<8x1xf32>
    %16 = vector.broadcast %15 : vector<8x1xf32> to vector<8x64xf32>
    %17 = arith.divf %13, %16 : vector<8x64xf32>
    %c0_10 = arith.constant 0 : index
    %c0_11 = arith.constant 0 : index
    %c0_12 = arith.constant 0 : index
    %c0_13 = arith.constant 0 : index
    %18 = vector.load %arg11[%c0_10, %c0_11, %c0_12, %c0_13] : memref<1x4x8x64xf32, #tpu.memory_space<vmem>>, vector<1x1x8x64xf32>
    %19 = vector.shape_cast %18 : vector<1x1x8x64xf32> to vector<8x64xf32>
    %20 = vector.shape_cast %17 : vector<8x64xf32> to vector<1x1x8x64xf32>
    tpu.vector_store %arg11[%c0_10, %c0_11, %c0_12, %c0_13], %20 {strides = array<i32>} : memref<1x4x8x64xf32, #tpu.memory_space<vmem>>, vector<1x1x8x64xf32>,
    %21 = arith.truncf %17 : vector<8x64xf32> to vector<8x64xbf16>
    %22 = vector.extract_strided_slice %5 {offsets = [0, 0], sizes = [64, 8], strides = [1, 1]} : vector<64x32xbf16> to vector<64x8xbf16>
    %cst_14 = arith.constant dense<0.000000e+00> : vector<8x8xf32>
    %23 = tpu.matmul %21, %22, %cst_14 {dimension_numbers = #tpu.dot_dimension_numbers<[1], [0], [0], [1], [0, 0, 1, 1], [], []>} : vector<8x64xbf16>, vector<64x8xbf16>, vector<8x8xf32> -> vector<8x8xf32>
    %24 = vector.extract_strided_slice %1 {offsets = [0, 8], sizes = [8, 8], strides = [1, 1]} : vector<8x32xbf16> to vector<8x8xbf16>
    %25 = vector.extract_strided_slice %3 {offsets = [0, 8], sizes = [64, 8], strides = [1, 1]} : vector<64x32xbf16> to vector<64x8xbf16>
    %cst_15 = arith.constant dense<0.000000e+00> : vector<8x64xf32>
    %26 = tpu.matmul %24, %25, %cst_15 {dimension_numbers = #tpu.dot_dimension_numbers<[1], [1], [0], [0], [0, 0, 1, 0], [], []>} : vector<8x8xbf16>, vector<64x8xbf16>, vector<8x64xf32> -> vector<8x64xf32>
    %cst_16 = arith.constant dense<0xFF800000> : vector<8xf32>
    %27 = vector.multi_reduction <maximumf>, %26, %cst_16 [1] : vector<8x64xf32> to vector<8xf32>
    %28 = vector.shape_cast %27 : vector<8xf32> to vector<8x1xf32>
    %29 = vector.broadcast %28 : vector<8x1xf32> to vector<8x64xf32>
    %30 = arith.subf %26, %29 : vector<8x64xf32>
    %31 = math.exp %30 : vector<8x64xf32>
    %cst_17 = arith.constant dense<0.000000e+00> : vector<8xf32>
    %32 = vector.multi_reduction <add>, %31, %cst_17 [1] : vector<8x64xf32> to vector<8xf32>
    %33 = vector.shape_cast %32 : vector<8xf32> to vector<8x1xf32>
    %34 = vector.broadcast %33 : vector<8x1xf32> to vector<8x64xf32>
    %35 = arith.divf %31, %34 : vector<8x64xf32>
    %c0_18 = arith.constant 0 : index
    %c1 = arith.constant 1 : index
    %c0_19 = arith.constant 0 : index
    %c0_20 = arith.constant 0 : index
    %36 = vector.load %arg11[%c0_18, %c1, %c0_19, %c0_20] : memref<1x4x8x64xf32, #tpu.memory_space<vmem>>, vector<1x1x8x64xf32>
    %37 = vector.shape_cast %36 : vector<1x1x8x64xf32> to vector<8x64xf32>
    %38 = vector.shape_cast %35 : vector<8x64xf32> to vector<1x1x8x64xf32>
    tpu.vector_store %arg11[%c0_18, %c1, %c0_19, %c0_20], %38 {strides = array<i32>} : memref<1x4x8x64xf32, #tpu.memory_space<vmem>>, vector<1x1x8x64xf32>,
    %39 = arith.truncf %35 : vector<8x64xf32> to vector<8x64xbf16>
    %40 = vector.extract_strided_slice %5 {offsets = [0, 8], sizes = [64, 8], strides = [1, 1]} : vector<64x32xbf16> to vector<64x8xbf16>
    %cst_21 = arith.constant dense<0.000000e+00> : vector<8x8xf32>
    %41 = tpu.matmul %39, %40, %cst_21 {dimension_numbers = #tpu.dot_dimension_numbers<[1], [0], [0], [1], [0, 0, 1, 1], [], []>} : vector<8x64xbf16>, vector<64x8xbf16>, vector<8x8xf32> -> vector<8x8xf32>
    %42 = vector.extract_strided_slice %1 {offsets = [0, 16], sizes = [8, 8], strides = [1, 1]} : vector<8x32xbf16> to vector<8x8xbf16>
    %43 = vector.extract_strided_slice %3 {offsets = [0, 16], sizes = [64, 8], strides = [1, 1]} : vector<64x32xbf16> to vector<64x8xbf16>
    %cst_22 = arith.constant dense<0.000000e+00> : vector<8x64xf32>
    %44 = tpu.matmul %42, %43, %cst_22 {dimension_numbers = #tpu.dot_dimension_numbers<[1], [1], [0], [0], [0, 0, 1, 0], [], []>} : vector<8x8xbf16>, vector<64x8xbf16>, vector<8x64xf32> -> vector<8x64xf32>
    %cst_23 = arith.constant dense<0xFF800000> : vector<8xf32>
    %45 = vector.multi_reduction <maximumf>, %44, %cst_23 [1] : vector<8x64xf32> to vector<8xf32>
    %46 = vector.shape_cast %45 : vector<8xf32> to vector<8x1xf32>
    %47 = vector.broadcast %46 : vector<8x1xf32> to vector<8x64xf32>
    %48 = arith.subf %44, %47 : vector<8x64xf32>
    %49 = math.exp %48 : vector<8x64xf32>
    %cst_24 = arith.constant dense<0.000000e+00> : vector<8xf32>
    %50 = vector.multi_reduction <add>, %49, %cst_24 [1] : vector<8x64xf32> to vector<8xf32>
    %51 = vector.shape_cast %50 : vector<8xf32> to vector<8x1xf32>
    %52 = vector.broadcast %51 : vector<8x1xf32> to vector<8x64xf32>
    %53 = arith.divf %49, %52 : vector<8x64xf32>
    %c0_25 = arith.constant 0 : index
    %c2 = arith.constant 2 : index
    %c0_26 = arith.constant 0 : index
    %c0_27 = arith.constant 0 : index
    %54 = vector.load %arg11[%c0_25, %c2, %c0_26, %c0_27] : memref<1x4x8x64xf32, #tpu.memory_space<vmem>>, vector<1x1x8x64xf32>
    %55 = vector.shape_cast %54 : vector<1x1x8x64xf32> to vector<8x64xf32>
    %56 = vector.shape_cast %53 : vector<8x64xf32> to vector<1x1x8x64xf32>
    tpu.vector_store %arg11[%c0_25, %c2, %c0_26, %c0_27], %56 {strides = array<i32>} : memref<1x4x8x64xf32, #tpu.memory_space<vmem>>, vector<1x1x8x64xf32>,
    %57 = arith.truncf %53 : vector<8x64xf32> to vector<8x64xbf16>
    %58 = vector.extract_strided_slice %5 {offsets = [0, 16], sizes = [64, 8], strides = [1, 1]} : vector<64x32xbf16> to vector<64x8xbf16>
    %cst_28 = arith.constant dense<0.000000e+00> : vector<8x8xf32>
    %59 = tpu.matmul %57, %58, %cst_28 {dimension_numbers = #tpu.dot_dimension_numbers<[1], [0], [0], [1], [0, 0, 1, 1], [], []>} : vector<8x64xbf16>, vector<64x8xbf16>, vector<8x8xf32> -> vector<8x8xf32>
    %60 = vector.extract_strided_slice %1 {offsets = [0, 24], sizes = [8, 8], strides = [1, 1]} : vector<8x32xbf16> to vector<8x8xbf16>
    %61 = vector.extract_strided_slice %3 {offsets = [0, 24], sizes = [64, 8], strides = [1, 1]} : vector<64x32xbf16> to vector<64x8xbf16>
    %cst_29 = arith.constant dense<0.000000e+00> : vector<8x64xf32>
    %62 = tpu.matmul %60, %61, %cst_29 {dimension_numbers = #tpu.dot_dimension_numbers<[1], [1], [0], [0], [0, 0, 1, 0], [], []>} : vector<8x8xbf16>, vector<64x8xbf16>, vector<8x64xf32> -> vector<8x64xf32>
    %cst_30 = arith.constant dense<0xFF800000> : vector<8xf32>
    %63 = vector.multi_reduction <maximumf>, %62, %cst_30 [1] : vector<8x64xf32> to vector<8xf32>
    %64 = vector.shape_cast %63 : vector<8xf32> to vector<8x1xf32>
    %65 = vector.broadcast %64 : vector<8x1xf32> to vector<8x64xf32>
    %66 = arith.subf %62, %65 : vector<8x64xf32>
    %67 = math.exp %66 : vector<8x64xf32>
    %cst_31 = arith.constant dense<0.000000e+00> : vector<8xf32>
    %68 = vector.multi_reduction <add>, %67, %cst_31 [1] : vector<8x64xf32> to vector<8xf32>
    %69 = vector.shape_cast %68 : vector<8xf32> to vector<8x1xf32>
    %70 = vector.broadcast %69 : vector<8x1xf32> to vector<8x64xf32>
    %71 = arith.divf %67, %70 : vector<8x64xf32>
    %c0_32 = arith.constant 0 : index
    %c3 = arith.constant 3 : index
    %c0_33 = arith.constant 0 : index
    %c0_34 = arith.constant 0 : index
    %72 = vector.load %arg11[%c0_32, %c3, %c0_33, %c0_34] : memref<1x4x8x64xf32, #tpu.memory_space<vmem>>, vector<1x1x8x64xf32>
    %73 = vector.shape_cast %72 : vector<1x1x8x64xf32> to vector<8x64xf32>
    %74 = vector.shape_cast %71 : vector<8x64xf32> to vector<1x1x8x64xf32>
    tpu.vector_store %arg11[%c0_32, %c3, %c0_33, %c0_34], %74 {strides = array<i32>} : memref<1x4x8x64xf32, #tpu.memory_space<vmem>>, vector<1x1x8x64xf32>,
    %75 = arith.truncf %71 : vector<8x64xf32> to vector<8x64xbf16>
    %76 = vector.extract_strided_slice %5 {offsets = [0, 24], sizes = [64, 8], strides = [1, 1]} : vector<64x32xbf16> to vector<64x8xbf16>
    %cst_35 = arith.constant dense<0.000000e+00> : vector<8x8xf32>
    %77 = tpu.matmul %75, %76, %cst_35 {dimension_numbers = #tpu.dot_dimension_numbers<[1], [0], [0], [1], [0, 0, 1, 1], [], []>} : vector<8x64xbf16>, vector<64x8xbf16>, vector<8x8xf32> -> vector<8x8xf32>
    %78 = tpu.concatenate %23, %41, %59, %77 in 1 : vector<8x8xf32>, vector<8x8xf32>, vector<8x8xf32>, vector<8x8xf32> -> vector<8x32xf32>
    %79 = arith.truncf %78 : vector<8x32xf32> to vector<8x32xbf16>
    %c0_36 = arith.constant 0 : index
    %c0_37 = arith.constant 0 : index
    %80 = vector.load %arg5[%c0_36, %c0_37] : memref<32x32xbf16, #tpu.memory_space<vmem>>, vector<32x32xbf16>
    %cst_38 = arith.constant dense<0.000000e+00> : vector<8x32xf32>
    %81 = tpu.matmul %79, %80, %cst_38 {dimension_numbers = #tpu.dot_dimension_numbers<[1], [0], [0], [1], [0, 0, 1, 1], [], []>} : vector<8x32xbf16>, vector<32x32xbf16>, vector<8x32xf32> -> vector<8x32xf32>
    %c0_39 = arith.constant 0 : index
    %c0_40 = arith.constant 0 : index
    %82 = vector.load %arg6[%c0_39, %c0_40] : memref<1x32xf32, #tpu.memory_space<vmem>>, vector<1x32xf32>
    %83 = vector.broadcast %82 : vector<1x32xf32> to vector<8x32xf32>
    %84 = arith.addf %81, %83 : vector<8x32xf32>
    %c0_41 = arith.constant 0 : index
    %c0_42 = arith.constant 0 : index
    %c0_43 = arith.constant 0 : index
    %85 = vector.load %arg7[%c0_41, %c0_42, %c0_43] : memref<1x8x32xf32, #tpu.memory_space<vmem>>, vector<1x8x32xf32>
    %86 = vector.shape_cast %85 : vector<1x8x32xf32> to vector<8x32xf32>
    %87 = arith.addf %86, %84 : vector<8x32xf32>
    %cst_44 = arith.constant dense<0.000000e+00> : vector<8xf32>
    %88 = vector.multi_reduction <add>, %87, %cst_44 [1] : vector<8x32xf32> to vector<8xf32>
    %89 = vector.shape_cast %88 : vector<8xf32> to vector<8x1xf32>
    %cst_45 = arith.constant 3.200000e+01 : f32
    %90 = vector.broadcast %cst_45 : f32 to vector<8x1xf32>
    %91 = arith.divf %89, %90 : vector<8x1xf32>
    %92 = vector.broadcast %91 : vector<8x1xf32> to vector<8x32xf32>
    %93 = arith.subf %87, %92 : vector<8x32xf32>
    %94 = arith.mulf %93, %93 : vector<8x32xf32>
    %cst_46 = arith.constant dense<0.000000e+00> : vector<8xf32>
    %95 = vector.multi_reduction <add>, %94, %cst_46 [1] : vector<8x32xf32> to vector<8xf32>
    %96 = vector.shape_cast %95 : vector<8xf32> to vector<8x1xf32>
    %cst_47 = arith.constant 3.200000e+01 : f32
    %97 = vector.broadcast %cst_47 : f32 to vector<8x1xf32>
    %98 = arith.divf %96, %97 : vector<8x1xf32>
    %99 = vector.broadcast %91 : vector<8x1xf32> to vector<8x32xf32>
    %100 = arith.subf %87, %99 : vector<8x32xf32>
    %cst_48 = arith.constant 9.99999974E-6 : f32
    %101 = vector.broadcast %cst_48 : f32 to vector<8x1xf32>
    %102 = arith.addf %98, %101 : vector<8x1xf32>
    %103 = math.rsqrt %102 : vector<8x1xf32>
    %104 = vector.broadcast %103 : vector<8x1xf32> to vector<8x32xf32>
    %105 = arith.mulf %100, %104 : vector<8x32xf32>
    %c0_49 = arith.constant 0 : index
    %c0_50 = arith.constant 0 : index
    %106 = vector.load %arg8[%c0_49, %c0_50] : memref<1x32xf32, #tpu.memory_space<vmem>>, vector<1x32xf32>
    %107 = vector.broadcast %106 : vector<1x32xf32> to vector<8x32xf32>
    %108 = arith.mulf %105, %107 : vector<8x32xf32>
    %c0_51 = arith.constant 0 : index
    %c0_52 = arith.constant 0 : index
    %109 = vector.load %arg9[%c0_51, %c0_52] : memref<1x32xf32, #tpu.memory_space<vmem>>, vector<1x32xf32>
    %110 = vector.broadcast %109 : vector<1x32xf32> to vector<8x32xf32>
    %111 = arith.addf %108, %110 : vector<8x32xf32>
    %c0_53 = arith.constant 0 : index
    %c0_54 = arith.constant 0 : index
    %c0_55 = arith.constant 0 : index
    %112 = vector.load %arg10[%c0_53, %c0_54, %c0_55] : memref<1x8x32xf32, #tpu.memory_space<vmem>>, vector<1x8x32xf32>
    %113 = vector.shape_cast %112 : vector<1x8x32xf32> to vector<8x32xf32>
    %114 = vector.shape_cast %111 : vector<8x32xf32> to vector<1x8x32xf32>
    tpu.vector_store %arg10[%c0_53, %c0_54, %c0_55], %114 {strides = array<i32>} : memref<1x8x32xf32, #tpu.memory_space<vmem>>, vector<1x8x32xf32>,
    return
  }
  func.func @transform_0(%arg0: i32, %arg1: i32) -> (i32, i32, i32) {
    %c0_i32 = arith.constant 0 : i32
    %c0_i32_0 = arith.constant 0 : i32
    return %arg0, %arg1, %c0_i32 : i32, i32, i32
  }
  func.func @transform_1(%arg0: i32, %arg1: i32) -> (i32, i32, i32) {
    %c0_i32 = arith.constant 0 : i32
    %c0_i32_0 = arith.constant 0 : i32
    %c0_i32_1 = arith.constant 0 : i32
    return %arg0, %c0_i32, %c0_i32_0 : i32, i32, i32
  }
  func.func @transform_2(%arg0: i32, %arg1: i32) -> (i32, i32, i32) {
    %c0_i32 = arith.constant 0 : i32
    %c0_i32_0 = arith.constant 0 : i32
    %c0_i32_1 = arith.constant 0 : i32
    return %arg0, %c0_i32, %c0_i32_0 : i32, i32, i32
  }
  func.func @transform_3(%arg0: i32, %arg1: i32) -> (i32, i32) {
    %c0_i32 = arith.constant 0 : i32
    %c0_i32_0 = arith.constant 0 : i32
    %c0_i32_1 = arith.constant 0 : i32
    return %c0_i32, %c0_i32_0 : i32, i32
  }
  func.func @transform_4(%arg0: i32, %arg1: i32) -> (i32, i32) {
    %c0_i32 = arith.constant 0 : i32
    %c0_i32_0 = arith.constant 0 : i32
    %c0_i32_1 = arith.constant 0 : i32
    return %c0_i32, %c0_i32_0 : i32, i32
  }
  func.func @transform_5(%arg0: i32, %arg1: i32) -> (i32, i32, i32) {
    %c0_i32 = arith.constant 0 : i32
    %c0_i32_0 = arith.constant 0 : i32
    return %arg0, %arg1, %c0_i32 : i32, i32, i32
  }
  func.func @transform_6(%arg0: i32, %arg1: i32) -> (i32, i32) {
    %c0_i32 = arith.constant 0 : i32
    %c0_i32_0 = arith.constant 0 : i32
    %c0_i32_1 = arith.constant 0 : i32
    return %c0_i32, %c0_i32_0 : i32, i32
  }
  func.func @transform_7(%arg0: i32, %arg1: i32) -> (i32, i32) {
    %c0_i32 = arith.constant 0 : i32
    %c0_i32_0 = arith.constant 0 : i32
    %c0_i32_1 = arith.constant 0 : i32
    return %c0_i32, %c0_i32_0 : i32, i32
  }
  func.func @transform_8(%arg0: i32, %arg1: i32) -> (i32, i32, i32) {
    %c0_i32 = arith.constant 0 : i32
    %c0_i32_0 = arith.constant 0 : i32
    return %arg0, %arg1, %c0_i32 : i32, i32, i32
  }
  func.func @transform_9(%arg0: i32, %arg1: i32) -> (i32, i32, i32, i32) {
    %c0_i32 = arith.constant 0 : i32
    %c0_i32_0 = arith.constant 0 : i32
    %c0_i32_1 = arith.constant 0 : i32
    return %arg0, %c0_i32, %arg1, %c0_i32_0 : i32, i32, i32, i32
  }
}

module attributes {stable_mosaic.version = 11 : i64} {
  func.func @_ffn_kernel(%arg0: i32, %arg1: memref<16x32xf32, #tpu.memory_space<vmem>>, %arg2: memref<32x64xbf16, #tpu.memory_space<vmem>>, %arg3: memref<1x64xf32, #tpu.memory_space<vmem>>, %arg4: memref<64x32xbf16, #tpu.memory_space<vmem>>, %arg5: memref<1x32xf32, #tpu.memory_space<vmem>>, %arg6: memref<1x32xf32, #tpu.memory_space<vmem>>, %arg7: memref<1x32xf32, #tpu.memory_space<vmem>>, %arg8: memref<1x32xf32, #tpu.memory_space<vmem>>, %arg9: memref<1x32xf32, #tpu.memory_space<vmem>>, %arg10: memref<16x32xf32, #tpu.memory_space<vmem>>, %arg11: memref<16x32xf32, #tpu.memory_space<vmem>>) attributes {dimension_semantics = [#tpu.dimension_semantics<parallel>], iteration_bounds = array<i64: 1>, scalar_prefetch = 0 : i64, scratch_operands = 0 : i64, tpu.core_type = #tpu.core_type<tc>, window_params = [{transform_indices = @transform_0, window_bounds = array<i64: 16, 32>}, {pipeline_mode = #tpu.pipeline_mode<synchronous>, transform_indices = @transform_1, window_bounds = array<i64: 32, 64>}, {pipeline_mode = #tpu.pipeline_mode<synchronous>, transform_indices = @transform_2, window_bounds = array<i64: 1, 64>}, {pipeline_mode = #tpu.pipeline_mode<synchronous>, transform_indices = @transform_3, window_bounds = array<i64: 64, 32>}, {pipeline_mode = #tpu.pipeline_mode<synchronous>, transform_indices = @transform_4, window_bounds = array<i64: 1, 32>}, {pipeline_mode = #tpu.pipeline_mode<synchronous>, transform_indices = @transform_5, window_bounds = array<i64: 1, 32>}, {pipeline_mode = #tpu.pipeline_mode<synchronous>, transform_indices = @transform_6, window_bounds = array<i64: 1, 32>}, {pipeline_mode = #tpu.pipeline_mode<synchronous>, transform_indices = @transform_7, window_bounds = array<i64: 1, 32>}, {pipeline_mode = #tpu.pipeline_mode<synchronous>, transform_indices = @transform_8, window_bounds = array<i64: 1, 32>}, {transform_indices = @transform_9, window_bounds = array<i64: 16, 32>}, {transform_indices = @transform_10, window_bounds = array<i64: 16, 32>}]} {
    %c0 = arith.constant 0 : index
    %c0_0 = arith.constant 0 : index
    %0 = vector.load %arg1[%c0, %c0_0] : memref<16x32xf32, #tpu.memory_space<vmem>>, vector<16x32xf32>
    %1 = arith.truncf %0 : vector<16x32xf32> to vector<16x32xbf16>
    %c0_1 = arith.constant 0 : index
    %c0_2 = arith.constant 0 : index
    %2 = vector.load %arg2[%c0_1, %c0_2] : memref<32x64xbf16, #tpu.memory_space<vmem>>, vector<32x64xbf16>
    %cst = arith.constant dense<0.000000e+00> : vector<16x64xf32>
    %3 = tpu.matmul %1, %2, %cst {dimension_numbers = #tpu.dot_dimension_numbers<[1], [0], [0], [1], [0, 0, 1, 1], [], []>} : vector<16x32xbf16>, vector<32x64xbf16>, vector<16x64xf32> -> vector<16x64xf32>
    %c0_3 = arith.constant 0 : index
    %c0_4 = arith.constant 0 : index
    %4 = vector.load %arg3[%c0_3, %c0_4] : memref<1x64xf32, #tpu.memory_space<vmem>>, vector<1x64xf32>
    %5 = vector.broadcast %4 : vector<1x64xf32> to vector<16x64xf32>
    %6 = arith.addf %3, %5 : vector<16x64xf32>
    %cst_5 = arith.constant 0.000000e+00 : f32
    %7 = vector.broadcast %cst_5 : f32 to vector<16x64xf32>
    %8 = arith.maximumf %6, %7 : vector<16x64xf32>
    %9 = arith.truncf %8 : vector<16x64xf32> to vector<16x64xbf16>
    %c0_6 = arith.constant 0 : index
    %c0_7 = arith.constant 0 : index
    %10 = vector.load %arg4[%c0_6, %c0_7] : memref<64x32xbf16, #tpu.memory_space<vmem>>, vector<64x32xbf16>
    %cst_8 = arith.constant dense<0.000000e+00> : vector<16x32xf32>
    %11 = tpu.matmul %9, %10, %cst_8 {dimension_numbers = #tpu.dot_dimension_numbers<[1], [0], [0], [1], [0, 0, 1, 1], [], []>} : vector<16x64xbf16>, vector<64x32xbf16>, vector<16x32xf32> -> vector<16x32xf32>
    %c0_9 = arith.constant 0 : index
    %c0_10 = arith.constant 0 : index
    %12 = vector.load %arg5[%c0_9, %c0_10] : memref<1x32xf32, #tpu.memory_space<vmem>>, vector<1x32xf32>
    %13 = vector.broadcast %12 : vector<1x32xf32> to vector<16x32xf32>
    %14 = arith.addf %11, %13 : vector<16x32xf32>
    %15 = arith.addf %0, %14 : vector<16x32xf32>
    %cst_11 = arith.constant dense<0.000000e+00> : vector<16xf32>
    %16 = vector.multi_reduction <add>, %15, %cst_11 [1] : vector<16x32xf32> to vector<16xf32>
    %17 = vector.shape_cast %16 : vector<16xf32> to vector<16x1xf32>
    %cst_12 = arith.constant 3.200000e+01 : f32
    %18 = vector.broadcast %cst_12 : f32 to vector<16x1xf32>
    %19 = arith.divf %17, %18 : vector<16x1xf32>
    %20 = vector.broadcast %19 : vector<16x1xf32> to vector<16x32xf32>
    %21 = arith.subf %15, %20 : vector<16x32xf32>
    %22 = arith.mulf %21, %21 : vector<16x32xf32>
    %cst_13 = arith.constant dense<0.000000e+00> : vector<16xf32>
    %23 = vector.multi_reduction <add>, %22, %cst_13 [1] : vector<16x32xf32> to vector<16xf32>
    %24 = vector.shape_cast %23 : vector<16xf32> to vector<16x1xf32>
    %cst_14 = arith.constant 3.200000e+01 : f32
    %25 = vector.broadcast %cst_14 : f32 to vector<16x1xf32>
    %26 = arith.divf %24, %25 : vector<16x1xf32>
    %27 = vector.broadcast %19 : vector<16x1xf32> to vector<16x32xf32>
    %28 = arith.subf %15, %27 : vector<16x32xf32>
    %cst_15 = arith.constant 9.99999974E-6 : f32
    %29 = vector.broadcast %cst_15 : f32 to vector<16x1xf32>
    %30 = arith.addf %26, %29 : vector<16x1xf32>
    %31 = math.rsqrt %30 : vector<16x1xf32>
    %32 = vector.broadcast %31 : vector<16x1xf32> to vector<16x32xf32>
    %33 = arith.mulf %28, %32 : vector<16x32xf32>
    %c0_16 = arith.constant 0 : index
    %c0_17 = arith.constant 0 : index
    %34 = vector.load %arg6[%c0_16, %c0_17] : memref<1x32xf32, #tpu.memory_space<vmem>>, vector<1x32xf32>
    %35 = vector.broadcast %34 : vector<1x32xf32> to vector<16x32xf32>
    %36 = arith.mulf %33, %35 : vector<16x32xf32>
    %c0_18 = arith.constant 0 : index
    %c0_19 = arith.constant 0 : index
    %37 = vector.load %arg7[%c0_18, %c0_19] : memref<1x32xf32, #tpu.memory_space<vmem>>, vector<1x32xf32>
    %38 = vector.broadcast %37 : vector<1x32xf32> to vector<16x32xf32>
    %39 = arith.addf %36, %38 : vector<16x32xf32>
    %c0_20 = arith.constant 0 : index
    %c0_21 = arith.constant 0 : index
    %40 = vector.load %arg10[%c0_20, %c0_21] : memref<16x32xf32, #tpu.memory_space<vmem>>, vector<16x32xf32>
    tpu.vector_store %arg10[%c0_20, %c0_21], %39 {strides = array<i32>} : memref<16x32xf32, #tpu.memory_space<vmem>>, vector<16x32xf32>,
    %cst_22 = arith.constant dense<0.000000e+00> : vector<16xf32>
    %41 = vector.multi_reduction <add>, %39, %cst_22 [1] : vector<16x32xf32> to vector<16xf32>
    %42 = vector.shape_cast %41 : vector<16xf32> to vector<16x1xf32>
    %cst_23 = arith.constant 3.200000e+01 : f32
    %43 = vector.broadcast %cst_23 : f32 to vector<16x1xf32>
    %44 = arith.divf %42, %43 : vector<16x1xf32>
    %45 = vector.broadcast %44 : vector<16x1xf32> to vector<16x32xf32>
    %46 = arith.subf %39, %45 : vector<16x32xf32>
    %47 = arith.mulf %46, %46 : vector<16x32xf32>
    %cst_24 = arith.constant dense<0.000000e+00> : vector<16xf32>
    %48 = vector.multi_reduction <add>, %47, %cst_24 [1] : vector<16x32xf32> to vector<16xf32>
    %49 = vector.shape_cast %48 : vector<16xf32> to vector<16x1xf32>
    %cst_25 = arith.constant 3.200000e+01 : f32
    %50 = vector.broadcast %cst_25 : f32 to vector<16x1xf32>
    %51 = arith.divf %49, %50 : vector<16x1xf32>
    %52 = vector.broadcast %44 : vector<16x1xf32> to vector<16x32xf32>
    %53 = arith.subf %39, %52 : vector<16x32xf32>
    %cst_26 = arith.constant 9.99999974E-6 : f32
    %54 = vector.broadcast %cst_26 : f32 to vector<16x1xf32>
    %55 = arith.addf %51, %54 : vector<16x1xf32>
    %56 = math.rsqrt %55 : vector<16x1xf32>
    %57 = vector.broadcast %56 : vector<16x1xf32> to vector<16x32xf32>
    %58 = arith.mulf %53, %57 : vector<16x32xf32>
    %c0_27 = arith.constant 0 : index
    %c0_28 = arith.constant 0 : index
    %59 = vector.load %arg8[%c0_27, %c0_28] : memref<1x32xf32, #tpu.memory_space<vmem>>, vector<1x32xf32>
    %60 = vector.broadcast %59 : vector<1x32xf32> to vector<16x32xf32>
    %61 = arith.mulf %58, %60 : vector<16x32xf32>
    %c0_29 = arith.constant 0 : index
    %c0_30 = arith.constant 0 : index
    %62 = vector.load %arg9[%c0_29, %c0_30] : memref<1x32xf32, #tpu.memory_space<vmem>>, vector<1x32xf32>
    %63 = vector.broadcast %62 : vector<1x32xf32> to vector<16x32xf32>
    %64 = arith.addf %61, %63 : vector<16x32xf32>
    %c0_31 = arith.constant 0 : index
    %c0_32 = arith.constant 0 : index
    %65 = vector.load %arg11[%c0_31, %c0_32] : memref<16x32xf32, #tpu.memory_space<vmem>>, vector<16x32xf32>
    tpu.vector_store %arg11[%c0_31, %c0_32], %64 {strides = array<i32>} : memref<16x32xf32, #tpu.memory_space<vmem>>, vector<16x32xf32>,
    return
  }
  func.func @transform_0(%arg0: i32) -> (i32, i32) {
    %c0_i32 = arith.constant 0 : i32
    %c0_i32_0 = arith.constant 0 : i32
    return %arg0, %c0_i32 : i32, i32
  }
  func.func @transform_1(%arg0: i32) -> (i32, i32) {
    %c0_i32 = arith.constant 0 : i32
    %c0_i32_0 = arith.constant 0 : i32
    %c0_i32_1 = arith.constant 0 : i32
    return %c0_i32, %c0_i32_0 : i32, i32
  }
  func.func @transform_2(%arg0: i32) -> (i32, i32) {
    %c0_i32 = arith.constant 0 : i32
    %c0_i32_0 = arith.constant 0 : i32
    %c0_i32_1 = arith.constant 0 : i32
    return %c0_i32, %c0_i32_0 : i32, i32
  }
  func.func @transform_3(%arg0: i32) -> (i32, i32) {
    %c0_i32 = arith.constant 0 : i32
    %c0_i32_0 = arith.constant 0 : i32
    %c0_i32_1 = arith.constant 0 : i32
    return %c0_i32, %c0_i32_0 : i32, i32
  }
  func.func @transform_4(%arg0: i32) -> (i32, i32) {
    %c0_i32 = arith.constant 0 : i32
    %c0_i32_0 = arith.constant 0 : i32
    %c0_i32_1 = arith.constant 0 : i32
    return %c0_i32, %c0_i32_0 : i32, i32
  }
  func.func @transform_5(%arg0: i32) -> (i32, i32) {
    %c0_i32 = arith.constant 0 : i32
    %c0_i32_0 = arith.constant 0 : i32
    %c0_i32_1 = arith.constant 0 : i32
    return %c0_i32, %c0_i32_0 : i32, i32
  }
  func.func @transform_6(%arg0: i32) -> (i32, i32) {
    %c0_i32 = arith.constant 0 : i32
    %c0_i32_0 = arith.constant 0 : i32
    %c0_i32_1 = arith.constant 0 : i32
    return %c0_i32, %c0_i32_0 : i32, i32
  }
  func.func @transform_7(%arg0: i32) -> (i32, i32) {
    %c0_i32 = arith.constant 0 : i32
    %c0_i32_0 = arith.constant 0 : i32
    %c0_i32_1 = arith.constant 0 : i32
    return %c0_i32, %c0_i32_0 : i32, i32
  }
  func.func @transform_8(%arg0: i32) -> (i32, i32) {
    %c0_i32 = arith.constant 0 : i32
    %c0_i32_0 = arith.constant 0 : i32
    %c0_i32_1 = arith.constant 0 : i32
    return %c0_i32, %c0_i32_0 : i32, i32
  }
  func.func @transform_9(%arg0: i32) -> (i32, i32) {
    %c0_i32 = arith.constant 0 : i32
    %c0_i32_0 = arith.constant 0 : i32
    return %arg0, %c0_i32 : i32, i32
  }
  func.func @transform_10(%arg0: i32) -> (i32, i32) {
    %c0_i32 = arith.constant 0 : i32
    %c0_i32_0 = arith.constant 0 : i32
    return %arg0, %c0_i32 : i32, i32
  }
}

</mosaic_0001>

<llo_original>
// kernel: intr_forward.23
$region0: #{intr_forward.23}
  #allocation0 [shape = 'u32[]', space=smem, size = 0x4, offset = 0x4, fixed_abs, tag = 'smem constant byte address 0x4 - core index']
  #allocation1 [shape = 'u32[144,128]{1,0:T(1,128)}', space=vmem, size = 0x12000, scoped, tag = 'internal scratch']
  %s0 = inlined_call_operand.vmem [shape: f32[128,32], index: 0, kind: input, shape index: {}]
  %s1 = inlined_call_operand.vmem [shape: bf16[32,32], index: 1, kind: input, shape index: {}]
  %s2 = inlined_call_operand.vmem [shape: f32[1,32], index: 2, kind: input, shape index: {}]
  %s3 = inlined_call_operand.vmem [shape: bf16[128,32], index: 3, kind: output, shape index: {}]
  %s4 = sld [smem:[#allocation0]]
  $region22: #{intr_forward.23} parent=0
    _
  %s6 = ssub.s32 1, %s4
  %s7 = scalar_select 0, %s6, %s4
  // Predicated region
  $region2: #{intr_forward.23} parent=0 // pred_check
    _
  $region3: #{intr_forward.23} parent=0 // pred_check_branch
    %9 = sbr.rel (0) target = $region5
  $region4: #{intr_forward.23} parent=0 // pred_region
    _
  $region5: #{intr_forward.23} parent=0 // pred_fallthru
    _
  // Predicated region
  $region6: #{intr_forward.23} parent=0 // pred_check
    _
  $region7: #{intr_forward.23} parent=0 // pred_check_branch
    %11 = sbr.rel (0) target = $region9
  $region8: #{intr_forward.23} parent=0 // pred_region
    _
  $region9: #{intr_forward.23} parent=0 // pred_fallthru
    _
  // Predicated region
  $region10: #{intr_forward.23} parent=0 // pred_check
    _
  $region11: #{intr_forward.23} parent=0 // pred_check_branch
    %13 = sbr.rel (0) target = $region13
  $region12: #{intr_forward.23} parent=0 // pred_region
    _
  $region13: #{intr_forward.23} parent=0 // pred_fallthru
    _
  %v15 = vld [vmem:[%s0] sm:$0xff]
  %v16 = vld [vmem:[%s0 + $0x8] sm:$0xff]
  %v17 = vld [vmem:[%s0 + $0x10] sm:$0xff]
  %v18 = vld [vmem:[%s0 + $0x18] sm:$0xff]
  %v19 = vld [vmem:[%s0 + $0x20] sm:$0xff]
  %v20 = vld [vmem:[%s0 + $0x28] sm:$0xff]
  %v21 = vld [vmem:[%s0 + $0x30] sm:$0xff]
  %v22 = vld [vmem:[%s0 + $0x38] sm:$0xff]
  %v23 = vld [vmem:[%s0 + $0x40] sm:$0xff]
  %v24 = vld [vmem:[%s0 + $0x48] sm:$0xff]
  %v25 = vld [vmem:[%s0 + $0x50] sm:$0xff]
  %v26 = vld [vmem:[%s0 + $0x58] sm:$0xff]
  %v27 = vld [vmem:[%s0 + $0x60] sm:$0xff]
  %v28 = vld [vmem:[%s0 + $0x68] sm:$0xff]
  %v29 = vld [vmem:[%s0 + $0x70] sm:$0xff]
  %v30 = vld [vmem:[%s0 + $0x78] sm:$0xff]
  %v31 = vpack.c.bf16 %v16, %v15
  %v32 = vpack.c.bf16 %v18, %v17
  %v33 = vpack.c.bf16 %v20, %v19
  %v34 = vpack.c.bf16 %v22, %v21
  %v35 = vpack.c.bf16 %v24, %v23
  %v36 = vpack.c.bf16 %v26, %v25
  %v37 = vpack.c.bf16 %v28, %v27
  %v38 = vpack.c.bf16 %v30, %v29
  %v39 = vld [vmem:[%s1] sm:$0xf]
  %v40 = vld [vmem:[%s1 + $0x4] sm:$0xf]
  %v41 = vld [vmem:[%s1 + $0x8] sm:$0xf]
  %v42 = vld [vmem:[%s1 + $0xc] sm:$0xf]
  %v43 = vld [vmem:[%s2] sm:$0x1]
  %v45 = vlaneseq
  %v46 = vshrl.u32 %v45, 7
  %v47 = vsub.s32 0, %v46
  %v48 = vrot.slane %v43, %v47
  %v54 = vunpack.c.l.b16 %v39
  %v55 = vunpack.c.l.b16 %v40
  %v56 = vunpack.c.l.b16 %v41
  %v57 = vunpack.c.l.b16 %v42
  %v58 = vpack.c.b16 %v55, %v54
  %v59 = vpack.c.b16 %v57, %v56
  %vm62 = vcmask 261120
  %v64 = vsel %vm62, %v31, 0
  %v67 = vsel %vm62, %v32, 0
  %v70 = vsel %vm62, %v33, 0
  %v73 = vsel %vm62, %v34, 0
  %v76 = vsel %vm62, %v35, 0
  %v79 = vsel %vm62, %v36, 0
  %v82 = vsel %vm62, %v37, 0
  %v85 = vsel %vm62, %v38, 0
  %87 = vmatprep.subr.bf16.mxu0 0
  %88 = vmatpush1.bf16.msra.mxu0 0
  %89 = vmatprep.subr.bf16.mxu0 0
  %90 = vmatpush1.bf16.msra.mxu0 0
  %91 = vmatprep.subr.bf16.mxu0 0
  %92 = vmatpush1.bf16.msra.mxu0 0
  %93 = vmatprep.subr.bf16.mxu0 0
  %94 = vmatpush1.bf16.msra.mxu0 0
  %95 = vmatprep.subr.bf16.mxu0 0
  %96 = vmatpush1.bf16.msra.mxu0 0
  %97 = vmatprep.subr.bf16.mxu0 0
  %98 = vmatpush1.bf16.msra.mxu0 0
  %99 = vmatprep.subr.bf16.mxu0 0
  %100 = vmatpush1.bf16.msra.mxu0 %v59
  %101 = vmatprep.subr.bf16.mxu0 0
  %102 = vmatpush1.bf16.msra.mxu0 %v58
  %103 = vmatprep.subr.bf16.mxu0 0
  %104 = vmatpush2.bf16.msra.mxu0 0
  %105 = vmatprep.subr.bf16.mxu0 0
  %106 = vmatpush2.bf16.msra.mxu0 0
  %107 = vmatprep.subr.bf16.mxu0 0
  %108 = vmatpush2.bf16.msra.mxu0 0
  %109 = vmatprep.subr.bf16.mxu0 0
  %110 = vmatpush2.bf16.msra.mxu0 0
  %111 = vmatprep.subr.bf16.mxu0 0
  %112 = vmatpush2.bf16.msra.mxu0 0
  %113 = vmatprep.subr.bf16.mxu0 0
  %114 = vmatpush2.bf16.msra.mxu0 0
  %115 = vmatprep.subr.bf16.mxu0 0
  %116 = vmatpush2.bf16.msra.mxu0 0
  %117 = vmatprep.subr.bf16.mxu0 0
  %118 = vmatpush2.bf16.msra.mxu0 0
  %119 = vmatprep.mubr.bf16.mxu0 0
  %120 = vmatmul.mubr.bf16.gmra.mxu0 %v64
  %v121 = vpop.f32.mrf.mxu0
  %v122 = vadd.f32 %v48, %v121
  %v123 = vpop.f32.mrf.mxu0
  %v124 = vpop.f32.mrf.mxu0
  %v125 = vadd.f32 %v48, %v124
  %v126 = vpop.f32.mrf.mxu0
  %127 = vmatprep.mubr.bf16.mxu0 0
  %128 = vmatmul.mubr.bf16.gmra.mxu0 %v67
  %v129 = vpop.f32.mrf.mxu0
  %v130 = vadd.f32 %v48, %v129
  %v131 = vpop.f32.mrf.mxu0
  %v132 = vpop.f32.mrf.mxu0
  %v133 = vadd.f32 %v48, %v132
  %v134 = vpop.f32.mrf.mxu0
  %135 = vmatprep.mubr.bf16.mxu0 0
  %136 = vmatmul.mubr.bf16.gmra.mxu0 %v70
  %v137 = vpop.f32.mrf.mxu0
  %v138 = vadd.f32 %v48, %v137
  %v139 = vpop.f32.mrf.mxu0
  %v140 = vpop.f32.mrf.mxu0
  %v141 = vadd.f32 %v48, %v140
  %v142 = vpop.f32.mrf.mxu0
  %143 = vmatprep.mubr.bf16.mxu0 0
  %144 = vmatmul.mubr.bf16.gmra.mxu0 %v73
  %v145 = vpop.f32.mrf.mxu0
  %v146 = vadd.f32 %v48, %v145
  %v147 = vpop.f32.mrf.mxu0
  %v148 = vpop.f32.mrf.mxu0
  %v149 = vadd.f32 %v48, %v148
  %v150 = vpop.f32.mrf.mxu0
  %151 = vmatprep.mubr.bf16.mxu0 0
  %152 = vmatmul.mubr.bf16.gmra.mxu0 %v76
  %v153 = vpop.f32.mrf.mxu0
  %v154 = vadd.f32 %v48, %v153
  %v155 = vpop.f32.mrf.mxu0
  %v156 = vpop.f32.mrf.mxu0
  %v157 = vadd.f32 %v48, %v156
  %v158 = vpop.f32.mrf.mxu0
  %159 = vmatprep.mubr.bf16.mxu0 0
  %160 = vmatmul.mubr.bf16.gmra.mxu0 %v79
  %v161 = vpop.f32.mrf.mxu0
  %v162 = vadd.f32 %v48, %v161
  %v163 = vpop.f32.mrf.mxu0
  %v164 = vpop.f32.mrf.mxu0
  %v165 = vadd.f32 %v48, %v164
  %v166 = vpop.f32.mrf.mxu0
  %167 = vmatprep.mubr.bf16.mxu0 0
  %168 = vmatmul.mubr.bf16.gmra.mxu0 %v82
  %v169 = vpop.f32.mrf.mxu0
  %v170 = vadd.f32 %v48, %v169
  %v171 = vpop.f32.mrf.mxu0
  %v172 = vpop.f32.mrf.mxu0
  %v173 = vadd.f32 %v48, %v172
  %v174 = vpop.f32.mrf.mxu0
  %175 = vmatprep.mubr.bf16.mxu0 0
  %176 = vmatmul.mubr.bf16.gmra.mxu0 %v85
  %v177 = vpop.f32.mrf.mxu0
  %v178 = vadd.f32 %v48, %v177
  %v179 = vpop.f32.mrf.mxu0
  %v180 = vpop.f32.mrf.mxu0
  %v181 = vadd.f32 %v48, %v180
  %v182 = vpop.f32.mrf.mxu0
  %183 = vdwg.mxu0
  %v184 = vpack.c.bf16 %v125, %v122
  %v185 = vpack.c.bf16 %v133, %v130
  %v186 = vpack.c.bf16 %v141, %v138
  %v187 = vpack.c.bf16 %v149, %v146
  %v188 = vpack.c.bf16 %v157, %v154
  %v189 = vpack.c.bf16 %v165, %v162
  %v190 = vpack.c.bf16 %v173, %v170
  %v191 = vpack.c.bf16 %v181, %v178
  %v200 = vunpack.c.l.b16 %v184
  %v201 = vunpack.c.h.b16 %v184
  %v202 = vunpack.c.l.b16 %v185
  %v203 = vunpack.c.h.b16 %v185
  %v204 = vunpack.c.l.b16 %v186
  %v205 = vunpack.c.h.b16 %v186
  %v206 = vunpack.c.l.b16 %v187
  %v207 = vunpack.c.h.b16 %v187
  %v208 = vunpack.c.l.b16 %v188
  %v209 = vunpack.c.h.b16 %v188
  %v210 = vunpack.c.l.b16 %v189
  %v211 = vunpack.c.h.b16 %v189
  %v212 = vunpack.c.l.b16 %v190
  %v213 = vunpack.c.h.b16 %v190
  %v214 = vunpack.c.l.b16 %v191
  %v215 = vunpack.c.h.b16 %v191
  %v216 = vpack.c.b16 %v200, %v200
  %v217 = vpack.c.b16 %v201, %v201
  %v218 = vpack.c.b16 %v202, %v202
  %v219 = vpack.c.b16 %v203, %v203
  %v220 = vpack.c.b16 %v204, %v204
  %v221 = vpack.c.b16 %v205, %v205
  %v222 = vpack.c.b16 %v206, %v206
  %v223 = vpack.c.b16 %v207, %v207
  %v224 = vpack.c.b16 %v208, %v208
  %v225 = vpack.c.b16 %v209, %v209
  %v226 = vpack.c.b16 %v210, %v210
  %v227 = vpack.c.b16 %v211, %v211
  %v228 = vpack.c.b16 %v212, %v212
  %v229 = vpack.c.b16 %v213, %v213
  %v230 = vpack.c.b16 %v214, %v214
  %v231 = vpack.c.b16 %v215, %v215
  %vm248 = vcmask 257024
  %249 = vst.msk [vmem:[%s3] sm:$0xf] %vm248, %v216
  %250 = vst.msk [vmem:[%s3 + $0x4] sm:$0xf] %vm248, %v217
  %251 = vst.msk [vmem:[%s3 + $0x8] sm:$0xf] %vm248, %v218
  %252 = vst.msk [vmem:[%s3 + $0xc] sm:$0xf] %vm248, %v219
  %253 = vst.msk [vmem:[%s3 + $0x10] sm:$0xf] %vm248, %v220
  %254 = vst.msk [vmem:[%s3 + $0x14] sm:$0xf] %vm248, %v221
  %255 = vst.msk [vmem:[%s3 + $0x18] sm:$0xf] %vm248, %v222
  %256 = vst.msk [vmem:[%s3 + $0x1c] sm:$0xf] %vm248, %v223
  %257 = vst.msk [vmem:[%s3 + $0x20] sm:$0xf] %vm248, %v224
  %258 = vst.msk [vmem:[%s3 + $0x24] sm:$0xf] %vm248, %v225
  %259 = vst.msk [vmem:[%s3 + $0x28] sm:$0xf] %vm248, %v226
  %260 = vst.msk [vmem:[%s3 + $0x2c] sm:$0xf] %vm248, %v227
  %261 = vst.msk [vmem:[%s3 + $0x30] sm:$0xf] %vm248, %v228
  %262 = vst.msk [vmem:[%s3 + $0x34] sm:$0xf] %vm248, %v229
  %263 = vst.msk [vmem:[%s3 + $0x38] sm:$0xf] %vm248, %v230
  %264 = vst.msk [vmem:[%s3 + $0x3c] sm:$0xf] %vm248, %v231
  // Predicated region
  $region14: #{intr_forward.23} parent=0 // pred_check
    _
  $region15: #{intr_forward.23} parent=0 // pred_check_branch
    %266 = sbr.rel (0) target = $region17
  $region16: #{intr_forward.23} parent=0 // pred_region
    _
  $region17: #{intr_forward.23} parent=0 // pred_fallthru
    _
  // Predicated region
  $region18: #{intr_forward.23} parent=0 // pred_check
    _
  $region19: #{intr_forward.23} parent=0 // pred_check_branch
    %268 = sbr.rel (0) target = $region21
  $region20: #{intr_forward.23} parent=0 // pred_region
    _
  $region21: #{intr_forward.23} parent=0 // pred_fallthru
    _

// kernel: intr_forward.21
$region0: #{intr_forward.21}
  #allocation0 [shape = 'u32[]', space=smem, size = 0x4, offset = 0x4, fixed_abs, tag = 'smem constant byte address 0x4 - core index']
  #allocation1 [shape = 'u32[144,128]{1,0:T(1,128)}', space=vmem, size = 0x12000, scoped, tag = 'internal scratch']
  #allocation2 [shape = 'f32[128,32]{1,0:T(8,128)}', space=vmem, size = 0x10000, scoped, tag = 'scratch operand']
  %s0 = inlined_call_operand.vmem [shape: bf16[128,4], index: 0, kind: input, shape index: {}]
  %s1 = inlined_call_operand.vmem [shape: bf16[4,32], index: 1, kind: input, shape index: {}]
  %s2 = inlined_call_operand.vmem [shape: f32[1,32], index: 2, kind: input, shape index: {}]
  %s3 = inlined_call_operand.vmem [shape: f32[128,32], index: 3, kind: output, shape index: {}]
  %s4 = sld [smem:[#allocation0]]
  $region30: #{intr_forward.21} parent=0
    _
  %s6 = ssub.s32 1, %s4
  %s7 = scalar_select 0, %s6, %s4
  // Predicated region
  $region2: #{intr_forward.21} parent=0 // pred_check
    _
  $region3: #{intr_forward.21} parent=0 // pred_check_branch
    %9 = sbr.rel (0) target = $region5
  $region4: #{intr_forward.21} parent=0 // pred_region
    _
  $region5: #{intr_forward.21} parent=0 // pred_fallthru
    _
  // Predicated region
  $region6: #{intr_forward.21} parent=0 // pred_check
    _
  $region7: #{intr_forward.21} parent=0 // pred_check_branch
    %11 = sbr.rel (0) target = $region9
  $region8: #{intr_forward.21} parent=0 // pred_region
    _
  $region9: #{intr_forward.21} parent=0 // pred_fallthru
    _
  // Predicated region
  $region10: #{intr_forward.21} parent=0 // pred_check
    _
  $region11: #{intr_forward.21} parent=0 // pred_check_branch
    %13 = sbr.rel (0) target = $region13
  $region12: #{intr_forward.21} parent=0 // pred_region
    _
  $region13: #{intr_forward.21} parent=0 // pred_fallthru
    _
  %p15 = scmp.eq.s32.totalorder 0, 0
  // Predicated region
  $region14: #{intr_forward.21} parent=0 // pred_check
    %p16 = pneg %p15
  $region15: #{intr_forward.21} parent=0 // pred_check_branch
    %18 = sbr.rel (%p16) target = $region17
  $region16: #{intr_forward.21} parent=0 // pred_region
    %vm19 = vcmask 261120
    %20 = vst.msk [vmem:[#allocation2] sm:$0xff] %vm19, 0.0
    %21 = vst.msk [vmem:[#allocation2 + $0x8] sm:$0xff] %vm19, 0.0
    %22 = vst.msk [vmem:[#allocation2 + $0x10] sm:$0xff] %vm19, 0.0
    %23 = vst.msk [vmem:[#allocation2 + $0x18] sm:$0xff] %vm19, 0.0
    %24 = vst.msk [vmem:[#allocation2 + $0x20] sm:$0xff] %vm19, 0.0
    %25 = vst.msk [vmem:[#allocation2 + $0x28] sm:$0xff] %vm19, 0.0
    %26 = vst.msk [vmem:[#allocation2 + $0x30] sm:$0xff] %vm19, 0.0
    %27 = vst.msk [vmem:[#allocation2 + $0x38] sm:$0xff] %vm19, 0.0
    %28 = vst.msk [vmem:[#allocation2 + $0x40] sm:$0xff] %vm19, 0.0
    %29 = vst.msk [vmem:[#allocation2 + $0x48] sm:$0xff] %vm19, 0.0
    %30 = vst.msk [vmem:[#allocation2 + $0x50] sm:$0xff] %vm19, 0.0
    %31 = vst.msk [vmem:[#allocation2 + $0x58] sm:$0xff] %vm19, 0.0
    %32 = vst.msk [vmem:[#allocation2 + $0x60] sm:$0xff] %vm19, 0.0
    %33 = vst.msk [vmem:[#allocation2 + $0x68] sm:$0xff] %vm19, 0.0
    %34 = vst.msk [vmem:[#allocation2 + $0x70] sm:$0xff] %vm19, 0.0
    %35 = vst.msk [vmem:[#allocation2 + $0x78] sm:$0xff] %vm19, 0.0
  $region17: #{intr_forward.21} parent=0 // pred_fallthru
    _
  %v36 = vld [vmem:[#allocation2] sm:$0xff]
  %v37 = vld [vmem:[#allocation2 + $0x8] sm:$0xff]
  %v38 = vld [vmem:[#allocation2 + $0x10] sm:$0xff]
  %v39 = vld [vmem:[#allocation2 + $0x18] sm:$0xff]
  %v40 = vld [vmem:[#allocation2 + $0x20] sm:$0xff]
  %v41 = vld [vmem:[#allocation2 + $0x28] sm:$0xff]
  %v42 = vld [vmem:[#allocation2 + $0x30] sm:$0xff]
  %v43 = vld [vmem:[#allocation2 + $0x38] sm:$0xff]
  %v44 = vld [vmem:[#allocation2 + $0x40] sm:$0xff]
  %v45 = vld [vmem:[#allocation2 + $0x48] sm:$0xff]
  %v46 = vld [vmem:[#allocation2 + $0x50] sm:$0xff]
  %v47 = vld [vmem:[#allocation2 + $0x58] sm:$0xff]
  %v48 = vld [vmem:[#allocation2 + $0x60] sm:$0xff]
  %v49 = vld [vmem:[#allocation2 + $0x68] sm:$0xff]
  %v50 = vld [vmem:[#allocation2 + $0x70] sm:$0xff]
  %v51 = vld [vmem:[#allocation2 + $0x78] sm:$0xff]
  %v52 = vld [vmem:[%s0] sm:$0xf]
  %v53 = vld [vmem:[%s0 + $0x4] sm:$0xf]
  %v54 = vld [vmem:[%s0 + $0x8] sm:$0xf]
  %v55 = vld [vmem:[%s0 + $0xc] sm:$0xf]
  %v56 = vld [vmem:[%s0 + $0x10] sm:$0xf]
  %v57 = vld [vmem:[%s0 + $0x14] sm:$0xf]
  %v58 = vld [vmem:[%s0 + $0x18] sm:$0xf]
  %v59 = vld [vmem:[%s0 + $0x1c] sm:$0xf]
  %v60 = vld [vmem:[%s0 + $0x20] sm:$0xf]
  %v61 = vld [vmem:[%s0 + $0x24] sm:$0xf]
  %v62 = vld [vmem:[%s0 + $0x28] sm:$0xf]
  %v63 = vld [vmem:[%s0 + $0x2c] sm:$0xf]
  %v64 = vld [vmem:[%s0 + $0x30] sm:$0xf]
  %v65 = vld [vmem:[%s0 + $0x34] sm:$0xf]
  %v66 = vld [vmem:[%s0 + $0x38] sm:$0xf]
  %v67 = vld [vmem:[%s0 + $0x3c] sm:$0xf]
  %v68 = vld [vmem:[%s1] sm:$0x3]
  %v85 = vunpack.c.l.b16 %v52
  %v86 = vunpack.c.l.b16 %v53
  %v87 = vunpack.c.l.b16 %v54
  %v88 = vunpack.c.l.b16 %v55
  %v89 = vunpack.c.l.b16 %v56
  %v90 = vunpack.c.l.b16 %v57
  %v91 = vunpack.c.l.b16 %v58
  %v92 = vunpack.c.l.b16 %v59
  %v93 = vunpack.c.l.b16 %v60
  %v94 = vunpack.c.l.b16 %v61
  %v95 = vunpack.c.l.b16 %v62
  %v96 = vunpack.c.l.b16 %v63
  %v97 = vunpack.c.l.b16 %v64
  %v98 = vunpack.c.l.b16 %v65
  %v99 = vunpack.c.l.b16 %v66
  %v100 = vunpack.c.l.b16 %v67
  %v101 = vpack.c.b16 %v86, %v85
  %v102 = vpack.c.b16 %v88, %v87
  %v103 = vpack.c.b16 %v90, %v89
  %v104 = vpack.c.b16 %v92, %v91
  %v105 = vpack.c.b16 %v94, %v93
  %v106 = vpack.c.b16 %v96, %v95
  %v107 = vpack.c.b16 %v98, %v97
  %v108 = vpack.c.b16 %v100, %v99
  %vm109 = vcmask 31744
  %v111 = vsel %vm109, %v101, 0
  %v114 = vsel %vm109, %v102, 0
  %v117 = vsel %vm109, %v103, 0
  %v120 = vsel %vm109, %v104, 0
  %v123 = vsel %vm109, %v105, 0
  %v126 = vsel %vm109, %v106, 0
  %v129 = vsel %vm109, %v107, 0
  %v132 = vsel %vm109, %v108, 0
  %vm134 = vcmask 1041408
  %v136 = vsel %vm134, %v68, 0
  %138 = vmatprep.subr.bf16.mxu0 0
  %139 = vmatpush1.bf16.msra.mxu0 0
  %140 = vmatprep.subr.bf16.mxu0 0
  %141 = vmatpush1.bf16.msra.mxu0 0
  %142 = vmatprep.subr.bf16.mxu0 0
  %143 = vmatpush1.bf16.msra.mxu0 0
  %144 = vmatprep.subr.bf16.mxu0 0
  %145 = vmatpush1.bf16.msra.mxu0 0
  %146 = vmatprep.subr.bf16.mxu0 0
  %147 = vmatpush1.bf16.msra.mxu0 0
  %148 = vmatprep.subr.bf16.mxu0 0
  %149 = vmatpush1.bf16.msra.mxu0 0
  %150 = vmatprep.subr.bf16.mxu0 0
  %151 = vmatpush1.bf16.msra.mxu0 0
  %152 = vmatprep.subr.bf16.mxu0 0
  %153 = vmatpush1.bf16.msra.mxu0 %v136
  %154 = vmatprep.subr.bf16.mxu0 0
  %155 = vmatpush2.bf16.msra.mxu0 0
  %156 = vmatprep.subr.bf16.mxu0 0
  %157 = vmatpush2.bf16.msra.mxu0 0
  %158 = vmatprep.subr.bf16.mxu0 0
  %159 = vmatpush2.bf16.msra.mxu0 0
  %160 = vmatprep.subr.bf16.mxu0 0
  %161 = vmatpush2.bf16.msra.mxu0 0
  %162 = vmatprep.subr.bf16.mxu0 0
  %163 = vmatpush2.bf16.msra.mxu0 0
  %164 = vmatprep.subr.bf16.mxu0 0
  %165 = vmatpush2.bf16.msra.mxu0 0
  %166 = vmatprep.subr.bf16.mxu0 0
  %167 = vmatpush2.bf16.msra.mxu0 0
  %168 = vmatprep.subr.bf16.mxu0 0
  %169 = vmatpush2.bf16.msra.mxu0 0
  %170 = vmatprep.mubr.bf16.mxu0 0
  %171 = vmatmul.mubr.bf16.gmra.mxu0 %v111
  %v172 = vpop.f32.mrf.mxu0
  %v173 = vadd.f32 0.0, %v172
  %v174 = vpop.f32.mrf.mxu0
  %v175 = vpop.f32.mrf.mxu0
  %v176 = vadd.f32 0.0, %v175
  %v177 = vpop.f32.mrf.mxu0
  %178 = vmatprep.mubr.bf16.mxu0 0
  %179 = vmatmul.mubr.bf16.gmra.mxu0 %v114
  %v180 = vpop.f32.mrf.mxu0
  %v181 = vadd.f32 0.0, %v180
  %v182 = vpop.f32.mrf.mxu0
  %v183 = vpop.f32.mrf.mxu0
  %v184 = vadd.f32 0.0, %v183
  %v185 = vpop.f32.mrf.mxu0
  %186 = vmatprep.mubr.bf16.mxu0 0
  %187 = vmatmul.mubr.bf16.gmra.mxu0 %v117
  %v188 = vpop.f32.mrf.mxu0
  %v189 = vadd.f32 0.0, %v188
  %v190 = vpop.f32.mrf.mxu0
  %v191 = vpop.f32.mrf.mxu0
  %v192 = vadd.f32 0.0, %v191
  %v193 = vpop.f32.mrf.mxu0
  %194 = vmatprep.mubr.bf16.mxu0 0
  %195 = vmatmul.mubr.bf16.gmra.mxu0 %v120
  %v196 = vpop.f32.mrf.mxu0
  %v197 = vadd.f32 0.0, %v196
  %v198 = vpop.f32.mrf.mxu0
  %v199 = vpop.f32.mrf.mxu0
  %v200 = vadd.f32 0.0, %v199
  %v201 = vpop.f32.mrf.mxu0
  %202 = vmatprep.mubr.bf16.mxu0 0
  %203 = vmatmul.mubr.bf16.gmra.mxu0 %v123
  %v204 = vpop.f32.mrf.mxu0
  %v205 = vadd.f32 0.0, %v204
  %v206 = vpop.f32.mrf.mxu0
  %v207 = vpop.f32.mrf.mxu0
  %v208 = vadd.f32 0.0, %v207
  %v209 = vpop.f32.mrf.mxu0
  %210 = vmatprep.mubr.bf16.mxu0 0
  %211 = vmatmul.mubr.bf16.gmra.mxu0 %v126
  %v212 = vpop.f32.mrf.mxu0
  %v213 = vadd.f32 0.0, %v212
  %v214 = vpop.f32.mrf.mxu0
  %v215 = vpop.f32.mrf.mxu0
  %v216 = vadd.f32 0.0, %v215
  %v217 = vpop.f32.mrf.mxu0
  %218 = vmatprep.mubr.bf16.mxu0 0
  %219 = vmatmul.mubr.bf16.gmra.mxu0 %v129
  %v220 = vpop.f32.mrf.mxu0
  %v221 = vadd.f32 0.0, %v220
  %v222 = vpop.f32.mrf.mxu0
  %v223 = vpop.f32.mrf.mxu0
  %v224 = vadd.f32 0.0, %v223
  %v225 = vpop.f32.mrf.mxu0
  %226 = vmatprep.mubr.bf16.mxu0 0
  %227 = vmatmul.mubr.bf16.gmra.mxu0 %v132
  %v228 = vpop.f32.mrf.mxu0
  %v229 = vadd.f32 0.0, %v228
  %v230 = vpop.f32.mrf.mxu0
  %v231 = vpop.f32.mrf.mxu0
  %v232 = vadd.f32 0.0, %v231
  %v233 = vpop.f32.mrf.mxu0
  %234 = vdwg.mxu0
  %v235 = vadd.f32 %v36, %v173
  %v236 = vadd.f32 %v37, %v176
  %v237 = vadd.f32 %v38, %v181
  %v238 = vadd.f32 %v39, %v184
  %v239 = vadd.f32 %v40, %v189
  %v240 = vadd.f32 %v41, %v192
  %v241 = vadd.f32 %v42, %v197
  %v242 = vadd.f32 %v43, %v200
  %v243 = vadd.f32 %v44, %v205
  %v244 = vadd.f32 %v45, %v208
  %v245 = vadd.f32 %v46, %v213
  %v246 = vadd.f32 %v47, %v216
  %v247 = vadd.f32 %v48, %v221
  %v248 = vadd.f32 %v49, %v224
  %v249 = vadd.f32 %v50, %v229
  %v250 = vadd.f32 %v51, %v232
  %vm251 = vcmask 261120
  %252 = vst.msk [vmem:[#allocation2] sm:$0xff] %vm251, %v235
  %253 = vst.msk [vmem:[#allocation2 + $0x8] sm:$0xff] %vm251, %v236
  %254 = vst.msk [vmem:[#allocation2 + $0x10] sm:$0xff] %vm251, %v237
  %255 = vst.msk [vmem:[#allocation2 + $0x18] sm:$0xff] %vm251, %v238
  %256 = vst.msk [vmem:[#allocation2 + $0x20] sm:$0xff] %vm251, %v239
  %257 = vst.msk [vmem:[#allocation2 + $0x28] sm:$0xff] %vm251, %v240
  %258 = vst.msk [vmem:[#allocation2 + $0x30] sm:$0xff] %vm251, %v241
  %259 = vst.msk [vmem:[#allocation2 + $0x38] sm:$0xff] %vm251, %v242
  %260 = vst.msk [vmem:[#allocation2 + $0x40] sm:$0xff] %vm251, %v243
  %261 = vst.msk [vmem:[#allocation2 + $0x48] sm:$0xff] %vm251, %v244
  %262 = vst.msk [vmem:[#allocation2 + $0x50] sm:$0xff] %vm251, %v245
  %263 = vst.msk [vmem:[#allocation2 + $0x58] sm:$0xff] %vm251, %v246
  %264 = vst.msk [vmem:[#allocation2 + $0x60] sm:$0xff] %vm251, %v247
  %265 = vst.msk [vmem:[#allocation2 + $0x68] sm:$0xff] %vm251, %v248
  %266 = vst.msk [vmem:[#allocation2 + $0x70] sm:$0xff] %vm251, %v249
  %267 = vst.msk [vmem:[#allocation2 + $0x78] sm:$0xff] %vm251, %v250
  // Predicated region
  $region18: #{intr_forward.21} parent=0 // pred_check
    %p268 = pneg %p15
  $region19: #{intr_forward.21} parent=0 // pred_check_branch
    %270 = sbr.rel (%p268) target = $region21
  $region20: #{intr_forward.21} parent=0 // pred_region
    %v271 = vld [vmem:[#allocation2] sm:$0xff]
    %v272 = vld [vmem:[#allocation2 + $0x8] sm:$0xff]
    %v273 = vld [vmem:[#allocation2 + $0x10] sm:$0xff]
    %v274 = vld [vmem:[#allocation2 + $0x18] sm:$0xff]
    %v275 = vld [vmem:[#allocation2 + $0x20] sm:$0xff]
    %v276 = vld [vmem:[#allocation2 + $0x28] sm:$0xff]
    %v277 = vld [vmem:[#allocation2 + $0x30] sm:$0xff]
    %v278 = vld [vmem:[#allocation2 + $0x38] sm:$0xff]
    %v279 = vld [vmem:[#allocation2 + $0x40] sm:$0xff]
    %v280 = vld [vmem:[#allocation2 + $0x48] sm:$0xff]
    %v281 = vld [vmem:[#allocation2 + $0x50] sm:$0xff]
    %v282 = vld [vmem:[#allocation2 + $0x58] sm:$0xff]
    %v283 = vld [vmem:[#allocation2 + $0x60] sm:$0xff]
    %v284 = vld [vmem:[#allocation2 + $0x68] sm:$0xff]
    %v285 = vld [vmem:[#allocation2 + $0x70] sm:$0xff]
    %v286 = vld [vmem:[#allocation2 + $0x78] sm:$0xff]
    %v287 = vld [vmem:[%s2] sm:$0x1]
    %v289 = vlaneseq
    %v290 = vshrl.u32 %v289, 7
    %v291 = vsub.s32 0, %v290
    %v292 = vrot.slane %v287, %v291
    %v294 = vadd.f32 %v271, %v292
    %v295 = vadd.f32 %v272, %v292
    %v296 = vadd.f32 %v273, %v292
    %v297 = vadd.f32 %v274, %v292
    %v298 = vadd.f32 %v275, %v292
    %v299 = vadd.f32 %v276, %v292
    %v300 = vadd.f32 %v277, %v292
    %v301 = vadd.f32 %v278, %v292
    %v302 = vadd.f32 %v279, %v292
    %v303 = vadd.f32 %v280, %v292
    %v304 = vadd.f32 %v281, %v292
    %v305 = vadd.f32 %v282, %v292
    %v306 = vadd.f32 %v283, %v292
    %v307 = vadd.f32 %v284, %v292
    %v308 = vadd.f32 %v285, %v292
    %v309 = vadd.f32 %v286, %v292
    %310 = vst.msk [vmem:[%s3] sm:$0xff] %vm251, %v294
    %311 = vst.msk [vmem:[%s3 + $0x8] sm:$0xff] %vm251, %v295
    %312 = vst.msk [vmem:[%s3 + $0x10] sm:$0xff] %vm251, %v296
    %313 = vst.msk [vmem:[%s3 + $0x18] sm:$0xff] %vm251, %v297
    %314 = vst.msk [vmem:[%s3 + $0x20] sm:$0xff] %vm251, %v298
    %315 = vst.msk [vmem:[%s3 + $0x28] sm:$0xff] %vm251, %v299
    %316 = vst.msk [vmem:[%s3 + $0x30] sm:$0xff] %vm251, %v300
    %317 = vst.msk [vmem:[%s3 + $0x38] sm:$0xff] %vm251, %v301
    %318 = vst.msk [vmem:[%s3 + $0x40] sm:$0xff] %vm251, %v302
    %319 = vst.msk [vmem:[%s3 + $0x48] sm:$0xff] %vm251, %v303
    %320 = vst.msk [vmem:[%s3 + $0x50] sm:$0xff] %vm251, %v304
    %321 = vst.msk [vmem:[%s3 + $0x58] sm:$0xff] %vm251, %v305
    %322 = vst.msk [vmem:[%s3 + $0x60] sm:$0xff] %vm251, %v306
    %323 = vst.msk [vmem:[%s3 + $0x68] sm:$0xff] %vm251, %v307
    %324 = vst.msk [vmem:[%s3 + $0x70] sm:$0xff] %vm251, %v308
    %325 = vst.msk [vmem:[%s3 + $0x78] sm:$0xff] %vm251, %v309
  $region21: #{intr_forward.21} parent=0 // pred_fallthru
    _
  // Predicated region
  $region22: #{intr_forward.21} parent=0 // pred_check
    _
  $region23: #{intr_forward.21} parent=0 // pred_check_branch
    %327 = sbr.rel (0) target = $region25
  $region24: #{intr_forward.21} parent=0 // pred_region
    _
  $region25: #{intr_forward.21} parent=0 // pred_fallthru
    _
  // Predicated region
  $region26: #{intr_forward.21} parent=0 // pred_check
    _
  $region27: #{intr_forward.21} parent=0 // pred_check_branch
    %329 = sbr.rel (0) target = $region29
  $region28: #{intr_forward.21} parent=0 // pred_region
    _
  $region29: #{intr_forward.21} parent=0 // pred_fallthru
    _

// kernel: intr_forward.20
$region0: #{intr_forward.20}
  #allocation0 [shape = 'u32[]', space=smem, size = 0x4, offset = 0x4, fixed_abs, tag = 'smem constant byte address 0x4 - core index']
  #allocation1 [shape = 'u32[144,128]{1,0:T(1,128)}', space=vmem, size = 0x12000, scoped, tag = 'internal scratch']
  #allocation2 [shape = 'f32[128,4]{1,0:T(8,128)}', space=vmem, size = 0x10000, scoped, tag = 'scratch operand']
  %s0 = inlined_call_operand.vmem [shape: bf16[128,3], index: 0, kind: input, shape index: {}]
  %s1 = inlined_call_operand.vmem [shape: bf16[3,4], index: 1, kind: input, shape index: {}]
  %s2 = inlined_call_operand.vmem [shape: f32[1,4], index: 2, kind: input, shape index: {}]
  %s3 = inlined_call_operand.vmem [shape: f32[128,4], index: 3, kind: output, shape index: {}]
  %s4 = sld [smem:[#allocation0]]
  $region30: #{intr_forward.20} parent=0
    _
  %s6 = ssub.s32 1, %s4
  %s7 = scalar_select 0, %s6, %s4
  // Predicated region
  $region2: #{intr_forward.20} parent=0 // pred_check
    _
  $region3: #{intr_forward.20} parent=0 // pred_check_branch
    %9 = sbr.rel (0) target = $region5
  $region4: #{intr_forward.20} parent=0 // pred_region
    _
  $region5: #{intr_forward.20} parent=0 // pred_fallthru
    _
  // Predicated region
  $region6: #{intr_forward.20} parent=0 // pred_check
    _
  $region7: #{intr_forward.20} parent=0 // pred_check_branch
    %11 = sbr.rel (0) target = $region9
  $region8: #{intr_forward.20} parent=0 // pred_region
    _
  $region9: #{intr_forward.20} parent=0 // pred_fallthru
    _
  // Predicated region
  $region10: #{intr_forward.20} parent=0 // pred_check
    _
  $region11: #{intr_forward.20} parent=0 // pred_check_branch
    %13 = sbr.rel (0) target = $region13
  $region12: #{intr_forward.20} parent=0 // pred_region
    _
  $region13: #{intr_forward.20} parent=0 // pred_fallthru
    _
  %p15 = scmp.eq.s32.totalorder 0, 0
  // Predicated region
  $region14: #{intr_forward.20} parent=0 // pred_check
    %p16 = pneg %p15
  $region15: #{intr_forward.20} parent=0 // pred_check_branch
    %18 = sbr.rel (%p16) target = $region17
  $region16: #{intr_forward.20} parent=0 // pred_region
    %vm19 = vcmask 31744
    %20 = vst.msk [vmem:[#allocation2] sm:$0xff] %vm19, 0.0
    %21 = vst.msk [vmem:[#allocation2 + $0x8] sm:$0xff] %vm19, 0.0
    %22 = vst.msk [vmem:[#allocation2 + $0x10] sm:$0xff] %vm19, 0.0
    %23 = vst.msk [vmem:[#allocation2 + $0x18] sm:$0xff] %vm19, 0.0
    %24 = vst.msk [vmem:[#allocation2 + $0x20] sm:$0xff] %vm19, 0.0
    %25 = vst.msk [vmem:[#allocation2 + $0x28] sm:$0xff] %vm19, 0.0
    %26 = vst.msk [vmem:[#allocation2 + $0x30] sm:$0xff] %vm19, 0.0
    %27 = vst.msk [vmem:[#allocation2 + $0x38] sm:$0xff] %vm19, 0.0
    %28 = vst.msk [vmem:[#allocation2 + $0x40] sm:$0xff] %vm19, 0.0
    %29 = vst.msk [vmem:[#allocation2 + $0x48] sm:$0xff] %vm19, 0.0
    %30 = vst.msk [vmem:[#allocation2 + $0x50] sm:$0xff] %vm19, 0.0
    %31 = vst.msk [vmem:[#allocation2 + $0x58] sm:$0xff] %vm19, 0.0
    %32 = vst.msk [vmem:[#allocation2 + $0x60] sm:$0xff] %vm19, 0.0
    %33 = vst.msk [vmem:[#allocation2 + $0x68] sm:$0xff] %vm19, 0.0
    %34 = vst.msk [vmem:[#allocation2 + $0x70] sm:$0xff] %vm19, 0.0
    %35 = vst.msk [vmem:[#allocation2 + $0x78] sm:$0xff] %vm19, 0.0
  $region17: #{intr_forward.20} parent=0 // pred_fallthru
    _
  %v36 = vld [vmem:[#allocation2] sm:$0xff]
  %v37 = vld [vmem:[#allocation2 + $0x8] sm:$0xff]
  %v38 = vld [vmem:[#allocation2 + $0x10] sm:$0xff]
  %v39 = vld [vmem:[#allocation2 + $0x18] sm:$0xff]
  %v40 = vld [vmem:[#allocation2 + $0x20] sm:$0xff]
  %v41 = vld [vmem:[#allocation2 + $0x28] sm:$0xff]
  %v42 = vld [vmem:[#allocation2 + $0x30] sm:$0xff]
  %v43 = vld [vmem:[#allocation2 + $0x38] sm:$0xff]
  %v44 = vld [vmem:[#allocation2 + $0x40] sm:$0xff]
  %v45 = vld [vmem:[#allocation2 + $0x48] sm:$0xff]
  %v46 = vld [vmem:[#allocation2 + $0x50] sm:$0xff]
  %v47 = vld [vmem:[#allocation2 + $0x58] sm:$0xff]
  %v48 = vld [vmem:[#allocation2 + $0x60] sm:$0xff]
  %v49 = vld [vmem:[#allocation2 + $0x68] sm:$0xff]
  %v50 = vld [vmem:[#allocation2 + $0x70] sm:$0xff]
  %v51 = vld [vmem:[#allocation2 + $0x78] sm:$0xff]
  %v52 = vld [vmem:[%s0] sm:$0xf]
  %v53 = vld [vmem:[%s0 + $0x4] sm:$0xf]
  %v54 = vld [vmem:[%s0 + $0x8] sm:$0xf]
  %v55 = vld [vmem:[%s0 + $0xc] sm:$0xf]
  %v56 = vld [vmem:[%s0 + $0x10] sm:$0xf]
  %v57 = vld [vmem:[%s0 + $0x14] sm:$0xf]
  %v58 = vld [vmem:[%s0 + $0x18] sm:$0xf]
  %v59 = vld [vmem:[%s0 + $0x1c] sm:$0xf]
  %v60 = vld [vmem:[%s0 + $0x20] sm:$0xf]
  %v61 = vld [vmem:[%s0 + $0x24] sm:$0xf]
  %v62 = vld [vmem:[%s0 + $0x28] sm:$0xf]
  %v63 = vld [vmem:[%s0 + $0x2c] sm:$0xf]
  %v64 = vld [vmem:[%s0 + $0x30] sm:$0xf]
  %v65 = vld [vmem:[%s0 + $0x34] sm:$0xf]
  %v66 = vld [vmem:[%s0 + $0x38] sm:$0xf]
  %v67 = vld [vmem:[%s0 + $0x3c] sm:$0xf]
  %v68 = vld [vmem:[%s1] sm:$0x3]
  %v85 = vunpack.c.l.b16 %v52
  %v86 = vunpack.c.l.b16 %v53
  %v87 = vunpack.c.l.b16 %v54
  %v88 = vunpack.c.l.b16 %v55
  %v89 = vunpack.c.l.b16 %v56
  %v90 = vunpack.c.l.b16 %v57
  %v91 = vunpack.c.l.b16 %v58
  %v92 = vunpack.c.l.b16 %v59
  %v93 = vunpack.c.l.b16 %v60
  %v94 = vunpack.c.l.b16 %v61
  %v95 = vunpack.c.l.b16 %v62
  %v96 = vunpack.c.l.b16 %v63
  %v97 = vunpack.c.l.b16 %v64
  %v98 = vunpack.c.l.b16 %v65
  %v99 = vunpack.c.l.b16 %v66
  %v100 = vunpack.c.l.b16 %v67
  %v101 = vpack.c.b16 %v86, %v85
  %v102 = vpack.c.b16 %v88, %v87
  %v103 = vpack.c.b16 %v90, %v89
  %v104 = vpack.c.b16 %v92, %v91
  %v105 = vpack.c.b16 %v94, %v93
  %v106 = vpack.c.b16 %v96, %v95
  %v107 = vpack.c.b16 %v98, %v97
  %v108 = vpack.c.b16 %v100, %v99
  %vm109 = vcmask 23552
  %v111 = vsel %vm109, %v101, 0
  %v114 = vsel %vm109, %v102, 0
  %v117 = vsel %vm109, %v103, 0
  %v120 = vsel %vm109, %v104, 0
  %v123 = vsel %vm109, %v105, 0
  %v126 = vsel %vm109, %v106, 0
  %v129 = vsel %vm109, %v107, 0
  %v132 = vsel %vm109, %v108, 0
  %vm134 = vcmask 1040384
  %vm135 = vcmask 1041408
  %v136 = vsel %vm134, 4294967295, 65535
  %v137 = vsel %vm135, %v136, 0
  %v139 = vand.u32 %v68, %v137
  %141 = vmatprep.subr.bf16.mxu0 0
  %142 = vmatpush1.bf16.msra.mxu0 0
  %143 = vmatprep.subr.bf16.mxu0 0
  %144 = vmatpush1.bf16.msra.mxu0 0
  %145 = vmatprep.subr.bf16.mxu0 0
  %146 = vmatpush1.bf16.msra.mxu0 0
  %147 = vmatprep.subr.bf16.mxu0 0
  %148 = vmatpush1.bf16.msra.mxu0 0
  %149 = vmatprep.subr.bf16.mxu0 0
  %150 = vmatpush1.bf16.msra.mxu0 0
  %151 = vmatprep.subr.bf16.mxu0 0
  %152 = vmatpush1.bf16.msra.mxu0 0
  %153 = vmatprep.subr.bf16.mxu0 0
  %154 = vmatpush1.bf16.msra.mxu0 0
  %155 = vmatprep.subr.bf16.mxu0 0
  %156 = vmatpush1.bf16.msra.mxu0 %v139
  %157 = vmatprep.subr.bf16.mxu0 0
  %158 = vmatpush2.bf16.msra.mxu0 0
  %159 = vmatprep.subr.bf16.mxu0 0
  %160 = vmatpush2.bf16.msra.mxu0 0
  %161 = vmatprep.subr.bf16.mxu0 0
  %162 = vmatpush2.bf16.msra.mxu0 0
  %163 = vmatprep.subr.bf16.mxu0 0
  %164 = vmatpush2.bf16.msra.mxu0 0
  %165 = vmatprep.subr.bf16.mxu0 0
  %166 = vmatpush2.bf16.msra.mxu0 0
  %167 = vmatprep.subr.bf16.mxu0 0
  %168 = vmatpush2.bf16.msra.mxu0 0
  %169 = vmatprep.subr.bf16.mxu0 0
  %170 = vmatpush2.bf16.msra.mxu0 0
  %171 = vmatprep.subr.bf16.mxu0 0
  %172 = vmatpush2.bf16.msra.mxu0 0
  %173 = vmatprep.mubr.bf16.mxu0 0
  %174 = vmatmul.mubr.bf16.gmra.mxu0 %v111
  %v175 = vpop.f32.mrf.mxu0
  %v176 = vadd.f32 0.0, %v175
  %v177 = vpop.f32.mrf.mxu0
  %v178 = vpop.f32.mrf.mxu0
  %v179 = vadd.f32 0.0, %v178
  %v180 = vpop.f32.mrf.mxu0
  %181 = vmatprep.mubr.bf16.mxu0 0
  %182 = vmatmul.mubr.bf16.gmra.mxu0 %v114
  %v183 = vpop.f32.mrf.mxu0
  %v184 = vadd.f32 0.0, %v183
  %v185 = vpop.f32.mrf.mxu0
  %v186 = vpop.f32.mrf.mxu0
  %v187 = vadd.f32 0.0, %v186
  %v188 = vpop.f32.mrf.mxu0
  %189 = vmatprep.mubr.bf16.mxu0 0
  %190 = vmatmul.mubr.bf16.gmra.mxu0 %v117
  %v191 = vpop.f32.mrf.mxu0
  %v192 = vadd.f32 0.0, %v191
  %v193 = vpop.f32.mrf.mxu0
  %v194 = vpop.f32.mrf.mxu0
  %v195 = vadd.f32 0.0, %v194
  %v196 = vpop.f32.mrf.mxu0
  %197 = vmatprep.mubr.bf16.mxu0 0
  %198 = vmatmul.mubr.bf16.gmra.mxu0 %v120
  %v199 = vpop.f32.mrf.mxu0
  %v200 = vadd.f32 0.0, %v199
  %v201 = vpop.f32.mrf.mxu0
  %v202 = vpop.f32.mrf.mxu0
  %v203 = vadd.f32 0.0, %v202
  %v204 = vpop.f32.mrf.mxu0
  %205 = vmatprep.mubr.bf16.mxu0 0
  %206 = vmatmul.mubr.bf16.gmra.mxu0 %v123
  %v207 = vpop.f32.mrf.mxu0
  %v208 = vadd.f32 0.0, %v207
  %v209 = vpop.f32.mrf.mxu0
  %v210 = vpop.f32.mrf.mxu0
  %v211 = vadd.f32 0.0, %v210
  %v212 = vpop.f32.mrf.mxu0
  %213 = vmatprep.mubr.bf16.mxu0 0
  %214 = vmatmul.mubr.bf16.gmra.mxu0 %v126
  %v215 = vpop.f32.mrf.mxu0
  %v216 = vadd.f32 0.0, %v215
  %v217 = vpop.f32.mrf.mxu0
  %v218 = vpop.f32.mrf.mxu0
  %v219 = vadd.f32 0.0, %v218
  %v220 = vpop.f32.mrf.mxu0
  %221 = vmatprep.mubr.bf16.mxu0 0
  %222 = vmatmul.mubr.bf16.gmra.mxu0 %v129
  %v223 = vpop.f32.mrf.mxu0
  %v224 = vadd.f32 0.0, %v223
  %v225 = vpop.f32.mrf.mxu0
  %v226 = vpop.f32.mrf.mxu0
  %v227 = vadd.f32 0.0, %v226
  %v228 = vpop.f32.mrf.mxu0
  %229 = vmatprep.mubr.bf16.mxu0 0
  %230 = vmatmul.mubr.bf16.gmra.mxu0 %v132
  %v231 = vpop.f32.mrf.mxu0
  %v232 = vadd.f32 0.0, %v231
  %v233 = vpop.f32.mrf.mxu0
  %v234 = vpop.f32.mrf.mxu0
  %v235 = vadd.f32 0.0, %v234
  %v236 = vpop.f32.mrf.mxu0
  %237 = vdwg.mxu0
  %v238 = vadd.f32 %v36, %v176
  %v239 = vadd.f32 %v37, %v179
  %v240 = vadd.f32 %v38, %v184
  %v241 = vadd.f32 %v39, %v187
  %v242 = vadd.f32 %v40, %v192
  %v243 = vadd.f32 %v41, %v195
  %v244 = vadd.f32 %v42, %v200
  %v245 = vadd.f32 %v43, %v203
  %v246 = vadd.f32 %v44, %v208
  %v247 = vadd.f32 %v45, %v211
  %v248 = vadd.f32 %v46, %v216
  %v249 = vadd.f32 %v47, %v219
  %v250 = vadd.f32 %v48, %v224
  %v251 = vadd.f32 %v49, %v227
  %v252 = vadd.f32 %v50, %v232
  %v253 = vadd.f32 %v51, %v235
  %vm254 = vcmask 31744
  %255 = vst.msk [vmem:[#allocation2] sm:$0xff] %vm254, %v238
  %256 = vst.msk [vmem:[#allocation2 + $0x8] sm:$0xff] %vm254, %v239
  %257 = vst.msk [vmem:[#allocation2 + $0x10] sm:$0xff] %vm254, %v240
  %258 = vst.msk [vmem:[#allocation2 + $0x18] sm:$0xff] %vm254, %v241
  %259 = vst.msk [vmem:[#allocation2 + $0x20] sm:$0xff] %vm254, %v242
  %260 = vst.msk [vmem:[#allocation2 + $0x28] sm:$0xff] %vm254, %v243
  %261 = vst.msk [vmem:[#allocation2 + $0x30] sm:$0xff] %vm254, %v244
  %262 = vst.msk [vmem:[#allocation2 + $0x38] sm:$0xff] %vm254, %v245
  %263 = vst.msk [vmem:[#allocation2 + $0x40] sm:$0xff] %vm254, %v246
  %264 = vst.msk [vmem:[#allocation2 + $0x48] sm:$0xff] %vm254, %v247
  %265 = vst.msk [vmem:[#allocation2 + $0x50] sm:$0xff] %vm254, %v248
  %266 = vst.msk [vmem:[#allocation2 + $0x58] sm:$0xff] %vm254, %v249
  %267 = vst.msk [vmem:[#allocation2 + $0x60] sm:$0xff] %vm254, %v250
  %268 = vst.msk [vmem:[#allocation2 + $0x68] sm:$0xff] %vm254, %v251
  %269 = vst.msk [vmem:[#allocation2 + $0x70] sm:$0xff] %vm254, %v252
  %270 = vst.msk [vmem:[#allocation2 + $0x78] sm:$0xff] %vm254, %v253
  // Predicated region
  $region18: #{intr_forward.20} parent=0 // pred_check
    %p271 = pneg %p15
  $region19: #{intr_forward.20} parent=0 // pred_check_branch
    %273 = sbr.rel (%p271) target = $region21
  $region20: #{intr_forward.20} parent=0 // pred_region
    %v274 = vld [vmem:[#allocation2] sm:$0xff]
    %v275 = vld [vmem:[#allocation2 + $0x8] sm:$0xff]
    %v276 = vld [vmem:[#allocation2 + $0x10] sm:$0xff]
    %v277 = vld [vmem:[#allocation2 + $0x18] sm:$0xff]
    %v278 = vld [vmem:[#allocation2 + $0x20] sm:$0xff]
    %v279 = vld [vmem:[#allocation2 + $0x28] sm:$0xff]
    %v280 = vld [vmem:[#allocation2 + $0x30] sm:$0xff]
    %v281 = vld [vmem:[#allocation2 + $0x38] sm:$0xff]
    %v282 = vld [vmem:[#allocation2 + $0x40] sm:$0xff]
    %v283 = vld [vmem:[#allocation2 + $0x48] sm:$0xff]
    %v284 = vld [vmem:[#allocation2 + $0x50] sm:$0xff]
    %v285 = vld [vmem:[#allocation2 + $0x58] sm:$0xff]
    %v286 = vld [vmem:[#allocation2 + $0x60] sm:$0xff]
    %v287 = vld [vmem:[#allocation2 + $0x68] sm:$0xff]
    %v288 = vld [vmem:[#allocation2 + $0x70] sm:$0xff]
    %v289 = vld [vmem:[#allocation2 + $0x78] sm:$0xff]
    %v290 = vld [vmem:[%s2] sm:$0x1]
    %v292 = vlaneseq
    %v293 = vshrl.u32 %v292, 7
    %v294 = vsub.s32 0, %v293
    %v295 = vrot.slane %v290, %v294
    %v297 = vadd.f32 %v274, %v295
    %v298 = vadd.f32 %v275, %v295
    %v299 = vadd.f32 %v276, %v295
    %v300 = vadd.f32 %v277, %v295
    %v301 = vadd.f32 %v278, %v295
    %v302 = vadd.f32 %v279, %v295
    %v303 = vadd.f32 %v280, %v295
    %v304 = vadd.f32 %v281, %v295
    %v305 = vadd.f32 %v282, %v295
    %v306 = vadd.f32 %v283, %v295
    %v307 = vadd.f32 %v284, %v295
    %v308 = vadd.f32 %v285, %v295
    %v309 = vadd.f32 %v286, %v295
    %v310 = vadd.f32 %v287, %v295
    %v311 = vadd.f32 %v288, %v295
    %v312 = vadd.f32 %v289, %v295
    %v313 = vmax.f32 %v297, 0.0
    %v314 = vmax.f32 %v298, 0.0
    %v315 = vmax.f32 %v299, 0.0
    %v316 = vmax.f32 %v300, 0.0
    %v317 = vmax.f32 %v301, 0.0
    %v318 = vmax.f32 %v302, 0.0
    %v319 = vmax.f32 %v303, 0.0
    %v320 = vmax.f32 %v304, 0.0
    %v321 = vmax.f32 %v305, 0.0
    %v322 = vmax.f32 %v306, 0.0
    %v323 = vmax.f32 %v307, 0.0
    %v324 = vmax.f32 %v308, 0.0
    %v325 = vmax.f32 %v309, 0.0
    %v326 = vmax.f32 %v310, 0.0
    %v327 = vmax.f32 %v311, 0.0
    %v328 = vmax.f32 %v312, 0.0
    %329 = vst.msk [vmem:[%s3] sm:$0xff] %vm254, %v313
    %330 = vst.msk [vmem:[%s3 + $0x8] sm:$0xff] %vm254, %v314
    %331 = vst.msk [vmem:[%s3 + $0x10] sm:$0xff] %vm254, %v315
    %332 = vst.msk [vmem:[%s3 + $0x18] sm:$0xff] %vm254, %v316
    %333 = vst.msk [vmem:[%s3 + $0x20] sm:$0xff] %vm254, %v317
    %334 = vst.msk [vmem:[%s3 + $0x28] sm:$0xff] %vm254, %v318
    %335 = vst.msk [vmem:[%s3 + $0x30] sm:$0xff] %vm254, %v319
    %336 = vst.msk [vmem:[%s3 + $0x38] sm:$0xff] %vm254, %v320
    %337 = vst.msk [vmem:[%s3 + $0x40] sm:$0xff] %vm254, %v321
    %338 = vst.msk [vmem:[%s3 + $0x48] sm:$0xff] %vm254, %v322
    %339 = vst.msk [vmem:[%s3 + $0x50] sm:$0xff] %vm254, %v323
    %340 = vst.msk [vmem:[%s3 + $0x58] sm:$0xff] %vm254, %v324
    %341 = vst.msk [vmem:[%s3 + $0x60] sm:$0xff] %vm254, %v325
    %342 = vst.msk [vmem:[%s3 + $0x68] sm:$0xff] %vm254, %v326
    %343 = vst.msk [vmem:[%s3 + $0x70] sm:$0xff] %vm254, %v327
    %344 = vst.msk [vmem:[%s3 + $0x78] sm:$0xff] %vm254, %v328
  $region21: #{intr_forward.20} parent=0 // pred_fallthru
    _
  // Predicated region
  $region22: #{intr_forward.20} parent=0 // pred_check
    _
  $region23: #{intr_forward.20} parent=0 // pred_check_branch
    %346 = sbr.rel (0) target = $region25
  $region24: #{intr_forward.20} parent=0 // pred_region
    _
  $region25: #{intr_forward.20} parent=0 // pred_fallthru
    _
  // Predicated region
  $region26: #{intr_forward.20} parent=0 // pred_check
    _
  $region27: #{intr_forward.20} parent=0 // pred_check_branch
    %348 = sbr.rel (0) target = $region29
  $region28: #{intr_forward.20} parent=0 // pred_region
    _
  $region29: #{intr_forward.20} parent=0 // pred_fallthru
    _

// kernel: intr_forward.22
$region0: #{intr_forward.22}
  #allocation0 [shape = 'u32[]', space=smem, size = 0x4, offset = 0x4, fixed_abs, tag = 'smem constant byte address 0x4 - core index']
  #allocation1 [shape = 'u32[144,128]{1,0:T(1,128)}', space=vmem, size = 0x12000, scoped, tag = 'internal scratch']
  %s0 = inlined_call_operand.vmem [shape: f32[128,32], index: 0, kind: input, shape index: {}]
  %s1 = inlined_call_operand.vmem [shape: f32[128,32], index: 1, kind: input, shape index: {}]
  %s2 = inlined_call_operand.vmem [shape: bf16[32,64], index: 2, kind: input, shape index: {}]
  %s3 = inlined_call_operand.vmem [shape: f32[1,64], index: 3, kind: input, shape index: {}]
  %s4 = inlined_call_operand.vmem [shape: bf16[128,32], index: 4, kind: output, shape index: {0}]
  %s5 = inlined_call_operand.vmem [shape: bf16[128,32], index: 5, kind: output, shape index: {1}]
  %6 = xla_tuple %s4, %s5
  %s7 = sld [smem:[#allocation0]]
  $region34: #{intr_forward.22} parent=0
    _
  %s9 = ssub.s32 1, %s7
  %s10 = scalar_select 0, %s9, %s7
  // Predicated region
  $region2: #{intr_forward.22} parent=0 // pred_check
    _
  $region3: #{intr_forward.22} parent=0 // pred_check_branch
    %12 = sbr.rel (0) target = $region5
  $region4: #{intr_forward.22} parent=0 // pred_region
    _
  $region5: #{intr_forward.22} parent=0 // pred_fallthru
    _
  // Predicated region
  $region6: #{intr_forward.22} parent=0 // pred_check
    _
  $region7: #{intr_forward.22} parent=0 // pred_check_branch
    %14 = sbr.rel (0) target = $region9
  $region8: #{intr_forward.22} parent=0 // pred_region
    _
  $region9: #{intr_forward.22} parent=0 // pred_fallthru
    _
  // Predicated region
  $region10: #{intr_forward.22} parent=0 // pred_check
    _
  $region11: #{intr_forward.22} parent=0 // pred_check_branch
    %16 = sbr.rel (0) target = $region13
  $region12: #{intr_forward.22} parent=0 // pred_region
    _
  $region13: #{intr_forward.22} parent=0 // pred_fallthru
    _
  // Predicated region
  $region14: #{intr_forward.22} parent=0 // pred_check
    _
  $region15: #{intr_forward.22} parent=0 // pred_check_branch
    %18 = sbr.rel (0) target = $region17
  $region16: #{intr_forward.22} parent=0 // pred_region
    _
  $region17: #{intr_forward.22} parent=0 // pred_fallthru
    _
  %v20 = vld [vmem:[%s0] sm:$0xff]
  %v21 = vld [vmem:[%s0 + $0x8] sm:$0xff]
  %v22 = vld [vmem:[%s0 + $0x10] sm:$0xff]
  %v23 = vld [vmem:[%s0 + $0x18] sm:$0xff]
  %v24 = vld [vmem:[%s0 + $0x20] sm:$0xff]
  %v25 = vld [vmem:[%s0 + $0x28] sm:$0xff]
  %v26 = vld [vmem:[%s0 + $0x30] sm:$0xff]
  %v27 = vld [vmem:[%s0 + $0x38] sm:$0xff]
  %v28 = vld [vmem:[%s0 + $0x40] sm:$0xff]
  %v29 = vld [vmem:[%s0 + $0x48] sm:$0xff]
  %v30 = vld [vmem:[%s0 + $0x50] sm:$0xff]
  %v31 = vld [vmem:[%s0 + $0x58] sm:$0xff]
  %v32 = vld [vmem:[%s0 + $0x60] sm:$0xff]
  %v33 = vld [vmem:[%s0 + $0x68] sm:$0xff]
  %v34 = vld [vmem:[%s0 + $0x70] sm:$0xff]
  %v35 = vld [vmem:[%s0 + $0x78] sm:$0xff]
  %v36 = vld [vmem:[%s1] sm:$0xff]
  %v37 = vld [vmem:[%s1 + $0x8] sm:$0xff]
  %v38 = vld [vmem:[%s1 + $0x10] sm:$0xff]
  %v39 = vld [vmem:[%s1 + $0x18] sm:$0xff]
  %v40 = vld [vmem:[%s1 + $0x20] sm:$0xff]
  %v41 = vld [vmem:[%s1 + $0x28] sm:$0xff]
  %v42 = vld [vmem:[%s1 + $0x30] sm:$0xff]
  %v43 = vld [vmem:[%s1 + $0x38] sm:$0xff]
  %v44 = vld [vmem:[%s1 + $0x40] sm:$0xff]
  %v45 = vld [vmem:[%s1 + $0x48] sm:$0xff]
  %v46 = vld [vmem:[%s1 + $0x50] sm:$0xff]
  %v47 = vld [vmem:[%s1 + $0x58] sm:$0xff]
  %v48 = vld [vmem:[%s1 + $0x60] sm:$0xff]
  %v49 = vld [vmem:[%s1 + $0x68] sm:$0xff]
  %v50 = vld [vmem:[%s1 + $0x70] sm:$0xff]
  %v51 = vld [vmem:[%s1 + $0x78] sm:$0xff]
  %v52 = vadd.f32 %v20, %v36
  %v53 = vadd.f32 %v21, %v37
  %v54 = vadd.f32 %v22, %v38
  %v55 = vadd.f32 %v23, %v39
  %v56 = vadd.f32 %v24, %v40
  %v57 = vadd.f32 %v25, %v41
  %v58 = vadd.f32 %v26, %v42
  %v59 = vadd.f32 %v27, %v43
  %v60 = vadd.f32 %v28, %v44
  %v61 = vadd.f32 %v29, %v45
  %v62 = vadd.f32 %v30, %v46
  %v63 = vadd.f32 %v31, %v47
  %v64 = vadd.f32 %v32, %v48
  %v65 = vadd.f32 %v33, %v49
  %v66 = vadd.f32 %v34, %v50
  %v67 = vadd.f32 %v35, %v51
  %v68 = vpack.c.bf16 %v53, %v52
  %v69 = vpack.c.bf16 %v55, %v54
  %v70 = vpack.c.bf16 %v57, %v56
  %v71 = vpack.c.bf16 %v59, %v58
  %v72 = vpack.c.bf16 %v61, %v60
  %v73 = vpack.c.bf16 %v63, %v62
  %v74 = vpack.c.bf16 %v65, %v64
  %v75 = vpack.c.bf16 %v67, %v66
  %v76 = vld [vmem:[%s2] sm:$0xf]
  %v77 = vld [vmem:[%s2 + $0x4] sm:$0xf]
  %v78 = vld [vmem:[%s2 + $0x8] sm:$0xf]
  %v79 = vld [vmem:[%s2 + $0xc] sm:$0xf]
  %v80 = vld [vmem:[%s3] sm:$0x1]
  %v82 = vlaneseq
  %v83 = vshrl.u32 %v82, 7
  %v84 = vsub.s32 0, %v83
  %v85 = vrot.slane %v80, %v84
  %v91 = vunpack.c.l.b16 %v76
  %v92 = vunpack.c.l.b16 %v77
  %v93 = vunpack.c.l.b16 %v78
  %v94 = vunpack.c.l.b16 %v79
  %v95 = vpack.c.b16 %v92, %v91
  %v96 = vpack.c.b16 %v94, %v93
  %vm99 = vcmask 261120
  %v101 = vsel %vm99, %v68, 0
  %v104 = vsel %vm99, %v69, 0
  %v107 = vsel %vm99, %v70, 0
  %v110 = vsel %vm99, %v71, 0
  %v113 = vsel %vm99, %v72, 0
  %v116 = vsel %vm99, %v73, 0
  %v119 = vsel %vm99, %v74, 0
  %v122 = vsel %vm99, %v75, 0
  %124 = vmatprep.subr.bf16.mxu0 0
  %125 = vmatpush1.bf16.msra.mxu0 0
  %126 = vmatprep.subr.bf16.mxu0 0
  %127 = vmatpush1.bf16.msra.mxu0 0
  %128 = vmatprep.subr.bf16.mxu0 0
  %129 = vmatpush1.bf16.msra.mxu0 0
  %130 = vmatprep.subr.bf16.mxu0 0
  %131 = vmatpush1.bf16.msra.mxu0 0
  %132 = vmatprep.subr.bf16.mxu0 0
  %133 = vmatpush1.bf16.msra.mxu0 0
  %134 = vmatprep.subr.bf16.mxu0 0
  %135 = vmatpush1.bf16.msra.mxu0 0
  %136 = vmatprep.subr.bf16.mxu0 0
  %137 = vmatpush1.bf16.msra.mxu0 %v96
  %138 = vmatprep.subr.bf16.mxu0 0
  %139 = vmatpush1.bf16.msra.mxu0 %v95
  %140 = vmatprep.subr.bf16.mxu0 0
  %141 = vmatpush2.bf16.msra.mxu0 0
  %142 = vmatprep.subr.bf16.mxu0 0
  %143 = vmatpush2.bf16.msra.mxu0 0
  %144 = vmatprep.subr.bf16.mxu0 0
  %145 = vmatpush2.bf16.msra.mxu0 0
  %146 = vmatprep.subr.bf16.mxu0 0
  %147 = vmatpush2.bf16.msra.mxu0 0
  %148 = vmatprep.subr.bf16.mxu0 0
  %149 = vmatpush2.bf16.msra.mxu0 0
  %150 = vmatprep.subr.bf16.mxu0 0
  %151 = vmatpush2.bf16.msra.mxu0 0
  %152 = vmatprep.subr.bf16.mxu0 0
  %153 = vmatpush2.bf16.msra.mxu0 0
  %154 = vmatprep.subr.bf16.mxu0 0
  %155 = vmatpush2.bf16.msra.mxu0 0
  %156 = vmatprep.mubr.bf16.mxu0 0
  %157 = vmatmul.mubr.bf16.gmra.mxu0 %v101
  %v158 = vpop.f32.mrf.mxu0
  %v159 = vadd.f32 %v85, %v158
  %v160 = vpop.f32.mrf.mxu0
  %v161 = vpop.f32.mrf.mxu0
  %v162 = vadd.f32 %v85, %v161
  %v163 = vpop.f32.mrf.mxu0
  %164 = vmatprep.mubr.bf16.mxu0 0
  %165 = vmatmul.mubr.bf16.gmra.mxu0 %v104
  %v166 = vpop.f32.mrf.mxu0
  %v167 = vadd.f32 %v85, %v166
  %v168 = vpop.f32.mrf.mxu0
  %v169 = vpop.f32.mrf.mxu0
  %v170 = vadd.f32 %v85, %v169
  %v171 = vpop.f32.mrf.mxu0
  %172 = vmatprep.mubr.bf16.mxu0 0
  %173 = vmatmul.mubr.bf16.gmra.mxu0 %v107
  %v174 = vpop.f32.mrf.mxu0
  %v175 = vadd.f32 %v85, %v174
  %v176 = vpop.f32.mrf.mxu0
  %v177 = vpop.f32.mrf.mxu0
  %v178 = vadd.f32 %v85, %v177
  %v179 = vpop.f32.mrf.mxu0
  %180 = vmatprep.mubr.bf16.mxu0 0
  %181 = vmatmul.mubr.bf16.gmra.mxu0 %v110
  %v182 = vpop.f32.mrf.mxu0
  %v183 = vadd.f32 %v85, %v182
  %v184 = vpop.f32.mrf.mxu0
  %v185 = vpop.f32.mrf.mxu0
  %v186 = vadd.f32 %v85, %v185
  %v187 = vpop.f32.mrf.mxu0
  %188 = vmatprep.mubr.bf16.mxu0 0
  %189 = vmatmul.mubr.bf16.gmra.mxu0 %v113
  %v190 = vpop.f32.mrf.mxu0
  %v191 = vadd.f32 %v85, %v190
  %v192 = vpop.f32.mrf.mxu0
  %v193 = vpop.f32.mrf.mxu0
  %v194 = vadd.f32 %v85, %v193
  %v195 = vpop.f32.mrf.mxu0
  %196 = vmatprep.mubr.bf16.mxu0 0
  %197 = vmatmul.mubr.bf16.gmra.mxu0 %v116
  %v198 = vpop.f32.mrf.mxu0
  %v199 = vadd.f32 %v85, %v198
  %v200 = vpop.f32.mrf.mxu0
  %v201 = vpop.f32.mrf.mxu0
  %v202 = vadd.f32 %v85, %v201
  %v203 = vpop.f32.mrf.mxu0
  %204 = vmatprep.mubr.bf16.mxu0 0
  %205 = vmatmul.mubr.bf16.gmra.mxu0 %v119
  %v206 = vpop.f32.mrf.mxu0
  %v207 = vadd.f32 %v85, %v206
  %v208 = vpop.f32.mrf.mxu0
  %v209 = vpop.f32.mrf.mxu0
  %v210 = vadd.f32 %v85, %v209
  %v211 = vpop.f32.mrf.mxu0
  %212 = vmatprep.mubr.bf16.mxu0 0
  %213 = vmatmul.mubr.bf16.gmra.mxu0 %v122
  %v214 = vpop.f32.mrf.mxu0
  %v215 = vadd.f32 %v85, %v214
  %v216 = vpop.f32.mrf.mxu0
  %v217 = vpop.f32.mrf.mxu0
  %v218 = vadd.f32 %v85, %v217
  %v219 = vpop.f32.mrf.mxu0
  %220 = vdwg.mxu0
  %v221 = vpack.c.bf16 %v162, %v159
  %v222 = vpack.c.bf16 %v170, %v167
  %v223 = vpack.c.bf16 %v178, %v175
  %v224 = vpack.c.bf16 %v186, %v183
  %v225 = vpack.c.bf16 %v194, %v191
  %v226 = vpack.c.bf16 %v202, %v199
  %v227 = vpack.c.bf16 %v210, %v207
  %v228 = vpack.c.bf16 %v218, %v215
  %v237 = vunpack.c.l.b16 %v221
  %v238 = vunpack.c.h.b16 %v221
  %v239 = vunpack.c.l.b16 %v222
  %v240 = vunpack.c.h.b16 %v222
  %v241 = vunpack.c.l.b16 %v223
  %v242 = vunpack.c.h.b16 %v223
  %v243 = vunpack.c.l.b16 %v224
  %v244 = vunpack.c.h.b16 %v224
  %v245 = vunpack.c.l.b16 %v225
  %v246 = vunpack.c.h.b16 %v225
  %v247 = vunpack.c.l.b16 %v226
  %v248 = vunpack.c.h.b16 %v226
  %v249 = vunpack.c.l.b16 %v227
  %v250 = vunpack.c.h.b16 %v227
  %v251 = vunpack.c.l.b16 %v228
  %v252 = vunpack.c.h.b16 %v228
  %v253 = vpack.c.b16 %v237, %v237
  %v254 = vpack.c.b16 %v238, %v238
  %v255 = vpack.c.b16 %v239, %v239
  %v256 = vpack.c.b16 %v240, %v240
  %v257 = vpack.c.b16 %v241, %v241
  %v258 = vpack.c.b16 %v242, %v242
  %v259 = vpack.c.b16 %v243, %v243
  %v260 = vpack.c.b16 %v244, %v244
  %v261 = vpack.c.b16 %v245, %v245
  %v262 = vpack.c.b16 %v246, %v246
  %v263 = vpack.c.b16 %v247, %v247
  %v264 = vpack.c.b16 %v248, %v248
  %v265 = vpack.c.b16 %v249, %v249
  %v266 = vpack.c.b16 %v250, %v250
  %v267 = vpack.c.b16 %v251, %v251
  %v268 = vpack.c.b16 %v252, %v252
  %vm285 = vcmask 257024
  %286 = vst.msk [vmem:[%s4] sm:$0xf] %vm285, %v253
  %287 = vst.msk [vmem:[%s4 + $0x4] sm:$0xf] %vm285, %v254
  %288 = vst.msk [vmem:[%s4 + $0x8] sm:$0xf] %vm285, %v255
  %289 = vst.msk [vmem:[%s4 + $0xc] sm:$0xf] %vm285, %v256
  %290 = vst.msk [vmem:[%s4 + $0x10] sm:$0xf] %vm285, %v257
  %291 = vst.msk [vmem:[%s4 + $0x14] sm:$0xf] %vm285, %v258
  %292 = vst.msk [vmem:[%s4 + $0x18] sm:$0xf] %vm285, %v259
  %293 = vst.msk [vmem:[%s4 + $0x1c] sm:$0xf] %vm285, %v260
  %294 = vst.msk [vmem:[%s4 + $0x20] sm:$0xf] %vm285, %v261
  %295 = vst.msk [vmem:[%s4 + $0x24] sm:$0xf] %vm285, %v262
  %296 = vst.msk [vmem:[%s4 + $0x28] sm:$0xf] %vm285, %v263
  %297 = vst.msk [vmem:[%s4 + $0x2c] sm:$0xf] %vm285, %v264
  %298 = vst.msk [vmem:[%s4 + $0x30] sm:$0xf] %vm285, %v265
  %299 = vst.msk [vmem:[%s4 + $0x34] sm:$0xf] %vm285, %v266
  %300 = vst.msk [vmem:[%s4 + $0x38] sm:$0xf] %vm285, %v267
  %301 = vst.msk [vmem:[%s4 + $0x3c] sm:$0xf] %vm285, %v268
  %302 = vrot.lane.b32.xlu0 %v253, 96
  %v303 = vpop.permute.xlu0 %302
  %304 = vrot.lane.b32.xlu0 %v254, 96
  %v305 = vpop.permute.xlu0 %304
  %306 = vrot.lane.b32.xlu0 %v255, 96
  %v307 = vpop.permute.xlu0 %306
  %308 = vrot.lane.b32.xlu0 %v256, 96
  %v309 = vpop.permute.xlu0 %308
  %310 = vrot.lane.b32.xlu0 %v257, 96
  %v311 = vpop.permute.xlu0 %310
  %312 = vrot.lane.b32.xlu0 %v258, 96
  %v313 = vpop.permute.xlu0 %312
  %314 = vrot.lane.b32.xlu0 %v259, 96
  %v315 = vpop.permute.xlu0 %314
  %316 = vrot.lane.b32.xlu0 %v260, 96
  %v317 = vpop.permute.xlu0 %316
  %318 = vrot.lane.b32.xlu0 %v261, 96
  %v319 = vpop.permute.xlu0 %318
  %320 = vrot.lane.b32.xlu0 %v262, 96
  %v321 = vpop.permute.xlu0 %320
  %322 = vrot.lane.b32.xlu0 %v263, 96
  %v323 = vpop.permute.xlu0 %322
  %324 = vrot.lane.b32.xlu0 %v264, 96
  %v325 = vpop.permute.xlu0 %324
  %326 = vrot.lane.b32.xlu0 %v265, 96
  %v327 = vpop.permute.xlu0 %326
  %328 = vrot.lane.b32.xlu0 %v266, 96
  %v329 = vpop.permute.xlu0 %328
  %330 = vrot.lane.b32.xlu0 %v267, 96
  %v331 = vpop.permute.xlu0 %330
  %332 = vrot.lane.b32.xlu0 %v268, 96
  %v333 = vpop.permute.xlu0 %332
  %350 = vst.msk [vmem:[%s5] sm:$0xf] %vm285, %v303
  %351 = vst.msk [vmem:[%s5 + $0x4] sm:$0xf] %vm285, %v305
  %352 = vst.msk [vmem:[%s5 + $0x8] sm:$0xf] %vm285, %v307
  %353 = vst.msk [vmem:[%s5 + $0xc] sm:$0xf] %vm285, %v309
  %354 = vst.msk [vmem:[%s5 + $0x10] sm:$0xf] %vm285, %v311
  %355 = vst.msk [vmem:[%s5 + $0x14] sm:$0xf] %vm285, %v313
  %356 = vst.msk [vmem:[%s5 + $0x18] sm:$0xf] %vm285, %v315
  %357 = vst.msk [vmem:[%s5 + $0x1c] sm:$0xf] %vm285, %v317
  %358 = vst.msk [vmem:[%s5 + $0x20] sm:$0xf] %vm285, %v319
  %359 = vst.msk [vmem:[%s5 + $0x24] sm:$0xf] %vm285, %v321
  %360 = vst.msk [vmem:[%s5 + $0x28] sm:$0xf] %vm285, %v323
  %361 = vst.msk [vmem:[%s5 + $0x2c] sm:$0xf] %vm285, %v325
  %362 = vst.msk [vmem:[%s5 + $0x30] sm:$0xf] %vm285, %v327
  %363 = vst.msk [vmem:[%s5 + $0x34] sm:$0xf] %vm285, %v329
  %364 = vst.msk [vmem:[%s5 + $0x38] sm:$0xf] %vm285, %v331
  %365 = vst.msk [vmem:[%s5 + $0x3c] sm:$0xf] %vm285, %v333
  // Predicated region
  $region18: #{intr_forward.22} parent=0 // pred_check
    _
  $region19: #{intr_forward.22} parent=0 // pred_check_branch
    %367 = sbr.rel (0) target = $region21
  $region20: #{intr_forward.22} parent=0 // pred_region
    _
  $region21: #{intr_forward.22} parent=0 // pred_fallthru
    _
  // Predicated region
  $region22: #{intr_forward.22} parent=0 // pred_check
    _
  $region23: #{intr_forward.22} parent=0 // pred_check_branch
    %369 = sbr.rel (0) target = $region25
  $region24: #{intr_forward.22} parent=0 // pred_region
    _
  $region25: #{intr_forward.22} parent=0 // pred_fallthru
    _
  // Predicated region
  $region26: #{intr_forward.22} parent=0 // pred_check
    _
  $region27: #{intr_forward.22} parent=0 // pred_check_branch
    %371 = sbr.rel (0) target = $region29
  $region28: #{intr_forward.22} parent=0 // pred_region
    _
  $region29: #{intr_forward.22} parent=0 // pred_fallthru
    _
  // Predicated region
  $region30: #{intr_forward.22} parent=0 // pred_check
    _
  $region31: #{intr_forward.22} parent=0 // pred_check_branch
    %373 = sbr.rel (0) target = $region33
  $region32: #{intr_forward.22} parent=0 // pred_region
    _
  $region33: #{intr_forward.22} parent=0 // pred_fallthru
    _

// kernel: intr_forward.30
$region0: #{intr_forward.30}
  #allocation0 [shape = 'u32[]', space=smem, size = 0x4, offset = 0x4, fixed_abs, tag = 'smem constant byte address 0x4 - core index']
  #allocation1 [shape = 'u32[144,128]{1,0:T(1,128)}', space=vmem, size = 0x12000, scoped, tag = 'internal scratch']
  %s0 = inlined_call_operand.vmem [shape: f32[128,32], index: 0, kind: input, shape index: {}]
  %s1 = inlined_call_operand.vmem [shape: bf16[32,64], index: 1, kind: input, shape index: {}]
  %s2 = inlined_call_operand.vmem [shape: f32[1,64], index: 2, kind: input, shape index: {}]
  %s3 = inlined_call_operand.vmem [shape: bf16[128,32], index: 3, kind: output, shape index: {0}]
  %s4 = inlined_call_operand.vmem [shape: bf16[128,32], index: 4, kind: output, shape index: {1}]
  %5 = xla_tuple %s3, %s4
  %s6 = sld [smem:[#allocation0]]
  $region30: #{intr_forward.30} parent=0
    _
  %s8 = ssub.s32 1, %s6
  %s9 = scalar_select 0, %s8, %s6
  // Predicated region
  $region2: #{intr_forward.30} parent=0 // pred_check
    _
  $region3: #{intr_forward.30} parent=0 // pred_check_branch
    %11 = sbr.rel (0) target = $region5
  $region4: #{intr_forward.30} parent=0 // pred_region
    _
  $region5: #{intr_forward.30} parent=0 // pred_fallthru
    _
  // Predicated region
  $region6: #{intr_forward.30} parent=0 // pred_check
    _
  $region7: #{intr_forward.30} parent=0 // pred_check_branch
    %13 = sbr.rel (0) target = $region9
  $region8: #{intr_forward.30} parent=0 // pred_region
    _
  $region9: #{intr_forward.30} parent=0 // pred_fallthru
    _
  // Predicated region
  $region10: #{intr_forward.30} parent=0 // pred_check
    _
  $region11: #{intr_forward.30} parent=0 // pred_check_branch
    %15 = sbr.rel (0) target = $region13
  $region12: #{intr_forward.30} parent=0 // pred_region
    _
  $region13: #{intr_forward.30} parent=0 // pred_fallthru
    _
  %v17 = vld [vmem:[%s0] sm:$0xff]
  %v18 = vld [vmem:[%s0 + $0x8] sm:$0xff]
  %v19 = vld [vmem:[%s0 + $0x10] sm:$0xff]
  %v20 = vld [vmem:[%s0 + $0x18] sm:$0xff]
  %v21 = vld [vmem:[%s0 + $0x20] sm:$0xff]
  %v22 = vld [vmem:[%s0 + $0x28] sm:$0xff]
  %v23 = vld [vmem:[%s0 + $0x30] sm:$0xff]
  %v24 = vld [vmem:[%s0 + $0x38] sm:$0xff]
  %v25 = vld [vmem:[%s0 + $0x40] sm:$0xff]
  %v26 = vld [vmem:[%s0 + $0x48] sm:$0xff]
  %v27 = vld [vmem:[%s0 + $0x50] sm:$0xff]
  %v28 = vld [vmem:[%s0 + $0x58] sm:$0xff]
  %v29 = vld [vmem:[%s0 + $0x60] sm:$0xff]
  %v30 = vld [vmem:[%s0 + $0x68] sm:$0xff]
  %v31 = vld [vmem:[%s0 + $0x70] sm:$0xff]
  %v32 = vld [vmem:[%s0 + $0x78] sm:$0xff]
  %v33 = vpack.c.bf16 %v18, %v17
  %v34 = vpack.c.bf16 %v20, %v19
  %v35 = vpack.c.bf16 %v22, %v21
  %v36 = vpack.c.bf16 %v24, %v23
  %v37 = vpack.c.bf16 %v26, %v25
  %v38 = vpack.c.bf16 %v28, %v27
  %v39 = vpack.c.bf16 %v30, %v29
  %v40 = vpack.c.bf16 %v32, %v31
  %v41 = vld [vmem:[%s1] sm:$0xf]
  %v42 = vld [vmem:[%s1 + $0x4] sm:$0xf]
  %v43 = vld [vmem:[%s1 + $0x8] sm:$0xf]
  %v44 = vld [vmem:[%s1 + $0xc] sm:$0xf]
  %v45 = vld [vmem:[%s2] sm:$0x1]
  %v47 = vlaneseq
  %v48 = vshrl.u32 %v47, 7
  %v49 = vsub.s32 0, %v48
  %v50 = vrot.slane %v45, %v49
  %v56 = vunpack.c.l.b16 %v41
  %v57 = vunpack.c.l.b16 %v42
  %v58 = vunpack.c.l.b16 %v43
  %v59 = vunpack.c.l.b16 %v44
  %v60 = vpack.c.b16 %v57, %v56
  %v61 = vpack.c.b16 %v59, %v58
  %vm64 = vcmask 261120
  %v66 = vsel %vm64, %v33, 0
  %v69 = vsel %vm64, %v34, 0
  %v72 = vsel %vm64, %v35, 0
  %v75 = vsel %vm64, %v36, 0
  %v78 = vsel %vm64, %v37, 0
  %v81 = vsel %vm64, %v38, 0
  %v84 = vsel %vm64, %v39, 0
  %v87 = vsel %vm64, %v40, 0
  %89 = vmatprep.subr.bf16.mxu0 0
  %90 = vmatpush1.bf16.msra.mxu0 0
  %91 = vmatprep.subr.bf16.mxu0 0
  %92 = vmatpush1.bf16.msra.mxu0 0
  %93 = vmatprep.subr.bf16.mxu0 0
  %94 = vmatpush1.bf16.msra.mxu0 0
  %95 = vmatprep.subr.bf16.mxu0 0
  %96 = vmatpush1.bf16.msra.mxu0 0
  %97 = vmatprep.subr.bf16.mxu0 0
  %98 = vmatpush1.bf16.msra.mxu0 0
  %99 = vmatprep.subr.bf16.mxu0 0
  %100 = vmatpush1.bf16.msra.mxu0 0
  %101 = vmatprep.subr.bf16.mxu0 0
  %102 = vmatpush1.bf16.msra.mxu0 %v61
  %103 = vmatprep.subr.bf16.mxu0 0
  %104 = vmatpush1.bf16.msra.mxu0 %v60
  %105 = vmatprep.subr.bf16.mxu0 0
  %106 = vmatpush2.bf16.msra.mxu0 0
  %107 = vmatprep.subr.bf16.mxu0 0
  %108 = vmatpush2.bf16.msra.mxu0 0
  %109 = vmatprep.subr.bf16.mxu0 0
  %110 = vmatpush2.bf16.msra.mxu0 0
  %111 = vmatprep.subr.bf16.mxu0 0
  %112 = vmatpush2.bf16.msra.mxu0 0
  %113 = vmatprep.subr.bf16.mxu0 0
  %114 = vmatpush2.bf16.msra.mxu0 0
  %115 = vmatprep.subr.bf16.mxu0 0
  %116 = vmatpush2.bf16.msra.mxu0 0
  %117 = vmatprep.subr.bf16.mxu0 0
  %118 = vmatpush2.bf16.msra.mxu0 0
  %119 = vmatprep.subr.bf16.mxu0 0
  %120 = vmatpush2.bf16.msra.mxu0 0
  %121 = vmatprep.mubr.bf16.mxu0 0
  %122 = vmatmul.mubr.bf16.gmra.mxu0 %v66
  %v123 = vpop.f32.mrf.mxu0
  %v124 = vadd.f32 %v50, %v123
  %v125 = vpop.f32.mrf.mxu0
  %v126 = vpop.f32.mrf.mxu0
  %v127 = vadd.f32 %v50, %v126
  %v128 = vpop.f32.mrf.mxu0
  %129 = vmatprep.mubr.bf16.mxu0 0
  %130 = vmatmul.mubr.bf16.gmra.mxu0 %v69
  %v131 = vpop.f32.mrf.mxu0
  %v132 = vadd.f32 %v50, %v131
  %v133 = vpop.f32.mrf.mxu0
  %v134 = vpop.f32.mrf.mxu0
  %v135 = vadd.f32 %v50, %v134
  %v136 = vpop.f32.mrf.mxu0
  %137 = vmatprep.mubr.bf16.mxu0 0
  %138 = vmatmul.mubr.bf16.gmra.mxu0 %v72
  %v139 = vpop.f32.mrf.mxu0
  %v140 = vadd.f32 %v50, %v139
  %v141 = vpop.f32.mrf.mxu0
  %v142 = vpop.f32.mrf.mxu0
  %v143 = vadd.f32 %v50, %v142
  %v144 = vpop.f32.mrf.mxu0
  %145 = vmatprep.mubr.bf16.mxu0 0
  %146 = vmatmul.mubr.bf16.gmra.mxu0 %v75
  %v147 = vpop.f32.mrf.mxu0
  %v148 = vadd.f32 %v50, %v147
  %v149 = vpop.f32.mrf.mxu0
  %v150 = vpop.f32.mrf.mxu0
  %v151 = vadd.f32 %v50, %v150
  %v152 = vpop.f32.mrf.mxu0
  %153 = vmatprep.mubr.bf16.mxu0 0
  %154 = vmatmul.mubr.bf16.gmra.mxu0 %v78
  %v155 = vpop.f32.mrf.mxu0
  %v156 = vadd.f32 %v50, %v155
  %v157 = vpop.f32.mrf.mxu0
  %v158 = vpop.f32.mrf.mxu0
  %v159 = vadd.f32 %v50, %v158
  %v160 = vpop.f32.mrf.mxu0
  %161 = vmatprep.mubr.bf16.mxu0 0
  %162 = vmatmul.mubr.bf16.gmra.mxu0 %v81
  %v163 = vpop.f32.mrf.mxu0
  %v164 = vadd.f32 %v50, %v163
  %v165 = vpop.f32.mrf.mxu0
  %v166 = vpop.f32.mrf.mxu0
  %v167 = vadd.f32 %v50, %v166
  %v168 = vpop.f32.mrf.mxu0
  %169 = vmatprep.mubr.bf16.mxu0 0
  %170 = vmatmul.mubr.bf16.gmra.mxu0 %v84
  %v171 = vpop.f32.mrf.mxu0
  %v172 = vadd.f32 %v50, %v171
  %v173 = vpop.f32.mrf.mxu0
  %v174 = vpop.f32.mrf.mxu0
  %v175 = vadd.f32 %v50, %v174
  %v176 = vpop.f32.mrf.mxu0
  %177 = vmatprep.mubr.bf16.mxu0 0
  %178 = vmatmul.mubr.bf16.gmra.mxu0 %v87
  %v179 = vpop.f32.mrf.mxu0
  %v180 = vadd.f32 %v50, %v179
  %v181 = vpop.f32.mrf.mxu0
  %v182 = vpop.f32.mrf.mxu0
  %v183 = vadd.f32 %v50, %v182
  %v184 = vpop.f32.mrf.mxu0
  %185 = vdwg.mxu0
  %v186 = vpack.c.bf16 %v127, %v124
  %v187 = vpack.c.bf16 %v135, %v132
  %v188 = vpack.c.bf16 %v143, %v140
  %v189 = vpack.c.bf16 %v151, %v148
  %v190 = vpack.c.bf16 %v159, %v156
  %v191 = vpack.c.bf16 %v167, %v164
  %v192 = vpack.c.bf16 %v175, %v172
  %v193 = vpack.c.bf16 %v183, %v180
  %v202 = vunpack.c.l.b16 %v186
  %v203 = vunpack.c.h.b16 %v186
  %v204 = vunpack.c.l.b16 %v187
  %v205 = vunpack.c.h.b16 %v187
  %v206 = vunpack.c.l.b16 %v188
  %v207 = vunpack.c.h.b16 %v188
  %v208 = vunpack.c.l.b16 %v189
  %v209 = vunpack.c.h.b16 %v189
  %v210 = vunpack.c.l.b16 %v190
  %v211 = vunpack.c.h.b16 %v190
  %v212 = vunpack.c.l.b16 %v191
  %v213 = vunpack.c.h.b16 %v191
  %v214 = vunpack.c.l.b16 %v192
  %v215 = vunpack.c.h.b16 %v192
  %v216 = vunpack.c.l.b16 %v193
  %v217 = vunpack.c.h.b16 %v193
  %v218 = vpack.c.b16 %v202, %v202
  %v219 = vpack.c.b16 %v203, %v203
  %v220 = vpack.c.b16 %v204, %v204
  %v221 = vpack.c.b16 %v205, %v205
  %v222 = vpack.c.b16 %v206, %v206
  %v223 = vpack.c.b16 %v207, %v207
  %v224 = vpack.c.b16 %v208, %v208
  %v225 = vpack.c.b16 %v209, %v209
  %v226 = vpack.c.b16 %v210, %v210
  %v227 = vpack.c.b16 %v211, %v211
  %v228 = vpack.c.b16 %v212, %v212
  %v229 = vpack.c.b16 %v213, %v213
  %v230 = vpack.c.b16 %v214, %v214
  %v231 = vpack.c.b16 %v215, %v215
  %v232 = vpack.c.b16 %v216, %v216
  %v233 = vpack.c.b16 %v217, %v217
  %vm250 = vcmask 257024
  %251 = vst.msk [vmem:[%s3] sm:$0xf] %vm250, %v218
  %252 = vst.msk [vmem:[%s3 + $0x4] sm:$0xf] %vm250, %v219
  %253 = vst.msk [vmem:[%s3 + $0x8] sm:$0xf] %vm250, %v220
  %254 = vst.msk [vmem:[%s3 + $0xc] sm:$0xf] %vm250, %v221
  %255 = vst.msk [vmem:[%s3 + $0x10] sm:$0xf] %vm250, %v222
  %256 = vst.msk [vmem:[%s3 + $0x14] sm:$0xf] %vm250, %v223
  %257 = vst.msk [vmem:[%s3 + $0x18] sm:$0xf] %vm250, %v224
  %258 = vst.msk [vmem:[%s3 + $0x1c] sm:$0xf] %vm250, %v225
  %259 = vst.msk [vmem:[%s3 + $0x20] sm:$0xf] %vm250, %v226
  %260 = vst.msk [vmem:[%s3 + $0x24] sm:$0xf] %vm250, %v227
  %261 = vst.msk [vmem:[%s3 + $0x28] sm:$0xf] %vm250, %v228
  %262 = vst.msk [vmem:[%s3 + $0x2c] sm:$0xf] %vm250, %v229
  %263 = vst.msk [vmem:[%s3 + $0x30] sm:$0xf] %vm250, %v230
  %264 = vst.msk [vmem:[%s3 + $0x34] sm:$0xf] %vm250, %v231
  %265 = vst.msk [vmem:[%s3 + $0x38] sm:$0xf] %vm250, %v232
  %266 = vst.msk [vmem:[%s3 + $0x3c] sm:$0xf] %vm250, %v233
  %267 = vrot.lane.b32.xlu0 %v218, 96
  %v268 = vpop.permute.xlu0 %267
  %269 = vrot.lane.b32.xlu0 %v219, 96
  %v270 = vpop.permute.xlu0 %269
  %271 = vrot.lane.b32.xlu0 %v220, 96
  %v272 = vpop.permute.xlu0 %271
  %273 = vrot.lane.b32.xlu0 %v221, 96
  %v274 = vpop.permute.xlu0 %273
  %275 = vrot.lane.b32.xlu0 %v222, 96
  %v276 = vpop.permute.xlu0 %275
  %277 = vrot.lane.b32.xlu0 %v223, 96
  %v278 = vpop.permute.xlu0 %277
  %279 = vrot.lane.b32.xlu0 %v224, 96
  %v280 = vpop.permute.xlu0 %279
  %281 = vrot.lane.b32.xlu0 %v225, 96
  %v282 = vpop.permute.xlu0 %281
  %283 = vrot.lane.b32.xlu0 %v226, 96
  %v284 = vpop.permute.xlu0 %283
  %285 = vrot.lane.b32.xlu0 %v227, 96
  %v286 = vpop.permute.xlu0 %285
  %287 = vrot.lane.b32.xlu0 %v228, 96
  %v288 = vpop.permute.xlu0 %287
  %289 = vrot.lane.b32.xlu0 %v229, 96
  %v290 = vpop.permute.xlu0 %289
  %291 = vrot.lane.b32.xlu0 %v230, 96
  %v292 = vpop.permute.xlu0 %291
  %293 = vrot.lane.b32.xlu0 %v231, 96
  %v294 = vpop.permute.xlu0 %293
  %295 = vrot.lane.b32.xlu0 %v232, 96
  %v296 = vpop.permute.xlu0 %295
  %297 = vrot.lane.b32.xlu0 %v233, 96
  %v298 = vpop.permute.xlu0 %297
  %315 = vst.msk [vmem:[%s4] sm:$0xf] %vm250, %v268
  %316 = vst.msk [vmem:[%s4 + $0x4] sm:$0xf] %vm250, %v270
  %317 = vst.msk [vmem:[%s4 + $0x8] sm:$0xf] %vm250, %v272
  %318 = vst.msk [vmem:[%s4 + $0xc] sm:$0xf] %vm250, %v274
  %319 = vst.msk [vmem:[%s4 + $0x10] sm:$0xf] %vm250, %v276
  %320 = vst.msk [vmem:[%s4 + $0x14] sm:$0xf] %vm250, %v278
  %321 = vst.msk [vmem:[%s4 + $0x18] sm:$0xf] %vm250, %v280
  %322 = vst.msk [vmem:[%s4 + $0x1c] sm:$0xf] %vm250, %v282
  %323 = vst.msk [vmem:[%s4 + $0x20] sm:$0xf] %vm250, %v284
  %324 = vst.msk [vmem:[%s4 + $0x24] sm:$0xf] %vm250, %v286
  %325 = vst.msk [vmem:[%s4 + $0x28] sm:$0xf] %vm250, %v288
  %326 = vst.msk [vmem:[%s4 + $0x2c] sm:$0xf] %vm250, %v290
  %327 = vst.msk [vmem:[%s4 + $0x30] sm:$0xf] %vm250, %v292
  %328 = vst.msk [vmem:[%s4 + $0x34] sm:$0xf] %vm250, %v294
  %329 = vst.msk [vmem:[%s4 + $0x38] sm:$0xf] %vm250, %v296
  %330 = vst.msk [vmem:[%s4 + $0x3c] sm:$0xf] %vm250, %v298
  // Predicated region
  $region14: #{intr_forward.30} parent=0 // pred_check
    _
  $region15: #{intr_forward.30} parent=0 // pred_check_branch
    %332 = sbr.rel (0) target = $region17
  $region16: #{intr_forward.30} parent=0 // pred_region
    _
  $region17: #{intr_forward.30} parent=0 // pred_fallthru
    _
  // Predicated region
  $region18: #{intr_forward.30} parent=0 // pred_check
    _
  $region19: #{intr_forward.30} parent=0 // pred_check_branch
    %334 = sbr.rel (0) target = $region21
  $region20: #{intr_forward.30} parent=0 // pred_region
    _
  $region21: #{intr_forward.30} parent=0 // pred_fallthru
    _
  // Predicated region
  $region22: #{intr_forward.30} parent=0 // pred_check
    _
  $region23: #{intr_forward.30} parent=0 // pred_check_branch
    %336 = sbr.rel (0) target = $region25
  $region24: #{intr_forward.30} parent=0 // pred_region
    _
  $region25: #{intr_forward.30} parent=0 // pred_fallthru
    _
  // Predicated region
  $region26: #{intr_forward.30} parent=0 // pred_check
    _
  $region27: #{intr_forward.30} parent=0 // pred_check_branch
    %338 = sbr.rel (0) target = $region29
  $region28: #{intr_forward.30} parent=0 // pred_region
    _
  $region29: #{intr_forward.30} parent=0 // pred_fallthru
    _

// kernel: intr_forward.26
$region0: #{intr_forward.26}
  #allocation0 [shape = 'u32[]', space=smem, size = 0x4, offset = 0x4, fixed_abs, tag = 'smem constant byte address 0x4 - core index']
  #allocation1 [shape = 'u32[144,128]{1,0:T(1,128)}', space=vmem, size = 0x12000, scoped, tag = 'internal scratch']
  %s0 = inlined_call_operand.vmem [shape: f32[16,32], index: 0, kind: input, shape index: {}]
  %s1 = inlined_call_operand.vmem [shape: f32[16,32], index: 1, kind: input, shape index: {}]
  %s2 = inlined_call_operand.vmem [shape: bf16[32,64], index: 2, kind: input, shape index: {}]
  %s3 = inlined_call_operand.vmem [shape: f32[1,64], index: 3, kind: input, shape index: {}]
  %s4 = inlined_call_operand.vmem [shape: bf16[16,32], index: 4, kind: output, shape index: {0}]
  %s5 = inlined_call_operand.vmem [shape: bf16[16,32], index: 5, kind: output, shape index: {1}]
  %6 = xla_tuple %s4, %s5
  %s7 = sld [smem:[#allocation0]]
  $region34: #{intr_forward.26} parent=0
    _
  %s9 = ssub.s32 1, %s7
  %s10 = scalar_select 0, %s9, %s7
  // Predicated region
  $region2: #{intr_forward.26} parent=0 // pred_check
    _
  $region3: #{intr_forward.26} parent=0 // pred_check_branch
    %12 = sbr.rel (0) target = $region5
  $region4: #{intr_forward.26} parent=0 // pred_region
    _
  $region5: #{intr_forward.26} parent=0 // pred_fallthru
    _
  // Predicated region
  $region6: #{intr_forward.26} parent=0 // pred_check
    _
  $region7: #{intr_forward.26} parent=0 // pred_check_branch
    %14 = sbr.rel (0) target = $region9
  $region8: #{intr_forward.26} parent=0 // pred_region
    _
  $region9: #{intr_forward.26} parent=0 // pred_fallthru
    _
  // Predicated region
  $region10: #{intr_forward.26} parent=0 // pred_check
    _
  $region11: #{intr_forward.26} parent=0 // pred_check_branch
    %16 = sbr.rel (0) target = $region13
  $region12: #{intr_forward.26} parent=0 // pred_region
    _
  $region13: #{intr_forward.26} parent=0 // pred_fallthru
    _
  // Predicated region
  $region14: #{intr_forward.26} parent=0 // pred_check
    _
  $region15: #{intr_forward.26} parent=0 // pred_check_branch
    %18 = sbr.rel (0) target = $region17
  $region16: #{intr_forward.26} parent=0 // pred_region
    _
  $region17: #{intr_forward.26} parent=0 // pred_fallthru
    _
  %v20 = vld [vmem:[%s0] sm:$0xff]
  %v21 = vld [vmem:[%s0 + $0x8] sm:$0xff]
  %v22 = vld [vmem:[%s1] sm:$0xff]
  %v23 = vld [vmem:[%s1 + $0x8] sm:$0xff]
  %v24 = vadd.f32 %v20, %v22
  %v25 = vadd.f32 %v21, %v23
  %v26 = vpack.c.bf16 %v25, %v24
  %v27 = vld [vmem:[%s2] sm:$0xf]
  %v28 = vld [vmem:[%s2 + $0x4] sm:$0xf]
  %v29 = vld [vmem:[%s2 + $0x8] sm:$0xf]
  %v30 = vld [vmem:[%s2 + $0xc] sm:$0xf]
  %v31 = vld [vmem:[%s3] sm:$0x1]
  %v33 = vlaneseq
  %v34 = vshrl.u32 %v33, 7
  %v35 = vsub.s32 0, %v34
  %v36 = vrot.slane %v31, %v35
  %v42 = vunpack.c.l.b16 %v27
  %v43 = vunpack.c.l.b16 %v28
  %v44 = vunpack.c.l.b16 %v29
  %v45 = vunpack.c.l.b16 %v30
  %v46 = vpack.c.b16 %v43, %v42
  %v47 = vpack.c.b16 %v45, %v44
  %vm50 = vcmask 261120
  %v52 = vsel %vm50, %v26, 0
  %54 = vmatprep.subr.bf16.mxu0 0
  %55 = vmatpush1.bf16.msra.mxu0 0
  %56 = vmatprep.subr.bf16.mxu0 0
  %57 = vmatpush1.bf16.msra.mxu0 0
  %58 = vmatprep.subr.bf16.mxu0 0
  %59 = vmatpush1.bf16.msra.mxu0 0
  %60 = vmatprep.subr.bf16.mxu0 0
  %61 = vmatpush1.bf16.msra.mxu0 0
  %62 = vmatprep.subr.bf16.mxu0 0
  %63 = vmatpush1.bf16.msra.mxu0 0
  %64 = vmatprep.subr.bf16.mxu0 0
  %65 = vmatpush1.bf16.msra.mxu0 0
  %66 = vmatprep.subr.bf16.mxu0 0
  %67 = vmatpush1.bf16.msra.mxu0 %v47
  %68 = vmatprep.subr.bf16.mxu0 0
  %69 = vmatpush1.bf16.msra.mxu0 %v46
  %70 = vmatprep.subr.bf16.mxu0 0
  %71 = vmatpush2.bf16.msra.mxu0 0
  %72 = vmatprep.subr.bf16.mxu0 0
  %73 = vmatpush2.bf16.msra.mxu0 0
  %74 = vmatprep.subr.bf16.mxu0 0
  %75 = vmatpush2.bf16.msra.mxu0 0
  %76 = vmatprep.subr.bf16.mxu0 0
  %77 = vmatpush2.bf16.msra.mxu0 0
  %78 = vmatprep.subr.bf16.mxu0 0
  %79 = vmatpush2.bf16.msra.mxu0 0
  %80 = vmatprep.subr.bf16.mxu0 0
  %81 = vmatpush2.bf16.msra.mxu0 0
  %82 = vmatprep.subr.bf16.mxu0 0
  %83 = vmatpush2.bf16.msra.mxu0 0
  %84 = vmatprep.subr.bf16.mxu0 0
  %85 = vmatpush2.bf16.msra.mxu0 0
  %86 = vmatprep.mubr.bf16.mxu0 0
  %87 = vmatmul.mubr.bf16.gmra.mxu0 %v52
  %v88 = vpop.f32.mrf.mxu0
  %v89 = vadd.f32 %v36, %v88
  %v90 = vpop.f32.mrf.mxu0
  %v91 = vpop.f32.mrf.mxu0
  %v92 = vadd.f32 %v36, %v91
  %v93 = vpop.f32.mrf.mxu0
  %94 = vdwg.mxu0
  %v95 = vpack.c.bf16 %v92, %v89
  %v97 = vunpack.c.l.b16 %v95
  %v98 = vunpack.c.h.b16 %v95
  %v99 = vpack.c.b16 %v97, %v97
  %v100 = vpack.c.b16 %v98, %v98
  %vm103 = vcmask 257024
  %104 = vst.msk [vmem:[%s4] sm:$0xf] %vm103, %v99
  %105 = vst.msk [vmem:[%s4 + $0x4] sm:$0xf] %vm103, %v100
  %106 = vrot.lane.b32.xlu0 %v99, 96
  %v107 = vpop.permute.xlu0 %106
  %108 = vrot.lane.b32.xlu0 %v100, 96
  %v109 = vpop.permute.xlu0 %108
  %112 = vst.msk [vmem:[%s5] sm:$0xf] %vm103, %v107
  %113 = vst.msk [vmem:[%s5 + $0x4] sm:$0xf] %vm103, %v109
  // Predicated region
  $region18: #{intr_forward.26} parent=0 // pred_check
    _
  $region19: #{intr_forward.26} parent=0 // pred_check_branch
    %115 = sbr.rel (0) target = $region21
  $region20: #{intr_forward.26} parent=0 // pred_region
    _
  $region21: #{intr_forward.26} parent=0 // pred_fallthru
    _
  // Predicated region
  $region22: #{intr_forward.26} parent=0 // pred_check
    _
  $region23: #{intr_forward.26} parent=0 // pred_check_branch
    %117 = sbr.rel (0) target = $region25
  $region24: #{intr_forward.26} parent=0 // pred_region
    _
  $region25: #{intr_forward.26} parent=0 // pred_fallthru
    _
  // Predicated region
  $region26: #{intr_forward.26} parent=0 // pred_check
    _
  $region27: #{intr_forward.26} parent=0 // pred_check_branch
    %119 = sbr.rel (0) target = $region29
  $region28: #{intr_forward.26} parent=0 // pred_region
    _
  $region29: #{intr_forward.26} parent=0 // pred_fallthru
    _
  // Predicated region
  $region30: #{intr_forward.26} parent=0 // pred_check
    _
  $region31: #{intr_forward.26} parent=0 // pred_check_branch
    %121 = sbr.rel (0) target = $region33
  $region32: #{intr_forward.26} parent=0 // pred_region
    _
  $region33: #{intr_forward.26} parent=0 // pred_fallthru
    _

// kernel: intr_forward.25
$region0: #{intr_forward.25}
  #allocation0 [shape = 'u32[]', space=smem, size = 0x4, offset = 0x4, fixed_abs, tag = 'smem constant byte address 0x4 - core index']
  #allocation1 [shape = 'u32[144,128]{1,0:T(1,128)}', space=vmem, size = 0x12000, scoped, tag = 'internal scratch']
  %s0 = inlined_call_operand.vmem [shape: f32[128,32], index: 0, kind: input, shape index: {}]
  %s1 = inlined_call_operand.vmem [shape: bf16[32,64], index: 1, kind: input, shape index: {}]
  %s2 = inlined_call_operand.vmem [shape: f32[1,64], index: 2, kind: input, shape index: {}]
  %s3 = inlined_call_operand.vmem [shape: bf16[64,32], index: 3, kind: input, shape index: {}]
  %s4 = inlined_call_operand.vmem [shape: f32[1,32], index: 4, kind: input, shape index: {}]
  %s5 = inlined_call_operand.vmem [shape: f32[1,32], index: 5, kind: input, shape index: {}]
  %s6 = inlined_call_operand.vmem [shape: f32[1,32], index: 6, kind: input, shape index: {}]
  %s7 = inlined_call_operand.vmem [shape: f32[128,32], index: 7, kind: output, shape index: {}]
  %s8 = sld [smem:[#allocation0]]
  $region38: #{intr_forward.25} parent=0
    _
  %s10 = ssub.s32 1, %s8
  %s11 = scalar_select 0, %s10, %s8
  // Predicated region
  $region2: #{intr_forward.25} parent=0 // pred_check
    _
  $region3: #{intr_forward.25} parent=0 // pred_check_branch
    %13 = sbr.rel (0) target = $region5
  $region4: #{intr_forward.25} parent=0 // pred_region
    _
  $region5: #{intr_forward.25} parent=0 // pred_fallthru
    _
  // Predicated region
  $region6: #{intr_forward.25} parent=0 // pred_check
    _
  $region7: #{intr_forward.25} parent=0 // pred_check_branch
    %15 = sbr.rel (0) target = $region9
  $region8: #{intr_forward.25} parent=0 // pred_region
    _
  $region9: #{intr_forward.25} parent=0 // pred_fallthru
    _
  // Predicated region
  $region10: #{intr_forward.25} parent=0 // pred_check
    _
  $region11: #{intr_forward.25} parent=0 // pred_check_branch
    %17 = sbr.rel (0) target = $region13
  $region12: #{intr_forward.25} parent=0 // pred_region
    _
  $region13: #{intr_forward.25} parent=0 // pred_fallthru
    _
  // Predicated region
  $region14: #{intr_forward.25} parent=0 // pred_check
    _
  $region15: #{intr_forward.25} parent=0 // pred_check_branch
    %19 = sbr.rel (0) target = $region17
  $region16: #{intr_forward.25} parent=0 // pred_region
    _
  $region17: #{intr_forward.25} parent=0 // pred_fallthru
    _
  // Predicated region
  $region18: #{intr_forward.25} parent=0 // pred_check
    _
  $region19: #{intr_forward.25} parent=0 // pred_check_branch
    %21 = sbr.rel (0) target = $region21
  $region20: #{intr_forward.25} parent=0 // pred_region
    _
  $region21: #{intr_forward.25} parent=0 // pred_fallthru
    _
  // Predicated region
  $region22: #{intr_forward.25} parent=0 // pred_check
    _
  $region23: #{intr_forward.25} parent=0 // pred_check_branch
    %23 = sbr.rel (0) target = $region25
  $region24: #{intr_forward.25} parent=0 // pred_region
    _
  $region25: #{intr_forward.25} parent=0 // pred_fallthru
    _
  // Predicated region
  $region26: #{intr_forward.25} parent=0 // pred_check
    _
  $region27: #{intr_forward.25} parent=0 // pred_check_branch
    %25 = sbr.rel (0) target = $region29
  $region28: #{intr_forward.25} parent=0 // pred_region
    _
  $region29: #{intr_forward.25} parent=0 // pred_fallthru
    _
  %v27 = vld [vmem:[%s0] sm:$0xff]
  %v28 = vld [vmem:[%s0 + $0x8] sm:$0xff]
  %v29 = vld [vmem:[%s0 + $0x10] sm:$0xff]
  %v30 = vld [vmem:[%s0 + $0x18] sm:$0xff]
  %v31 = vld [vmem:[%s0 + $0x20] sm:$0xff]
  %v32 = vld [vmem:[%s0 + $0x28] sm:$0xff]
  %v33 = vld [vmem:[%s0 + $0x30] sm:$0xff]
  %v34 = vld [vmem:[%s0 + $0x38] sm:$0xff]
  %v35 = vld [vmem:[%s0 + $0x40] sm:$0xff]
  %v36 = vld [vmem:[%s0 + $0x48] sm:$0xff]
  %v37 = vld [vmem:[%s0 + $0x50] sm:$0xff]
  %v38 = vld [vmem:[%s0 + $0x58] sm:$0xff]
  %v39 = vld [vmem:[%s0 + $0x60] sm:$0xff]
  %v40 = vld [vmem:[%s0 + $0x68] sm:$0xff]
  %v41 = vld [vmem:[%s0 + $0x70] sm:$0xff]
  %v42 = vld [vmem:[%s0 + $0x78] sm:$0xff]
  %v43 = vpack.c.bf16 %v28, %v27
  %v44 = vpack.c.bf16 %v30, %v29
  %v45 = vpack.c.bf16 %v32, %v31
  %v46 = vpack.c.bf16 %v34, %v33
  %v47 = vpack.c.bf16 %v36, %v35
  %v48 = vpack.c.bf16 %v38, %v37
  %v49 = vpack.c.bf16 %v40, %v39
  %v50 = vpack.c.bf16 %v42, %v41
  %v51 = vld [vmem:[%s1] sm:$0xf]
  %v52 = vld [vmem:[%s1 + $0x4] sm:$0xf]
  %v53 = vld [vmem:[%s1 + $0x8] sm:$0xf]
  %v54 = vld [vmem:[%s1 + $0xc] sm:$0xf]
  %v55 = vld [vmem:[%s2] sm:$0x1]
  %v57 = vlaneseq
  %v58 = vshrl.u32 %v57, 7
  %v59 = vsub.s32 0, %v58
  %v60 = vrot.slane %v55, %v59
  %v66 = vunpack.c.l.b16 %v51
  %v67 = vunpack.c.l.b16 %v52
  %v68 = vunpack.c.l.b16 %v53
  %v69 = vunpack.c.l.b16 %v54
  %v70 = vpack.c.b16 %v67, %v66
  %v71 = vpack.c.b16 %v69, %v68
  %vm74 = vcmask 261120
  %v76 = vsel %vm74, %v43, 0
  %v79 = vsel %vm74, %v44, 0
  %v82 = vsel %vm74, %v45, 0
  %v85 = vsel %vm74, %v46, 0
  %v88 = vsel %vm74, %v47, 0
  %v91 = vsel %vm74, %v48, 0
  %v94 = vsel %vm74, %v49, 0
  %v97 = vsel %vm74, %v50, 0
  %99 = vmatprep.subr.bf16.mxu0 0
  %100 = vmatpush1.bf16.msra.mxu0 0
  %101 = vmatprep.subr.bf16.mxu0 0
  %102 = vmatpush1.bf16.msra.mxu0 0
  %103 = vmatprep.subr.bf16.mxu0 0
  %104 = vmatpush1.bf16.msra.mxu0 0
  %105 = vmatprep.subr.bf16.mxu0 0
  %106 = vmatpush1.bf16.msra.mxu0 0
  %107 = vmatprep.subr.bf16.mxu0 0
  %108 = vmatpush1.bf16.msra.mxu0 0
  %109 = vmatprep.subr.bf16.mxu0 0
  %110 = vmatpush1.bf16.msra.mxu0 0
  %111 = vmatprep.subr.bf16.mxu0 0
  %112 = vmatpush1.bf16.msra.mxu0 %v71
  %113 = vmatprep.subr.bf16.mxu0 0
  %114 = vmatpush1.bf16.msra.mxu0 %v70
  %115 = vmatprep.subr.bf16.mxu0 0
  %116 = vmatpush2.bf16.msra.mxu0 0
  %117 = vmatprep.subr.bf16.mxu0 0
  %118 = vmatpush2.bf16.msra.mxu0 0
  %119 = vmatprep.subr.bf16.mxu0 0
  %120 = vmatpush2.bf16.msra.mxu0 0
  %121 = vmatprep.subr.bf16.mxu0 0
  %122 = vmatpush2.bf16.msra.mxu0 0
  %123 = vmatprep.subr.bf16.mxu0 0
  %124 = vmatpush2.bf16.msra.mxu0 0
  %125 = vmatprep.subr.bf16.mxu0 0
  %126 = vmatpush2.bf16.msra.mxu0 0
  %127 = vmatprep.subr.bf16.mxu0 0
  %128 = vmatpush2.bf16.msra.mxu0 0
  %129 = vmatprep.subr.bf16.mxu0 0
  %130 = vmatpush2.bf16.msra.mxu0 0
  %131 = vmatprep.mubr.bf16.mxu0 0
  %132 = vmatmul.mubr.bf16.gmra.mxu0 %v76
  %v133 = vpop.f32.mrf.mxu0
  %v134 = vadd.f32 %v60, %v133
  %v135 = vpop.f32.mrf.mxu0
  %v136 = vpop.f32.mrf.mxu0
  %v137 = vadd.f32 %v60, %v136
  %v138 = vpop.f32.mrf.mxu0
  %139 = vmatprep.mubr.bf16.mxu0 0
  %140 = vmatmul.mubr.bf16.gmra.mxu0 %v79
  %v141 = vpop.f32.mrf.mxu0
  %v142 = vadd.f32 %v60, %v141
  %v143 = vpop.f32.mrf.mxu0
  %v144 = vpop.f32.mrf.mxu0
  %v145 = vadd.f32 %v60, %v144
  %v146 = vpop.f32.mrf.mxu0
  %147 = vmatprep.mubr.bf16.mxu0 0
  %148 = vmatmul.mubr.bf16.gmra.mxu0 %v82
  %v149 = vpop.f32.mrf.mxu0
  %v150 = vadd.f32 %v60, %v149
  %v151 = vpop.f32.mrf.mxu0
  %v152 = vpop.f32.mrf.mxu0
  %v153 = vadd.f32 %v60, %v152
  %v154 = vpop.f32.mrf.mxu0
  %155 = vmatprep.mubr.bf16.mxu0 0
  %156 = vmatmul.mubr.bf16.gmra.mxu0 %v85
  %v157 = vpop.f32.mrf.mxu0
  %v158 = vadd.f32 %v60, %v157
  %v159 = vpop.f32.mrf.mxu0
  %v160 = vpop.f32.mrf.mxu0
  %v161 = vadd.f32 %v60, %v160
  %v162 = vpop.f32.mrf.mxu0
  %163 = vmatprep.mubr.bf16.mxu0 0
  %164 = vmatmul.mubr.bf16.gmra.mxu0 %v88
  %v165 = vpop.f32.mrf.mxu0
  %v166 = vadd.f32 %v60, %v165
  %v167 = vpop.f32.mrf.mxu0
  %v168 = vpop.f32.mrf.mxu0
  %v169 = vadd.f32 %v60, %v168
  %v170 = vpop.f32.mrf.mxu0
  %171 = vmatprep.mubr.bf16.mxu0 0
  %172 = vmatmul.mubr.bf16.gmra.mxu0 %v91
  %v173 = vpop.f32.mrf.mxu0
  %v174 = vadd.f32 %v60, %v173
  %v175 = vpop.f32.mrf.mxu0
  %v176 = vpop.f32.mrf.mxu0
  %v177 = vadd.f32 %v60, %v176
  %v178 = vpop.f32.mrf.mxu0
  %179 = vmatprep.mubr.bf16.mxu0 0
  %180 = vmatmul.mubr.bf16.gmra.mxu0 %v94
  %v181 = vpop.f32.mrf.mxu0
  %v182 = vadd.f32 %v60, %v181
  %v183 = vpop.f32.mrf.mxu0
  %v184 = vpop.f32.mrf.mxu0
  %v185 = vadd.f32 %v60, %v184
  %v186 = vpop.f32.mrf.mxu0
  %187 = vmatprep.mubr.bf16.mxu0 0
  %188 = vmatmul.mubr.bf16.gmra.mxu0 %v97
  %v189 = vpop.f32.mrf.mxu0
  %v190 = vadd.f32 %v60, %v189
  %v191 = vpop.f32.mrf.mxu0
  %v192 = vpop.f32.mrf.mxu0
  %v193 = vadd.f32 %v60, %v192
  %v194 = vpop.f32.mrf.mxu0
  %195 = vdwg.mxu0
  %v196 = vmax.f32 %v134, 0.0
  %v197 = vmax.f32 %v137, 0.0
  %v198 = vmax.f32 %v142, 0.0
  %v199 = vmax.f32 %v145, 0.0
  %v200 = vmax.f32 %v150, 0.0
  %v201 = vmax.f32 %v153, 0.0
  %v202 = vmax.f32 %v158, 0.0
  %v203 = vmax.f32 %v161, 0.0
  %v204 = vmax.f32 %v166, 0.0
  %v205 = vmax.f32 %v169, 0.0
  %v206 = vmax.f32 %v174, 0.0
  %v207 = vmax.f32 %v177, 0.0
  %v208 = vmax.f32 %v182, 0.0
  %v209 = vmax.f32 %v185, 0.0
  %v210 = vmax.f32 %v190, 0.0
  %v211 = vmax.f32 %v193, 0.0
  %v212 = vpack.c.bf16 %v197, %v196
  %v213 = vpack.c.bf16 %v199, %v198
  %v214 = vpack.c.bf16 %v201, %v200
  %v215 = vpack.c.bf16 %v203, %v202
  %v216 = vpack.c.bf16 %v205, %v204
  %v217 = vpack.c.bf16 %v207, %v206
  %v218 = vpack.c.bf16 %v209, %v208
  %v219 = vpack.c.bf16 %v211, %v210
  %v220 = vld [vmem:[%s3] sm:$0xf]
  %v221 = vld [vmem:[%s3 + $0x4] sm:$0xf]
  %v222 = vld [vmem:[%s3 + $0x8] sm:$0xf]
  %v223 = vld [vmem:[%s3 + $0xc] sm:$0xf]
  %v224 = vld [vmem:[%s3 + $0x10] sm:$0xf]
  %v225 = vld [vmem:[%s3 + $0x14] sm:$0xf]
  %v226 = vld [vmem:[%s3 + $0x18] sm:$0xf]
  %v227 = vld [vmem:[%s3 + $0x1c] sm:$0xf]
  %v228 = vld [vmem:[%s4] sm:$0x1]
  %v230 = vlaneseq
  %v231 = vshrl.u32 %v230, 7
  %v232 = vsub.s32 0, %v231
  %v233 = vrot.slane %v228, %v232
  %v243 = vunpack.c.l.b16 %v220
  %v244 = vunpack.c.l.b16 %v221
  %v245 = vunpack.c.l.b16 %v222
  %v246 = vunpack.c.l.b16 %v223
  %v247 = vunpack.c.l.b16 %v224
  %v248 = vunpack.c.l.b16 %v225
  %v249 = vunpack.c.l.b16 %v226
  %v250 = vunpack.c.l.b16 %v227
  %v251 = vpack.c.b16 %v244, %v243
  %v252 = vpack.c.b16 %v246, %v245
  %v253 = vpack.c.b16 %v248, %v247
  %v254 = vpack.c.b16 %v250, %v249
  %vm259 = vcmask 523264
  %v261 = vsel %vm259, %v212, 0
  %v264 = vsel %vm259, %v213, 0
  %v267 = vsel %vm259, %v214, 0
  %v270 = vsel %vm259, %v215, 0
  %v273 = vsel %vm259, %v216, 0
  %v276 = vsel %vm259, %v217, 0
  %v279 = vsel %vm259, %v218, 0
  %v282 = vsel %vm259, %v219, 0
  %284 = vmatprep.subr.bf16.mxu0 0
  %285 = vmatpush1.bf16.msra.mxu0 0
  %286 = vmatprep.subr.bf16.mxu0 0
  %287 = vmatpush1.bf16.msra.mxu0 0
  %288 = vmatprep.subr.bf16.mxu0 0
  %289 = vmatpush1.bf16.msra.mxu0 0
  %290 = vmatprep.subr.bf16.mxu0 0
  %291 = vmatpush1.bf16.msra.mxu0 0
  %292 = vmatprep.subr.bf16.mxu0 0
  %293 = vmatpush1.bf16.msra.mxu0 %v254
  %294 = vmatprep.subr.bf16.mxu0 0
  %295 = vmatpush1.bf16.msra.mxu0 %v253
  %296 = vmatprep.subr.bf16.mxu0 0
  %297 = vmatpush1.bf16.msra.mxu0 %v252
  %298 = vmatprep.subr.bf16.mxu0 0
  %299 = vmatpush1.bf16.msra.mxu0 %v251
  %300 = vmatprep.subr.bf16.mxu0 0
  %301 = vmatpush2.bf16.msra.mxu0 0
  %302 = vmatprep.subr.bf16.mxu0 0
  %303 = vmatpush2.bf16.msra.mxu0 0
  %304 = vmatprep.subr.bf16.mxu0 0
  %305 = vmatpush2.bf16.msra.mxu0 0
  %306 = vmatprep.subr.bf16.mxu0 0
  %307 = vmatpush2.bf16.msra.mxu0 0
  %308 = vmatprep.subr.bf16.mxu0 0
  %309 = vmatpush2.bf16.msra.mxu0 0
  %310 = vmatprep.subr.bf16.mxu0 0
  %311 = vmatpush2.bf16.msra.mxu0 0
  %312 = vmatprep.subr.bf16.mxu0 0
  %313 = vmatpush2.bf16.msra.mxu0 0
  %314 = vmatprep.subr.bf16.mxu0 0
  %315 = vmatpush2.bf16.msra.mxu0 0
  %316 = vmatprep.mubr.bf16.mxu0 0
  %317 = vmatmul.mubr.bf16.gmra.mxu0 %v261
  %v318 = vpop.f32.mrf.mxu0
  %v319 = vadd.f32 %v233, %v318
  %v320 = vpop.f32.mrf.mxu0
  %v321 = vpop.f32.mrf.mxu0
  %v322 = vadd.f32 %v233, %v321
  %v323 = vpop.f32.mrf.mxu0
  %324 = vmatprep.mubr.bf16.mxu0 0
  %325 = vmatmul.mubr.bf16.gmra.mxu0 %v264
  %v326 = vpop.f32.mrf.mxu0
  %v327 = vadd.f32 %v233, %v326
  %v328 = vpop.f32.mrf.mxu0
  %v329 = vpop.f32.mrf.mxu0
  %v330 = vadd.f32 %v233, %v329
  %v331 = vpop.f32.mrf.mxu0
  %332 = vmatprep.mubr.bf16.mxu0 0
  %333 = vmatmul.mubr.bf16.gmra.mxu0 %v267
  %v334 = vpop.f32.mrf.mxu0
  %v335 = vadd.f32 %v233, %v334
  %v336 = vpop.f32.mrf.mxu0
  %v337 = vpop.f32.mrf.mxu0
  %v338 = vadd.f32 %v233, %v337
  %v339 = vpop.f32.mrf.mxu0
  %340 = vmatprep.mubr.bf16.mxu0 0
  %341 = vmatmul.mubr.bf16.gmra.mxu0 %v270
  %v342 = vpop.f32.mrf.mxu0
  %v343 = vadd.f32 %v233, %v342
  %v344 = vpop.f32.mrf.mxu0
  %v345 = vpop.f32.mrf.mxu0
  %v346 = vadd.f32 %v233, %v345
  %v347 = vpop.f32.mrf.mxu0
  %348 = vmatprep.mubr.bf16.mxu0 0
  %349 = vmatmul.mubr.bf16.gmra.mxu0 %v273
  %v350 = vpop.f32.mrf.mxu0
  %v351 = vadd.f32 %v233, %v350
  %v352 = vpop.f32.mrf.mxu0
  %v353 = vpop.f32.mrf.mxu0
  %v354 = vadd.f32 %v233, %v353
  %v355 = vpop.f32.mrf.mxu0
  %356 = vmatprep.mubr.bf16.mxu0 0
  %357 = vmatmul.mubr.bf16.gmra.mxu0 %v276
  %v358 = vpop.f32.mrf.mxu0
  %v359 = vadd.f32 %v233, %v358
  %v360 = vpop.f32.mrf.mxu0
  %v361 = vpop.f32.mrf.mxu0
  %v362 = vadd.f32 %v233, %v361
  %v363 = vpop.f32.mrf.mxu0
  %364 = vmatprep.mubr.bf16.mxu0 0
  %365 = vmatmul.mubr.bf16.gmra.mxu0 %v279
  %v366 = vpop.f32.mrf.mxu0
  %v367 = vadd.f32 %v233, %v366
  %v368 = vpop.f32.mrf.mxu0
  %v369 = vpop.f32.mrf.mxu0
  %v370 = vadd.f32 %v233, %v369
  %v371 = vpop.f32.mrf.mxu0
  %372 = vmatprep.mubr.bf16.mxu0 0
  %373 = vmatmul.mubr.bf16.gmra.mxu0 %v282
  %v374 = vpop.f32.mrf.mxu0
  %v375 = vadd.f32 %v233, %v374
  %v376 = vpop.f32.mrf.mxu0
  %v377 = vpop.f32.mrf.mxu0
  %v378 = vadd.f32 %v233, %v377
  %v379 = vpop.f32.mrf.mxu0
  %380 = vdwg.mxu0
  %v381 = vadd.f32 %v27, %v319
  %v382 = vadd.f32 %v28, %v322
  %v383 = vadd.f32 %v29, %v327
  %v384 = vadd.f32 %v30, %v330
  %v385 = vadd.f32 %v31, %v335
  %v386 = vadd.f32 %v32, %v338
  %v387 = vadd.f32 %v33, %v343
  %v388 = vadd.f32 %v34, %v346
  %v389 = vadd.f32 %v35, %v351
  %v390 = vadd.f32 %v36, %v354
  %v391 = vadd.f32 %v37, %v359
  %v392 = vadd.f32 %v38, %v362
  %v393 = vadd.f32 %v39, %v367
  %v394 = vadd.f32 %v40, %v370
  %v395 = vadd.f32 %v41, %v375
  %v396 = vadd.f32 %v42, %v378
  %v397 = vsel %vm74, %v381, 0.0
  %398 = vadd.xlane.f32.xlu0 %v397
  %v399 = vpop.xlane.xlu0 %398
  %v400 = vsel %vm74, %v382, 0.0
  %401 = vadd.xlane.f32.xlu0 %v400
  %v402 = vpop.xlane.xlu0 %401
  %v403 = vsel %vm74, %v383, 0.0
  %404 = vadd.xlane.f32.xlu0 %v403
  %v405 = vpop.xlane.xlu0 %404
  %v406 = vsel %vm74, %v384, 0.0
  %407 = vadd.xlane.f32.xlu0 %v406
  %v408 = vpop.xlane.xlu0 %407
  %v409 = vsel %vm74, %v385, 0.0
  %410 = vadd.xlane.f32.xlu0 %v409
  %v411 = vpop.xlane.xlu0 %410
  %v412 = vsel %vm74, %v386, 0.0
  %413 = vadd.xlane.f32.xlu0 %v412
  %v414 = vpop.xlane.xlu0 %413
  %v415 = vsel %vm74, %v387, 0.0
  %416 = vadd.xlane.f32.xlu0 %v415
  %v417 = vpop.xlane.xlu0 %416
  %v418 = vsel %vm74, %v388, 0.0
  %419 = vadd.xlane.f32.xlu0 %v418
  %v420 = vpop.xlane.xlu0 %419
  %v421 = vsel %vm74, %v389, 0.0
  %422 = vadd.xlane.f32.xlu0 %v421
  %v423 = vpop.xlane.xlu0 %422
  %v424 = vsel %vm74, %v390, 0.0
  %425 = vadd.xlane.f32.xlu0 %v424
  %v426 = vpop.xlane.xlu0 %425
  %v427 = vsel %vm74, %v391, 0.0
  %428 = vadd.xlane.f32.xlu0 %v427
  %v429 = vpop.xlane.xlu0 %428
  %v430 = vsel %vm74, %v392, 0.0
  %431 = vadd.xlane.f32.xlu0 %v430
  %v432 = vpop.xlane.xlu0 %431
  %v433 = vsel %vm74, %v393, 0.0
  %434 = vadd.xlane.f32.xlu0 %v433
  %v435 = vpop.xlane.xlu0 %434
  %v436 = vsel %vm74, %v394, 0.0
  %437 = vadd.xlane.f32.xlu0 %v436
  %v438 = vpop.xlane.xlu0 %437
  %v439 = vsel %vm74, %v395, 0.0
  %440 = vadd.xlane.f32.xlu0 %v439
  %v441 = vpop.xlane.xlu0 %440
  %v442 = vsel %vm74, %v396, 0.0
  %443 = vadd.xlane.f32.xlu0 %v442
  %v444 = vpop.xlane.xlu0 %443
  %v445 = vrcp.pop 32.0
  %v446 = vmul.f32 %v399, %v445
  %v447 = vmul.f32 %v402, %v445
  %v448 = vmul.f32 %v405, %v445
  %v449 = vmul.f32 %v408, %v445
  %v450 = vmul.f32 %v411, %v445
  %v451 = vmul.f32 %v414, %v445
  %v452 = vmul.f32 %v417, %v445
  %v453 = vmul.f32 %v420, %v445
  %v454 = vmul.f32 %v423, %v445
  %v455 = vmul.f32 %v426, %v445
  %v456 = vmul.f32 %v429, %v445
  %v457 = vmul.f32 %v432, %v445
  %v458 = vmul.f32 %v435, %v445
  %v459 = vmul.f32 %v438, %v445
  %v460 = vmul.f32 %v441, %v445
  %v461 = vmul.f32 %v444, %v445
  %v462 = vsub.f32 %v381, %v446
  %v463 = vsub.f32 %v382, %v447
  %v464 = vsub.f32 %v383, %v448
  %v465 = vsub.f32 %v384, %v449
  %v466 = vsub.f32 %v385, %v450
  %v467 = vsub.f32 %v386, %v451
  %v468 = vsub.f32 %v387, %v452
  %v469 = vsub.f32 %v388, %v453
  %v470 = vsub.f32 %v389, %v454
  %v471 = vsub.f32 %v390, %v455
  %v472 = vsub.f32 %v391, %v456
  %v473 = vsub.f32 %v392, %v457
  %v474 = vsub.f32 %v393, %v458
  %v475 = vsub.f32 %v394, %v459
  %v476 = vsub.f32 %v395, %v460
  %v477 = vsub.f32 %v396, %v461
  %v478 = vmul.f32 %v462, %v462
  %v479 = vmul.f32 %v463, %v463
  %v480 = vmul.f32 %v464, %v464
  %v481 = vmul.f32 %v465, %v465
  %v482 = vmul.f32 %v466, %v466
  %v483 = vmul.f32 %v467, %v467
  %v484 = vmul.f32 %v468, %v468
  %v485 = vmul.f32 %v469, %v469
  %v486 = vmul.f32 %v470, %v470
  %v487 = vmul.f32 %v471, %v471
  %v488 = vmul.f32 %v472, %v472
  %v489 = vmul.f32 %v473, %v473
  %v490 = vmul.f32 %v474, %v474
  %v491 = vmul.f32 %v475, %v475
  %v492 = vmul.f32 %v476, %v476
  %v493 = vmul.f32 %v477, %v477
  %v494 = vsel %vm74, %v478, 0.0
  %495 = vadd.xlane.f32.xlu0 %v494
  %v496 = vpop.xlane.xlu0 %495
  %v497 = vsel %vm74, %v479, 0.0
  %498 = vadd.xlane.f32.xlu0 %v497
  %v499 = vpop.xlane.xlu0 %498
  %v500 = vsel %vm74, %v480, 0.0
  %501 = vadd.xlane.f32.xlu0 %v500
  %v502 = vpop.xlane.xlu0 %501
  %v503 = vsel %vm74, %v481, 0.0
  %504 = vadd.xlane.f32.xlu0 %v503
  %v505 = vpop.xlane.xlu0 %504
  %v506 = vsel %vm74, %v482, 0.0
  %507 = vadd.xlane.f32.xlu0 %v506
  %v508 = vpop.xlane.xlu0 %507
  %v509 = vsel %vm74, %v483, 0.0
  %510 = vadd.xlane.f32.xlu0 %v509
  %v511 = vpop.xlane.xlu0 %510
  %v512 = vsel %vm74, %v484, 0.0
  %513 = vadd.xlane.f32.xlu0 %v512
  %v514 = vpop.xlane.xlu0 %513
  %v515 = vsel %vm74, %v485, 0.0
  %516 = vadd.xlane.f32.xlu0 %v515
  %v517 = vpop.xlane.xlu0 %516
  %v518 = vsel %vm74, %v486, 0.0
  %519 = vadd.xlane.f32.xlu0 %v518
  %v520 = vpop.xlane.xlu0 %519
  %v521 = vsel %vm74, %v487, 0.0
  %522 = vadd.xlane.f32.xlu0 %v521
  %v523 = vpop.xlane.xlu0 %522
  %v524 = vsel %vm74, %v488, 0.0
  %525 = vadd.xlane.f32.xlu0 %v524
  %v526 = vpop.xlane.xlu0 %525
  %v527 = vsel %vm74, %v489, 0.0
  %528 = vadd.xlane.f32.xlu0 %v527
  %v529 = vpop.xlane.xlu0 %528
  %v530 = vsel %vm74, %v490, 0.0
  %531 = vadd.xlane.f32.xlu0 %v530
  %v532 = vpop.xlane.xlu0 %531
  %v533 = vsel %vm74, %v491, 0.0
  %534 = vadd.xlane.f32.xlu0 %v533
  %v535 = vpop.xlane.xlu0 %534
  %v536 = vsel %vm74, %v492, 0.0
  %537 = vadd.xlane.f32.xlu0 %v536
  %v538 = vpop.xlane.xlu0 %537
  %v539 = vsel %vm74, %v493, 0.0
  %540 = vadd.xlane.f32.xlu0 %v539
  %v541 = vpop.xlane.xlu0 %540
  %v542 = vmul.f32 %v496, %v445
  %v543 = vmul.f32 %v499, %v445
  %v544 = vmul.f32 %v502, %v445
  %v545 = vmul.f32 %v505, %v445
  %v546 = vmul.f32 %v508, %v445
  %v547 = vmul.f32 %v511, %v445
  %v548 = vmul.f32 %v514, %v445
  %v549 = vmul.f32 %v517, %v445
  %v550 = vmul.f32 %v520, %v445
  %v551 = vmul.f32 %v523, %v445
  %v552 = vmul.f32 %v526, %v445
  %v553 = vmul.f32 %v529, %v445
  %v554 = vmul.f32 %v532, %v445
  %v555 = vmul.f32 %v535, %v445
  %v556 = vmul.f32 %v538, %v445
  %v557 = vmul.f32 %v541, %v445
  %v558 = vadd.f32 %v542, 1e-05
  %v559 = vadd.f32 %v543, 1e-05
  %v560 = vadd.f32 %v544, 1e-05
  %v561 = vadd.f32 %v545, 1e-05
  %v562 = vadd.f32 %v546, 1e-05
  %v563 = vadd.f32 %v547, 1e-05
  %v564 = vadd.f32 %v548, 1e-05
  %v565 = vadd.f32 %v549, 1e-05
  %v566 = vadd.f32 %v550, 1e-05
  %v567 = vadd.f32 %v551, 1e-05
  %v568 = vadd.f32 %v552, 1e-05
  %v569 = vadd.f32 %v553, 1e-05
  %v570 = vadd.f32 %v554, 1e-05
  %v571 = vadd.f32 %v555, 1e-05
  %v572 = vadd.f32 %v556, 1e-05
  %v573 = vadd.f32 %v557, 1e-05
  %v574 = vrsqrt.pop %v558
  %v575 = vrsqrt.pop %v559
  %v576 = vrsqrt.pop %v560
  %v577 = vrsqrt.pop %v561
  %v578 = vrsqrt.pop %v562
  %v579 = vrsqrt.pop %v563
  %v580 = vrsqrt.pop %v564
  %v581 = vrsqrt.pop %v565
  %v582 = vrsqrt.pop %v566
  %v583 = vrsqrt.pop %v567
  %v584 = vrsqrt.pop %v568
  %v585 = vrsqrt.pop %v569
  %v586 = vrsqrt.pop %v570
  %v587 = vrsqrt.pop %v571
  %v588 = vrsqrt.pop %v572
  %v589 = vrsqrt.pop %v573
  %v590 = vmul.f32 %v462, %v574
  %v591 = vmul.f32 %v463, %v575
  %v592 = vmul.f32 %v464, %v576
  %v593 = vmul.f32 %v465, %v577
  %v594 = vmul.f32 %v466, %v578
  %v595 = vmul.f32 %v467, %v579
  %v596 = vmul.f32 %v468, %v580
  %v597 = vmul.f32 %v469, %v581
  %v598 = vmul.f32 %v470, %v582
  %v599 = vmul.f32 %v471, %v583
  %v600 = vmul.f32 %v472, %v584
  %v601 = vmul.f32 %v473, %v585
  %v602 = vmul.f32 %v474, %v586
  %v603 = vmul.f32 %v475, %v587
  %v604 = vmul.f32 %v476, %v588
  %v605 = vmul.f32 %v477, %v589
  %v606 = vld [vmem:[%s5] sm:$0x1]
  %v608 = vlaneseq
  %v609 = vshrl.u32 %v608, 7
  %v610 = vsub.s32 0, %v609
  %v611 = vrot.slane %v606, %v610
  %v613 = vmul.f32 %v590, %v611
  %v614 = vmul.f32 %v591, %v611
  %v615 = vmul.f32 %v592, %v611
  %v616 = vmul.f32 %v593, %v611
  %v617 = vmul.f32 %v594, %v611
  %v618 = vmul.f32 %v595, %v611
  %v619 = vmul.f32 %v596, %v611
  %v620 = vmul.f32 %v597, %v611
  %v621 = vmul.f32 %v598, %v611
  %v622 = vmul.f32 %v599, %v611
  %v623 = vmul.f32 %v600, %v611
  %v624 = vmul.f32 %v601, %v611
  %v625 = vmul.f32 %v602, %v611
  %v626 = vmul.f32 %v603, %v611
  %v627 = vmul.f32 %v604, %v611
  %v628 = vmul.f32 %v605, %v611
  %v629 = vld [vmem:[%s6] sm:$0x1]
  %v631 = vlaneseq
  %v632 = vshrl.u32 %v631, 7
  %v633 = vsub.s32 0, %v632
  %v634 = vrot.slane %v629, %v633
  %v636 = vadd.f32 %v613, %v634
  %v637 = vadd.f32 %v614, %v634
  %v638 = vadd.f32 %v615, %v634
  %v639 = vadd.f32 %v616, %v634
  %v640 = vadd.f32 %v617, %v634
  %v641 = vadd.f32 %v618, %v634
  %v642 = vadd.f32 %v619, %v634
  %v643 = vadd.f32 %v620, %v634
  %v644 = vadd.f32 %v621, %v634
  %v645 = vadd.f32 %v622, %v634
  %v646 = vadd.f32 %v623, %v634
  %v647 = vadd.f32 %v624, %v634
  %v648 = vadd.f32 %v625, %v634
  %v649 = vadd.f32 %v626, %v634
  %v650 = vadd.f32 %v627, %v634
  %v651 = vadd.f32 %v628, %v634
  %652 = vst.msk [vmem:[%s7] sm:$0xff] %vm74, %v636
  %653 = vst.msk [vmem:[%s7 + $0x8] sm:$0xff] %vm74, %v637
  %654 = vst.msk [vmem:[%s7 + $0x10] sm:$0xff] %vm74, %v638
  %655 = vst.msk [vmem:[%s7 + $0x18] sm:$0xff] %vm74, %v639
  %656 = vst.msk [vmem:[%s7 + $0x20] sm:$0xff] %vm74, %v640
  %657 = vst.msk [vmem:[%s7 + $0x28] sm:$0xff] %vm74, %v641
  %658 = vst.msk [vmem:[%s7 + $0x30] sm:$0xff] %vm74, %v642
  %659 = vst.msk [vmem:[%s7 + $0x38] sm:$0xff] %vm74, %v643
  %660 = vst.msk [vmem:[%s7 + $0x40] sm:$0xff] %vm74, %v644
  %661 = vst.msk [vmem:[%s7 + $0x48] sm:$0xff] %vm74, %v645
  %662 = vst.msk [vmem:[%s7 + $0x50] sm:$0xff] %vm74, %v646
  %663 = vst.msk [vmem:[%s7 + $0x58] sm:$0xff] %vm74, %v647
  %664 = vst.msk [vmem:[%s7 + $0x60] sm:$0xff] %vm74, %v648
  %665 = vst.msk [vmem:[%s7 + $0x68] sm:$0xff] %vm74, %v649
  %666 = vst.msk [vmem:[%s7 + $0x70] sm:$0xff] %vm74, %v650
  %667 = vst.msk [vmem:[%s7 + $0x78] sm:$0xff] %vm74, %v651
  // Predicated region
  $region30: #{intr_forward.25} parent=0 // pred_check
    _
  $region31: #{intr_forward.25} parent=0 // pred_check_branch
    %669 = sbr.rel (0) target = $region33
  $region32: #{intr_forward.25} parent=0 // pred_region
    _
  $region33: #{intr_forward.25} parent=0 // pred_fallthru
    _
  // Predicated region
  $region34: #{intr_forward.25} parent=0 // pred_check
    _
  $region35: #{intr_forward.25} parent=0 // pred_check_branch
    %671 = sbr.rel (0) target = $region37
  $region36: #{intr_forward.25} parent=0 // pred_region
    _
  $region37: #{intr_forward.25} parent=0 // pred_fallthru
    _

// kernel: intr_forward.24
$region0: #{intr_forward.24}
  #allocation0 [shape = 'u32[]', space=smem, size = 0x4, offset = 0x4, fixed_abs, tag = 'smem constant byte address 0x4 - core index']
  #allocation1 [shape = 'u32[144,128]{1,0:T(1,128)}', space=vmem, size = 0x12000, scoped, tag = 'internal scratch']
  %s0 = inlined_call_operand.vmem [shape: bf16[2,64,32], index: 0, kind: input, shape index: {}]
  %s1 = inlined_call_operand.vmem [shape: bf16[2,64,32], index: 1, kind: input, shape index: {}]
  %s2 = inlined_call_operand.vmem [shape: bf16[2,64,32], index: 2, kind: input, shape index: {}]
  %s3 = inlined_call_operand.vmem [shape: bf16[32,32], index: 3, kind: input, shape index: {}]
  %s4 = inlined_call_operand.vmem [shape: f32[1,32], index: 4, kind: input, shape index: {}]
  %s5 = inlined_call_operand.vmem [shape: f32[2,64,32], index: 5, kind: input, shape index: {}]
  %s6 = inlined_call_operand.vmem [shape: f32[1,32], index: 6, kind: input, shape index: {}]
  %s7 = inlined_call_operand.vmem [shape: f32[1,32], index: 7, kind: input, shape index: {}]
  %s8 = inlined_call_operand.vmem [shape: f32[2,64,32], index: 8, kind: output, shape index: {}]
  %s9 = sld [smem:[#allocation0]]
  $region65: #{intr_forward.24} parent=0
    _
  %s11 = ssub.s32 1, %s9
  %s12 = scalar_select 0, %s11, %s9
  loop: start=0, step=1, limit=4
  $region2: #{intr_forward.24} parent=0 // loop_pre_header
    _
  $region3: #{intr_forward.24} parent=0 // loop_header
    %s14 = sphi 0, %s18
    %p15 = scmp.ge.s32.totalorder %s14, 4
    %s21 = sphi 0, %s33
    %s22 = sphi 0, %s29
    %s23 = sphi 0, %s21
    %s24 = sphi 0, %s22
    %s25 = sphi 0, %s23
    %s26 = sphi 0, %s24
    %s38 = sphi 0, %s40
    %s41 = sphi 0, %s38
    %s42 = sphi 0, %s41
    %s58 = sphi 0, %s42
    %s64 = sphi 0, %s66
    %s67 = sphi 0, %s64
    %s68 = sphi 0, %s67
    %s84 = sphi 0, %s68
    %s90 = sphi 0, %s92
    %s93 = sphi 0, %s90
    %s94 = sphi 0, %s93
    %s110 = sphi 0, %s94
    %s114 = sphi 0, %s114
    %s116 = sphi 0, %s114
    %s117 = sphi 0, %s116
    %s131 = sphi 0, %s117
    %s135 = sphi 0, %s135
    %s137 = sphi 0, %s135
    %s138 = sphi 0, %s137
    %s152 = sphi 0, %s138
    %s160 = sphi 0, %s162
    %s163 = sphi 0, %s160
    %s164 = sphi 0, %s163
    %s180 = sphi 0, %s164
    %s184 = sphi 0, %s184
    %s186 = sphi 0, %s184
    %s187 = sphi 0, %s186
    %s201 = sphi 0, %s187
    %s205 = sphi 0, %s205
    %s207 = sphi 0, %s205
    %s208 = sphi 0, %s207
    %s222 = sphi 0, %s208
    %s230 = sphi 0, %s232
    %s233 = sphi 0, %s230
    %s234 = sphi 0, %s233
    %s250 = sphi 0, %s234
  $region4: #{intr_forward.24} parent=0 // loop_header_branch
    %17 = sbr.rel (%p15) target = $region8
  $region5: #{intr_forward.24} parent=0 // loop_body
    %s19 = ssub.s32 %s14, 1
    %s20 = ssub.s32 %s14, 2
    %s27 = sadd.s32 1, %s22
    %p28 = scmp.ge.s32.totalorder %s27, 1
    %s29 = scalar_select %p28, 0, %s27
    %s30 = sadd.s32 1, %s21
    %s31 = scalar_select %p28, %s30, %s21
    %p32 = scmp.ge.s32.totalorder %s31, 2
    %s33 = scalar_select %p32, 0, %s31
    %s34 = ssub.s32 %s21, %s33
    %s35 = ssub.s32 %s22, %s29
    %s36 = sor.u32 %s34, %s35
    %p37 = scmp.eq.s32.totalorder %s36, 0
    %s39 = sadd.s32 %s38, 1
    %s40 = scalar_select %p37, %s38, %s39
    %p43 = pneg %p37
    %p44 = scmp.eq.s32.totalorder %s14, 1
    %p45 = por %p43, %p44
    %p46 = scmp.ne.s32.totalorder %s38, %s41
    %p47 = scmp.eq.s32.totalorder %s14, 0
    %p48 = por %p46, %p47
    %p49 = scmp.ne.s32.totalorder %s38, %s41
    %p50 = scmp.eq.s32.totalorder %s19, 1
    %p51 = por %p49, %p50
    %p52 = scmp.ne.s32.totalorder %s41, %s42
    %p53 = scmp.eq.s32.totalorder %s19, 0
    %p54 = por %p52, %p53
    %p55 = scmp.ne.s32.totalorder %s41, %s42
    %p56 = scmp.eq.s32.totalorder %s20, 1
    %p57 = por %p55, %p56
    %p59 = scmp.ne.s32.totalorder %s42, %s58
    %p60 = scmp.eq.s32.totalorder %s20, 0
    %p61 = por %p59, %p60
    %s62 = ssub.s32 %s21, %s33
    %p63 = scmp.eq.s32.totalorder %s62, 0
    %s65 = sadd.s32 %s64, 1
    %s66 = scalar_select %p63, %s64, %s65
    %p69 = pneg %p63
    %p70 = scmp.eq.s32.totalorder %s14, 1
    %p71 = por %p69, %p70
    %p72 = scmp.ne.s32.totalorder %s64, %s67
    %p73 = scmp.eq.s32.totalorder %s14, 0
    %p74 = por %p72, %p73
    %p75 = scmp.ne.s32.totalorder %s64, %s67
    %p76 = scmp.eq.s32.totalorder %s19, 1
    %p77 = por %p75, %p76
    %p78 = scmp.ne.s32.totalorder %s67, %s68
    %p79 = scmp.eq.s32.totalorder %s19, 0
    %p80 = por %p78, %p79
    %p81 = scmp.ne.s32.totalorder %s67, %s68
    %p82 = scmp.eq.s32.totalorder %s20, 1
    %p83 = por %p81, %p82
    %p85 = scmp.ne.s32.totalorder %s68, %s84
    %p86 = scmp.eq.s32.totalorder %s20, 0
    %p87 = por %p85, %p86
    %s88 = ssub.s32 %s21, %s33
    %p89 = scmp.eq.s32.totalorder %s88, 0
    %s91 = sadd.s32 %s90, 1
    %s92 = scalar_select %p89, %s90, %s91
    %p95 = pneg %p89
    %p96 = scmp.eq.s32.totalorder %s14, 1
    %p97 = por %p95, %p96
    %p98 = scmp.ne.s32.totalorder %s90, %s93
    %p99 = scmp.eq.s32.totalorder %s14, 0
    %p100 = por %p98, %p99
    %p101 = scmp.ne.s32.totalorder %s90, %s93
    %p102 = scmp.eq.s32.totalorder %s19, 1
    %p103 = por %p101, %p102
    %p104 = scmp.ne.s32.totalorder %s93, %s94
    %p105 = scmp.eq.s32.totalorder %s19, 0
    %p106 = por %p104, %p105
    %p107 = scmp.ne.s32.totalorder %s93, %s94
    %p108 = scmp.eq.s32.totalorder %s20, 1
    %p109 = por %p107, %p108
    %p111 = scmp.ne.s32.totalorder %s94, %s110
    %p112 = scmp.eq.s32.totalorder %s20, 0
    %p113 = por %p111, %p112
    %s115 = sadd.s32 %s114, 1
    %p118 = scmp.eq.s32.totalorder %s14, 1
    %p119 = scmp.ne.s32.totalorder %s114, %s116
    %p120 = scmp.eq.s32.totalorder %s14, 0
    %p121 = por %p119, %p120
    %p122 = scmp.ne.s32.totalorder %s114, %s116
    %p123 = scmp.eq.s32.totalorder %s19, 1
    %p124 = por %p122, %p123
    %p125 = scmp.ne.s32.totalorder %s116, %s117
    %p126 = scmp.eq.s32.totalorder %s19, 0
    %p127 = por %p125, %p126
    %p128 = scmp.ne.s32.totalorder %s116, %s117
    %p129 = scmp.eq.s32.totalorder %s20, 1
    %p130 = por %p128, %p129
    %p132 = scmp.ne.s32.totalorder %s117, %s131
    %p133 = scmp.eq.s32.totalorder %s20, 0
    %p134 = por %p132, %p133
    %s136 = sadd.s32 %s135, 1
    %p139 = scmp.eq.s32.totalorder %s14, 1
    %p140 = scmp.ne.s32.totalorder %s135, %s137
    %p141 = scmp.eq.s32.totalorder %s14, 0
    %p142 = por %p140, %p141
    %p143 = scmp.ne.s32.totalorder %s135, %s137
    %p144 = scmp.eq.s32.totalorder %s19, 1
    %p145 = por %p143, %p144
    %p146 = scmp.ne.s32.totalorder %s137, %s138
    %p147 = scmp.eq.s32.totalorder %s19, 0
    %p148 = por %p146, %p147
    %p149 = scmp.ne.s32.totalorder %s137, %s138
    %p150 = scmp.eq.s32.totalorder %s20, 1
    %p151 = por %p149, %p150
    %p153 = scmp.ne.s32.totalorder %s138, %s152
    %p154 = scmp.eq.s32.totalorder %s20, 0
    %p155 = por %p153, %p154
    %s156 = ssub.s32 %s21, %s33
    %s157 = ssub.s32 %s22, %s29
    %s158 = sor.u32 %s156, %s157
    %p159 = scmp.eq.s32.totalorder %s158, 0
    %s161 = sadd.s32 %s160, 1
    %s162 = scalar_select %p159, %s160, %s161
    %p165 = pneg %p159
    %p166 = scmp.eq.s32.totalorder %s14, 1
    %p167 = por %p165, %p166
    %p168 = scmp.ne.s32.totalorder %s160, %s163
    %p169 = scmp.eq.s32.totalorder %s14, 0
    %p170 = por %p168, %p169
    %p171 = scmp.ne.s32.totalorder %s160, %s163
    %p172 = scmp.eq.s32.totalorder %s19, 1
    %p173 = por %p171, %p172
    %p174 = scmp.ne.s32.totalorder %s163, %s164
    %p175 = scmp.eq.s32.totalorder %s19, 0
    %p176 = por %p174, %p175
    %p177 = scmp.ne.s32.totalorder %s163, %s164
    %p178 = scmp.eq.s32.totalorder %s20, 1
    %p179 = por %p177, %p178
    %p181 = scmp.ne.s32.totalorder %s164, %s180
    %p182 = scmp.eq.s32.totalorder %s20, 0
    %p183 = por %p181, %p182
    %s185 = sadd.s32 %s184, 1
    %p188 = scmp.eq.s32.totalorder %s14, 1
    %p189 = scmp.ne.s32.totalorder %s184, %s186
    %p190 = scmp.eq.s32.totalorder %s14, 0
    %p191 = por %p189, %p190
    %p192 = scmp.ne.s32.totalorder %s184, %s186
    %p193 = scmp.eq.s32.totalorder %s19, 1
    %p194 = por %p192, %p193
    %p195 = scmp.ne.s32.totalorder %s186, %s187
    %p196 = scmp.eq.s32.totalorder %s19, 0
    %p197 = por %p195, %p196
    %p198 = scmp.ne.s32.totalorder %s186, %s187
    %p199 = scmp.eq.s32.totalorder %s20, 1
    %p200 = por %p198, %p199
    %p202 = scmp.ne.s32.totalorder %s187, %s201
    %p203 = scmp.eq.s32.totalorder %s20, 0
    %p204 = por %p202, %p203
    %s206 = sadd.s32 %s205, 1
    %p209 = scmp.eq.s32.totalorder %s14, 1
    %p210 = scmp.ne.s32.totalorder %s205, %s207
    %p211 = scmp.eq.s32.totalorder %s14, 0
    %p212 = por %p210, %p211
    %p213 = scmp.ne.s32.totalorder %s205, %s207
    %p214 = scmp.eq.s32.totalorder %s19, 1
    %p215 = por %p213, %p214
    %p216 = scmp.ne.s32.totalorder %s207, %s208
    %p217 = scmp.eq.s32.totalorder %s19, 0
    %p218 = por %p216, %p217
    %p219 = scmp.ne.s32.totalorder %s207, %s208
    %p220 = scmp.eq.s32.totalorder %s20, 1
    %p221 = por %p219, %p220
    %p223 = scmp.ne.s32.totalorder %s208, %s222
    %p224 = scmp.eq.s32.totalorder %s20, 0
    %p225 = por %p223, %p224
    %s226 = ssub.s32 %s21, %s33
    %s227 = ssub.s32 %s22, %s29
    %s228 = sor.u32 %s226, %s227
    %p229 = scmp.eq.s32.totalorder %s228, 0
    %s231 = sadd.s32 %s230, 1
    %s232 = scalar_select %p229, %s230, %s231
    %p235 = pneg %p229
    %p236 = scmp.eq.s32.totalorder %s14, 1
    %p237 = por %p235, %p236
    %p238 = scmp.ne.s32.totalorder %s230, %s233
    %p239 = scmp.eq.s32.totalorder %s14, 0
    %p240 = por %p238, %p239
    %p241 = scmp.ne.s32.totalorder %s230, %s233
    %p242 = scmp.eq.s32.totalorder %s19, 1
    %p243 = por %p241, %p242
    %p244 = scmp.ne.s32.totalorder %s233, %s234
    %p245 = scmp.eq.s32.totalorder %s19, 0
    %p246 = por %p244, %p245
    %p247 = scmp.ne.s32.totalorder %s233, %s234
    %p248 = scmp.eq.s32.totalorder %s20, 1
    %p249 = por %p247, %p248
    %p251 = scmp.ne.s32.totalorder %s234, %s250
    %p252 = scmp.eq.s32.totalorder %s20, 0
    %p253 = por %p251, %p252
    %p254 = scmp.le.s32.totalorder 1, %s14
    %p255 = scmp.lt.s32.totalorder %s14, 3
    %p256 = pnand %p254, %p255
    %p257 = pneg %p256
    // Predicated region
    $region9: #{intr_forward.24} parent=5 // pred_check
      _
    $region10: #{intr_forward.24} parent=5 // pred_check_branch
      %259 = sbr.rel (%p256) target = $region12
    $region11: #{intr_forward.24} parent=5 // pred_region
      %s260 = ssub.s32 %s14, 1
      // Predicated region
      $region13: #{intr_forward.24} parent=11 // pred_check
        %p261 = pneg %p127
      $region14: #{intr_forward.24} parent=11 // pred_check_branch
        %263 = sbr.rel (%p261) target = $region16
      $region15: #{intr_forward.24} parent=11 // pred_region
        _
      $region16: #{intr_forward.24} parent=11 // pred_fallthru
        _
      // Predicated region
      $region17: #{intr_forward.24} parent=11 // pred_check
        %p264 = pneg %p148
      $region18: #{intr_forward.24} parent=11 // pred_check_branch
        %266 = sbr.rel (%p264) target = $region20
      $region19: #{intr_forward.24} parent=11 // pred_region
        _
      $region20: #{intr_forward.24} parent=11 // pred_fallthru
        _
      // Predicated region
      $region21: #{intr_forward.24} parent=11 // pred_check
        %p267 = pneg %p197
      $region22: #{intr_forward.24} parent=11 // pred_check_branch
        %269 = sbr.rel (%p267) target = $region24
      $region23: #{intr_forward.24} parent=11 // pred_region
        _
      $region24: #{intr_forward.24} parent=11 // pred_fallthru
        _
      // Predicated region
      $region25: #{intr_forward.24} parent=11 // pred_check
        %p270 = pneg %p218
      $region26: #{intr_forward.24} parent=11 // pred_check_branch
        %272 = sbr.rel (%p270) target = $region28
      $region27: #{intr_forward.24} parent=11 // pred_region
        _
      $region28: #{intr_forward.24} parent=11 // pred_fallthru
        _
    $region12: #{intr_forward.24} parent=5 // pred_fallthru
      _
    %p273 = scmp.lt.s32.totalorder %s14, 2
    // Predicated region
    $region29: #{intr_forward.24} parent=5 // pred_check
      %p274 = pneg %p273
    $region30: #{intr_forward.24} parent=5 // pred_check_branch
      %276 = sbr.rel (%p274) target = $region32
    $region31: #{intr_forward.24} parent=5 // pred_region
      // Predicated region
      $region33: #{intr_forward.24} parent=31 // pred_check
        %p277 = pneg %p48
      $region34: #{intr_forward.24} parent=31 // pred_check_branch
        %279 = sbr.rel (%p277) target = $region36
      $region35: #{intr_forward.24} parent=31 // pred_region
        %s280 = smul.u32 8, %s22
        %p281 = scmp.lt.s32.totalorder %s21, 1
        %s282 = scalar_select %p281, %s21, 1
        %p283 = scmp.lt.s32.totalorder %s280, 7
        %s284 = scalar_select %p283, %s280, 7
        %s285 = smul.addr %s282, 8
        %s286 = sadd.s32 %s284, %s285
        %s287 = smul.addr %s286, 4
        %s288 = scalar_lea.vmem %s0, %s287
        %s289 = smul.u32 8, %s22
      $region36: #{intr_forward.24} parent=31 // pred_fallthru
        _
      // Predicated region
      $region37: #{intr_forward.24} parent=31 // pred_check
        %p290 = pneg %p74
      $region38: #{intr_forward.24} parent=31 // pred_check_branch
        %292 = sbr.rel (%p290) target = $region40
      $region39: #{intr_forward.24} parent=31 // pred_region
        %p293 = scmp.lt.s32.totalorder %s21, 1
        %s294 = scalar_select %p293, %s21, 1
        %s295 = smul.addr %s294, 8
        %s296 = smul.addr %s295, 4
        %s297 = scalar_lea.vmem %s1, %s296
      $region40: #{intr_forward.24} parent=31 // pred_fallthru
        _
      // Predicated region
      $region41: #{intr_forward.24} parent=31 // pred_check
        %p298 = pneg %p100
      $region42: #{intr_forward.24} parent=31 // pred_check_branch
        %300 = sbr.rel (%p298) target = $region44
      $region43: #{intr_forward.24} parent=31 // pred_region
        %p301 = scmp.lt.s32.totalorder %s21, 1
        %s302 = scalar_select %p301, %s21, 1
        %s303 = smul.addr %s302, 8
        %s304 = smul.addr %s303, 4
        %s305 = scalar_lea.vmem %s2, %s304
      $region44: #{intr_forward.24} parent=31 // pred_fallthru
        _
      // Predicated region
      $region45: #{intr_forward.24} parent=31 // pred_check
        %p306 = pneg %p170
      $region46: #{intr_forward.24} parent=31 // pred_check_branch
        %308 = sbr.rel (%p306) target = $region48
      $region47: #{intr_forward.24} parent=31 // pred_region
        %s309 = smul.u32 8, %s22
        %p310 = scmp.lt.s32.totalorder %s21, 1
        %s311 = scalar_select %p310, %s21, 1
        %p312 = scmp.lt.s32.totalorder %s309, 7
        %s313 = scalar_select %p312, %s309, 7
        %s314 = smul.addr %s311, 8
        %s315 = sadd.s32 %s313, %s314
        %s316 = smul.addr %s315, 8
        %s317 = scalar_lea.vmem %s5, %s316
        %s318 = smul.u32 8, %s22
      $region48: #{intr_forward.24} parent=31 // pred_fallthru
        _
    $region32: #{intr_forward.24} parent=5 // pred_fallthru
      _
    %p319 = scmp.le.s32.totalorder 1, %s14
    %p320 = scmp.lt.s32.totalorder %s14, 3
    %p321 = pnand %p319, %p320
    %p322 = pneg %p321
    // Predicated region
    $region49: #{intr_forward.24} parent=5 // pred_check
      _
    $region50: #{intr_forward.24} parent=5 // pred_check_branch
      %324 = sbr.rel (%p321) target = $region52
    $region51: #{intr_forward.24} parent=5 // pred_region
      %s325 = ssub.s32 %s14, 1
      %s326 = smul.u32 8, %s24
      %p327 = scmp.lt.s32.totalorder %s23, 1
      %s328 = scalar_select %p327, %s23, 1
      %p329 = scmp.lt.s32.totalorder %s326, 7
      %s330 = scalar_select %p329, %s326, 7
      %s331 = smul.addr %s328, 8
      %s332 = sadd.s32 %s330, %s331
      %s333 = smul.addr %s332, 4
      %s334 = scalar_lea.vmem %s0, %s333
      %p335 = pneg %p54
      %p336 = pneg %p51
      %p337 = scmp.lt.s32.totalorder %s23, 1
      %s338 = scalar_select %p337, %s23, 1
      %s339 = smul.addr %s338, 8
      %s340 = smul.addr %s339, 4
      %s341 = scalar_lea.vmem %s1, %s340
      %p342 = pneg %p80
      %p343 = pneg %p77
      %p344 = scmp.lt.s32.totalorder %s23, 1
      %s345 = scalar_select %p344, %s23, 1
      %s346 = smul.addr %s345, 8
      %s347 = smul.addr %s346, 4
      %s348 = scalar_lea.vmem %s2, %s347
      %p349 = pneg %p106
      %p350 = pneg %p103
      %p351 = pneg %p127
      %p352 = pneg %p124
      %p353 = pneg %p148
      %p354 = pneg %p145
      %s355 = smul.u32 8, %s24
      %p356 = scmp.lt.s32.totalorder %s23, 1
      %s357 = scalar_select %p356, %s23, 1
      %p358 = scmp.lt.s32.totalorder %s355, 7
      %s359 = scalar_select %p358, %s355, 7
      %s360 = smul.addr %s357, 8
      %s361 = sadd.s32 %s359, %s360
      %s362 = smul.addr %s361, 8
      %s363 = scalar_lea.vmem %s5, %s362
      %p364 = pneg %p176
      %p365 = pneg %p173
      %p366 = pneg %p197
      %p367 = pneg %p194
      %p368 = pneg %p218
      %p369 = pneg %p215
      %p370 = pneg %p246
      %p371 = pneg %p243
      %s372 = smul.u32 8, %s24
      %p373 = scmp.lt.s32.totalorder %s23, 1
      %s374 = scalar_select %p373, %s23, 1
      %p375 = scmp.lt.s32.totalorder %s372, 7
      %s376 = scalar_select %p375, %s372, 7
      %s377 = smul.addr %s374, 8
      %s378 = sadd.s32 %s376, %s377
      %s379 = smul.addr %s378, 8
      %s380 = scalar_lea.vmem %s8, %s379
      %s381 = smul.u32 8, %s24
      %p382 = scmp.lt.s32.totalorder %s23, 1
      %s383 = scalar_select %p382, %s23, 1
      %p384 = scmp.lt.s32.totalorder %s381, 7
      %s385 = scalar_select %p384, %s381, 7
      %s386 = smul.addr %s383, 8
      %s387 = sadd.s32 %s385, %s386
      %s388 = smul.addr %s387, 4
      %s389 = scalar_lea.vmem %s0, %s388
      %s390 = smul.u32 8, %s24
      %p391 = scmp.lt.s32.totalorder %s23, 1
      %s392 = scalar_select %p391, %s23, 1
      %s393 = smul.addr %s392, 8
      %s394 = smul.addr %s393, 4
      %s395 = scalar_lea.vmem %s1, %s394
      %p396 = scmp.lt.s32.totalorder %s23, 1
      %s397 = scalar_select %p396, %s23, 1
      %s398 = smul.addr %s397, 8
      %s399 = smul.addr %s398, 4
      %s400 = scalar_lea.vmem %s2, %s399
      %s401 = smul.u32 8, %s24
      %p402 = scmp.lt.s32.totalorder %s23, 1
      %s403 = scalar_select %p402, %s23, 1
      %p404 = scmp.lt.s32.totalorder %s401, 7
      %s405 = scalar_select %p404, %s401, 7
      %s406 = smul.addr %s403, 8
      %s407 = sadd.s32 %s405, %s406
      %s408 = smul.addr %s407, 8
      %s409 = scalar_lea.vmem %s5, %s408
      %s410 = smul.u32 8, %s24
      %s411 = smul.u32 8, %s24
      %p412 = scmp.lt.s32.totalorder %s23, 1
      %s413 = scalar_select %p412, %s23, 1
      %p414 = scmp.lt.s32.totalorder %s411, 7
      %s415 = scalar_select %p414, %s411, 7
      %s416 = smul.addr %s413, 8
      %s417 = sadd.s32 %s415, %s416
      %s418 = smul.addr %s417, 8
      %s419 = scalar_lea.vmem %s8, %s418
      %s420 = smul.u32 8, %s24
      %v422 = vld [vmem:[%s389] sm:$0xf]
      %v423 = vld [vmem:[%s389 + $0x4] sm:$0xf]
      %v424 = vld [vmem:[%s389 + $0x8] sm:$0xf]
      %v425 = vld [vmem:[%s389 + $0xc] sm:$0xf]
      %v426 = vld [vmem:[%s389 + $0x10] sm:$0xf]
      %v427 = vld [vmem:[%s389 + $0x14] sm:$0xf]
      %v428 = vld [vmem:[%s389 + $0x18] sm:$0xf]
      %v429 = vld [vmem:[%s389 + $0x1c] sm:$0xf]
      %v430 = vld [vmem:[%s395] sm:$0xf]
      %v431 = vld [vmem:[%s395 + $0x4] sm:$0xf]
      %v432 = vld [vmem:[%s395 + $0x8] sm:$0xf]
      %v433 = vld [vmem:[%s395 + $0xc] sm:$0xf]
      %v434 = vld [vmem:[%s395 + $0x10] sm:$0xf]
      %v435 = vld [vmem:[%s395 + $0x14] sm:$0xf]
      %v436 = vld [vmem:[%s395 + $0x18] sm:$0xf]
      %v437 = vld [vmem:[%s395 + $0x1c] sm:$0xf]
      %v438 = vld [vmem:[%s400] sm:$0xf]
      %v439 = vld [vmem:[%s400 + $0x4] sm:$0xf]
      %v440 = vld [vmem:[%s400 + $0x8] sm:$0xf]
      %v441 = vld [vmem:[%s400 + $0xc] sm:$0xf]
      %v442 = vld [vmem:[%s400 + $0x10] sm:$0xf]
      %v443 = vld [vmem:[%s400 + $0x14] sm:$0xf]
      %v444 = vld [vmem:[%s400 + $0x18] sm:$0xf]
      %v445 = vld [vmem:[%s400 + $0x1c] sm:$0xf]
      %v454 = vunpack.c.l.b16 %v422
      %v455 = vunpack.c.l.b16 %v423
      %v456 = vunpack.c.l.b16 %v424
      %v457 = vunpack.c.l.b16 %v425
      %v458 = vunpack.c.l.b16 %v426
      %v459 = vunpack.c.l.b16 %v427
      %v460 = vunpack.c.l.b16 %v428
      %v461 = vunpack.c.l.b16 %v429
      %v462 = vpack.c.b16 %v455, %v454
      %v463 = vpack.c.b16 %v457, %v456
      %v464 = vpack.c.b16 %v459, %v458
      %v465 = vpack.c.b16 %v461, %v460
      %v474 = vunpack.c.l.b16 %v430
      %v475 = vunpack.c.l.b16 %v431
      %v476 = vunpack.c.l.b16 %v432
      %v477 = vunpack.c.l.b16 %v433
      %v478 = vunpack.c.l.b16 %v434
      %v479 = vunpack.c.l.b16 %v435
      %v480 = vunpack.c.l.b16 %v436
      %v481 = vunpack.c.l.b16 %v437
      %v482 = vpack.c.b16 %v475, %v474
      %v483 = vpack.c.b16 %v477, %v476
      %v484 = vpack.c.b16 %v479, %v478
      %v485 = vpack.c.b16 %v481, %v480
      %vm486 = vcmask 64512
      %v488 = vsel %vm486, %v462, 0
      %v491 = vsel %vm486, %v463, 0
      %v494 = vsel %vm486, %v464, 0
      %v497 = vsel %vm486, %v465, 0
      %v500 = vsel %vm486, %v482, 0
      %v503 = vsel %vm486, %v483, 0
      %v506 = vsel %vm486, %v484, 0
      %v509 = vsel %vm486, %v485, 0
      %511 = vmatprep.subr.bf16.mxu0 0
      %512 = vmatpush1.bf16.xpose.msra.mxu0 0
      %513 = vmatprep.subr.bf16.mxu0 0
      %514 = vmatpush1.bf16.xpose.msra.mxu0 0
      %515 = vmatprep.subr.bf16.mxu0 0
      %516 = vmatpush1.bf16.xpose.msra.mxu0 0
      %517 = vmatprep.subr.bf16.mxu0 0
      %518 = vmatpush1.bf16.xpose.msra.mxu0 0
      %519 = vmatprep.subr.bf16.mxu0 0
      %520 = vmatpush1.bf16.xpose.msra.mxu0 %v509
      %521 = vmatprep.subr.bf16.mxu0 0
      %522 = vmatpush1.bf16.xpose.msra.mxu0 %v506
      %523 = vmatprep.subr.bf16.mxu0 0
      %524 = vmatpush1.bf16.xpose.msra.mxu0 %v503
      %525 = vmatprep.subr.bf16.mxu0 0
      %526 = vmatpush1.bf16.xpose.msra.mxu0 %v500
      %527 = vmatprep.subr.bf16.mxu0 0
      %528 = vmatpush2.bf16.xpose.msra.mxu0 0
      %529 = vmatprep.subr.bf16.mxu0 0
      %530 = vmatpush2.bf16.xpose.msra.mxu0 0
      %531 = vmatprep.subr.bf16.mxu0 0
      %532 = vmatpush2.bf16.xpose.msra.mxu0 0
      %533 = vmatprep.subr.bf16.mxu0 0
      %534 = vmatpush2.bf16.xpose.msra.mxu0 0
      %535 = vmatprep.subr.bf16.mxu0 0
      %536 = vmatpush2.bf16.xpose.msra.mxu0 0
      %537 = vmatprep.subr.bf16.mxu0 0
      %538 = vmatpush2.bf16.xpose.msra.mxu0 0
      %539 = vmatprep.subr.bf16.mxu0 0
      %540 = vmatpush2.bf16.xpose.msra.mxu0 0
      %541 = vmatprep.subr.bf16.mxu0 0
      %542 = vmatpush2.bf16.xpose.msra.mxu0 0
      %543 = vmatprep.mubr.bf16.mxu0 0
      %544 = vmatmul.mubr.bf16.gmra.mxu0 %v488
      %v545 = vpop.f32.mrf.mxu0
      %v546 = vadd.f32 0.0, %v545
      %v547 = vpop.f32.mrf.mxu0
      %v548 = vpop.f32.mrf.mxu0
      %v549 = vadd.f32 0.0, %v548
      %v550 = vpop.f32.mrf.mxu0
      %551 = vmatprep.mubr.bf16.mxu0 0
      %552 = vmatmul.mubr.bf16.gmra.mxu0 %v491
      %v553 = vpop.f32.mrf.mxu0
      %v554 = vadd.f32 0.0, %v553
      %v555 = vpop.f32.mrf.mxu0
      %v556 = vpop.f32.mrf.mxu0
      %v557 = vadd.f32 0.0, %v556
      %v558 = vpop.f32.mrf.mxu0
      %559 = vmatprep.mubr.bf16.mxu0 0
      %560 = vmatmul.mubr.bf16.gmra.mxu0 %v494
      %v561 = vpop.f32.mrf.mxu0
      %v562 = vadd.f32 0.0, %v561
      %v563 = vpop.f32.mrf.mxu0
      %v564 = vpop.f32.mrf.mxu0
      %v565 = vadd.f32 0.0, %v564
      %v566 = vpop.f32.mrf.mxu0
      %567 = vmatprep.mubr.bf16.mxu0 0
      %568 = vmatmul.mubr.bf16.gmra.mxu0 %v497
      %v569 = vpop.f32.mrf.mxu0
      %v570 = vadd.f32 0.0, %v569
      %v571 = vpop.f32.mrf.mxu0
      %v572 = vpop.f32.mrf.mxu0
      %v573 = vadd.f32 0.0, %v572
      %v574 = vpop.f32.mrf.mxu0
      %575 = vdwg.mxu0
      %vm576 = vcmask 523264
      %v577 = vsel %vm576, %v546, -inf
      %578 = vmax.xlane.f32.xlu0 %v577
      %v579 = vpop.xlane.xlu0 %578
      %v580 = vsel %vm576, %v549, -inf
      %581 = vmax.xlane.f32.xlu0 %v580
      %v582 = vpop.xlane.xlu0 %581
      %v583 = vsel %vm576, %v554, -inf
      %584 = vmax.xlane.f32.xlu0 %v583
      %v585 = vpop.xlane.xlu0 %584
      %v586 = vsel %vm576, %v557, -inf
      %587 = vmax.xlane.f32.xlu0 %v586
      %v588 = vpop.xlane.xlu0 %587
      %v589 = vsel %vm576, %v562, -inf
      %590 = vmax.xlane.f32.xlu0 %v589
      %v591 = vpop.xlane.xlu0 %590
      %v592 = vsel %vm576, %v565, -inf
      %593 = vmax.xlane.f32.xlu0 %v592
      %v594 = vpop.xlane.xlu0 %593
      %v595 = vsel %vm576, %v570, -inf
      %596 = vmax.xlane.f32.xlu0 %v595
      %v597 = vpop.xlane.xlu0 %596
      %v598 = vsel %vm576, %v573, -inf
      %599 = vmax.xlane.f32.xlu0 %v598
      %v600 = vpop.xlane.xlu0 %599
      %v601 = vsub.f32 %v546, %v579
      %v602 = vsub.f32 %v549, %v582
      %v603 = vsub.f32 %v554, %v585
      %v604 = vsub.f32 %v557, %v588
      %v605 = vsub.f32 %v562, %v591
      %v606 = vsub.f32 %v565, %v594
      %v607 = vsub.f32 %v570, %v597
      %v608 = vsub.f32 %v573, %v600
      %v609 = vmul.f32 %v601, 1.442695
      %v610 = vpow.pop %v609
      %v611 = vmul.f32 %v602, 1.442695
      %v612 = vpow.pop %v611
      %v613 = vmul.f32 %v603, 1.442695
      %v614 = vpow.pop %v613
      %v615 = vmul.f32 %v604, 1.442695
      %v616 = vpow.pop %v615
      %v617 = vmul.f32 %v605, 1.442695
      %v618 = vpow.pop %v617
      %v619 = vmul.f32 %v606, 1.442695
      %v620 = vpow.pop %v619
      %v621 = vmul.f32 %v607, 1.442695
      %v622 = vpow.pop %v621
      %v623 = vmul.f32 %v608, 1.442695
      %v624 = vpow.pop %v623
      %v625 = vsel %vm576, %v610, 0.0
      %626 = vadd.xlane.f32.xlu0 %v625
      %v627 = vpop.xlane.xlu0 %626
      %v628 = vsel %vm576, %v612, 0.0
      %629 = vadd.xlane.f32.xlu0 %v628
      %v630 = vpop.xlane.xlu0 %629
      %v631 = vsel %vm576, %v614, 0.0
      %632 = vadd.xlane.f32.xlu0 %v631
      %v633 = vpop.xlane.xlu0 %632
      %v634 = vsel %vm576, %v616, 0.0
      %635 = vadd.xlane.f32.xlu0 %v634
      %v636 = vpop.xlane.xlu0 %635
      %v637 = vsel %vm576, %v618, 0.0
      %638 = vadd.xlane.f32.xlu0 %v637
      %v639 = vpop.xlane.xlu0 %638
      %v640 = vsel %vm576, %v620, 0.0
      %641 = vadd.xlane.f32.xlu0 %v640
      %v642 = vpop.xlane.xlu0 %641
      %v643 = vsel %vm576, %v622, 0.0
      %644 = vadd.xlane.f32.xlu0 %v643
      %v645 = vpop.xlane.xlu0 %644
      %v646 = vsel %vm576, %v624, 0.0
      %647 = vadd.xlane.f32.xlu0 %v646
      %v648 = vpop.xlane.xlu0 %647
      %v649 = vrcp.pop %v627
      %v650 = vrcp.pop %v630
      %v651 = vrcp.pop %v633
      %v652 = vrcp.pop %v636
      %v653 = vrcp.pop %v639
      %v654 = vrcp.pop %v642
      %v655 = vrcp.pop %v645
      %v656 = vrcp.pop %v648
      %v657 = vmul.f32 %v610, %v649
      %v658 = vmul.f32 %v612, %v650
      %v659 = vmul.f32 %v614, %v651
      %v660 = vmul.f32 %v616, %v652
      %v661 = vmul.f32 %v618, %v653
      %v662 = vmul.f32 %v620, %v654
      %v663 = vmul.f32 %v622, %v655
      %v664 = vmul.f32 %v624, %v656
      %v665 = vpack.c.bf16 %v658, %v657
      %v666 = vpack.c.bf16 %v660, %v659
      %v667 = vpack.c.bf16 %v662, %v661
      %v668 = vpack.c.bf16 %v664, %v663
      %v677 = vunpack.c.l.b16 %v438
      %v678 = vunpack.c.l.b16 %v439
      %v679 = vunpack.c.l.b16 %v440
      %v680 = vunpack.c.l.b16 %v441
      %v681 = vunpack.c.l.b16 %v442
      %v682 = vunpack.c.l.b16 %v443
      %v683 = vunpack.c.l.b16 %v444
      %v684 = vunpack.c.l.b16 %v445
      %v685 = vpack.c.b16 %v678, %v677
      %v686 = vpack.c.b16 %v680, %v679
      %v687 = vpack.c.b16 %v682, %v681
      %v688 = vpack.c.b16 %v684, %v683
      %v694 = vsel %vm576, %v665, 0
      %v697 = vsel %vm576, %v666, 0
      %v700 = vsel %vm576, %v667, 0
      %v703 = vsel %vm576, %v668, 0
      %705 = vmatprep.subr.bf16.mxu0 0
      %706 = vmatpush1.bf16.msra.mxu0 0
      %707 = vmatprep.subr.bf16.mxu0 0
      %708 = vmatpush1.bf16.msra.mxu0 0
      %709 = vmatprep.subr.bf16.mxu0 0
      %710 = vmatpush1.bf16.msra.mxu0 0
      %711 = vmatprep.subr.bf16.mxu0 0
      %712 = vmatpush1.bf16.msra.mxu0 0
      %713 = vmatprep.subr.bf16.mxu0 0
      %714 = vmatpush1.bf16.msra.mxu0 %v688
      %715 = vmatprep.subr.bf16.mxu0 0
      %716 = vmatpush1.bf16.msra.mxu0 %v687
      %717 = vmatprep.subr.bf16.mxu0 0
      %718 = vmatpush1.bf16.msra.mxu0 %v686
      %719 = vmatprep.subr.bf16.mxu0 0
      %720 = vmatpush1.bf16.msra.mxu0 %v685
      %721 = vmatprep.subr.bf16.mxu0 0
      %722 = vmatpush2.bf16.msra.mxu0 0
      %723 = vmatprep.subr.bf16.mxu0 0
      %724 = vmatpush2.bf16.msra.mxu0 0
      %725 = vmatprep.subr.bf16.mxu0 0
      %726 = vmatpush2.bf16.msra.mxu0 0
      %727 = vmatprep.subr.bf16.mxu0 0
      %728 = vmatpush2.bf16.msra.mxu0 0
      %729 = vmatprep.subr.bf16.mxu0 0
      %730 = vmatpush2.bf16.msra.mxu0 0
      %731 = vmatprep.subr.bf16.mxu0 0
      %732 = vmatpush2.bf16.msra.mxu0 0
      %733 = vmatprep.subr.bf16.mxu0 0
      %734 = vmatpush2.bf16.msra.mxu0 0
      %735 = vmatprep.subr.bf16.mxu0 0
      %736 = vmatpush2.bf16.msra.mxu0 0
      %737 = vmatprep.mubr.bf16.mxu0 0
      %738 = vmatmul.mubr.bf16.gmra.mxu0 %v694
      %v739 = vpop.f32.mrf.mxu0
      %v740 = vadd.f32 0.0, %v739
      %v741 = vpop.f32.mrf.mxu0
      %v742 = vpop.f32.mrf.mxu0
      %v743 = vadd.f32 0.0, %v742
      %v744 = vpop.f32.mrf.mxu0
      %745 = vmatprep.mubr.bf16.mxu0 0
      %746 = vmatmul.mubr.bf16.gmra.mxu0 %v697
      %v747 = vpop.f32.mrf.mxu0
      %v748 = vadd.f32 0.0, %v747
      %v749 = vpop.f32.mrf.mxu0
      %v750 = vpop.f32.mrf.mxu0
      %v751 = vadd.f32 0.0, %v750
      %v752 = vpop.f32.mrf.mxu0
      %753 = vmatprep.mubr.bf16.mxu0 0
      %754 = vmatmul.mubr.bf16.gmra.mxu0 %v700
      %v755 = vpop.f32.mrf.mxu0
      %v756 = vadd.f32 0.0, %v755
      %v757 = vpop.f32.mrf.mxu0
      %v758 = vpop.f32.mrf.mxu0
      %v759 = vadd.f32 0.0, %v758
      %v760 = vpop.f32.mrf.mxu0
      %761 = vmatprep.mubr.bf16.mxu0 0
      %762 = vmatmul.mubr.bf16.gmra.mxu0 %v703
      %v763 = vpop.f32.mrf.mxu0
      %v764 = vadd.f32 0.0, %v763
      %v765 = vpop.f32.mrf.mxu0
      %v766 = vpop.f32.mrf.mxu0
      %v767 = vadd.f32 0.0, %v766
      %v768 = vpop.f32.mrf.mxu0
      %769 = vdwg.mxu0
      %770 = vrot.lane.b32.xlu0 %v462, 120
      %v771 = vpop.permute.xlu0 %770
      %772 = vrot.lane.b32.xlu0 %v463, 120
      %v773 = vpop.permute.xlu0 %772
      %774 = vrot.lane.b32.xlu0 %v464, 120
      %v775 = vpop.permute.xlu0 %774
      %776 = vrot.lane.b32.xlu0 %v465, 120
      %v777 = vpop.permute.xlu0 %776
      %778 = vrot.lane.b32.xlu0 %v482, 120
      %v779 = vpop.permute.xlu0 %778
      %780 = vrot.lane.b32.xlu0 %v483, 120
      %v781 = vpop.permute.xlu0 %780
      %782 = vrot.lane.b32.xlu0 %v484, 120
      %v783 = vpop.permute.xlu0 %782
      %784 = vrot.lane.b32.xlu0 %v485, 120
      %v785 = vpop.permute.xlu0 %784
      %v787 = vsel %vm486, %v771, 0
      %v790 = vsel %vm486, %v773, 0
      %v793 = vsel %vm486, %v775, 0
      %v796 = vsel %vm486, %v777, 0
      %v799 = vsel %vm486, %v779, 0
      %v802 = vsel %vm486, %v781, 0
      %v805 = vsel %vm486, %v783, 0
      %v808 = vsel %vm486, %v785, 0
      %810 = vmatprep.subr.bf16.mxu0 0
      %811 = vmatpush1.bf16.xpose.msra.mxu0 0
      %812 = vmatprep.subr.bf16.mxu0 0
      %813 = vmatpush1.bf16.xpose.msra.mxu0 0
      %814 = vmatprep.subr.bf16.mxu0 0
      %815 = vmatpush1.bf16.xpose.msra.mxu0 0
      %816 = vmatprep.subr.bf16.mxu0 0
      %817 = vmatpush1.bf16.xpose.msra.mxu0 0
      %818 = vmatprep.subr.bf16.mxu0 0
      %819 = vmatpush1.bf16.xpose.msra.mxu0 %v808
      %820 = vmatprep.subr.bf16.mxu0 0
      %821 = vmatpush1.bf16.xpose.msra.mxu0 %v805
      %822 = vmatprep.subr.bf16.mxu0 0
      %823 = vmatpush1.bf16.xpose.msra.mxu0 %v802
      %824 = vmatprep.subr.bf16.mxu0 0
      %825 = vmatpush1.bf16.xpose.msra.mxu0 %v799
      %826 = vmatprep.subr.bf16.mxu0 0
      %827 = vmatpush2.bf16.xpose.msra.mxu0 0
      %828 = vmatprep.subr.bf16.mxu0 0
      %829 = vmatpush2.bf16.xpose.msra.mxu0 0
      %830 = vmatprep.subr.bf16.mxu0 0
      %831 = vmatpush2.bf16.xpose.msra.mxu0 0
      %832 = vmatprep.subr.bf16.mxu0 0
      %833 = vmatpush2.bf16.xpose.msra.mxu0 0
      %834 = vmatprep.subr.bf16.mxu0 0
      %835 = vmatpush2.bf16.xpose.msra.mxu0 0
      %836 = vmatprep.subr.bf16.mxu0 0
      %837 = vmatpush2.bf16.xpose.msra.mxu0 0
      %838 = vmatprep.subr.bf16.mxu0 0
      %839 = vmatpush2.bf16.xpose.msra.mxu0 0
      %840 = vmatprep.subr.bf16.mxu0 0
      %841 = vmatpush2.bf16.xpose.msra.mxu0 0
      %842 = vmatprep.mubr.bf16.mxu0 0
      %843 = vmatmul.mubr.bf16.gmra.mxu0 %v787
      %v844 = vpop.f32.mrf.mxu0
      %v845 = vadd.f32 0.0, %v844
      %v846 = vpop.f32.mrf.mxu0
      %v847 = vpop.f32.mrf.mxu0
      %v848 = vadd.f32 0.0, %v847
      %v849 = vpop.f32.mrf.mxu0
      %850 = vmatprep.mubr.bf16.mxu0 0
      %851 = vmatmul.mubr.bf16.gmra.mxu0 %v790
      %v852 = vpop.f32.mrf.mxu0
      %v853 = vadd.f32 0.0, %v852
      %v854 = vpop.f32.mrf.mxu0
      %v855 = vpop.f32.mrf.mxu0
      %v856 = vadd.f32 0.0, %v855
      %v857 = vpop.f32.mrf.mxu0
      %858 = vmatprep.mubr.bf16.mxu0 0
      %859 = vmatmul.mubr.bf16.gmra.mxu0 %v793
      %v860 = vpop.f32.mrf.mxu0
      %v861 = vadd.f32 0.0, %v860
      %v862 = vpop.f32.mrf.mxu0
      %v863 = vpop.f32.mrf.mxu0
      %v864 = vadd.f32 0.0, %v863
      %v865 = vpop.f32.mrf.mxu0
      %866 = vmatprep.mubr.bf16.mxu0 0
      %867 = vmatmul.mubr.bf16.gmra.mxu0 %v796
      %v868 = vpop.f32.mrf.mxu0
      %v869 = vadd.f32 0.0, %v868
      %v870 = vpop.f32.mrf.mxu0
      %v871 = vpop.f32.mrf.mxu0
      %v872 = vadd.f32 0.0, %v871
      %v873 = vpop.f32.mrf.mxu0
      %874 = vdwg.mxu0
      %v875 = vsel %vm576, %v845, -inf
      %876 = vmax.xlane.f32.xlu0 %v875
      %v877 = vpop.xlane.xlu0 %876
      %v878 = vsel %vm576, %v848, -inf
      %879 = vmax.xlane.f32.xlu0 %v878
      %v880 = vpop.xlane.xlu0 %879
      %v881 = vsel %vm576, %v853, -inf
      %882 = vmax.xlane.f32.xlu0 %v881
      %v883 = vpop.xlane.xlu0 %882
      %v884 = vsel %vm576, %v856, -inf
      %885 = vmax.xlane.f32.xlu0 %v884
      %v886 = vpop.xlane.xlu0 %885
      %v887 = vsel %vm576, %v861, -inf
      %888 = vmax.xlane.f32.xlu0 %v887
      %v889 = vpop.xlane.xlu0 %888
      %v890 = vsel %vm576, %v864, -inf
      %891 = vmax.xlane.f32.xlu0 %v890
      %v892 = vpop.xlane.xlu0 %891
      %v893 = vsel %vm576, %v869, -inf
      %894 = vmax.xlane.f32.xlu0 %v893
      %v895 = vpop.xlane.xlu0 %894
      %v896 = vsel %vm576, %v872, -inf
      %897 = vmax.xlane.f32.xlu0 %v896
      %v898 = vpop.xlane.xlu0 %897
      %v899 = vsub.f32 %v845, %v877
      %v900 = vsub.f32 %v848, %v880
      %v901 = vsub.f32 %v853, %v883
      %v902 = vsub.f32 %v856, %v886
      %v903 = vsub.f32 %v861, %v889
      %v904 = vsub.f32 %v864, %v892
      %v905 = vsub.f32 %v869, %v895
      %v906 = vsub.f32 %v872, %v898
      %v907 = vmul.f32 %v899, 1.442695
      %v908 = vpow.pop %v907
      %v909 = vmul.f32 %v900, 1.442695
      %v910 = vpow.pop %v909
      %v911 = vmul.f32 %v901, 1.442695
      %v912 = vpow.pop %v911
      %v913 = vmul.f32 %v902, 1.442695
      %v914 = vpow.pop %v913
      %v915 = vmul.f32 %v903, 1.442695
      %v916 = vpow.pop %v915
      %v917 = vmul.f32 %v904, 1.442695
      %v918 = vpow.pop %v917
      %v919 = vmul.f32 %v905, 1.442695
      %v920 = vpow.pop %v919
      %v921 = vmul.f32 %v906, 1.442695
      %v922 = vpow.pop %v921
      %v923 = vsel %vm576, %v908, 0.0
      %924 = vadd.xlane.f32.xlu0 %v923
      %v925 = vpop.xlane.xlu0 %924
      %v926 = vsel %vm576, %v910, 0.0
      %927 = vadd.xlane.f32.xlu0 %v926
      %v928 = vpop.xlane.xlu0 %927
      %v929 = vsel %vm576, %v912, 0.0
      %930 = vadd.xlane.f32.xlu0 %v929
      %v931 = vpop.xlane.xlu0 %930
      %v932 = vsel %vm576, %v914, 0.0
      %933 = vadd.xlane.f32.xlu0 %v932
      %v934 = vpop.xlane.xlu0 %933
      %v935 = vsel %vm576, %v916, 0.0
      %936 = vadd.xlane.f32.xlu0 %v935
      %v937 = vpop.xlane.xlu0 %936
      %v938 = vsel %vm576, %v918, 0.0
      %939 = vadd.xlane.f32.xlu0 %v938
      %v940 = vpop.xlane.xlu0 %939
      %v941 = vsel %vm576, %v920, 0.0
      %942 = vadd.xlane.f32.xlu0 %v941
      %v943 = vpop.xlane.xlu0 %942
      %v944 = vsel %vm576, %v922, 0.0
      %945 = vadd.xlane.f32.xlu0 %v944
      %v946 = vpop.xlane.xlu0 %945
      %v947 = vrcp.pop %v925
      %v948 = vrcp.pop %v928
      %v949 = vrcp.pop %v931
      %v950 = vrcp.pop %v934
      %v951 = vrcp.pop %v937
      %v952 = vrcp.pop %v940
      %v953 = vrcp.pop %v943
      %v954 = vrcp.pop %v946
      %v955 = vmul.f32 %v908, %v947
      %v956 = vmul.f32 %v910, %v948
      %v957 = vmul.f32 %v912, %v949
      %v958 = vmul.f32 %v914, %v950
      %v959 = vmul.f32 %v916, %v951
      %v960 = vmul.f32 %v918, %v952
      %v961 = vmul.f32 %v920, %v953
      %v962 = vmul.f32 %v922, %v954
      %v963 = vpack.c.bf16 %v956, %v955
      %v964 = vpack.c.bf16 %v958, %v957
      %v965 = vpack.c.bf16 %v960, %v959
      %v966 = vpack.c.bf16 %v962, %v961
      %967 = vrot.lane.b32.xlu0 %v685, 120
      %v968 = vpop.permute.xlu0 %967
      %969 = vrot.lane.b32.xlu0 %v686, 120
      %v970 = vpop.permute.xlu0 %969
      %971 = vrot.lane.b32.xlu0 %v687, 120
      %v972 = vpop.permute.xlu0 %971
      %973 = vrot.lane.b32.xlu0 %v688, 120
      %v974 = vpop.permute.xlu0 %973
      %v980 = vsel %vm576, %v963, 0
      %v983 = vsel %vm576, %v964, 0
      %v986 = vsel %vm576, %v965, 0
      %v989 = vsel %vm576, %v966, 0
      %991 = vmatprep.subr.bf16.mxu0 0
      %992 = vmatpush1.bf16.msra.mxu0 0
      %993 = vmatprep.subr.bf16.mxu0 0
      %994 = vmatpush1.bf16.msra.mxu0 0
      %995 = vmatprep.subr.bf16.mxu0 0
      %996 = vmatpush1.bf16.msra.mxu0 0
      %997 = vmatprep.subr.bf16.mxu0 0
      %998 = vmatpush1.bf16.msra.mxu0 0
      %999 = vmatprep.subr.bf16.mxu0 0
      %1000 = vmatpush1.bf16.msra.mxu0 %v974
      %1001 = vmatprep.subr.bf16.mxu0 0
      %1002 = vmatpush1.bf16.msra.mxu0 %v972
      %1003 = vmatprep.subr.bf16.mxu0 0
      %1004 = vmatpush1.bf16.msra.mxu0 %v970
      %1005 = vmatprep.subr.bf16.mxu0 0
      %1006 = vmatpush1.bf16.msra.mxu0 %v968
      %1007 = vmatprep.subr.bf16.mxu0 0
      %1008 = vmatpush2.bf16.msra.mxu0 0
      %1009 = vmatprep.subr.bf16.mxu0 0
      %1010 = vmatpush2.bf16.msra.mxu0 0
      %1011 = vmatprep.subr.bf16.mxu0 0
      %1012 = vmatpush2.bf16.msra.mxu0 0
      %1013 = vmatprep.subr.bf16.mxu0 0
      %1014 = vmatpush2.bf16.msra.mxu0 0
      %1015 = vmatprep.subr.bf16.mxu0 0
      %1016 = vmatpush2.bf16.msra.mxu0 0
      %1017 = vmatprep.subr.bf16.mxu0 0
      %1018 = vmatpush2.bf16.msra.mxu0 0
      %1019 = vmatprep.subr.bf16.mxu0 0
      %1020 = vmatpush2.bf16.msra.mxu0 0
      %1021 = vmatprep.subr.bf16.mxu0 0
      %1022 = vmatpush2.bf16.msra.mxu0 0
      %1023 = vmatprep.mubr.bf16.mxu0 0
      %1024 = vmatmul.mubr.bf16.gmra.mxu0 %v980
      %v1025 = vpop.f32.mrf.mxu0
      %v1026 = vadd.f32 0.0, %v1025
      %v1027 = vpop.f32.mrf.mxu0
      %v1028 = vpop.f32.mrf.mxu0
      %v1029 = vadd.f32 0.0, %v1028
      %v1030 = vpop.f32.mrf.mxu0
      %1031 = vmatprep.mubr.bf16.mxu0 0
      %1032 = vmatmul.mubr.bf16.gmra.mxu0 %v983
      %v1033 = vpop.f32.mrf.mxu0
      %v1034 = vadd.f32 0.0, %v1033
      %v1035 = vpop.f32.mrf.mxu0
      %v1036 = vpop.f32.mrf.mxu0
      %v1037 = vadd.f32 0.0, %v1036
      %v1038 = vpop.f32.mrf.mxu0
      %1039 = vmatprep.mubr.bf16.mxu0 0
      %1040 = vmatmul.mubr.bf16.gmra.mxu0 %v986
      %v1041 = vpop.f32.mrf.mxu0
      %v1042 = vadd.f32 0.0, %v1041
      %v1043 = vpop.f32.mrf.mxu0
      %v1044 = vpop.f32.mrf.mxu0
      %v1045 = vadd.f32 0.0, %v1044
      %v1046 = vpop.f32.mrf.mxu0
      %1047 = vmatprep.mubr.bf16.mxu0 0
      %1048 = vmatmul.mubr.bf16.gmra.mxu0 %v989
      %v1049 = vpop.f32.mrf.mxu0
      %v1050 = vadd.f32 0.0, %v1049
      %v1051 = vpop.f32.mrf.mxu0
      %v1052 = vpop.f32.mrf.mxu0
      %v1053 = vadd.f32 0.0, %v1052
      %v1054 = vpop.f32.mrf.mxu0
      %1055 = vdwg.mxu0
      %1056 = vrot.lane.b32.xlu0 %v462, 112
      %v1057 = vpop.permute.xlu0 %1056
      %1058 = vrot.lane.b32.xlu0 %v463, 112
      %v1059 = vpop.permute.xlu0 %1058
      %1060 = vrot.lane.b32.xlu0 %v464, 112
      %v1061 = vpop.permute.xlu0 %1060
      %1062 = vrot.lane.b32.xlu0 %v465, 112
      %v1063 = vpop.permute.xlu0 %1062
      %1064 = vrot.lane.b32.xlu0 %v482, 112
      %v1065 = vpop.permute.xlu0 %1064
      %1066 = vrot.lane.b32.xlu0 %v483, 112
      %v1067 = vpop.permute.xlu0 %1066
      %1068 = vrot.lane.b32.xlu0 %v484, 112
      %v1069 = vpop.permute.xlu0 %1068
      %1070 = vrot.lane.b32.xlu0 %v485, 112
      %v1071 = vpop.permute.xlu0 %1070
      %v1073 = vsel %vm486, %v1057, 0
      %v1076 = vsel %vm486, %v1059, 0
      %v1079 = vsel %vm486, %v1061, 0
      %v1082 = vsel %vm486, %v1063, 0
      %v1085 = vsel %vm486, %v1065, 0
      %v1088 = vsel %vm486, %v1067, 0
      %v1091 = vsel %vm486, %v1069, 0
      %v1094 = vsel %vm486, %v1071, 0
      %1096 = vmatprep.subr.bf16.mxu0 0
      %1097 = vmatpush1.bf16.xpose.msra.mxu0 0
      %1098 = vmatprep.subr.bf16.mxu0 0
      %1099 = vmatpush1.bf16.xpose.msra.mxu0 0
      %1100 = vmatprep.subr.bf16.mxu0 0
      %1101 = vmatpush1.bf16.xpose.msra.mxu0 0
      %1102 = vmatprep.subr.bf16.mxu0 0
      %1103 = vmatpush1.bf16.xpose.msra.mxu0 0
      %1104 = vmatprep.subr.bf16.mxu0 0
      %1105 = vmatpush1.bf16.xpose.msra.mxu0 %v1094
      %1106 = vmatprep.subr.bf16.mxu0 0
      %1107 = vmatpush1.bf16.xpose.msra.mxu0 %v1091
      %1108 = vmatprep.subr.bf16.mxu0 0
      %1109 = vmatpush1.bf16.xpose.msra.mxu0 %v1088
      %1110 = vmatprep.subr.bf16.mxu0 0
      %1111 = vmatpush1.bf16.xpose.msra.mxu0 %v1085
      %1112 = vmatprep.subr.bf16.mxu0 0
      %1113 = vmatpush2.bf16.xpose.msra.mxu0 0
      %1114 = vmatprep.subr.bf16.mxu0 0
      %1115 = vmatpush2.bf16.xpose.msra.mxu0 0
      %1116 = vmatprep.subr.bf16.mxu0 0
      %1117 = vmatpush2.bf16.xpose.msra.mxu0 0
      %1118 = vmatprep.subr.bf16.mxu0 0
      %1119 = vmatpush2.bf16.xpose.msra.mxu0 0
      %1120 = vmatprep.subr.bf16.mxu0 0
      %1121 = vmatpush2.bf16.xpose.msra.mxu0 0
      %1122 = vmatprep.subr.bf16.mxu0 0
      %1123 = vmatpush2.bf16.xpose.msra.mxu0 0
      %1124 = vmatprep.subr.bf16.mxu0 0
      %1125 = vmatpush2.bf16.xpose.msra.mxu0 0
      %1126 = vmatprep.subr.bf16.mxu0 0
      %1127 = vmatpush2.bf16.xpose.msra.mxu0 0
      %1128 = vmatprep.mubr.bf16.mxu0 0
      %1129 = vmatmul.mubr.bf16.gmra.mxu0 %v1073
      %v1130 = vpop.f32.mrf.mxu0
      %v1131 = vadd.f32 0.0, %v1130
      %v1132 = vpop.f32.mrf.mxu0
      %v1133 = vpop.f32.mrf.mxu0
      %v1134 = vadd.f32 0.0, %v1133
      %v1135 = vpop.f32.mrf.mxu0
      %1136 = vmatprep.mubr.bf16.mxu0 0
      %1137 = vmatmul.mubr.bf16.gmra.mxu0 %v1076
      %v1138 = vpop.f32.mrf.mxu0
      %v1139 = vadd.f32 0.0, %v1138
      %v1140 = vpop.f32.mrf.mxu0
      %v1141 = vpop.f32.mrf.mxu0
      %v1142 = vadd.f32 0.0, %v1141
      %v1143 = vpop.f32.mrf.mxu0
      %1144 = vmatprep.mubr.bf16.mxu0 0
      %1145 = vmatmul.mubr.bf16.gmra.mxu0 %v1079
      %v1146 = vpop.f32.mrf.mxu0
      %v1147 = vadd.f32 0.0, %v1146
      %v1148 = vpop.f32.mrf.mxu0
      %v1149 = vpop.f32.mrf.mxu0
      %v1150 = vadd.f32 0.0, %v1149
      %v1151 = vpop.f32.mrf.mxu0
      %1152 = vmatprep.mubr.bf16.mxu0 0
      %1153 = vmatmul.mubr.bf16.gmra.mxu0 %v1082
      %v1154 = vpop.f32.mrf.mxu0
      %v1155 = vadd.f32 0.0, %v1154
      %v1156 = vpop.f32.mrf.mxu0
      %v1157 = vpop.f32.mrf.mxu0
      %v1158 = vadd.f32 0.0, %v1157
      %v1159 = vpop.f32.mrf.mxu0
      %1160 = vdwg.mxu0
      %v1161 = vsel %vm576, %v1131, -inf
      %1162 = vmax.xlane.f32.xlu0 %v1161
      %v1163 = vpop.xlane.xlu0 %1162
      %v1164 = vsel %vm576, %v1134, -inf
      %1165 = vmax.xlane.f32.xlu0 %v1164
      %v1166 = vpop.xlane.xlu0 %1165
      %v1167 = vsel %vm576, %v1139, -inf
      %1168 = vmax.xlane.f32.xlu0 %v1167
      %v1169 = vpop.xlane.xlu0 %1168
      %v1170 = vsel %vm576, %v1142, -inf
      %1171 = vmax.xlane.f32.xlu0 %v1170
      %v1172 = vpop.xlane.xlu0 %1171
      %v1173 = vsel %vm576, %v1147, -inf
      %1174 = vmax.xlane.f32.xlu0 %v1173
      %v1175 = vpop.xlane.xlu0 %1174
      %v1176 = vsel %vm576, %v1150, -inf
      %1177 = vmax.xlane.f32.xlu0 %v1176
      %v1178 = vpop.xlane.xlu0 %1177
      %v1179 = vsel %vm576, %v1155, -inf
      %1180 = vmax.xlane.f32.xlu0 %v1179
      %v1181 = vpop.xlane.xlu0 %1180
      %v1182 = vsel %vm576, %v1158, -inf
      %1183 = vmax.xlane.f32.xlu0 %v1182
      %v1184 = vpop.xlane.xlu0 %1183
      %v1185 = vsub.f32 %v1131, %v1163
      %v1186 = vsub.f32 %v1134, %v1166
      %v1187 = vsub.f32 %v1139, %v1169
      %v1188 = vsub.f32 %v1142, %v1172
      %v1189 = vsub.f32 %v1147, %v1175
      %v1190 = vsub.f32 %v1150, %v1178
      %v1191 = vsub.f32 %v1155, %v1181
      %v1192 = vsub.f32 %v1158, %v1184
      %v1193 = vmul.f32 %v1185, 1.442695
      %v1194 = vpow.pop %v1193
      %v1195 = vmul.f32 %v1186, 1.442695
      %v1196 = vpow.pop %v1195
      %v1197 = vmul.f32 %v1187, 1.442695
      %v1198 = vpow.pop %v1197
      %v1199 = vmul.f32 %v1188, 1.442695
      %v1200 = vpow.pop %v1199
      %v1201 = vmul.f32 %v1189, 1.442695
      %v1202 = vpow.pop %v1201
      %v1203 = vmul.f32 %v1190, 1.442695
      %v1204 = vpow.pop %v1203
      %v1205 = vmul.f32 %v1191, 1.442695
      %v1206 = vpow.pop %v1205
      %v1207 = vmul.f32 %v1192, 1.442695
      %v1208 = vpow.pop %v1207
      %v1209 = vsel %vm576, %v1194, 0.0
      %1210 = vadd.xlane.f32.xlu0 %v1209
      %v1211 = vpop.xlane.xlu0 %1210
      %v1212 = vsel %vm576, %v1196, 0.0
      %1213 = vadd.xlane.f32.xlu0 %v1212
      %v1214 = vpop.xlane.xlu0 %1213
      %v1215 = vsel %vm576, %v1198, 0.0
      %1216 = vadd.xlane.f32.xlu0 %v1215
      %v1217 = vpop.xlane.xlu0 %1216
      %v1218 = vsel %vm576, %v1200, 0.0
      %1219 = vadd.xlane.f32.xlu0 %v1218
      %v1220 = vpop.xlane.xlu0 %1219
      %v1221 = vsel %vm576, %v1202, 0.0
      %1222 = vadd.xlane.f32.xlu0 %v1221
      %v1223 = vpop.xlane.xlu0 %1222
      %v1224 = vsel %vm576, %v1204, 0.0
      %1225 = vadd.xlane.f32.xlu0 %v1224
      %v1226 = vpop.xlane.xlu0 %1225
      %v1227 = vsel %vm576, %v1206, 0.0
      %1228 = vadd.xlane.f32.xlu0 %v1227
      %v1229 = vpop.xlane.xlu0 %1228
      %v1230 = vsel %vm576, %v1208, 0.0
      %1231 = vadd.xlane.f32.xlu0 %v1230
      %v1232 = vpop.xlane.xlu0 %1231
      %v1233 = vrcp.pop %v1211
      %v1234 = vrcp.pop %v1214
      %v1235 = vrcp.pop %v1217
      %v1236 = vrcp.pop %v1220
      %v1237 = vrcp.pop %v1223
      %v1238 = vrcp.pop %v1226
      %v1239 = vrcp.pop %v1229
      %v1240 = vrcp.pop %v1232
      %v1241 = vmul.f32 %v1194, %v1233
      %v1242 = vmul.f32 %v1196, %v1234
      %v1243 = vmul.f32 %v1198, %v1235
      %v1244 = vmul.f32 %v1200, %v1236
      %v1245 = vmul.f32 %v1202, %v1237
      %v1246 = vmul.f32 %v1204, %v1238
      %v1247 = vmul.f32 %v1206, %v1239
      %v1248 = vmul.f32 %v1208, %v1240
      %v1249 = vpack.c.bf16 %v1242, %v1241
      %v1250 = vpack.c.bf16 %v1244, %v1243
      %v1251 = vpack.c.bf16 %v1246, %v1245
      %v1252 = vpack.c.bf16 %v1248, %v1247
      %1253 = vrot.lane.b32.xlu0 %v685, 112
      %v1254 = vpop.permute.xlu0 %1253
      %1255 = vrot.lane.b32.xlu0 %v686, 112
      %v1256 = vpop.permute.xlu0 %1255
      %1257 = vrot.lane.b32.xlu0 %v687, 112
      %v1258 = vpop.permute.xlu0 %1257
      %1259 = vrot.lane.b32.xlu0 %v688, 112
      %v1260 = vpop.permute.xlu0 %1259
      %v1266 = vsel %vm576, %v1249, 0
      %v1269 = vsel %vm576, %v1250, 0
      %v1272 = vsel %vm576, %v1251, 0
      %v1275 = vsel %vm576, %v1252, 0
      %1277 = vmatprep.subr.bf16.mxu0 0
      %1278 = vmatpush1.bf16.msra.mxu0 0
      %1279 = vmatprep.subr.bf16.mxu0 0
      %1280 = vmatpush1.bf16.msra.mxu0 0
      %1281 = vmatprep.subr.bf16.mxu0 0
      %1282 = vmatpush1.bf16.msra.mxu0 0
      %1283 = vmatprep.subr.bf16.mxu0 0
      %1284 = vmatpush1.bf16.msra.mxu0 0
      %1285 = vmatprep.subr.bf16.mxu0 0
      %1286 = vmatpush1.bf16.msra.mxu0 %v1260
      %1287 = vmatprep.subr.bf16.mxu0 0
      %1288 = vmatpush1.bf16.msra.mxu0 %v1258
      %1289 = vmatprep.subr.bf16.mxu0 0
      %1290 = vmatpush1.bf16.msra.mxu0 %v1256
      %1291 = vmatprep.subr.bf16.mxu0 0
      %1292 = vmatpush1.bf16.msra.mxu0 %v1254
      %1293 = vmatprep.subr.bf16.mxu0 0
      %1294 = vmatpush2.bf16.msra.mxu0 0
      %1295 = vmatprep.subr.bf16.mxu0 0
      %1296 = vmatpush2.bf16.msra.mxu0 0
      %1297 = vmatprep.subr.bf16.mxu0 0
      %1298 = vmatpush2.bf16.msra.mxu0 0
      %1299 = vmatprep.subr.bf16.mxu0 0
      %1300 = vmatpush2.bf16.msra.mxu0 0
      %1301 = vmatprep.subr.bf16.mxu0 0
      %1302 = vmatpush2.bf16.msra.mxu0 0
      %1303 = vmatprep.subr.bf16.mxu0 0
      %1304 = vmatpush2.bf16.msra.mxu0 0
      %1305 = vmatprep.subr.bf16.mxu0 0
      %1306 = vmatpush2.bf16.msra.mxu0 0
      %1307 = vmatprep.subr.bf16.mxu0 0
      %1308 = vmatpush2.bf16.msra.mxu0 0
      %1309 = vmatprep.mubr.bf16.mxu0 0
      %1310 = vmatmul.mubr.bf16.gmra.mxu0 %v1266
      %v1311 = vpop.f32.mrf.mxu0
      %v1312 = vadd.f32 0.0, %v1311
      %v1313 = vpop.f32.mrf.mxu0
      %v1314 = vpop.f32.mrf.mxu0
      %v1315 = vadd.f32 0.0, %v1314
      %v1316 = vpop.f32.mrf.mxu0
      %1317 = vmatprep.mubr.bf16.mxu0 0
      %1318 = vmatmul.mubr.bf16.gmra.mxu0 %v1269
      %v1319 = vpop.f32.mrf.mxu0
      %v1320 = vadd.f32 0.0, %v1319
      %v1321 = vpop.f32.mrf.mxu0
      %v1322 = vpop.f32.mrf.mxu0
      %v1323 = vadd.f32 0.0, %v1322
      %v1324 = vpop.f32.mrf.mxu0
      %1325 = vmatprep.mubr.bf16.mxu0 0
      %1326 = vmatmul.mubr.bf16.gmra.mxu0 %v1272
      %v1327 = vpop.f32.mrf.mxu0
      %v1328 = vadd.f32 0.0, %v1327
      %v1329 = vpop.f32.mrf.mxu0
      %v1330 = vpop.f32.mrf.mxu0
      %v1331 = vadd.f32 0.0, %v1330
      %v1332 = vpop.f32.mrf.mxu0
      %1333 = vmatprep.mubr.bf16.mxu0 0
      %1334 = vmatmul.mubr.bf16.gmra.mxu0 %v1275
      %v1335 = vpop.f32.mrf.mxu0
      %v1336 = vadd.f32 0.0, %v1335
      %v1337 = vpop.f32.mrf.mxu0
      %v1338 = vpop.f32.mrf.mxu0
      %v1339 = vadd.f32 0.0, %v1338
      %v1340 = vpop.f32.mrf.mxu0
      %1341 = vdwg.mxu0
      %1342 = vrot.lane.b32.xlu0 %v462, 104
      %v1343 = vpop.permute.xlu0 %1342
      %1344 = vrot.lane.b32.xlu0 %v463, 104
      %v1345 = vpop.permute.xlu0 %1344
      %1346 = vrot.lane.b32.xlu0 %v464, 104
      %v1347 = vpop.permute.xlu0 %1346
      %1348 = vrot.lane.b32.xlu0 %v465, 104
      %v1349 = vpop.permute.xlu0 %1348
      %1350 = vrot.lane.b32.xlu0 %v482, 104
      %v1351 = vpop.permute.xlu0 %1350
      %1352 = vrot.lane.b32.xlu0 %v483, 104
      %v1353 = vpop.permute.xlu0 %1352
      %1354 = vrot.lane.b32.xlu0 %v484, 104
      %v1355 = vpop.permute.xlu0 %1354
      %1356 = vrot.lane.b32.xlu0 %v485, 104
      %v1357 = vpop.permute.xlu0 %1356
      %v1359 = vsel %vm486, %v1343, 0
      %v1362 = vsel %vm486, %v1345, 0
      %v1365 = vsel %vm486, %v1347, 0
      %v1368 = vsel %vm486, %v1349, 0
      %v1371 = vsel %vm486, %v1351, 0
      %v1374 = vsel %vm486, %v1353, 0
      %v1377 = vsel %vm486, %v1355, 0
      %v1380 = vsel %vm486, %v1357, 0
      %1382 = vmatprep.subr.bf16.mxu0 0
      %1383 = vmatpush1.bf16.xpose.msra.mxu0 0
      %1384 = vmatprep.subr.bf16.mxu0 0
      %1385 = vmatpush1.bf16.xpose.msra.mxu0 0
      %1386 = vmatprep.subr.bf16.mxu0 0
      %1387 = vmatpush1.bf16.xpose.msra.mxu0 0
      %1388 = vmatprep.subr.bf16.mxu0 0
      %1389 = vmatpush1.bf16.xpose.msra.mxu0 0
      %1390 = vmatprep.subr.bf16.mxu0 0
      %1391 = vmatpush1.bf16.xpose.msra.mxu0 %v1380
      %1392 = vmatprep.subr.bf16.mxu0 0
      %1393 = vmatpush1.bf16.xpose.msra.mxu0 %v1377
      %1394 = vmatprep.subr.bf16.mxu0 0
      %1395 = vmatpush1.bf16.xpose.msra.mxu0 %v1374
      %1396 = vmatprep.subr.bf16.mxu0 0
      %1397 = vmatpush1.bf16.xpose.msra.mxu0 %v1371
      %1398 = vmatprep.subr.bf16.mxu0 0
      %1399 = vmatpush2.bf16.xpose.msra.mxu0 0
      %1400 = vmatprep.subr.bf16.mxu0 0
      %1401 = vmatpush2.bf16.xpose.msra.mxu0 0
      %1402 = vmatprep.subr.bf16.mxu0 0
      %1403 = vmatpush2.bf16.xpose.msra.mxu0 0
      %1404 = vmatprep.subr.bf16.mxu0 0
      %1405 = vmatpush2.bf16.xpose.msra.mxu0 0
      %1406 = vmatprep.subr.bf16.mxu0 0
      %1407 = vmatpush2.bf16.xpose.msra.mxu0 0
      %1408 = vmatprep.subr.bf16.mxu0 0
      %1409 = vmatpush2.bf16.xpose.msra.mxu0 0
      %1410 = vmatprep.subr.bf16.mxu0 0
      %1411 = vmatpush2.bf16.xpose.msra.mxu0 0
      %1412 = vmatprep.subr.bf16.mxu0 0
      %1413 = vmatpush2.bf16.xpose.msra.mxu0 0
      %1414 = vmatprep.mubr.bf16.mxu0 0
      %1415 = vmatmul.mubr.bf16.gmra.mxu0 %v1359
      %v1416 = vpop.f32.mrf.mxu0
      %v1417 = vadd.f32 0.0, %v1416
      %v1418 = vpop.f32.mrf.mxu0
      %v1419 = vpop.f32.mrf.mxu0
      %v1420 = vadd.f32 0.0, %v1419
      %v1421 = vpop.f32.mrf.mxu0
      %1422 = vmatprep.mubr.bf16.mxu0 0
      %1423 = vmatmul.mubr.bf16.gmra.mxu0 %v1362
      %v1424 = vpop.f32.mrf.mxu0
      %v1425 = vadd.f32 0.0, %v1424
      %v1426 = vpop.f32.mrf.mxu0
      %v1427 = vpop.f32.mrf.mxu0
      %v1428 = vadd.f32 0.0, %v1427
      %v1429 = vpop.f32.mrf.mxu0
      %1430 = vmatprep.mubr.bf16.mxu0 0
      %1431 = vmatmul.mubr.bf16.gmra.mxu0 %v1365
      %v1432 = vpop.f32.mrf.mxu0
      %v1433 = vadd.f32 0.0, %v1432
      %v1434 = vpop.f32.mrf.mxu0
      %v1435 = vpop.f32.mrf.mxu0
      %v1436 = vadd.f32 0.0, %v1435
      %v1437 = vpop.f32.mrf.mxu0
      %1438 = vmatprep.mubr.bf16.mxu0 0
      %1439 = vmatmul.mubr.bf16.gmra.mxu0 %v1368
      %v1440 = vpop.f32.mrf.mxu0
      %v1441 = vadd.f32 0.0, %v1440
      %v1442 = vpop.f32.mrf.mxu0
      %v1443 = vpop.f32.mrf.mxu0
      %v1444 = vadd.f32 0.0, %v1443
      %v1445 = vpop.f32.mrf.mxu0
      %1446 = vdwg.mxu0
      %v1447 = vsel %vm576, %v1417, -inf
      %1448 = vmax.xlane.f32.xlu0 %v1447
      %v1449 = vpop.xlane.xlu0 %1448
      %v1450 = vsel %vm576, %v1420, -inf
      %1451 = vmax.xlane.f32.xlu0 %v1450
      %v1452 = vpop.xlane.xlu0 %1451
      %v1453 = vsel %vm576, %v1425, -inf
      %1454 = vmax.xlane.f32.xlu0 %v1453
      %v1455 = vpop.xlane.xlu0 %1454
      %v1456 = vsel %vm576, %v1428, -inf
      %1457 = vmax.xlane.f32.xlu0 %v1456
      %v1458 = vpop.xlane.xlu0 %1457
      %v1459 = vsel %vm576, %v1433, -inf
      %1460 = vmax.xlane.f32.xlu0 %v1459
      %v1461 = vpop.xlane.xlu0 %1460
      %v1462 = vsel %vm576, %v1436, -inf
      %1463 = vmax.xlane.f32.xlu0 %v1462
      %v1464 = vpop.xlane.xlu0 %1463
      %v1465 = vsel %vm576, %v1441, -inf
      %1466 = vmax.xlane.f32.xlu0 %v1465
      %v1467 = vpop.xlane.xlu0 %1466
      %v1468 = vsel %vm576, %v1444, -inf
      %1469 = vmax.xlane.f32.xlu0 %v1468
      %v1470 = vpop.xlane.xlu0 %1469
      %v1471 = vsub.f32 %v1417, %v1449
      %v1472 = vsub.f32 %v1420, %v1452
      %v1473 = vsub.f32 %v1425, %v1455
      %v1474 = vsub.f32 %v1428, %v1458
      %v1475 = vsub.f32 %v1433, %v1461
      %v1476 = vsub.f32 %v1436, %v1464
      %v1477 = vsub.f32 %v1441, %v1467
      %v1478 = vsub.f32 %v1444, %v1470
      %v1479 = vmul.f32 %v1471, 1.442695
      %v1480 = vpow.pop %v1479
      %v1481 = vmul.f32 %v1472, 1.442695
      %v1482 = vpow.pop %v1481
      %v1483 = vmul.f32 %v1473, 1.442695
      %v1484 = vpow.pop %v1483
      %v1485 = vmul.f32 %v1474, 1.442695
      %v1486 = vpow.pop %v1485
      %v1487 = vmul.f32 %v1475, 1.442695
      %v1488 = vpow.pop %v1487
      %v1489 = vmul.f32 %v1476, 1.442695
      %v1490 = vpow.pop %v1489
      %v1491 = vmul.f32 %v1477, 1.442695
      %v1492 = vpow.pop %v1491
      %v1493 = vmul.f32 %v1478, 1.442695
      %v1494 = vpow.pop %v1493
      %v1495 = vsel %vm576, %v1480, 0.0
      %1496 = vadd.xlane.f32.xlu0 %v1495
      %v1497 = vpop.xlane.xlu0 %1496
      %v1498 = vsel %vm576, %v1482, 0.0
      %1499 = vadd.xlane.f32.xlu0 %v1498
      %v1500 = vpop.xlane.xlu0 %1499
      %v1501 = vsel %vm576, %v1484, 0.0
      %1502 = vadd.xlane.f32.xlu0 %v1501
      %v1503 = vpop.xlane.xlu0 %1502
      %v1504 = vsel %vm576, %v1486, 0.0
      %1505 = vadd.xlane.f32.xlu0 %v1504
      %v1506 = vpop.xlane.xlu0 %1505
      %v1507 = vsel %vm576, %v1488, 0.0
      %1508 = vadd.xlane.f32.xlu0 %v1507
      %v1509 = vpop.xlane.xlu0 %1508
      %v1510 = vsel %vm576, %v1490, 0.0
      %1511 = vadd.xlane.f32.xlu0 %v1510
      %v1512 = vpop.xlane.xlu0 %1511
      %v1513 = vsel %vm576, %v1492, 0.0
      %1514 = vadd.xlane.f32.xlu0 %v1513
      %v1515 = vpop.xlane.xlu0 %1514
      %v1516 = vsel %vm576, %v1494, 0.0
      %1517 = vadd.xlane.f32.xlu0 %v1516
      %v1518 = vpop.xlane.xlu0 %1517
      %v1519 = vrcp.pop %v1497
      %v1520 = vrcp.pop %v1500
      %v1521 = vrcp.pop %v1503
      %v1522 = vrcp.pop %v1506
      %v1523 = vrcp.pop %v1509
      %v1524 = vrcp.pop %v1512
      %v1525 = vrcp.pop %v1515
      %v1526 = vrcp.pop %v1518
      %v1527 = vmul.f32 %v1480, %v1519
      %v1528 = vmul.f32 %v1482, %v1520
      %v1529 = vmul.f32 %v1484, %v1521
      %v1530 = vmul.f32 %v1486, %v1522
      %v1531 = vmul.f32 %v1488, %v1523
      %v1532 = vmul.f32 %v1490, %v1524
      %v1533 = vmul.f32 %v1492, %v1525
      %v1534 = vmul.f32 %v1494, %v1526
      %v1535 = vpack.c.bf16 %v1528, %v1527
      %v1536 = vpack.c.bf16 %v1530, %v1529
      %v1537 = vpack.c.bf16 %v1532, %v1531
      %v1538 = vpack.c.bf16 %v1534, %v1533
      %1539 = vrot.lane.b32.xlu0 %v685, 104
      %v1540 = vpop.permute.xlu0 %1539
      %1541 = vrot.lane.b32.xlu0 %v686, 104
      %v1542 = vpop.permute.xlu0 %1541
      %1543 = vrot.lane.b32.xlu0 %v687, 104
      %v1544 = vpop.permute.xlu0 %1543
      %1545 = vrot.lane.b32.xlu0 %v688, 104
      %v1546 = vpop.permute.xlu0 %1545
      %v1552 = vsel %vm576, %v1535, 0
      %v1555 = vsel %vm576, %v1536, 0
      %v1558 = vsel %vm576, %v1537, 0
      %v1561 = vsel %vm576, %v1538, 0
      %1563 = vmatprep.subr.bf16.mxu0 0
      %1564 = vmatpush1.bf16.msra.mxu0 0
      %1565 = vmatprep.subr.bf16.mxu0 0
      %1566 = vmatpush1.bf16.msra.mxu0 0
      %1567 = vmatprep.subr.bf16.mxu0 0
      %1568 = vmatpush1.bf16.msra.mxu0 0
      %1569 = vmatprep.subr.bf16.mxu0 0
      %1570 = vmatpush1.bf16.msra.mxu0 0
      %1571 = vmatprep.subr.bf16.mxu0 0
      %1572 = vmatpush1.bf16.msra.mxu0 %v1546
      %1573 = vmatprep.subr.bf16.mxu0 0
      %1574 = vmatpush1.bf16.msra.mxu0 %v1544
      %1575 = vmatprep.subr.bf16.mxu0 0
      %1576 = vmatpush1.bf16.msra.mxu0 %v1542
      %1577 = vmatprep.subr.bf16.mxu0 0
      %1578 = vmatpush1.bf16.msra.mxu0 %v1540
      %1579 = vmatprep.subr.bf16.mxu0 0
      %1580 = vmatpush2.bf16.msra.mxu0 0
      %1581 = vmatprep.subr.bf16.mxu0 0
      %1582 = vmatpush2.bf16.msra.mxu0 0
      %1583 = vmatprep.subr.bf16.mxu0 0
      %1584 = vmatpush2.bf16.msra.mxu0 0
      %1585 = vmatprep.subr.bf16.mxu0 0
      %1586 = vmatpush2.bf16.msra.mxu0 0
      %1587 = vmatprep.subr.bf16.mxu0 0
      %1588 = vmatpush2.bf16.msra.mxu0 0
      %1589 = vmatprep.subr.bf16.mxu0 0
      %1590 = vmatpush2.bf16.msra.mxu0 0
      %1591 = vmatprep.subr.bf16.mxu0 0
      %1592 = vmatpush2.bf16.msra.mxu0 0
      %1593 = vmatprep.subr.bf16.mxu0 0
      %1594 = vmatpush2.bf16.msra.mxu0 0
      %1595 = vmatprep.mubr.bf16.mxu0 0
      %1596 = vmatmul.mubr.bf16.gmra.mxu0 %v1552
      %v1597 = vpop.f32.mrf.mxu0
      %v1598 = vadd.f32 0.0, %v1597
      %v1599 = vpop.f32.mrf.mxu0
      %v1600 = vpop.f32.mrf.mxu0
      %v1601 = vadd.f32 0.0, %v1600
      %v1602 = vpop.f32.mrf.mxu0
      %1603 = vmatprep.mubr.bf16.mxu0 0
      %1604 = vmatmul.mubr.bf16.gmra.mxu0 %v1555
      %v1605 = vpop.f32.mrf.mxu0
      %v1606 = vadd.f32 0.0, %v1605
      %v1607 = vpop.f32.mrf.mxu0
      %v1608 = vpop.f32.mrf.mxu0
      %v1609 = vadd.f32 0.0, %v1608
      %v1610 = vpop.f32.mrf.mxu0
      %1611 = vmatprep.mubr.bf16.mxu0 0
      %1612 = vmatmul.mubr.bf16.gmra.mxu0 %v1558
      %v1613 = vpop.f32.mrf.mxu0
      %v1614 = vadd.f32 0.0, %v1613
      %v1615 = vpop.f32.mrf.mxu0
      %v1616 = vpop.f32.mrf.mxu0
      %v1617 = vadd.f32 0.0, %v1616
      %v1618 = vpop.f32.mrf.mxu0
      %1619 = vmatprep.mubr.bf16.mxu0 0
      %1620 = vmatmul.mubr.bf16.gmra.mxu0 %v1561
      %v1621 = vpop.f32.mrf.mxu0
      %v1622 = vadd.f32 0.0, %v1621
      %v1623 = vpop.f32.mrf.mxu0
      %v1624 = vpop.f32.mrf.mxu0
      %v1625 = vadd.f32 0.0, %v1624
      %v1626 = vpop.f32.mrf.mxu0
      %1627 = vdwg.mxu0
      %1636 = vrot.lane.b32.xlu0 %v1026, 8
      %v1637 = vpop.permute.xlu0 %1636
      %1638 = vrot.lane.b32.xlu0 %v1029, 8
      %v1639 = vpop.permute.xlu0 %1638
      %1640 = vrot.lane.b32.xlu0 %v1034, 8
      %v1641 = vpop.permute.xlu0 %1640
      %1642 = vrot.lane.b32.xlu0 %v1037, 8
      %v1643 = vpop.permute.xlu0 %1642
      %1644 = vrot.lane.b32.xlu0 %v1042, 8
      %v1645 = vpop.permute.xlu0 %1644
      %1646 = vrot.lane.b32.xlu0 %v1045, 8
      %v1647 = vpop.permute.xlu0 %1646
      %1648 = vrot.lane.b32.xlu0 %v1050, 8
      %v1649 = vpop.permute.xlu0 %1648
      %1650 = vrot.lane.b32.xlu0 %v1053, 8
      %v1651 = vpop.permute.xlu0 %1650
      %1668 = vrot.lane.b32.xlu0 %v1312, 16
      %v1669 = vpop.permute.xlu0 %1668
      %1670 = vrot.lane.b32.xlu0 %v1315, 16
      %v1671 = vpop.permute.xlu0 %1670
      %1672 = vrot.lane.b32.xlu0 %v1320, 16
      %v1673 = vpop.permute.xlu0 %1672
      %1674 = vrot.lane.b32.xlu0 %v1323, 16
      %v1675 = vpop.permute.xlu0 %1674
      %1676 = vrot.lane.b32.xlu0 %v1328, 16
      %v1677 = vpop.permute.xlu0 %1676
      %1678 = vrot.lane.b32.xlu0 %v1331, 16
      %v1679 = vpop.permute.xlu0 %1678
      %1680 = vrot.lane.b32.xlu0 %v1336, 16
      %v1681 = vpop.permute.xlu0 %1680
      %1682 = vrot.lane.b32.xlu0 %v1339, 16
      %v1683 = vpop.permute.xlu0 %1682
      %1700 = vrot.lane.b32.xlu0 %v1598, 24
      %v1701 = vpop.permute.xlu0 %1700
      %1702 = vrot.lane.b32.xlu0 %v1601, 24
      %v1703 = vpop.permute.xlu0 %1702
      %1704 = vrot.lane.b32.xlu0 %v1606, 24
      %v1705 = vpop.permute.xlu0 %1704
      %1706 = vrot.lane.b32.xlu0 %v1609, 24
      %v1707 = vpop.permute.xlu0 %1706
      %1708 = vrot.lane.b32.xlu0 %v1614, 24
      %v1709 = vpop.permute.xlu0 %1708
      %1710 = vrot.lane.b32.xlu0 %v1617, 24
      %v1711 = vpop.permute.xlu0 %1710
      %1712 = vrot.lane.b32.xlu0 %v1622, 24
      %v1713 = vpop.permute.xlu0 %1712
      %1714 = vrot.lane.b32.xlu0 %v1625, 24
      %v1715 = vpop.permute.xlu0 %1714
      %v1724 = vsel %vm486, %v740, %v1637
      %v1725 = vsel %vm486, %v743, %v1639
      %v1726 = vsel %vm486, %v748, %v1641
      %v1727 = vsel %vm486, %v751, %v1643
      %v1728 = vsel %vm486, %v756, %v1645
      %v1729 = vsel %vm486, %v759, %v1647
      %v1730 = vsel %vm486, %v764, %v1649
      %v1731 = vsel %vm486, %v767, %v1651
      %vm1732 = vcmask 130048
      %v1733 = vsel %vm1732, %v1724, %v1669
      %v1734 = vsel %vm1732, %v1725, %v1671
      %v1735 = vsel %vm1732, %v1726, %v1673
      %v1736 = vsel %vm1732, %v1727, %v1675
      %v1737 = vsel %vm1732, %v1728, %v1677
      %v1738 = vsel %vm1732, %v1729, %v1679
      %v1739 = vsel %vm1732, %v1730, %v1681
      %v1740 = vsel %vm1732, %v1731, %v1683
      %vm1741 = vcmask 195584
      %v1742 = vsel %vm1741, %v1733, %v1701
      %v1743 = vsel %vm1741, %v1734, %v1703
      %v1744 = vsel %vm1741, %v1735, %v1705
      %v1745 = vsel %vm1741, %v1736, %v1707
      %v1746 = vsel %vm1741, %v1737, %v1709
      %v1747 = vsel %vm1741, %v1738, %v1711
      %v1748 = vsel %vm1741, %v1739, %v1713
      %v1749 = vsel %vm1741, %v1740, %v1715
      %v1750 = vpack.c.bf16 %v1743, %v1742
      %v1751 = vpack.c.bf16 %v1745, %v1744
      %v1752 = vpack.c.bf16 %v1747, %v1746
      %v1753 = vpack.c.bf16 %v1749, %v1748
      %v1754 = vld [vmem:[%s3] sm:$0xf]
      %v1755 = vld [vmem:[%s3 + $0x4] sm:$0xf]
      %v1756 = vld [vmem:[%s3 + $0x8] sm:$0xf]
      %v1757 = vld [vmem:[%s3 + $0xc] sm:$0xf]
      %v1758 = vld [vmem:[%s4] sm:$0x1]
      %v1760 = vlaneseq
      %v1761 = vshrl.u32 %v1760, 7
      %v1762 = vsub.s32 0, %v1761
      %v1763 = vrot.slane %v1758, %v1762
      %v1769 = vunpack.c.l.b16 %v1754
      %v1770 = vunpack.c.l.b16 %v1755
      %v1771 = vunpack.c.l.b16 %v1756
      %v1772 = vunpack.c.l.b16 %v1757
      %v1773 = vpack.c.b16 %v1770, %v1769
      %v1774 = vpack.c.b16 %v1772, %v1771
      %vm1777 = vcmask 261120
      %v1779 = vsel %vm1777, %v1750, 0
      %v1782 = vsel %vm1777, %v1751, 0
      %v1785 = vsel %vm1777, %v1752, 0
      %v1788 = vsel %vm1777, %v1753, 0
      %1790 = vmatprep.subr.bf16.mxu0 0
      %1791 = vmatpush1.bf16.msra.mxu0 0
      %1792 = vmatprep.subr.bf16.mxu0 0
      %1793 = vmatpush1.bf16.msra.mxu0 0
      %1794 = vmatprep.subr.bf16.mxu0 0
      %1795 = vmatpush1.bf16.msra.mxu0 0
      %1796 = vmatprep.subr.bf16.mxu0 0
      %1797 = vmatpush1.bf16.msra.mxu0 0
      %1798 = vmatprep.subr.bf16.mxu0 0
      %1799 = vmatpush1.bf16.msra.mxu0 0
      %1800 = vmatprep.subr.bf16.mxu0 0
      %1801 = vmatpush1.bf16.msra.mxu0 0
      %1802 = vmatprep.subr.bf16.mxu0 0
      %1803 = vmatpush1.bf16.msra.mxu0 %v1774
      %1804 = vmatprep.subr.bf16.mxu0 0
      %1805 = vmatpush1.bf16.msra.mxu0 %v1773
      %1806 = vmatprep.subr.bf16.mxu0 0
      %1807 = vmatpush2.bf16.msra.mxu0 0
      %1808 = vmatprep.subr.bf16.mxu0 0
      %1809 = vmatpush2.bf16.msra.mxu0 0
      %1810 = vmatprep.subr.bf16.mxu0 0
      %1811 = vmatpush2.bf16.msra.mxu0 0
      %1812 = vmatprep.subr.bf16.mxu0 0
      %1813 = vmatpush2.bf16.msra.mxu0 0
      %1814 = vmatprep.subr.bf16.mxu0 0
      %1815 = vmatpush2.bf16.msra.mxu0 0
      %1816 = vmatprep.subr.bf16.mxu0 0
      %1817 = vmatpush2.bf16.msra.mxu0 0
      %1818 = vmatprep.subr.bf16.mxu0 0
      %1819 = vmatpush2.bf16.msra.mxu0 0
      %1820 = vmatprep.subr.bf16.mxu0 0
      %1821 = vmatpush2.bf16.msra.mxu0 0
      %1822 = vmatprep.mubr.bf16.mxu0 0
      %1823 = vmatmul.mubr.bf16.gmra.mxu0 %v1779
      %v1824 = vpop.f32.mrf.mxu0
      %v1825 = vadd.f32 %v1763, %v1824
      %v1826 = vpop.f32.mrf.mxu0
      %v1827 = vpop.f32.mrf.mxu0
      %v1828 = vadd.f32 %v1763, %v1827
      %v1829 = vpop.f32.mrf.mxu0
      %1830 = vmatprep.mubr.bf16.mxu0 0
      %1831 = vmatmul.mubr.bf16.gmra.mxu0 %v1782
      %v1832 = vpop.f32.mrf.mxu0
      %v1833 = vadd.f32 %v1763, %v1832
      %v1834 = vpop.f32.mrf.mxu0
      %v1835 = vpop.f32.mrf.mxu0
      %v1836 = vadd.f32 %v1763, %v1835
      %v1837 = vpop.f32.mrf.mxu0
      %1838 = vmatprep.mubr.bf16.mxu0 0
      %1839 = vmatmul.mubr.bf16.gmra.mxu0 %v1785
      %v1840 = vpop.f32.mrf.mxu0
      %v1841 = vadd.f32 %v1763, %v1840
      %v1842 = vpop.f32.mrf.mxu0
      %v1843 = vpop.f32.mrf.mxu0
      %v1844 = vadd.f32 %v1763, %v1843
      %v1845 = vpop.f32.mrf.mxu0
      %1846 = vmatprep.mubr.bf16.mxu0 0
      %1847 = vmatmul.mubr.bf16.gmra.mxu0 %v1788
      %v1848 = vpop.f32.mrf.mxu0
      %v1849 = vadd.f32 %v1763, %v1848
      %v1850 = vpop.f32.mrf.mxu0
      %v1851 = vpop.f32.mrf.mxu0
      %v1852 = vadd.f32 %v1763, %v1851
      %v1853 = vpop.f32.mrf.mxu0
      %1854 = vdwg.mxu0
      %v1855 = vld [vmem:[%s409] sm:$0xff]
      %v1856 = vld [vmem:[%s409 + $0x8] sm:$0xff]
      %v1857 = vld [vmem:[%s409 + $0x10] sm:$0xff]
      %v1858 = vld [vmem:[%s409 + $0x18] sm:$0xff]
      %v1859 = vld [vmem:[%s409 + $0x20] sm:$0xff]
      %v1860 = vld [vmem:[%s409 + $0x28] sm:$0xff]
      %v1861 = vld [vmem:[%s409 + $0x30] sm:$0xff]
      %v1862 = vld [vmem:[%s409 + $0x38] sm:$0xff]
      %v1863 = vadd.f32 %v1855, %v1825
      %v1864 = vadd.f32 %v1856, %v1828
      %v1865 = vadd.f32 %v1857, %v1833
      %v1866 = vadd.f32 %v1858, %v1836
      %v1867 = vadd.f32 %v1859, %v1841
      %v1868 = vadd.f32 %v1860, %v1844
      %v1869 = vadd.f32 %v1861, %v1849
      %v1870 = vadd.f32 %v1862, %v1852
      %v1871 = vsel %vm1777, %v1863, 0.0
      %1872 = vadd.xlane.f32.xlu0 %v1871
      %v1873 = vpop.xlane.xlu0 %1872
      %v1874 = vsel %vm1777, %v1864, 0.0
      %1875 = vadd.xlane.f32.xlu0 %v1874
      %v1876 = vpop.xlane.xlu0 %1875
      %v1877 = vsel %vm1777, %v1865, 0.0
      %1878 = vadd.xlane.f32.xlu0 %v1877
      %v1879 = vpop.xlane.xlu0 %1878
      %v1880 = vsel %vm1777, %v1866, 0.0
      %1881 = vadd.xlane.f32.xlu0 %v1880
      %v1882 = vpop.xlane.xlu0 %1881
      %v1883 = vsel %vm1777, %v1867, 0.0
      %1884 = vadd.xlane.f32.xlu0 %v1883
      %v1885 = vpop.xlane.xlu0 %1884
      %v1886 = vsel %vm1777, %v1868, 0.0
      %1887 = vadd.xlane.f32.xlu0 %v1886
      %v1888 = vpop.xlane.xlu0 %1887
      %v1889 = vsel %vm1777, %v1869, 0.0
      %1890 = vadd.xlane.f32.xlu0 %v1889
      %v1891 = vpop.xlane.xlu0 %1890
      %v1892 = vsel %vm1777, %v1870, 0.0
      %1893 = vadd.xlane.f32.xlu0 %v1892
      %v1894 = vpop.xlane.xlu0 %1893
      %v1895 = vrcp.pop 32.0
      %v1896 = vmul.f32 %v1873, %v1895
      %v1897 = vmul.f32 %v1876, %v1895
      %v1898 = vmul.f32 %v1879, %v1895
      %v1899 = vmul.f32 %v1882, %v1895
      %v1900 = vmul.f32 %v1885, %v1895
      %v1901 = vmul.f32 %v1888, %v1895
      %v1902 = vmul.f32 %v1891, %v1895
      %v1903 = vmul.f32 %v1894, %v1895
      %v1904 = vsub.f32 %v1863, %v1896
      %v1905 = vsub.f32 %v1864, %v1897
      %v1906 = vsub.f32 %v1865, %v1898
      %v1907 = vsub.f32 %v1866, %v1899
      %v1908 = vsub.f32 %v1867, %v1900
      %v1909 = vsub.f32 %v1868, %v1901
      %v1910 = vsub.f32 %v1869, %v1902
      %v1911 = vsub.f32 %v1870, %v1903
      %v1912 = vmul.f32 %v1904, %v1904
      %v1913 = vmul.f32 %v1905, %v1905
      %v1914 = vmul.f32 %v1906, %v1906
      %v1915 = vmul.f32 %v1907, %v1907
      %v1916 = vmul.f32 %v1908, %v1908
      %v1917 = vmul.f32 %v1909, %v1909
      %v1918 = vmul.f32 %v1910, %v1910
      %v1919 = vmul.f32 %v1911, %v1911
      %v1920 = vsel %vm1777, %v1912, 0.0
      %1921 = vadd.xlane.f32.xlu0 %v1920
      %v1922 = vpop.xlane.xlu0 %1921
      %v1923 = vsel %vm1777, %v1913, 0.0
      %1924 = vadd.xlane.f32.xlu0 %v1923
      %v1925 = vpop.xlane.xlu0 %1924
      %v1926 = vsel %vm1777, %v1914, 0.0
      %1927 = vadd.xlane.f32.xlu0 %v1926
      %v1928 = vpop.xlane.xlu0 %1927
      %v1929 = vsel %vm1777, %v1915, 0.0
      %1930 = vadd.xlane.f32.xlu0 %v1929
      %v1931 = vpop.xlane.xlu0 %1930
      %v1932 = vsel %vm1777, %v1916, 0.0
      %1933 = vadd.xlane.f32.xlu0 %v1932
      %v1934 = vpop.xlane.xlu0 %1933
      %v1935 = vsel %vm1777, %v1917, 0.0
      %1936 = vadd.xlane.f32.xlu0 %v1935
      %v1937 = vpop.xlane.xlu0 %1936
      %v1938 = vsel %vm1777, %v1918, 0.0
      %1939 = vadd.xlane.f32.xlu0 %v1938
      %v1940 = vpop.xlane.xlu0 %1939
      %v1941 = vsel %vm1777, %v1919, 0.0
      %1942 = vadd.xlane.f32.xlu0 %v1941
      %v1943 = vpop.xlane.xlu0 %1942
      %v1944 = vmul.f32 %v1922, %v1895
      %v1945 = vmul.f32 %v1925, %v1895
      %v1946 = vmul.f32 %v1928, %v1895
      %v1947 = vmul.f32 %v1931, %v1895
      %v1948 = vmul.f32 %v1934, %v1895
      %v1949 = vmul.f32 %v1937, %v1895
      %v1950 = vmul.f32 %v1940, %v1895
      %v1951 = vmul.f32 %v1943, %v1895
      %v1952 = vadd.f32 %v1944, 1e-05
      %v1953 = vadd.f32 %v1945, 1e-05
      %v1954 = vadd.f32 %v1946, 1e-05
      %v1955 = vadd.f32 %v1947, 1e-05
      %v1956 = vadd.f32 %v1948, 1e-05
      %v1957 = vadd.f32 %v1949, 1e-05
      %v1958 = vadd.f32 %v1950, 1e-05
      %v1959 = vadd.f32 %v1951, 1e-05
      %v1960 = vrsqrt.pop %v1952
      %v1961 = vrsqrt.pop %v1953
      %v1962 = vrsqrt.pop %v1954
      %v1963 = vrsqrt.pop %v1955
      %v1964 = vrsqrt.pop %v1956
      %v1965 = vrsqrt.pop %v1957
      %v1966 = vrsqrt.pop %v1958
      %v1967 = vrsqrt.pop %v1959
      %v1968 = vmul.f32 %v1904, %v1960
      %v1969 = vmul.f32 %v1905, %v1961
      %v1970 = vmul.f32 %v1906, %v1962
      %v1971 = vmul.f32 %v1907, %v1963
      %v1972 = vmul.f32 %v1908, %v1964
      %v1973 = vmul.f32 %v1909, %v1965
      %v1974 = vmul.f32 %v1910, %v1966
      %v1975 = vmul.f32 %v1911, %v1967
      %v1976 = vld [vmem:[%s6] sm:$0x1]
      %v1978 = vlaneseq
      %v1979 = vshrl.u32 %v1978, 7
      %v1980 = vsub.s32 0, %v1979
      %v1981 = vrot.slane %v1976, %v1980
      %v1983 = vmul.f32 %v1968, %v1981
      %v1984 = vmul.f32 %v1969, %v1981
      %v1985 = vmul.f32 %v1970, %v1981
      %v1986 = vmul.f32 %v1971, %v1981
      %v1987 = vmul.f32 %v1972, %v1981
      %v1988 = vmul.f32 %v1973, %v1981
      %v1989 = vmul.f32 %v1974, %v1981
      %v1990 = vmul.f32 %v1975, %v1981
      %v1991 = vld [vmem:[%s7] sm:$0x1]
      %v1993 = vlaneseq
      %v1994 = vshrl.u32 %v1993, 7
      %v1995 = vsub.s32 0, %v1994
      %v1996 = vrot.slane %v1991, %v1995
      %v1998 = vadd.f32 %v1983, %v1996
      %v1999 = vadd.f32 %v1984, %v1996
      %v2000 = vadd.f32 %v1985, %v1996
      %v2001 = vadd.f32 %v1986, %v1996
      %v2002 = vadd.f32 %v1987, %v1996
      %v2003 = vadd.f32 %v1988, %v1996
      %v2004 = vadd.f32 %v1989, %v1996
      %v2005 = vadd.f32 %v1990, %v1996
      %2006 = vst.msk [vmem:[%s419] sm:$0xff] %vm1777, %v1998
      %2007 = vst.msk [vmem:[%s419 + $0x8] sm:$0xff] %vm1777, %v1999
      %2008 = vst.msk [vmem:[%s419 + $0x10] sm:$0xff] %vm1777, %v2000
      %2009 = vst.msk [vmem:[%s419 + $0x18] sm:$0xff] %vm1777, %v2001
      %2010 = vst.msk [vmem:[%s419 + $0x20] sm:$0xff] %vm1777, %v2002
      %2011 = vst.msk [vmem:[%s419 + $0x28] sm:$0xff] %vm1777, %v2003
      %2012 = vst.msk [vmem:[%s419 + $0x30] sm:$0xff] %vm1777, %v2004
      %2013 = vst.msk [vmem:[%s419 + $0x38] sm:$0xff] %vm1777, %v2005
      %s2014 = smul.u32 8, %s24
      %p2015 = scmp.lt.s32.totalorder %s23, 1
      %s2016 = scalar_select %p2015, %s23, 1
      %p2017 = scmp.lt.s32.totalorder %s2014, 7
      %s2018 = scalar_select %p2017, %s2014, 7
      %s2019 = smul.addr %s2016, 8
      %s2020 = sadd.s32 %s2018, %s2019
      %s2021 = smul.addr %s2020, 8
      %s2022 = scalar_lea.vmem %s8, %s2021
      // Predicated region
      $region53: #{intr_forward.24} parent=51 // pred_check
        %p2023 = pneg %p243
      $region54: #{intr_forward.24} parent=51 // pred_check_branch
        %2025 = sbr.rel (%p2023) target = $region56
      $region55: #{intr_forward.24} parent=51 // pred_region
        %s2026 = smul.u32 8, %s24
      $region56: #{intr_forward.24} parent=51 // pred_fallthru
        _
    $region52: #{intr_forward.24} parent=5 // pred_fallthru
      _
    %p2027 = scmp.le.s32.totalorder 2, %s14
    // Predicated region
    $region57: #{intr_forward.24} parent=5 // pred_check
      %p2028 = pneg %p2027
    $region58: #{intr_forward.24} parent=5 // pred_check_branch
      %2030 = sbr.rel (%p2028) target = $region60
    $region59: #{intr_forward.24} parent=5 // pred_region
      %s2031 = ssub.s32 %s14, 2
      // Predicated region
      $region61: #{intr_forward.24} parent=59 // pred_check
        %p2032 = pneg %p249
      $region62: #{intr_forward.24} parent=59 // pred_check_branch
        %2034 = sbr.rel (%p2032) target = $region64
      $region63: #{intr_forward.24} parent=59 // pred_region
        %s2035 = smul.u32 8, %s26
        %p2036 = scmp.lt.s32.totalorder %s25, 1
        %s2037 = scalar_select %p2036, %s25, 1
        %p2038 = scmp.lt.s32.totalorder %s2035, 7
        %s2039 = scalar_select %p2038, %s2035, 7
        %s2040 = smul.addr %s2037, 8
        %s2041 = sadd.s32 %s2039, %s2040
        %s2042 = smul.addr %s2041, 8
        %s2043 = scalar_lea.vmem %s8, %s2042
      $region64: #{intr_forward.24} parent=59 // pred_fallthru
        _
    $region60: #{intr_forward.24} parent=5 // pred_fallthru
      _
  $region6: #{intr_forward.24} parent=0 // loop_footer
    %s18 = sadd.s32 1, %s14
  $region7: #{intr_forward.24} parent=0 // loop_footer_branch
    %13 = sbr.rel target = $region3
  $region8: #{intr_forward.24} parent=0 // loop_exit
    _

// kernel: intr_forward.27
$region0: #{intr_forward.27}
  #allocation0 [shape = 'u32[]', space=smem, size = 0x4, offset = 0x4, fixed_abs, tag = 'smem constant byte address 0x4 - core index']
  #allocation1 [shape = 'u32[144,128]{1,0:T(1,128)}', space=vmem, size = 0x12000, scoped, tag = 'internal scratch']
  %s0 = inlined_call_operand.vmem [shape: f32[16,32], index: 0, kind: input, shape index: {}]
  %s1 = inlined_call_operand.vmem [shape: bf16[32,32], index: 1, kind: input, shape index: {}]
  %s2 = inlined_call_operand.vmem [shape: f32[1,32], index: 2, kind: input, shape index: {}]
  %s3 = inlined_call_operand.vmem [shape: bf16[16,32], index: 3, kind: output, shape index: {}]
  %s4 = sld [smem:[#allocation0]]
  $region22: #{intr_forward.27} parent=0
    _
  %s6 = ssub.s32 1, %s4
  %s7 = scalar_select 0, %s6, %s4
  // Predicated region
  $region2: #{intr_forward.27} parent=0 // pred_check
    _
  $region3: #{intr_forward.27} parent=0 // pred_check_branch
    %9 = sbr.rel (0) target = $region5
  $region4: #{intr_forward.27} parent=0 // pred_region
    _
  $region5: #{intr_forward.27} parent=0 // pred_fallthru
    _
  // Predicated region
  $region6: #{intr_forward.27} parent=0 // pred_check
    _
  $region7: #{intr_forward.27} parent=0 // pred_check_branch
    %11 = sbr.rel (0) target = $region9
  $region8: #{intr_forward.27} parent=0 // pred_region
    _
  $region9: #{intr_forward.27} parent=0 // pred_fallthru
    _
  // Predicated region
  $region10: #{intr_forward.27} parent=0 // pred_check
    _
  $region11: #{intr_forward.27} parent=0 // pred_check_branch
    %13 = sbr.rel (0) target = $region13
  $region12: #{intr_forward.27} parent=0 // pred_region
    _
  $region13: #{intr_forward.27} parent=0 // pred_fallthru
    _
  %v15 = vld [vmem:[%s0] sm:$0xff]
  %v16 = vld [vmem:[%s0 + $0x8] sm:$0xff]
  %v17 = vpack.c.bf16 %v16, %v15
  %v18 = vld [vmem:[%s1] sm:$0xf]
  %v19 = vld [vmem:[%s1 + $0x4] sm:$0xf]
  %v20 = vld [vmem:[%s1 + $0x8] sm:$0xf]
  %v21 = vld [vmem:[%s1 + $0xc] sm:$0xf]
  %v22 = vld [vmem:[%s2] sm:$0x1]
  %v24 = vlaneseq
  %v25 = vshrl.u32 %v24, 7
  %v26 = vsub.s32 0, %v25
  %v27 = vrot.slane %v22, %v26
  %v33 = vunpack.c.l.b16 %v18
  %v34 = vunpack.c.l.b16 %v19
  %v35 = vunpack.c.l.b16 %v20
  %v36 = vunpack.c.l.b16 %v21
  %v37 = vpack.c.b16 %v34, %v33
  %v38 = vpack.c.b16 %v36, %v35
  %vm41 = vcmask 261120
  %v43 = vsel %vm41, %v17, 0
  %45 = vmatprep.subr.bf16.mxu0 0
  %46 = vmatpush1.bf16.msra.mxu0 0
  %47 = vmatprep.subr.bf16.mxu0 0
  %48 = vmatpush1.bf16.msra.mxu0 0
  %49 = vmatprep.subr.bf16.mxu0 0
  %50 = vmatpush1.bf16.msra.mxu0 0
  %51 = vmatprep.subr.bf16.mxu0 0
  %52 = vmatpush1.bf16.msra.mxu0 0
  %53 = vmatprep.subr.bf16.mxu0 0
  %54 = vmatpush1.bf16.msra.mxu0 0
  %55 = vmatprep.subr.bf16.mxu0 0
  %56 = vmatpush1.bf16.msra.mxu0 0
  %57 = vmatprep.subr.bf16.mxu0 0
  %58 = vmatpush1.bf16.msra.mxu0 %v38
  %59 = vmatprep.subr.bf16.mxu0 0
  %60 = vmatpush1.bf16.msra.mxu0 %v37
  %61 = vmatprep.subr.bf16.mxu0 0
  %62 = vmatpush2.bf16.msra.mxu0 0
  %63 = vmatprep.subr.bf16.mxu0 0
  %64 = vmatpush2.bf16.msra.mxu0 0
  %65 = vmatprep.subr.bf16.mxu0 0
  %66 = vmatpush2.bf16.msra.mxu0 0
  %67 = vmatprep.subr.bf16.mxu0 0
  %68 = vmatpush2.bf16.msra.mxu0 0
  %69 = vmatprep.subr.bf16.mxu0 0
  %70 = vmatpush2.bf16.msra.mxu0 0
  %71 = vmatprep.subr.bf16.mxu0 0
  %72 = vmatpush2.bf16.msra.mxu0 0
  %73 = vmatprep.subr.bf16.mxu0 0
  %74 = vmatpush2.bf16.msra.mxu0 0
  %75 = vmatprep.subr.bf16.mxu0 0
  %76 = vmatpush2.bf16.msra.mxu0 0
  %77 = vmatprep.mubr.bf16.mxu0 0
  %78 = vmatmul.mubr.bf16.gmra.mxu0 %v43
  %v79 = vpop.f32.mrf.mxu0
  %v80 = vadd.f32 %v27, %v79
  %v81 = vpop.f32.mrf.mxu0
  %v82 = vpop.f32.mrf.mxu0
  %v83 = vadd.f32 %v27, %v82
  %v84 = vpop.f32.mrf.mxu0
  %85 = vdwg.mxu0
  %v86 = vpack.c.bf16 %v83, %v80
  %v88 = vunpack.c.l.b16 %v86
  %v89 = vunpack.c.h.b16 %v86
  %v90 = vpack.c.b16 %v88, %v88
  %v91 = vpack.c.b16 %v89, %v89
  %vm94 = vcmask 257024
  %95 = vst.msk [vmem:[%s3] sm:$0xf] %vm94, %v90
  %96 = vst.msk [vmem:[%s3 + $0x4] sm:$0xf] %vm94, %v91
  // Predicated region
  $region14: #{intr_forward.27} parent=0 // pred_check
    _
  $region15: #{intr_forward.27} parent=0 // pred_check_branch
    %98 = sbr.rel (0) target = $region17
  $region16: #{intr_forward.27} parent=0 // pred_region
    _
  $region17: #{intr_forward.27} parent=0 // pred_fallthru
    _
  // Predicated region
  $region18: #{intr_forward.27} parent=0 // pred_check
    _
  $region19: #{intr_forward.27} parent=0 // pred_check_branch
    %100 = sbr.rel (0) target = $region21
  $region20: #{intr_forward.27} parent=0 // pred_region
    _
  $region21: #{intr_forward.27} parent=0 // pred_fallthru
    _

// kernel: intr_forward.29
$region0: #{intr_forward.29}
  #allocation0 [shape = 'u32[]', space=smem, size = 0x4, offset = 0x4, fixed_abs, tag = 'smem constant byte address 0x4 - core index']
  #allocation1 [shape = 'u32[144,128]{1,0:T(1,128)}', space=vmem, size = 0x12000, scoped, tag = 'internal scratch']
  %s0 = inlined_call_operand.vmem [shape: f32[16,32], index: 0, kind: input, shape index: {}]
  %s1 = inlined_call_operand.vmem [shape: f32[16,32], index: 1, kind: input, shape index: {}]
  %s2 = inlined_call_operand.vmem [shape: bf16[32,32], index: 2, kind: input, shape index: {}]
  %s3 = inlined_call_operand.vmem [shape: f32[1,32], index: 3, kind: input, shape index: {}]
  %s4 = inlined_call_operand.vmem [shape: bf16[16,32], index: 4, kind: output, shape index: {}]
  %s5 = sld [smem:[#allocation0]]
  $region26: #{intr_forward.29} parent=0
    _
  %s7 = ssub.s32 1, %s5
  %s8 = scalar_select 0, %s7, %s5
  // Predicated region
  $region2: #{intr_forward.29} parent=0 // pred_check
    _
  $region3: #{intr_forward.29} parent=0 // pred_check_branch
    %10 = sbr.rel (0) target = $region5
  $region4: #{intr_forward.29} parent=0 // pred_region
    _
  $region5: #{intr_forward.29} parent=0 // pred_fallthru
    _
  // Predicated region
  $region6: #{intr_forward.29} parent=0 // pred_check
    _
  $region7: #{intr_forward.29} parent=0 // pred_check_branch
    %12 = sbr.rel (0) target = $region9
  $region8: #{intr_forward.29} parent=0 // pred_region
    _
  $region9: #{intr_forward.29} parent=0 // pred_fallthru
    _
  // Predicated region
  $region10: #{intr_forward.29} parent=0 // pred_check
    _
  $region11: #{intr_forward.29} parent=0 // pred_check_branch
    %14 = sbr.rel (0) target = $region13
  $region12: #{intr_forward.29} parent=0 // pred_region
    _
  $region13: #{intr_forward.29} parent=0 // pred_fallthru
    _
  // Predicated region
  $region14: #{intr_forward.29} parent=0 // pred_check
    _
  $region15: #{intr_forward.29} parent=0 // pred_check_branch
    %16 = sbr.rel (0) target = $region17
  $region16: #{intr_forward.29} parent=0 // pred_region
    _
  $region17: #{intr_forward.29} parent=0 // pred_fallthru
    _
  %v18 = vld [vmem:[%s0] sm:$0xff]
  %v19 = vld [vmem:[%s0 + $0x8] sm:$0xff]
  %v20 = vld [vmem:[%s1] sm:$0xff]
  %v21 = vld [vmem:[%s1 + $0x8] sm:$0xff]
  %v22 = vadd.f32 %v18, %v20
  %v23 = vadd.f32 %v19, %v21
  %v24 = vpack.c.bf16 %v23, %v22
  %v25 = vld [vmem:[%s2] sm:$0xf]
  %v26 = vld [vmem:[%s2 + $0x4] sm:$0xf]
  %v27 = vld [vmem:[%s2 + $0x8] sm:$0xf]
  %v28 = vld [vmem:[%s2 + $0xc] sm:$0xf]
  %v29 = vld [vmem:[%s3] sm:$0x1]
  %v31 = vlaneseq
  %v32 = vshrl.u32 %v31, 7
  %v33 = vsub.s32 0, %v32
  %v34 = vrot.slane %v29, %v33
  %v40 = vunpack.c.l.b16 %v25
  %v41 = vunpack.c.l.b16 %v26
  %v42 = vunpack.c.l.b16 %v27
  %v43 = vunpack.c.l.b16 %v28
  %v44 = vpack.c.b16 %v41, %v40
  %v45 = vpack.c.b16 %v43, %v42
  %vm48 = vcmask 261120
  %v50 = vsel %vm48, %v24, 0
  %52 = vmatprep.subr.bf16.mxu0 0
  %53 = vmatpush1.bf16.msra.mxu0 0
  %54 = vmatprep.subr.bf16.mxu0 0
  %55 = vmatpush1.bf16.msra.mxu0 0
  %56 = vmatprep.subr.bf16.mxu0 0
  %57 = vmatpush1.bf16.msra.mxu0 0
  %58 = vmatprep.subr.bf16.mxu0 0
  %59 = vmatpush1.bf16.msra.mxu0 0
  %60 = vmatprep.subr.bf16.mxu0 0
  %61 = vmatpush1.bf16.msra.mxu0 0
  %62 = vmatprep.subr.bf16.mxu0 0
  %63 = vmatpush1.bf16.msra.mxu0 0
  %64 = vmatprep.subr.bf16.mxu0 0
  %65 = vmatpush1.bf16.msra.mxu0 %v45
  %66 = vmatprep.subr.bf16.mxu0 0
  %67 = vmatpush1.bf16.msra.mxu0 %v44
  %68 = vmatprep.subr.bf16.mxu0 0
  %69 = vmatpush2.bf16.msra.mxu0 0
  %70 = vmatprep.subr.bf16.mxu0 0
  %71 = vmatpush2.bf16.msra.mxu0 0
  %72 = vmatprep.subr.bf16.mxu0 0
  %73 = vmatpush2.bf16.msra.mxu0 0
  %74 = vmatprep.subr.bf16.mxu0 0
  %75 = vmatpush2.bf16.msra.mxu0 0
  %76 = vmatprep.subr.bf16.mxu0 0
  %77 = vmatpush2.bf16.msra.mxu0 0
  %78 = vmatprep.subr.bf16.mxu0 0
  %79 = vmatpush2.bf16.msra.mxu0 0
  %80 = vmatprep.subr.bf16.mxu0 0
  %81 = vmatpush2.bf16.msra.mxu0 0
  %82 = vmatprep.subr.bf16.mxu0 0
  %83 = vmatpush2.bf16.msra.mxu0 0
  %84 = vmatprep.mubr.bf16.mxu0 0
  %85 = vmatmul.mubr.bf16.gmra.mxu0 %v50
  %v86 = vpop.f32.mrf.mxu0
  %v87 = vadd.f32 %v34, %v86
  %v88 = vpop.f32.mrf.mxu0
  %v89 = vpop.f32.mrf.mxu0
  %v90 = vadd.f32 %v34, %v89
  %v91 = vpop.f32.mrf.mxu0
  %92 = vdwg.mxu0
  %v93 = vpack.c.bf16 %v90, %v87
  %v95 = vunpack.c.l.b16 %v93
  %v96 = vunpack.c.h.b16 %v93
  %v97 = vpack.c.b16 %v95, %v95
  %v98 = vpack.c.b16 %v96, %v96
  %vm101 = vcmask 257024
  %102 = vst.msk [vmem:[%s4] sm:$0xf] %vm101, %v97
  %103 = vst.msk [vmem:[%s4 + $0x4] sm:$0xf] %vm101, %v98
  // Predicated region
  $region18: #{intr_forward.29} parent=0 // pred_check
    _
  $region19: #{intr_forward.29} parent=0 // pred_check_branch
    %105 = sbr.rel (0) target = $region21
  $region20: #{intr_forward.29} parent=0 // pred_region
    _
  $region21: #{intr_forward.29} parent=0 // pred_fallthru
    _
  // Predicated region
  $region22: #{intr_forward.29} parent=0 // pred_check
    _
  $region23: #{intr_forward.29} parent=0 // pred_check_branch
    %107 = sbr.rel (0) target = $region25
  $region24: #{intr_forward.29} parent=0 // pred_region
    _
  $region25: #{intr_forward.29} parent=0 // pred_fallthru
    _

// kernel: intr_forward.28
$region0: #{intr_forward.28}
  #allocation0 [shape = 'u32[]', space=smem, size = 0x4, offset = 0x4, fixed_abs, tag = 'smem constant byte address 0x4 - core index']
  #allocation1 [shape = 'u32[144,128]{1,0:T(1,128)}', space=vmem, size = 0x12000, scoped, tag = 'internal scratch']
  %s0 = inlined_call_operand.vmem [shape: bf16[2,8,32], index: 0, kind: input, shape index: {}]
  %s1 = inlined_call_operand.vmem [shape: bf16[2,8,32], index: 1, kind: input, shape index: {}]
  %s2 = inlined_call_operand.vmem [shape: bf16[2,8,32], index: 2, kind: input, shape index: {}]
  %s3 = inlined_call_operand.vmem [shape: bf16[32,32], index: 3, kind: input, shape index: {}]
  %s4 = inlined_call_operand.vmem [shape: f32[1,32], index: 4, kind: input, shape index: {}]
  %s5 = inlined_call_operand.vmem [shape: f32[2,8,32], index: 5, kind: input, shape index: {}]
  %s6 = inlined_call_operand.vmem [shape: f32[1,32], index: 6, kind: input, shape index: {}]
  %s7 = inlined_call_operand.vmem [shape: f32[1,32], index: 7, kind: input, shape index: {}]
  %s8 = inlined_call_operand.vmem [shape: f32[2,8,32], index: 8, kind: output, shape index: {}]
  %s9 = sld [smem:[#allocation0]]
  $region65: #{intr_forward.28} parent=0
    _
  %s11 = ssub.s32 1, %s9
  %s12 = scalar_select 0, %s11, %s9
  loop: start=0, step=1, limit=4
  $region2: #{intr_forward.28} parent=0 // loop_pre_header
    _
  $region3: #{intr_forward.28} parent=0 // loop_header
    %s14 = sphi 0, %s18
    %p15 = scmp.ge.s32.totalorder %s14, 4
    %s21 = sphi 0, %s33
    %s22 = sphi 0, %s29
    %s23 = sphi 0, %s21
    %s24 = sphi 0, %s22
    %s25 = sphi 0, %s23
    %s26 = sphi 0, %s24
    %s38 = sphi 0, %s40
    %s41 = sphi 0, %s38
    %s42 = sphi 0, %s41
    %s58 = sphi 0, %s42
    %s64 = sphi 0, %s66
    %s67 = sphi 0, %s64
    %s68 = sphi 0, %s67
    %s84 = sphi 0, %s68
    %s90 = sphi 0, %s92
    %s93 = sphi 0, %s90
    %s94 = sphi 0, %s93
    %s110 = sphi 0, %s94
    %s114 = sphi 0, %s114
    %s116 = sphi 0, %s114
    %s117 = sphi 0, %s116
    %s131 = sphi 0, %s117
    %s135 = sphi 0, %s135
    %s137 = sphi 0, %s135
    %s138 = sphi 0, %s137
    %s152 = sphi 0, %s138
    %s160 = sphi 0, %s162
    %s163 = sphi 0, %s160
    %s164 = sphi 0, %s163
    %s180 = sphi 0, %s164
    %s184 = sphi 0, %s184
    %s186 = sphi 0, %s184
    %s187 = sphi 0, %s186
    %s201 = sphi 0, %s187
    %s205 = sphi 0, %s205
    %s207 = sphi 0, %s205
    %s208 = sphi 0, %s207
    %s222 = sphi 0, %s208
    %s230 = sphi 0, %s232
    %s233 = sphi 0, %s230
    %s234 = sphi 0, %s233
    %s250 = sphi 0, %s234
  $region4: #{intr_forward.28} parent=0 // loop_header_branch
    %17 = sbr.rel (%p15) target = $region8
  $region5: #{intr_forward.28} parent=0 // loop_body
    %s19 = ssub.s32 %s14, 1
    %s20 = ssub.s32 %s14, 2
    %s27 = sadd.s32 1, %s22
    %p28 = scmp.ge.s32.totalorder %s27, 1
    %s29 = scalar_select %p28, 0, %s27
    %s30 = sadd.s32 1, %s21
    %s31 = scalar_select %p28, %s30, %s21
    %p32 = scmp.ge.s32.totalorder %s31, 2
    %s33 = scalar_select %p32, 0, %s31
    %s34 = ssub.s32 %s21, %s33
    %s35 = ssub.s32 %s22, %s29
    %s36 = sor.u32 %s34, %s35
    %p37 = scmp.eq.s32.totalorder %s36, 0
    %s39 = sadd.s32 %s38, 1
    %s40 = scalar_select %p37, %s38, %s39
    %p43 = pneg %p37
    %p44 = scmp.eq.s32.totalorder %s14, 1
    %p45 = por %p43, %p44
    %p46 = scmp.ne.s32.totalorder %s38, %s41
    %p47 = scmp.eq.s32.totalorder %s14, 0
    %p48 = por %p46, %p47
    %p49 = scmp.ne.s32.totalorder %s38, %s41
    %p50 = scmp.eq.s32.totalorder %s19, 1
    %p51 = por %p49, %p50
    %p52 = scmp.ne.s32.totalorder %s41, %s42
    %p53 = scmp.eq.s32.totalorder %s19, 0
    %p54 = por %p52, %p53
    %p55 = scmp.ne.s32.totalorder %s41, %s42
    %p56 = scmp.eq.s32.totalorder %s20, 1
    %p57 = por %p55, %p56
    %p59 = scmp.ne.s32.totalorder %s42, %s58
    %p60 = scmp.eq.s32.totalorder %s20, 0
    %p61 = por %p59, %p60
    %s62 = ssub.s32 %s21, %s33
    %p63 = scmp.eq.s32.totalorder %s62, 0
    %s65 = sadd.s32 %s64, 1
    %s66 = scalar_select %p63, %s64, %s65
    %p69 = pneg %p63
    %p70 = scmp.eq.s32.totalorder %s14, 1
    %p71 = por %p69, %p70
    %p72 = scmp.ne.s32.totalorder %s64, %s67
    %p73 = scmp.eq.s32.totalorder %s14, 0
    %p74 = por %p72, %p73
    %p75 = scmp.ne.s32.totalorder %s64, %s67
    %p76 = scmp.eq.s32.totalorder %s19, 1
    %p77 = por %p75, %p76
    %p78 = scmp.ne.s32.totalorder %s67, %s68
    %p79 = scmp.eq.s32.totalorder %s19, 0
    %p80 = por %p78, %p79
    %p81 = scmp.ne.s32.totalorder %s67, %s68
    %p82 = scmp.eq.s32.totalorder %s20, 1
    %p83 = por %p81, %p82
    %p85 = scmp.ne.s32.totalorder %s68, %s84
    %p86 = scmp.eq.s32.totalorder %s20, 0
    %p87 = por %p85, %p86
    %s88 = ssub.s32 %s21, %s33
    %p89 = scmp.eq.s32.totalorder %s88, 0
    %s91 = sadd.s32 %s90, 1
    %s92 = scalar_select %p89, %s90, %s91
    %p95 = pneg %p89
    %p96 = scmp.eq.s32.totalorder %s14, 1
    %p97 = por %p95, %p96
    %p98 = scmp.ne.s32.totalorder %s90, %s93
    %p99 = scmp.eq.s32.totalorder %s14, 0
    %p100 = por %p98, %p99
    %p101 = scmp.ne.s32.totalorder %s90, %s93
    %p102 = scmp.eq.s32.totalorder %s19, 1
    %p103 = por %p101, %p102
    %p104 = scmp.ne.s32.totalorder %s93, %s94
    %p105 = scmp.eq.s32.totalorder %s19, 0
    %p106 = por %p104, %p105
    %p107 = scmp.ne.s32.totalorder %s93, %s94
    %p108 = scmp.eq.s32.totalorder %s20, 1
    %p109 = por %p107, %p108
    %p111 = scmp.ne.s32.totalorder %s94, %s110
    %p112 = scmp.eq.s32.totalorder %s20, 0
    %p113 = por %p111, %p112
    %s115 = sadd.s32 %s114, 1
    %p118 = scmp.eq.s32.totalorder %s14, 1
    %p119 = scmp.ne.s32.totalorder %s114, %s116
    %p120 = scmp.eq.s32.totalorder %s14, 0
    %p121 = por %p119, %p120
    %p122 = scmp.ne.s32.totalorder %s114, %s116
    %p123 = scmp.eq.s32.totalorder %s19, 1
    %p124 = por %p122, %p123
    %p125 = scmp.ne.s32.totalorder %s116, %s117
    %p126 = scmp.eq.s32.totalorder %s19, 0
    %p127 = por %p125, %p126
    %p128 = scmp.ne.s32.totalorder %s116, %s117
    %p129 = scmp.eq.s32.totalorder %s20, 1
    %p130 = por %p128, %p129
    %p132 = scmp.ne.s32.totalorder %s117, %s131
    %p133 = scmp.eq.s32.totalorder %s20, 0
    %p134 = por %p132, %p133
    %s136 = sadd.s32 %s135, 1
    %p139 = scmp.eq.s32.totalorder %s14, 1
    %p140 = scmp.ne.s32.totalorder %s135, %s137
    %p141 = scmp.eq.s32.totalorder %s14, 0
    %p142 = por %p140, %p141
    %p143 = scmp.ne.s32.totalorder %s135, %s137
    %p144 = scmp.eq.s32.totalorder %s19, 1
    %p145 = por %p143, %p144
    %p146 = scmp.ne.s32.totalorder %s137, %s138
    %p147 = scmp.eq.s32.totalorder %s19, 0
    %p148 = por %p146, %p147
    %p149 = scmp.ne.s32.totalorder %s137, %s138
    %p150 = scmp.eq.s32.totalorder %s20, 1
    %p151 = por %p149, %p150
    %p153 = scmp.ne.s32.totalorder %s138, %s152
    %p154 = scmp.eq.s32.totalorder %s20, 0
    %p155 = por %p153, %p154
    %s156 = ssub.s32 %s21, %s33
    %s157 = ssub.s32 %s22, %s29
    %s158 = sor.u32 %s156, %s157
    %p159 = scmp.eq.s32.totalorder %s158, 0
    %s161 = sadd.s32 %s160, 1
    %s162 = scalar_select %p159, %s160, %s161
    %p165 = pneg %p159
    %p166 = scmp.eq.s32.totalorder %s14, 1
    %p167 = por %p165, %p166
    %p168 = scmp.ne.s32.totalorder %s160, %s163
    %p169 = scmp.eq.s32.totalorder %s14, 0
    %p170 = por %p168, %p169
    %p171 = scmp.ne.s32.totalorder %s160, %s163
    %p172 = scmp.eq.s32.totalorder %s19, 1
    %p173 = por %p171, %p172
    %p174 = scmp.ne.s32.totalorder %s163, %s164
    %p175 = scmp.eq.s32.totalorder %s19, 0
    %p176 = por %p174, %p175
    %p177 = scmp.ne.s32.totalorder %s163, %s164
    %p178 = scmp.eq.s32.totalorder %s20, 1
    %p179 = por %p177, %p178
    %p181 = scmp.ne.s32.totalorder %s164, %s180
    %p182 = scmp.eq.s32.totalorder %s20, 0
    %p183 = por %p181, %p182
    %s185 = sadd.s32 %s184, 1
    %p188 = scmp.eq.s32.totalorder %s14, 1
    %p189 = scmp.ne.s32.totalorder %s184, %s186
    %p190 = scmp.eq.s32.totalorder %s14, 0
    %p191 = por %p189, %p190
    %p192 = scmp.ne.s32.totalorder %s184, %s186
    %p193 = scmp.eq.s32.totalorder %s19, 1
    %p194 = por %p192, %p193
    %p195 = scmp.ne.s32.totalorder %s186, %s187
    %p196 = scmp.eq.s32.totalorder %s19, 0
    %p197 = por %p195, %p196
    %p198 = scmp.ne.s32.totalorder %s186, %s187
    %p199 = scmp.eq.s32.totalorder %s20, 1
    %p200 = por %p198, %p199
    %p202 = scmp.ne.s32.totalorder %s187, %s201
    %p203 = scmp.eq.s32.totalorder %s20, 0
    %p204 = por %p202, %p203
    %s206 = sadd.s32 %s205, 1
    %p209 = scmp.eq.s32.totalorder %s14, 1
    %p210 = scmp.ne.s32.totalorder %s205, %s207
    %p211 = scmp.eq.s32.totalorder %s14, 0
    %p212 = por %p210, %p211
    %p213 = scmp.ne.s32.totalorder %s205, %s207
    %p214 = scmp.eq.s32.totalorder %s19, 1
    %p215 = por %p213, %p214
    %p216 = scmp.ne.s32.totalorder %s207, %s208
    %p217 = scmp.eq.s32.totalorder %s19, 0
    %p218 = por %p216, %p217
    %p219 = scmp.ne.s32.totalorder %s207, %s208
    %p220 = scmp.eq.s32.totalorder %s20, 1
    %p221 = por %p219, %p220
    %p223 = scmp.ne.s32.totalorder %s208, %s222
    %p224 = scmp.eq.s32.totalorder %s20, 0
    %p225 = por %p223, %p224
    %s226 = ssub.s32 %s21, %s33
    %s227 = ssub.s32 %s22, %s29
    %s228 = sor.u32 %s226, %s227
    %p229 = scmp.eq.s32.totalorder %s228, 0
    %s231 = sadd.s32 %s230, 1
    %s232 = scalar_select %p229, %s230, %s231
    %p235 = pneg %p229
    %p236 = scmp.eq.s32.totalorder %s14, 1
    %p237 = por %p235, %p236
    %p238 = scmp.ne.s32.totalorder %s230, %s233
    %p239 = scmp.eq.s32.totalorder %s14, 0
    %p240 = por %p238, %p239
    %p241 = scmp.ne.s32.totalorder %s230, %s233
    %p242 = scmp.eq.s32.totalorder %s19, 1
    %p243 = por %p241, %p242
    %p244 = scmp.ne.s32.totalorder %s233, %s234
    %p245 = scmp.eq.s32.totalorder %s19, 0
    %p246 = por %p244, %p245
    %p247 = scmp.ne.s32.totalorder %s233, %s234
    %p248 = scmp.eq.s32.totalorder %s20, 1
    %p249 = por %p247, %p248
    %p251 = scmp.ne.s32.totalorder %s234, %s250
    %p252 = scmp.eq.s32.totalorder %s20, 0
    %p253 = por %p251, %p252
    %p254 = scmp.le.s32.totalorder 1, %s14
    %p255 = scmp.lt.s32.totalorder %s14, 3
    %p256 = pnand %p254, %p255
    %p257 = pneg %p256
    // Predicated region
    $region9: #{intr_forward.28} parent=5 // pred_check
      _
    $region10: #{intr_forward.28} parent=5 // pred_check_branch
      %259 = sbr.rel (%p256) target = $region12
    $region11: #{intr_forward.28} parent=5 // pred_region
      %s260 = ssub.s32 %s14, 1
      // Predicated region
      $region13: #{intr_forward.28} parent=11 // pred_check
        %p261 = pneg %p127
      $region14: #{intr_forward.28} parent=11 // pred_check_branch
        %263 = sbr.rel (%p261) target = $region16
      $region15: #{intr_forward.28} parent=11 // pred_region
        _
      $region16: #{intr_forward.28} parent=11 // pred_fallthru
        _
      // Predicated region
      $region17: #{intr_forward.28} parent=11 // pred_check
        %p264 = pneg %p148
      $region18: #{intr_forward.28} parent=11 // pred_check_branch
        %266 = sbr.rel (%p264) target = $region20
      $region19: #{intr_forward.28} parent=11 // pred_region
        _
      $region20: #{intr_forward.28} parent=11 // pred_fallthru
        _
      // Predicated region
      $region21: #{intr_forward.28} parent=11 // pred_check
        %p267 = pneg %p197
      $region22: #{intr_forward.28} parent=11 // pred_check_branch
        %269 = sbr.rel (%p267) target = $region24
      $region23: #{intr_forward.28} parent=11 // pred_region
        _
      $region24: #{intr_forward.28} parent=11 // pred_fallthru
        _
      // Predicated region
      $region25: #{intr_forward.28} parent=11 // pred_check
        %p270 = pneg %p218
      $region26: #{intr_forward.28} parent=11 // pred_check_branch
        %272 = sbr.rel (%p270) target = $region28
      $region27: #{intr_forward.28} parent=11 // pred_region
        _
      $region28: #{intr_forward.28} parent=11 // pred_fallthru
        _
    $region12: #{intr_forward.28} parent=5 // pred_fallthru
      _
    %p273 = scmp.lt.s32.totalorder %s14, 2
    // Predicated region
    $region29: #{intr_forward.28} parent=5 // pred_check
      %p274 = pneg %p273
    $region30: #{intr_forward.28} parent=5 // pred_check_branch
      %276 = sbr.rel (%p274) target = $region32
    $region31: #{intr_forward.28} parent=5 // pred_region
      // Predicated region
      $region33: #{intr_forward.28} parent=31 // pred_check
        %p277 = pneg %p48
      $region34: #{intr_forward.28} parent=31 // pred_check_branch
        %279 = sbr.rel (%p277) target = $region36
      $region35: #{intr_forward.28} parent=31 // pred_region
        %p280 = scmp.lt.s32.totalorder %s21, 1
        %s281 = scalar_select %p280, %s21, 1
        %p282 = scmp.lt.s32.totalorder %s22, 0
        %s283 = scalar_select %p282, %s22, 0
        %s284 = sadd.s32 %s283, %s281
        %s285 = smul.addr %s284, 4
        %s286 = scalar_lea.vmem %s0, %s285
      $region36: #{intr_forward.28} parent=31 // pred_fallthru
        _
      // Predicated region
      $region37: #{intr_forward.28} parent=31 // pred_check
        %p287 = pneg %p74
      $region38: #{intr_forward.28} parent=31 // pred_check_branch
        %289 = sbr.rel (%p287) target = $region40
      $region39: #{intr_forward.28} parent=31 // pred_region
        %p290 = scmp.lt.s32.totalorder %s21, 1
        %s291 = scalar_select %p290, %s21, 1
        %s292 = smul.addr %s291, 4
        %s293 = scalar_lea.vmem %s1, %s292
      $region40: #{intr_forward.28} parent=31 // pred_fallthru
        _
      // Predicated region
      $region41: #{intr_forward.28} parent=31 // pred_check
        %p294 = pneg %p100
      $region42: #{intr_forward.28} parent=31 // pred_check_branch
        %296 = sbr.rel (%p294) target = $region44
      $region43: #{intr_forward.28} parent=31 // pred_region
        %p297 = scmp.lt.s32.totalorder %s21, 1
        %s298 = scalar_select %p297, %s21, 1
        %s299 = smul.addr %s298, 4
        %s300 = scalar_lea.vmem %s2, %s299
      $region44: #{intr_forward.28} parent=31 // pred_fallthru
        _
      // Predicated region
      $region45: #{intr_forward.28} parent=31 // pred_check
        %p301 = pneg %p170
      $region46: #{intr_forward.28} parent=31 // pred_check_branch
        %303 = sbr.rel (%p301) target = $region48
      $region47: #{intr_forward.28} parent=31 // pred_region
        %p304 = scmp.lt.s32.totalorder %s21, 1
        %s305 = scalar_select %p304, %s21, 1
        %p306 = scmp.lt.s32.totalorder %s22, 0
        %s307 = scalar_select %p306, %s22, 0
        %s308 = sadd.s32 %s307, %s305
        %s309 = smul.addr %s308, 8
        %s310 = scalar_lea.vmem %s5, %s309
      $region48: #{intr_forward.28} parent=31 // pred_fallthru
        _
    $region32: #{intr_forward.28} parent=5 // pred_fallthru
      _
    %p311 = scmp.le.s32.totalorder 1, %s14
    %p312 = scmp.lt.s32.totalorder %s14, 3
    %p313 = pnand %p311, %p312
    %p314 = pneg %p313
    // Predicated region
    $region49: #{intr_forward.28} parent=5 // pred_check
      _
    $region50: #{intr_forward.28} parent=5 // pred_check_branch
      %316 = sbr.rel (%p313) target = $region52
    $region51: #{intr_forward.28} parent=5 // pred_region
      %s317 = ssub.s32 %s14, 1
      %p318 = scmp.lt.s32.totalorder %s23, 1
      %s319 = scalar_select %p318, %s23, 1
      %p320 = scmp.lt.s32.totalorder %s24, 0
      %s321 = scalar_select %p320, %s24, 0
      %s322 = sadd.s32 %s321, %s319
      %s323 = smul.addr %s322, 4
      %s324 = scalar_lea.vmem %s0, %s323
      %p325 = pneg %p54
      %p326 = pneg %p51
      %p327 = scmp.lt.s32.totalorder %s23, 1
      %s328 = scalar_select %p327, %s23, 1
      %s329 = smul.addr %s328, 4
      %s330 = scalar_lea.vmem %s1, %s329
      %p331 = pneg %p80
      %p332 = pneg %p77
      %p333 = scmp.lt.s32.totalorder %s23, 1
      %s334 = scalar_select %p333, %s23, 1
      %s335 = smul.addr %s334, 4
      %s336 = scalar_lea.vmem %s2, %s335
      %p337 = pneg %p106
      %p338 = pneg %p103
      %p339 = pneg %p127
      %p340 = pneg %p124
      %p341 = pneg %p148
      %p342 = pneg %p145
      %p343 = scmp.lt.s32.totalorder %s23, 1
      %s344 = scalar_select %p343, %s23, 1
      %p345 = scmp.lt.s32.totalorder %s24, 0
      %s346 = scalar_select %p345, %s24, 0
      %s347 = sadd.s32 %s346, %s344
      %s348 = smul.addr %s347, 8
      %s349 = scalar_lea.vmem %s5, %s348
      %p350 = pneg %p176
      %p351 = pneg %p173
      %p352 = pneg %p197
      %p353 = pneg %p194
      %p354 = pneg %p218
      %p355 = pneg %p215
      %p356 = pneg %p246
      %p357 = pneg %p243
      %p358 = scmp.lt.s32.totalorder %s23, 1
      %s359 = scalar_select %p358, %s23, 1
      %p360 = scmp.lt.s32.totalorder %s24, 0
      %s361 = scalar_select %p360, %s24, 0
      %s362 = sadd.s32 %s361, %s359
      %s363 = smul.addr %s362, 8
      %s364 = scalar_lea.vmem %s8, %s363
      %p365 = scmp.lt.s32.totalorder %s23, 1
      %s366 = scalar_select %p365, %s23, 1
      %p367 = scmp.lt.s32.totalorder %s24, 0
      %s368 = scalar_select %p367, %s24, 0
      %s369 = sadd.s32 %s368, %s366
      %s370 = smul.addr %s369, 4
      %s371 = scalar_lea.vmem %s0, %s370
      %p372 = scmp.lt.s32.totalorder %s23, 1
      %s373 = scalar_select %p372, %s23, 1
      %s374 = smul.addr %s373, 4
      %s375 = scalar_lea.vmem %s1, %s374
      %p376 = scmp.lt.s32.totalorder %s23, 1
      %s377 = scalar_select %p376, %s23, 1
      %s378 = smul.addr %s377, 4
      %s379 = scalar_lea.vmem %s2, %s378
      %p380 = scmp.lt.s32.totalorder %s23, 1
      %s381 = scalar_select %p380, %s23, 1
      %p382 = scmp.lt.s32.totalorder %s24, 0
      %s383 = scalar_select %p382, %s24, 0
      %s384 = sadd.s32 %s383, %s381
      %s385 = smul.addr %s384, 8
      %s386 = scalar_lea.vmem %s5, %s385
      %p387 = scmp.lt.s32.totalorder %s23, 1
      %s388 = scalar_select %p387, %s23, 1
      %p389 = scmp.lt.s32.totalorder %s24, 0
      %s390 = scalar_select %p389, %s24, 0
      %s391 = sadd.s32 %s390, %s388
      %s392 = smul.addr %s391, 8
      %s393 = scalar_lea.vmem %s8, %s392
      %v395 = vld [vmem:[%s371] sm:$0xf]
      %v396 = vld [vmem:[%s375] sm:$0xf]
      %v397 = vld [vmem:[%s379] sm:$0xf]
      %vm398 = vcmask 64512
      %v400 = vsel %vm398, %v395, 0
      %v403 = vsel %vm398, %v396, 0
      %405 = vmatprep.subr.bf16.mxu0 0
      %406 = vmatpush1.bf16.xpose.msra.mxu0 0
      %407 = vmatprep.subr.bf16.mxu0 0
      %408 = vmatpush1.bf16.xpose.msra.mxu0 0
      %409 = vmatprep.subr.bf16.mxu0 0
      %410 = vmatpush1.bf16.xpose.msra.mxu0 0
      %411 = vmatprep.subr.bf16.mxu0 0
      %412 = vmatpush1.bf16.xpose.msra.mxu0 0
      %413 = vmatprep.subr.bf16.mxu0 0
      %414 = vmatpush1.bf16.xpose.msra.mxu0 0
      %415 = vmatprep.subr.bf16.mxu0 0
      %416 = vmatpush1.bf16.xpose.msra.mxu0 0
      %417 = vmatprep.subr.bf16.mxu0 0
      %418 = vmatpush1.bf16.xpose.msra.mxu0 0
      %419 = vmatprep.subr.bf16.mxu0 0
      %420 = vmatpush1.bf16.xpose.msra.mxu0 %v403
      %421 = vmatprep.subr.bf16.mxu0 0
      %422 = vmatpush2.bf16.xpose.msra.mxu0 0
      %423 = vmatprep.subr.bf16.mxu0 0
      %424 = vmatpush2.bf16.xpose.msra.mxu0 0
      %425 = vmatprep.subr.bf16.mxu0 0
      %426 = vmatpush2.bf16.xpose.msra.mxu0 0
      %427 = vmatprep.subr.bf16.mxu0 0
      %428 = vmatpush2.bf16.xpose.msra.mxu0 0
      %429 = vmatprep.subr.bf16.mxu0 0
      %430 = vmatpush2.bf16.xpose.msra.mxu0 0
      %431 = vmatprep.subr.bf16.mxu0 0
      %432 = vmatpush2.bf16.xpose.msra.mxu0 0
      %433 = vmatprep.subr.bf16.mxu0 0
      %434 = vmatpush2.bf16.xpose.msra.mxu0 0
      %435 = vmatprep.subr.bf16.mxu0 0
      %436 = vmatpush2.bf16.xpose.msra.mxu0 0
      %437 = vmatprep.mubr.bf16.mxu0 0
      %438 = vmatmul.mubr.bf16.gmra.mxu0 %v400
      %v439 = vpop.f32.mrf.mxu0
      %v440 = vadd.f32 0.0, %v439
      %v441 = vpop.f32.mrf.mxu0
      %v442 = vpop.f32.mrf.mxu0
      %v443 = vpop.f32.mrf.mxu0
      %444 = vdwg.mxu0
      %v445 = vsel %vm398, %v440, -inf
      %446 = vmax.xlane.f32.xlu0 %v445
      %v447 = vpop.xlane.xlu0 %446
      %v448 = vsub.f32 %v440, %v447
      %v449 = vmul.f32 %v448, 1.442695
      %v450 = vpow.pop %v449
      %v451 = vsel %vm398, %v450, 0.0
      %452 = vadd.xlane.f32.xlu0 %v451
      %v453 = vpop.xlane.xlu0 %452
      %v454 = vrcp.pop %v453
      %v455 = vmul.f32 %v450, %v454
      %v456 = vpack.c.bf16 %v455, %v455
      %v458 = vsel %vm398, %v456, 0
      %vm460 = vcmask 1043456
      %v462 = vsel %vm460, %v397, 0
      %464 = vmatprep.subr.bf16.mxu0 0
      %465 = vmatpush1.bf16.msra.mxu0 0
      %466 = vmatprep.subr.bf16.mxu0 0
      %467 = vmatpush1.bf16.msra.mxu0 0
      %468 = vmatprep.subr.bf16.mxu0 0
      %469 = vmatpush1.bf16.msra.mxu0 0
      %470 = vmatprep.subr.bf16.mxu0 0
      %471 = vmatpush1.bf16.msra.mxu0 0
      %472 = vmatprep.subr.bf16.mxu0 0
      %473 = vmatpush1.bf16.msra.mxu0 0
      %474 = vmatprep.subr.bf16.mxu0 0
      %475 = vmatpush1.bf16.msra.mxu0 0
      %476 = vmatprep.subr.bf16.mxu0 0
      %477 = vmatpush1.bf16.msra.mxu0 0
      %478 = vmatprep.subr.bf16.mxu0 0
      %479 = vmatpush1.bf16.msra.mxu0 %v462
      %480 = vmatprep.subr.bf16.mxu0 0
      %481 = vmatpush2.bf16.msra.mxu0 0
      %482 = vmatprep.subr.bf16.mxu0 0
      %483 = vmatpush2.bf16.msra.mxu0 0
      %484 = vmatprep.subr.bf16.mxu0 0
      %485 = vmatpush2.bf16.msra.mxu0 0
      %486 = vmatprep.subr.bf16.mxu0 0
      %487 = vmatpush2.bf16.msra.mxu0 0
      %488 = vmatprep.subr.bf16.mxu0 0
      %489 = vmatpush2.bf16.msra.mxu0 0
      %490 = vmatprep.subr.bf16.mxu0 0
      %491 = vmatpush2.bf16.msra.mxu0 0
      %492 = vmatprep.subr.bf16.mxu0 0
      %493 = vmatpush2.bf16.msra.mxu0 0
      %494 = vmatprep.subr.bf16.mxu0 0
      %495 = vmatpush2.bf16.msra.mxu0 0
      %496 = vmatprep.mubr.bf16.mxu0 0
      %497 = vmatmul.mubr.bf16.gmra.mxu0 %v458
      %v498 = vpop.f32.mrf.mxu0
      %v499 = vadd.f32 0.0, %v498
      %v500 = vpop.f32.mrf.mxu0
      %v501 = vpop.f32.mrf.mxu0
      %v502 = vpop.f32.mrf.mxu0
      %503 = vdwg.mxu0
      %v505 = vunpack.c.l.b16 %v395
      %v506 = vpack.c.b16 %v505, %v505
      %507 = vrot.lane.b32.xlu0 %v506, 120
      %v508 = vpop.permute.xlu0 %507
      %v510 = vunpack.c.l.b16 %v396
      %v511 = vpack.c.b16 %v510, %v510
      %512 = vrot.lane.b32.xlu0 %v511, 120
      %v513 = vpop.permute.xlu0 %512
      %v515 = vsel %vm398, %v508, 0
      %v518 = vsel %vm398, %v513, 0
      %520 = vmatprep.subr.bf16.mxu0 0
      %521 = vmatpush1.bf16.xpose.msra.mxu0 0
      %522 = vmatprep.subr.bf16.mxu0 0
      %523 = vmatpush1.bf16.xpose.msra.mxu0 0
      %524 = vmatprep.subr.bf16.mxu0 0
      %525 = vmatpush1.bf16.xpose.msra.mxu0 0
      %526 = vmatprep.subr.bf16.mxu0 0
      %527 = vmatpush1.bf16.xpose.msra.mxu0 0
      %528 = vmatprep.subr.bf16.mxu0 0
      %529 = vmatpush1.bf16.xpose.msra.mxu0 0
      %530 = vmatprep.subr.bf16.mxu0 0
      %531 = vmatpush1.bf16.xpose.msra.mxu0 0
      %532 = vmatprep.subr.bf16.mxu0 0
      %533 = vmatpush1.bf16.xpose.msra.mxu0 0
      %534 = vmatprep.subr.bf16.mxu0 0
      %535 = vmatpush1.bf16.xpose.msra.mxu0 %v518
      %536 = vmatprep.subr.bf16.mxu0 0
      %537 = vmatpush2.bf16.xpose.msra.mxu0 0
      %538 = vmatprep.subr.bf16.mxu0 0
      %539 = vmatpush2.bf16.xpose.msra.mxu0 0
      %540 = vmatprep.subr.bf16.mxu0 0
      %541 = vmatpush2.bf16.xpose.msra.mxu0 0
      %542 = vmatprep.subr.bf16.mxu0 0
      %543 = vmatpush2.bf16.xpose.msra.mxu0 0
      %544 = vmatprep.subr.bf16.mxu0 0
      %545 = vmatpush2.bf16.xpose.msra.mxu0 0
      %546 = vmatprep.subr.bf16.mxu0 0
      %547 = vmatpush2.bf16.xpose.msra.mxu0 0
      %548 = vmatprep.subr.bf16.mxu0 0
      %549 = vmatpush2.bf16.xpose.msra.mxu0 0
      %550 = vmatprep.subr.bf16.mxu0 0
      %551 = vmatpush2.bf16.xpose.msra.mxu0 0
      %552 = vmatprep.mubr.bf16.mxu0 0
      %553 = vmatmul.mubr.bf16.gmra.mxu0 %v515
      %v554 = vpop.f32.mrf.mxu0
      %v555 = vadd.f32 0.0, %v554
      %v556 = vpop.f32.mrf.mxu0
      %v557 = vpop.f32.mrf.mxu0
      %v558 = vpop.f32.mrf.mxu0
      %559 = vdwg.mxu0
      %v560 = vsel %vm398, %v555, -inf
      %561 = vmax.xlane.f32.xlu0 %v560
      %v562 = vpop.xlane.xlu0 %561
      %v563 = vsub.f32 %v555, %v562
      %v564 = vmul.f32 %v563, 1.442695
      %v565 = vpow.pop %v564
      %v566 = vsel %vm398, %v565, 0.0
      %567 = vadd.xlane.f32.xlu0 %v566
      %v568 = vpop.xlane.xlu0 %567
      %v569 = vrcp.pop %v568
      %v570 = vmul.f32 %v565, %v569
      %v571 = vpack.c.bf16 %v570, %v570
      %v573 = vunpack.c.l.b16 %v397
      %v574 = vpack.c.b16 %v573, %v573
      %575 = vrot.lane.b32.xlu0 %v574, 120
      %v576 = vpop.permute.xlu0 %575
      %v578 = vsel %vm398, %v571, 0
      %v581 = vsel %vm460, %v576, 0
      %583 = vmatprep.subr.bf16.mxu0 0
      %584 = vmatpush1.bf16.msra.mxu0 0
      %585 = vmatprep.subr.bf16.mxu0 0
      %586 = vmatpush1.bf16.msra.mxu0 0
      %587 = vmatprep.subr.bf16.mxu0 0
      %588 = vmatpush1.bf16.msra.mxu0 0
      %589 = vmatprep.subr.bf16.mxu0 0
      %590 = vmatpush1.bf16.msra.mxu0 0
      %591 = vmatprep.subr.bf16.mxu0 0
      %592 = vmatpush1.bf16.msra.mxu0 0
      %593 = vmatprep.subr.bf16.mxu0 0
      %594 = vmatpush1.bf16.msra.mxu0 0
      %595 = vmatprep.subr.bf16.mxu0 0
      %596 = vmatpush1.bf16.msra.mxu0 0
      %597 = vmatprep.subr.bf16.mxu0 0
      %598 = vmatpush1.bf16.msra.mxu0 %v581
      %599 = vmatprep.subr.bf16.mxu0 0
      %600 = vmatpush2.bf16.msra.mxu0 0
      %601 = vmatprep.subr.bf16.mxu0 0
      %602 = vmatpush2.bf16.msra.mxu0 0
      %603 = vmatprep.subr.bf16.mxu0 0
      %604 = vmatpush2.bf16.msra.mxu0 0
      %605 = vmatprep.subr.bf16.mxu0 0
      %606 = vmatpush2.bf16.msra.mxu0 0
      %607 = vmatprep.subr.bf16.mxu0 0
      %608 = vmatpush2.bf16.msra.mxu0 0
      %609 = vmatprep.subr.bf16.mxu0 0
      %610 = vmatpush2.bf16.msra.mxu0 0
      %611 = vmatprep.subr.bf16.mxu0 0
      %612 = vmatpush2.bf16.msra.mxu0 0
      %613 = vmatprep.subr.bf16.mxu0 0
      %614 = vmatpush2.bf16.msra.mxu0 0
      %615 = vmatprep.mubr.bf16.mxu0 0
      %616 = vmatmul.mubr.bf16.gmra.mxu0 %v578
      %v617 = vpop.f32.mrf.mxu0
      %v618 = vadd.f32 0.0, %v617
      %v619 = vpop.f32.mrf.mxu0
      %v620 = vpop.f32.mrf.mxu0
      %v621 = vpop.f32.mrf.mxu0
      %622 = vdwg.mxu0
      %623 = vrot.lane.b32.xlu0 %v506, 112
      %v624 = vpop.permute.xlu0 %623
      %625 = vrot.lane.b32.xlu0 %v511, 112
      %v626 = vpop.permute.xlu0 %625
      %v628 = vsel %vm398, %v624, 0
      %v631 = vsel %vm398, %v626, 0
      %633 = vmatprep.subr.bf16.mxu0 0
      %634 = vmatpush1.bf16.xpose.msra.mxu0 0
      %635 = vmatprep.subr.bf16.mxu0 0
      %636 = vmatpush1.bf16.xpose.msra.mxu0 0
      %637 = vmatprep.subr.bf16.mxu0 0
      %638 = vmatpush1.bf16.xpose.msra.mxu0 0
      %639 = vmatprep.subr.bf16.mxu0 0
      %640 = vmatpush1.bf16.xpose.msra.mxu0 0
      %641 = vmatprep.subr.bf16.mxu0 0
      %642 = vmatpush1.bf16.xpose.msra.mxu0 0
      %643 = vmatprep.subr.bf16.mxu0 0
      %644 = vmatpush1.bf16.xpose.msra.mxu0 0
      %645 = vmatprep.subr.bf16.mxu0 0
      %646 = vmatpush1.bf16.xpose.msra.mxu0 0
      %647 = vmatprep.subr.bf16.mxu0 0
      %648 = vmatpush1.bf16.xpose.msra.mxu0 %v631
      %649 = vmatprep.subr.bf16.mxu0 0
      %650 = vmatpush2.bf16.xpose.msra.mxu0 0
      %651 = vmatprep.subr.bf16.mxu0 0
      %652 = vmatpush2.bf16.xpose.msra.mxu0 0
      %653 = vmatprep.subr.bf16.mxu0 0
      %654 = vmatpush2.bf16.xpose.msra.mxu0 0
      %655 = vmatprep.subr.bf16.mxu0 0
      %656 = vmatpush2.bf16.xpose.msra.mxu0 0
      %657 = vmatprep.subr.bf16.mxu0 0
      %658 = vmatpush2.bf16.xpose.msra.mxu0 0
      %659 = vmatprep.subr.bf16.mxu0 0
      %660 = vmatpush2.bf16.xpose.msra.mxu0 0
      %661 = vmatprep.subr.bf16.mxu0 0
      %662 = vmatpush2.bf16.xpose.msra.mxu0 0
      %663 = vmatprep.subr.bf16.mxu0 0
      %664 = vmatpush2.bf16.xpose.msra.mxu0 0
      %665 = vmatprep.mubr.bf16.mxu0 0
      %666 = vmatmul.mubr.bf16.gmra.mxu0 %v628
      %v667 = vpop.f32.mrf.mxu0
      %v668 = vadd.f32 0.0, %v667
      %v669 = vpop.f32.mrf.mxu0
      %v670 = vpop.f32.mrf.mxu0
      %v671 = vpop.f32.mrf.mxu0
      %672 = vdwg.mxu0
      %v673 = vsel %vm398, %v668, -inf
      %674 = vmax.xlane.f32.xlu0 %v673
      %v675 = vpop.xlane.xlu0 %674
      %v676 = vsub.f32 %v668, %v675
      %v677 = vmul.f32 %v676, 1.442695
      %v678 = vpow.pop %v677
      %v679 = vsel %vm398, %v678, 0.0
      %680 = vadd.xlane.f32.xlu0 %v679
      %v681 = vpop.xlane.xlu0 %680
      %v682 = vrcp.pop %v681
      %v683 = vmul.f32 %v678, %v682
      %v684 = vpack.c.bf16 %v683, %v683
      %685 = vrot.lane.b32.xlu0 %v574, 112
      %v686 = vpop.permute.xlu0 %685
      %v688 = vsel %vm398, %v684, 0
      %v691 = vsel %vm460, %v686, 0
      %693 = vmatprep.subr.bf16.mxu0 0
      %694 = vmatpush1.bf16.msra.mxu0 0
      %695 = vmatprep.subr.bf16.mxu0 0
      %696 = vmatpush1.bf16.msra.mxu0 0
      %697 = vmatprep.subr.bf16.mxu0 0
      %698 = vmatpush1.bf16.msra.mxu0 0
      %699 = vmatprep.subr.bf16.mxu0 0
      %700 = vmatpush1.bf16.msra.mxu0 0
      %701 = vmatprep.subr.bf16.mxu0 0
      %702 = vmatpush1.bf16.msra.mxu0 0
      %703 = vmatprep.subr.bf16.mxu0 0
      %704 = vmatpush1.bf16.msra.mxu0 0
      %705 = vmatprep.subr.bf16.mxu0 0
      %706 = vmatpush1.bf16.msra.mxu0 0
      %707 = vmatprep.subr.bf16.mxu0 0
      %708 = vmatpush1.bf16.msra.mxu0 %v691
      %709 = vmatprep.subr.bf16.mxu0 0
      %710 = vmatpush2.bf16.msra.mxu0 0
      %711 = vmatprep.subr.bf16.mxu0 0
      %712 = vmatpush2.bf16.msra.mxu0 0
      %713 = vmatprep.subr.bf16.mxu0 0
      %714 = vmatpush2.bf16.msra.mxu0 0
      %715 = vmatprep.subr.bf16.mxu0 0
      %716 = vmatpush2.bf16.msra.mxu0 0
      %717 = vmatprep.subr.bf16.mxu0 0
      %718 = vmatpush2.bf16.msra.mxu0 0
      %719 = vmatprep.subr.bf16.mxu0 0
      %720 = vmatpush2.bf16.msra.mxu0 0
      %721 = vmatprep.subr.bf16.mxu0 0
      %722 = vmatpush2.bf16.msra.mxu0 0
      %723 = vmatprep.subr.bf16.mxu0 0
      %724 = vmatpush2.bf16.msra.mxu0 0
      %725 = vmatprep.mubr.bf16.mxu0 0
      %726 = vmatmul.mubr.bf16.gmra.mxu0 %v688
      %v727 = vpop.f32.mrf.mxu0
      %v728 = vadd.f32 0.0, %v727
      %v729 = vpop.f32.mrf.mxu0
      %v730 = vpop.f32.mrf.mxu0
      %v731 = vpop.f32.mrf.mxu0
      %732 = vdwg.mxu0
      %733 = vrot.lane.b32.xlu0 %v506, 104
      %v734 = vpop.permute.xlu0 %733
      %735 = vrot.lane.b32.xlu0 %v511, 104
      %v736 = vpop.permute.xlu0 %735
      %v738 = vsel %vm398, %v734, 0
      %v741 = vsel %vm398, %v736, 0
      %743 = vmatprep.subr.bf16.mxu0 0
      %744 = vmatpush1.bf16.xpose.msra.mxu0 0
      %745 = vmatprep.subr.bf16.mxu0 0
      %746 = vmatpush1.bf16.xpose.msra.mxu0 0
      %747 = vmatprep.subr.bf16.mxu0 0
      %748 = vmatpush1.bf16.xpose.msra.mxu0 0
      %749 = vmatprep.subr.bf16.mxu0 0
      %750 = vmatpush1.bf16.xpose.msra.mxu0 0
      %751 = vmatprep.subr.bf16.mxu0 0
      %752 = vmatpush1.bf16.xpose.msra.mxu0 0
      %753 = vmatprep.subr.bf16.mxu0 0
      %754 = vmatpush1.bf16.xpose.msra.mxu0 0
      %755 = vmatprep.subr.bf16.mxu0 0
      %756 = vmatpush1.bf16.xpose.msra.mxu0 0
      %757 = vmatprep.subr.bf16.mxu0 0
      %758 = vmatpush1.bf16.xpose.msra.mxu0 %v741
      %759 = vmatprep.subr.bf16.mxu0 0
      %760 = vmatpush2.bf16.xpose.msra.mxu0 0
      %761 = vmatprep.subr.bf16.mxu0 0
      %762 = vmatpush2.bf16.xpose.msra.mxu0 0
      %763 = vmatprep.subr.bf16.mxu0 0
      %764 = vmatpush2.bf16.xpose.msra.mxu0 0
      %765 = vmatprep.subr.bf16.mxu0 0
      %766 = vmatpush2.bf16.xpose.msra.mxu0 0
      %767 = vmatprep.subr.bf16.mxu0 0
      %768 = vmatpush2.bf16.xpose.msra.mxu0 0
      %769 = vmatprep.subr.bf16.mxu0 0
      %770 = vmatpush2.bf16.xpose.msra.mxu0 0
      %771 = vmatprep.subr.bf16.mxu0 0
      %772 = vmatpush2.bf16.xpose.msra.mxu0 0
      %773 = vmatprep.subr.bf16.mxu0 0
      %774 = vmatpush2.bf16.xpose.msra.mxu0 0
      %775 = vmatprep.mubr.bf16.mxu0 0
      %776 = vmatmul.mubr.bf16.gmra.mxu0 %v738
      %v777 = vpop.f32.mrf.mxu0
      %v778 = vadd.f32 0.0, %v777
      %v779 = vpop.f32.mrf.mxu0
      %v780 = vpop.f32.mrf.mxu0
      %v781 = vpop.f32.mrf.mxu0
      %782 = vdwg.mxu0
      %v783 = vsel %vm398, %v778, -inf
      %784 = vmax.xlane.f32.xlu0 %v783
      %v785 = vpop.xlane.xlu0 %784
      %v786 = vsub.f32 %v778, %v785
      %v787 = vmul.f32 %v786, 1.442695
      %v788 = vpow.pop %v787
      %v789 = vsel %vm398, %v788, 0.0
      %790 = vadd.xlane.f32.xlu0 %v789
      %v791 = vpop.xlane.xlu0 %790
      %v792 = vrcp.pop %v791
      %v793 = vmul.f32 %v788, %v792
      %v794 = vpack.c.bf16 %v793, %v793
      %795 = vrot.lane.b32.xlu0 %v574, 104
      %v796 = vpop.permute.xlu0 %795
      %v798 = vsel %vm398, %v794, 0
      %v801 = vsel %vm460, %v796, 0
      %803 = vmatprep.subr.bf16.mxu0 0
      %804 = vmatpush1.bf16.msra.mxu0 0
      %805 = vmatprep.subr.bf16.mxu0 0
      %806 = vmatpush1.bf16.msra.mxu0 0
      %807 = vmatprep.subr.bf16.mxu0 0
      %808 = vmatpush1.bf16.msra.mxu0 0
      %809 = vmatprep.subr.bf16.mxu0 0
      %810 = vmatpush1.bf16.msra.mxu0 0
      %811 = vmatprep.subr.bf16.mxu0 0
      %812 = vmatpush1.bf16.msra.mxu0 0
      %813 = vmatprep.subr.bf16.mxu0 0
      %814 = vmatpush1.bf16.msra.mxu0 0
      %815 = vmatprep.subr.bf16.mxu0 0
      %816 = vmatpush1.bf16.msra.mxu0 0
      %817 = vmatprep.subr.bf16.mxu0 0
      %818 = vmatpush1.bf16.msra.mxu0 %v801
      %819 = vmatprep.subr.bf16.mxu0 0
      %820 = vmatpush2.bf16.msra.mxu0 0
      %821 = vmatprep.subr.bf16.mxu0 0
      %822 = vmatpush2.bf16.msra.mxu0 0
      %823 = vmatprep.subr.bf16.mxu0 0
      %824 = vmatpush2.bf16.msra.mxu0 0
      %825 = vmatprep.subr.bf16.mxu0 0
      %826 = vmatpush2.bf16.msra.mxu0 0
      %827 = vmatprep.subr.bf16.mxu0 0
      %828 = vmatpush2.bf16.msra.mxu0 0
      %829 = vmatprep.subr.bf16.mxu0 0
      %830 = vmatpush2.bf16.msra.mxu0 0
      %831 = vmatprep.subr.bf16.mxu0 0
      %832 = vmatpush2.bf16.msra.mxu0 0
      %833 = vmatprep.subr.bf16.mxu0 0
      %834 = vmatpush2.bf16.msra.mxu0 0
      %835 = vmatprep.mubr.bf16.mxu0 0
      %836 = vmatmul.mubr.bf16.gmra.mxu0 %v798
      %v837 = vpop.f32.mrf.mxu0
      %v838 = vadd.f32 0.0, %v837
      %v839 = vpop.f32.mrf.mxu0
      %v840 = vpop.f32.mrf.mxu0
      %v841 = vpop.f32.mrf.mxu0
      %842 = vdwg.mxu0
      %844 = vrot.lane.b32.xlu0 %v618, 8
      %v845 = vpop.permute.xlu0 %844
      %848 = vrot.lane.b32.xlu0 %v728, 16
      %v849 = vpop.permute.xlu0 %848
      %852 = vrot.lane.b32.xlu0 %v838, 24
      %v853 = vpop.permute.xlu0 %852
      %v855 = vsel %vm398, %v499, %v845
      %vm856 = vcmask 130048
      %v857 = vsel %vm856, %v855, %v849
      %vm858 = vcmask 195584
      %v859 = vsel %vm858, %v857, %v853
      %v860 = vpack.c.bf16 %v859, %v859
      %v861 = vld [vmem:[%s3] sm:$0xf]
      %v862 = vld [vmem:[%s3 + $0x4] sm:$0xf]
      %v863 = vld [vmem:[%s3 + $0x8] sm:$0xf]
      %v864 = vld [vmem:[%s3 + $0xc] sm:$0xf]
      %v865 = vld [vmem:[%s4] sm:$0x1]
      %v867 = vlaneseq
      %v868 = vshrl.u32 %v867, 7
      %v869 = vsub.s32 0, %v868
      %v870 = vrot.slane %v865, %v869
      %v876 = vunpack.c.l.b16 %v861
      %v877 = vunpack.c.l.b16 %v862
      %v878 = vunpack.c.l.b16 %v863
      %v879 = vunpack.c.l.b16 %v864
      %v880 = vpack.c.b16 %v877, %v876
      %v881 = vpack.c.b16 %v879, %v878
      %vm884 = vcmask 261120
      %v886 = vsel %vm884, %v860, 0
      %888 = vmatprep.subr.bf16.mxu0 0
      %889 = vmatpush1.bf16.msra.mxu0 0
      %890 = vmatprep.subr.bf16.mxu0 0
      %891 = vmatpush1.bf16.msra.mxu0 0
      %892 = vmatprep.subr.bf16.mxu0 0
      %893 = vmatpush1.bf16.msra.mxu0 0
      %894 = vmatprep.subr.bf16.mxu0 0
      %895 = vmatpush1.bf16.msra.mxu0 0
      %896 = vmatprep.subr.bf16.mxu0 0
      %897 = vmatpush1.bf16.msra.mxu0 0
      %898 = vmatprep.subr.bf16.mxu0 0
      %899 = vmatpush1.bf16.msra.mxu0 0
      %900 = vmatprep.subr.bf16.mxu0 0
      %901 = vmatpush1.bf16.msra.mxu0 %v881
      %902 = vmatprep.subr.bf16.mxu0 0
      %903 = vmatpush1.bf16.msra.mxu0 %v880
      %904 = vmatprep.subr.bf16.mxu0 0
      %905 = vmatpush2.bf16.msra.mxu0 0
      %906 = vmatprep.subr.bf16.mxu0 0
      %907 = vmatpush2.bf16.msra.mxu0 0
      %908 = vmatprep.subr.bf16.mxu0 0
      %909 = vmatpush2.bf16.msra.mxu0 0
      %910 = vmatprep.subr.bf16.mxu0 0
      %911 = vmatpush2.bf16.msra.mxu0 0
      %912 = vmatprep.subr.bf16.mxu0 0
      %913 = vmatpush2.bf16.msra.mxu0 0
      %914 = vmatprep.subr.bf16.mxu0 0
      %915 = vmatpush2.bf16.msra.mxu0 0
      %916 = vmatprep.subr.bf16.mxu0 0
      %917 = vmatpush2.bf16.msra.mxu0 0
      %918 = vmatprep.subr.bf16.mxu0 0
      %919 = vmatpush2.bf16.msra.mxu0 0
      %920 = vmatprep.mubr.bf16.mxu0 0
      %921 = vmatmul.mubr.bf16.gmra.mxu0 %v886
      %v922 = vpop.f32.mrf.mxu0
      %v923 = vadd.f32 %v870, %v922
      %v924 = vpop.f32.mrf.mxu0
      %v925 = vpop.f32.mrf.mxu0
      %v926 = vpop.f32.mrf.mxu0
      %927 = vdwg.mxu0
      %v928 = vld [vmem:[%s386] sm:$0xff]
      %v929 = vadd.f32 %v928, %v923
      %v930 = vsel %vm884, %v929, 0.0
      %931 = vadd.xlane.f32.xlu0 %v930
      %v932 = vpop.xlane.xlu0 %931
      %v933 = vrcp.pop 32.0
      %v934 = vmul.f32 %v932, %v933
      %v935 = vsub.f32 %v929, %v934
      %v936 = vmul.f32 %v935, %v935
      %v937 = vsel %vm884, %v936, 0.0
      %938 = vadd.xlane.f32.xlu0 %v937
      %v939 = vpop.xlane.xlu0 %938
      %v940 = vmul.f32 %v939, %v933
      %v941 = vadd.f32 %v940, 1e-05
      %v942 = vrsqrt.pop %v941
      %v943 = vmul.f32 %v935, %v942
      %v944 = vld [vmem:[%s6] sm:$0x1]
      %v946 = vlaneseq
      %v947 = vshrl.u32 %v946, 7
      %v948 = vsub.s32 0, %v947
      %v949 = vrot.slane %v944, %v948
      %v951 = vmul.f32 %v943, %v949
      %v952 = vld [vmem:[%s7] sm:$0x1]
      %v954 = vlaneseq
      %v955 = vshrl.u32 %v954, 7
      %v956 = vsub.s32 0, %v955
      %v957 = vrot.slane %v952, %v956
      %v959 = vadd.f32 %v951, %v957
      %960 = vst.msk [vmem:[%s393] sm:$0xff] %vm884, %v959
      %p961 = scmp.lt.s32.totalorder %s23, 1
      %s962 = scalar_select %p961, %s23, 1
      %p963 = scmp.lt.s32.totalorder %s24, 0
      %s964 = scalar_select %p963, %s24, 0
      %s965 = sadd.s32 %s964, %s962
      %s966 = smul.addr %s965, 8
      %s967 = scalar_lea.vmem %s8, %s966
      // Predicated region
      $region53: #{intr_forward.28} parent=51 // pred_check
        %p968 = pneg %p243
      $region54: #{intr_forward.28} parent=51 // pred_check_branch
        %970 = sbr.rel (%p968) target = $region56
      $region55: #{intr_forward.28} parent=51 // pred_region
        _
      $region56: #{intr_forward.28} parent=51 // pred_fallthru
        _
    $region52: #{intr_forward.28} parent=5 // pred_fallthru
      _
    %p971 = scmp.le.s32.totalorder 2, %s14
    // Predicated region
    $region57: #{intr_forward.28} parent=5 // pred_check
      %p972 = pneg %p971
    $region58: #{intr_forward.28} parent=5 // pred_check_branch
      %974 = sbr.rel (%p972) target = $region60
    $region59: #{intr_forward.28} parent=5 // pred_region
      %s975 = ssub.s32 %s14, 2
      // Predicated region
      $region61: #{intr_forward.28} parent=59 // pred_check
        %p976 = pneg %p249
      $region62: #{intr_forward.28} parent=59 // pred_check_branch
        %978 = sbr.rel (%p976) target = $region64
      $region63: #{intr_forward.28} parent=59 // pred_region
        %p979 = scmp.lt.s32.totalorder %s25, 1
        %s980 = scalar_select %p979, %s25, 1
        %p981 = scmp.lt.s32.totalorder %s26, 0
        %s982 = scalar_select %p981, %s26, 0
        %s983 = sadd.s32 %s982, %s980
        %s984 = smul.addr %s983, 8
        %s985 = scalar_lea.vmem %s8, %s984
      $region64: #{intr_forward.28} parent=59 // pred_fallthru
        _
    $region60: #{intr_forward.28} parent=5 // pred_fallthru
      _
  $region6: #{intr_forward.28} parent=0 // loop_footer
    %s18 = sadd.s32 1, %s14
  $region7: #{intr_forward.28} parent=0 // loop_footer_branch
    %13 = sbr.rel target = $region3
  $region8: #{intr_forward.28} parent=0 // loop_exit
    _

// kernel: intr_forward.32
$region0: #{intr_forward.32}
  #allocation0 [shape = 'u32[]', space=smem, size = 0x4, offset = 0x4, fixed_abs, tag = 'smem constant byte address 0x4 - core index']
  #allocation1 [shape = 'u32[144,128]{1,0:T(1,128)}', space=vmem, size = 0x12000, scoped, tag = 'internal scratch']
  %s0 = inlined_call_operand.vmem [shape: f32[16,32], index: 0, kind: input, shape index: {}]
  %s1 = inlined_call_operand.vmem [shape: bf16[32,64], index: 1, kind: input, shape index: {}]
  %s2 = inlined_call_operand.vmem [shape: f32[1,64], index: 2, kind: input, shape index: {}]
  %s3 = inlined_call_operand.vmem [shape: bf16[64,32], index: 3, kind: input, shape index: {}]
  %s4 = inlined_call_operand.vmem [shape: f32[1,32], index: 4, kind: input, shape index: {}]
  %s5 = inlined_call_operand.vmem [shape: f32[1,32], index: 5, kind: input, shape index: {}]
  %s6 = inlined_call_operand.vmem [shape: f32[1,32], index: 6, kind: input, shape index: {}]
  %s7 = inlined_call_operand.vmem [shape: f32[1,32], index: 7, kind: input, shape index: {}]
  %s8 = inlined_call_operand.vmem [shape: f32[1,32], index: 8, kind: input, shape index: {}]
  %s9 = inlined_call_operand.vmem [shape: f32[16,32], index: 9, kind: output, shape index: {0}]
  %s10 = inlined_call_operand.vmem [shape: f32[16,32], index: 10, kind: output, shape index: {1}]
  %11 = xla_tuple %s9, %s10
  %s12 = sld [smem:[#allocation0]]
  $region54: #{intr_forward.32} parent=0
    _
  %s14 = ssub.s32 1, %s12
  %s15 = scalar_select 0, %s14, %s12
  // Predicated region
  $region2: #{intr_forward.32} parent=0 // pred_check
    _
  $region3: #{intr_forward.32} parent=0 // pred_check_branch
    %17 = sbr.rel (0) target = $region5
  $region4: #{intr_forward.32} parent=0 // pred_region
    _
  $region5: #{intr_forward.32} parent=0 // pred_fallthru
    _
  // Predicated region
  $region6: #{intr_forward.32} parent=0 // pred_check
    _
  $region7: #{intr_forward.32} parent=0 // pred_check_branch
    %19 = sbr.rel (0) target = $region9
  $region8: #{intr_forward.32} parent=0 // pred_region
    _
  $region9: #{intr_forward.32} parent=0 // pred_fallthru
    _
  // Predicated region
  $region10: #{intr_forward.32} parent=0 // pred_check
    _
  $region11: #{intr_forward.32} parent=0 // pred_check_branch
    %21 = sbr.rel (0) target = $region13
  $region12: #{intr_forward.32} parent=0 // pred_region
    _
  $region13: #{intr_forward.32} parent=0 // pred_fallthru
    _
  // Predicated region
  $region14: #{intr_forward.32} parent=0 // pred_check
    _
  $region15: #{intr_forward.32} parent=0 // pred_check_branch
    %23 = sbr.rel (0) target = $region17
  $region16: #{intr_forward.32} parent=0 // pred_region
    _
  $region17: #{intr_forward.32} parent=0 // pred_fallthru
    _
  // Predicated region
  $region18: #{intr_forward.32} parent=0 // pred_check
    _
  $region19: #{intr_forward.32} parent=0 // pred_check_branch
    %25 = sbr.rel (0) target = $region21
  $region20: #{intr_forward.32} parent=0 // pred_region
    _
  $region21: #{intr_forward.32} parent=0 // pred_fallthru
    _
  // Predicated region
  $region22: #{intr_forward.32} parent=0 // pred_check
    _
  $region23: #{intr_forward.32} parent=0 // pred_check_branch
    %27 = sbr.rel (0) target = $region25
  $region24: #{intr_forward.32} parent=0 // pred_region
    _
  $region25: #{intr_forward.32} parent=0 // pred_fallthru
    _
  // Predicated region
  $region26: #{intr_forward.32} parent=0 // pred_check
    _
  $region27: #{intr_forward.32} parent=0 // pred_check_branch
    %29 = sbr.rel (0) target = $region29
  $region28: #{intr_forward.32} parent=0 // pred_region
    _
  $region29: #{intr_forward.32} parent=0 // pred_fallthru
    _
  // Predicated region
  $region30: #{intr_forward.32} parent=0 // pred_check
    _
  $region31: #{intr_forward.32} parent=0 // pred_check_branch
    %31 = sbr.rel (0) target = $region33
  $region32: #{intr_forward.32} parent=0 // pred_region
    _
  $region33: #{intr_forward.32} parent=0 // pred_fallthru
    _
  // Predicated region
  $region34: #{intr_forward.32} parent=0 // pred_check
    _
  $region35: #{intr_forward.32} parent=0 // pred_check_branch
    %33 = sbr.rel (0) target = $region37
  $region36: #{intr_forward.32} parent=0 // pred_region
    _
  $region37: #{intr_forward.32} parent=0 // pred_fallthru
    _
  %v35 = vld [vmem:[%s0] sm:$0xff]
  %v36 = vld [vmem:[%s0 + $0x8] sm:$0xff]
  %v37 = vpack.c.bf16 %v36, %v35
  %v38 = vld [vmem:[%s1] sm:$0xf]
  %v39 = vld [vmem:[%s1 + $0x4] sm:$0xf]
  %v40 = vld [vmem:[%s1 + $0x8] sm:$0xf]
  %v41 = vld [vmem:[%s1 + $0xc] sm:$0xf]
  %v42 = vld [vmem:[%s2] sm:$0x1]
  %v44 = vlaneseq
  %v45 = vshrl.u32 %v44, 7
  %v46 = vsub.s32 0, %v45
  %v47 = vrot.slane %v42, %v46
  %v53 = vunpack.c.l.b16 %v38
  %v54 = vunpack.c.l.b16 %v39
  %v55 = vunpack.c.l.b16 %v40
  %v56 = vunpack.c.l.b16 %v41
  %v57 = vpack.c.b16 %v54, %v53
  %v58 = vpack.c.b16 %v56, %v55
  %vm61 = vcmask 261120
  %v63 = vsel %vm61, %v37, 0
  %65 = vmatprep.subr.bf16.mxu0 0
  %66 = vmatpush1.bf16.msra.mxu0 0
  %67 = vmatprep.subr.bf16.mxu0 0
  %68 = vmatpush1.bf16.msra.mxu0 0
  %69 = vmatprep.subr.bf16.mxu0 0
  %70 = vmatpush1.bf16.msra.mxu0 0
  %71 = vmatprep.subr.bf16.mxu0 0
  %72 = vmatpush1.bf16.msra.mxu0 0
  %73 = vmatprep.subr.bf16.mxu0 0
  %74 = vmatpush1.bf16.msra.mxu0 0
  %75 = vmatprep.subr.bf16.mxu0 0
  %76 = vmatpush1.bf16.msra.mxu0 0
  %77 = vmatprep.subr.bf16.mxu0 0
  %78 = vmatpush1.bf16.msra.mxu0 %v58
  %79 = vmatprep.subr.bf16.mxu0 0
  %80 = vmatpush1.bf16.msra.mxu0 %v57
  %81 = vmatprep.subr.bf16.mxu0 0
  %82 = vmatpush2.bf16.msra.mxu0 0
  %83 = vmatprep.subr.bf16.mxu0 0
  %84 = vmatpush2.bf16.msra.mxu0 0
  %85 = vmatprep.subr.bf16.mxu0 0
  %86 = vmatpush2.bf16.msra.mxu0 0
  %87 = vmatprep.subr.bf16.mxu0 0
  %88 = vmatpush2.bf16.msra.mxu0 0
  %89 = vmatprep.subr.bf16.mxu0 0
  %90 = vmatpush2.bf16.msra.mxu0 0
  %91 = vmatprep.subr.bf16.mxu0 0
  %92 = vmatpush2.bf16.msra.mxu0 0
  %93 = vmatprep.subr.bf16.mxu0 0
  %94 = vmatpush2.bf16.msra.mxu0 0
  %95 = vmatprep.subr.bf16.mxu0 0
  %96 = vmatpush2.bf16.msra.mxu0 0
  %97 = vmatprep.mubr.bf16.mxu0 0
  %98 = vmatmul.mubr.bf16.gmra.mxu0 %v63
  %v99 = vpop.f32.mrf.mxu0
  %v100 = vadd.f32 %v47, %v99
  %v101 = vpop.f32.mrf.mxu0
  %v102 = vpop.f32.mrf.mxu0
  %v103 = vadd.f32 %v47, %v102
  %v104 = vpop.f32.mrf.mxu0
  %105 = vdwg.mxu0
  %v106 = vmax.f32 %v100, 0.0
  %v107 = vmax.f32 %v103, 0.0
  %v108 = vpack.c.bf16 %v107, %v106
  %v109 = vld [vmem:[%s3] sm:$0xf]
  %v110 = vld [vmem:[%s3 + $0x4] sm:$0xf]
  %v111 = vld [vmem:[%s3 + $0x8] sm:$0xf]
  %v112 = vld [vmem:[%s3 + $0xc] sm:$0xf]
  %v113 = vld [vmem:[%s3 + $0x10] sm:$0xf]
  %v114 = vld [vmem:[%s3 + $0x14] sm:$0xf]
  %v115 = vld [vmem:[%s3 + $0x18] sm:$0xf]
  %v116 = vld [vmem:[%s3 + $0x1c] sm:$0xf]
  %v117 = vld [vmem:[%s4] sm:$0x1]
  %v119 = vlaneseq
  %v120 = vshrl.u32 %v119, 7
  %v121 = vsub.s32 0, %v120
  %v122 = vrot.slane %v117, %v121
  %v132 = vunpack.c.l.b16 %v109
  %v133 = vunpack.c.l.b16 %v110
  %v134 = vunpack.c.l.b16 %v111
  %v135 = vunpack.c.l.b16 %v112
  %v136 = vunpack.c.l.b16 %v113
  %v137 = vunpack.c.l.b16 %v114
  %v138 = vunpack.c.l.b16 %v115
  %v139 = vunpack.c.l.b16 %v116
  %v140 = vpack.c.b16 %v133, %v132
  %v141 = vpack.c.b16 %v135, %v134
  %v142 = vpack.c.b16 %v137, %v136
  %v143 = vpack.c.b16 %v139, %v138
  %vm148 = vcmask 523264
  %v150 = vsel %vm148, %v108, 0
  %152 = vmatprep.subr.bf16.mxu0 0
  %153 = vmatpush1.bf16.msra.mxu0 0
  %154 = vmatprep.subr.bf16.mxu0 0
  %155 = vmatpush1.bf16.msra.mxu0 0
  %156 = vmatprep.subr.bf16.mxu0 0
  %157 = vmatpush1.bf16.msra.mxu0 0
  %158 = vmatprep.subr.bf16.mxu0 0
  %159 = vmatpush1.bf16.msra.mxu0 0
  %160 = vmatprep.subr.bf16.mxu0 0
  %161 = vmatpush1.bf16.msra.mxu0 %v143
  %162 = vmatprep.subr.bf16.mxu0 0
  %163 = vmatpush1.bf16.msra.mxu0 %v142
  %164 = vmatprep.subr.bf16.mxu0 0
  %165 = vmatpush1.bf16.msra.mxu0 %v141
  %166 = vmatprep.subr.bf16.mxu0 0
  %167 = vmatpush1.bf16.msra.mxu0 %v140
  %168 = vmatprep.subr.bf16.mxu0 0
  %169 = vmatpush2.bf16.msra.mxu0 0
  %170 = vmatprep.subr.bf16.mxu0 0
  %171 = vmatpush2.bf16.msra.mxu0 0
  %172 = vmatprep.subr.bf16.mxu0 0
  %173 = vmatpush2.bf16.msra.mxu0 0
  %174 = vmatprep.subr.bf16.mxu0 0
  %175 = vmatpush2.bf16.msra.mxu0 0
  %176 = vmatprep.subr.bf16.mxu0 0
  %177 = vmatpush2.bf16.msra.mxu0 0
  %178 = vmatprep.subr.bf16.mxu0 0
  %179 = vmatpush2.bf16.msra.mxu0 0
  %180 = vmatprep.subr.bf16.mxu0 0
  %181 = vmatpush2.bf16.msra.mxu0 0
  %182 = vmatprep.subr.bf16.mxu0 0
  %183 = vmatpush2.bf16.msra.mxu0 0
  %184 = vmatprep.mubr.bf16.mxu0 0
  %185 = vmatmul.mubr.bf16.gmra.mxu0 %v150
  %v186 = vpop.f32.mrf.mxu0
  %v187 = vadd.f32 %v122, %v186
  %v188 = vpop.f32.mrf.mxu0
  %v189 = vpop.f32.mrf.mxu0
  %v190 = vadd.f32 %v122, %v189
  %v191 = vpop.f32.mrf.mxu0
  %192 = vdwg.mxu0
  %v193 = vadd.f32 %v35, %v187
  %v194 = vadd.f32 %v36, %v190
  %v195 = vsel %vm61, %v193, 0.0
  %196 = vadd.xlane.f32.xlu0 %v195
  %v197 = vpop.xlane.xlu0 %196
  %v198 = vsel %vm61, %v194, 0.0
  %199 = vadd.xlane.f32.xlu0 %v198
  %v200 = vpop.xlane.xlu0 %199
  %v201 = vrcp.pop 32.0
  %v202 = vmul.f32 %v197, %v201
  %v203 = vmul.f32 %v200, %v201
  %v204 = vsub.f32 %v193, %v202
  %v205 = vsub.f32 %v194, %v203
  %v206 = vmul.f32 %v204, %v204
  %v207 = vmul.f32 %v205, %v205
  %v208 = vsel %vm61, %v206, 0.0
  %209 = vadd.xlane.f32.xlu0 %v208
  %v210 = vpop.xlane.xlu0 %209
  %v211 = vsel %vm61, %v207, 0.0
  %212 = vadd.xlane.f32.xlu0 %v211
  %v213 = vpop.xlane.xlu0 %212
  %v214 = vmul.f32 %v210, %v201
  %v215 = vmul.f32 %v213, %v201
  %v216 = vadd.f32 %v214, 1e-05
  %v217 = vadd.f32 %v215, 1e-05
  %v218 = vrsqrt.pop %v216
  %v219 = vrsqrt.pop %v217
  %v220 = vmul.f32 %v204, %v218
  %v221 = vmul.f32 %v205, %v219
  %v222 = vld [vmem:[%s5] sm:$0x1]
  %v224 = vlaneseq
  %v225 = vshrl.u32 %v224, 7
  %v226 = vsub.s32 0, %v225
  %v227 = vrot.slane %v222, %v226
  %v229 = vmul.f32 %v220, %v227
  %v230 = vmul.f32 %v221, %v227
  %v231 = vld [vmem:[%s6] sm:$0x1]
  %v233 = vlaneseq
  %v234 = vshrl.u32 %v233, 7
  %v235 = vsub.s32 0, %v234
  %v236 = vrot.slane %v231, %v235
  %v238 = vadd.f32 %v229, %v236
  %v239 = vadd.f32 %v230, %v236
  %240 = vst.msk [vmem:[%s9] sm:$0xff] %vm61, %v238
  %241 = vst.msk [vmem:[%s9 + $0x8] sm:$0xff] %vm61, %v239
  %v242 = vsel %vm61, %v238, 0.0
  %243 = vadd.xlane.f32.xlu0 %v242
  %v244 = vpop.xlane.xlu0 %243
  %v245 = vsel %vm61, %v239, 0.0
  %246 = vadd.xlane.f32.xlu0 %v245
  %v247 = vpop.xlane.xlu0 %246
  %v248 = vmul.f32 %v244, %v201
  %v249 = vmul.f32 %v247, %v201
  %v250 = vsub.f32 %v238, %v248
  %v251 = vsub.f32 %v239, %v249
  %v252 = vmul.f32 %v250, %v250
  %v253 = vmul.f32 %v251, %v251
  %v254 = vsel %vm61, %v252, 0.0
  %255 = vadd.xlane.f32.xlu0 %v254
  %v256 = vpop.xlane.xlu0 %255
  %v257 = vsel %vm61, %v253, 0.0
  %258 = vadd.xlane.f32.xlu0 %v257
  %v259 = vpop.xlane.xlu0 %258
  %v260 = vmul.f32 %v256, %v201
  %v261 = vmul.f32 %v259, %v201
  %v262 = vadd.f32 %v260, 1e-05
  %v263 = vadd.f32 %v261, 1e-05
  %v264 = vrsqrt.pop %v262
  %v265 = vrsqrt.pop %v263
  %v266 = vmul.f32 %v250, %v264
  %v267 = vmul.f32 %v251, %v265
  %v268 = vld [vmem:[%s7] sm:$0x1]
  %v270 = vlaneseq
  %v271 = vshrl.u32 %v270, 7
  %v272 = vsub.s32 0, %v271
  %v273 = vrot.slane %v268, %v272
  %v275 = vmul.f32 %v266, %v273
  %v276 = vmul.f32 %v267, %v273
  %v277 = vld [vmem:[%s8] sm:$0x1]
  %v279 = vlaneseq
  %v280 = vshrl.u32 %v279, 7
  %v281 = vsub.s32 0, %v280
  %v282 = vrot.slane %v277, %v281
  %v284 = vadd.f32 %v275, %v282
  %v285 = vadd.f32 %v276, %v282
  %286 = vst.msk [vmem:[%s10] sm:$0xff] %vm61, %v284
  %287 = vst.msk [vmem:[%s10 + $0x8] sm:$0xff] %vm61, %v285
  // Predicated region
  $region38: #{intr_forward.32} parent=0 // pred_check
    _
  $region39: #{intr_forward.32} parent=0 // pred_check_branch
    %289 = sbr.rel (0) target = $region41
  $region40: #{intr_forward.32} parent=0 // pred_region
    _
  $region41: #{intr_forward.32} parent=0 // pred_fallthru
    _
  // Predicated region
  $region42: #{intr_forward.32} parent=0 // pred_check
    _
  $region43: #{intr_forward.32} parent=0 // pred_check_branch
    %291 = sbr.rel (0) target = $region45
  $region44: #{intr_forward.32} parent=0 // pred_region
    _
  $region45: #{intr_forward.32} parent=0 // pred_fallthru
    _
  // Predicated region
  $region46: #{intr_forward.32} parent=0 // pred_check
    _
  $region47: #{intr_forward.32} parent=0 // pred_check_branch
    %293 = sbr.rel (0) target = $region49
  $region48: #{intr_forward.32} parent=0 // pred_region
    _
  $region49: #{intr_forward.32} parent=0 // pred_fallthru
    _
  // Predicated region
  $region50: #{intr_forward.32} parent=0 // pred_check
    _
  $region51: #{intr_forward.32} parent=0 // pred_check_branch
    %295 = sbr.rel (0) target = $region53
  $region52: #{intr_forward.32} parent=0 // pred_region
    _
  $region53: #{intr_forward.32} parent=0 // pred_fallthru
    _

// kernel: intr_forward.31
$region0: #{intr_forward.31}
  #allocation0 [shape = 'u32[]', space=smem, size = 0x4, offset = 0x4, fixed_abs, tag = 'smem constant byte address 0x4 - core index']
  #allocation1 [shape = 'u32[144,128]{1,0:T(1,128)}', space=vmem, size = 0x12000, scoped, tag = 'internal scratch']
  %s0 = inlined_call_operand.vmem [shape: bf16[2,8,32], index: 0, kind: input, shape index: {}]
  %s1 = inlined_call_operand.vmem [shape: bf16[2,64,32], index: 1, kind: input, shape index: {}]
  %s2 = inlined_call_operand.vmem [shape: bf16[2,64,32], index: 2, kind: input, shape index: {}]
  %s3 = inlined_call_operand.vmem [shape: bf16[32,32], index: 3, kind: input, shape index: {}]
  %s4 = inlined_call_operand.vmem [shape: f32[1,32], index: 4, kind: input, shape index: {}]
  %s5 = inlined_call_operand.vmem [shape: f32[2,8,32], index: 5, kind: input, shape index: {}]
  %s6 = inlined_call_operand.vmem [shape: f32[1,32], index: 6, kind: input, shape index: {}]
  %s7 = inlined_call_operand.vmem [shape: f32[1,32], index: 7, kind: input, shape index: {}]
  %s8 = inlined_call_operand.vmem [shape: f32[2,8,32], index: 8, kind: output, shape index: {0}]
  %s9 = inlined_call_operand.vmem [shape: f32[2,4,8,64], index: 9, kind: output, shape index: {1}]
  %10 = xla_tuple %s8, %s9
  %s11 = sld [smem:[#allocation0]]
  $region73: #{intr_forward.31} parent=0
    _
  %s13 = ssub.s32 1, %s11
  %s14 = scalar_select 0, %s13, %s11
  loop: start=0, step=1, limit=4
  $region2: #{intr_forward.31} parent=0 // loop_pre_header
    _
  $region3: #{intr_forward.31} parent=0 // loop_header
    %s16 = sphi 0, %s20
    %p17 = scmp.ge.s32.totalorder %s16, 4
    %s23 = sphi 0, %s35
    %s24 = sphi 0, %s31
    %s25 = sphi 0, %s23
    %s26 = sphi 0, %s24
    %s27 = sphi 0, %s25
    %s28 = sphi 0, %s26
    %s40 = sphi 0, %s42
    %s43 = sphi 0, %s40
    %s44 = sphi 0, %s43
    %s60 = sphi 0, %s44
    %s66 = sphi 0, %s68
    %s69 = sphi 0, %s66
    %s70 = sphi 0, %s69
    %s86 = sphi 0, %s70
    %s92 = sphi 0, %s94
    %s95 = sphi 0, %s92
    %s96 = sphi 0, %s95
    %s112 = sphi 0, %s96
    %s116 = sphi 0, %s116
    %s118 = sphi 0, %s116
    %s119 = sphi 0, %s118
    %s133 = sphi 0, %s119
    %s137 = sphi 0, %s137
    %s139 = sphi 0, %s137
    %s140 = sphi 0, %s139
    %s154 = sphi 0, %s140
    %s162 = sphi 0, %s164
    %s165 = sphi 0, %s162
    %s166 = sphi 0, %s165
    %s182 = sphi 0, %s166
    %s186 = sphi 0, %s186
    %s188 = sphi 0, %s186
    %s189 = sphi 0, %s188
    %s203 = sphi 0, %s189
    %s207 = sphi 0, %s207
    %s209 = sphi 0, %s207
    %s210 = sphi 0, %s209
    %s224 = sphi 0, %s210
    %s232 = sphi 0, %s234
    %s235 = sphi 0, %s232
    %s236 = sphi 0, %s235
    %s252 = sphi 0, %s236
    %s260 = sphi 0, %s262
    %s263 = sphi 0, %s260
    %s264 = sphi 0, %s263
    %s280 = sphi 0, %s264
  $region4: #{intr_forward.31} parent=0 // loop_header_branch
    %19 = sbr.rel (%p17) target = $region8
  $region5: #{intr_forward.31} parent=0 // loop_body
    %s21 = ssub.s32 %s16, 1
    %s22 = ssub.s32 %s16, 2
    %s29 = sadd.s32 1, %s24
    %p30 = scmp.ge.s32.totalorder %s29, 1
    %s31 = scalar_select %p30, 0, %s29
    %s32 = sadd.s32 1, %s23
    %s33 = scalar_select %p30, %s32, %s23
    %p34 = scmp.ge.s32.totalorder %s33, 2
    %s35 = scalar_select %p34, 0, %s33
    %s36 = ssub.s32 %s23, %s35
    %s37 = ssub.s32 %s24, %s31
    %s38 = sor.u32 %s36, %s37
    %p39 = scmp.eq.s32.totalorder %s38, 0
    %s41 = sadd.s32 %s40, 1
    %s42 = scalar_select %p39, %s40, %s41
    %p45 = pneg %p39
    %p46 = scmp.eq.s32.totalorder %s16, 1
    %p47 = por %p45, %p46
    %p48 = scmp.ne.s32.totalorder %s40, %s43
    %p49 = scmp.eq.s32.totalorder %s16, 0
    %p50 = por %p48, %p49
    %p51 = scmp.ne.s32.totalorder %s40, %s43
    %p52 = scmp.eq.s32.totalorder %s21, 1
    %p53 = por %p51, %p52
    %p54 = scmp.ne.s32.totalorder %s43, %s44
    %p55 = scmp.eq.s32.totalorder %s21, 0
    %p56 = por %p54, %p55
    %p57 = scmp.ne.s32.totalorder %s43, %s44
    %p58 = scmp.eq.s32.totalorder %s22, 1
    %p59 = por %p57, %p58
    %p61 = scmp.ne.s32.totalorder %s44, %s60
    %p62 = scmp.eq.s32.totalorder %s22, 0
    %p63 = por %p61, %p62
    %s64 = ssub.s32 %s23, %s35
    %p65 = scmp.eq.s32.totalorder %s64, 0
    %s67 = sadd.s32 %s66, 1
    %s68 = scalar_select %p65, %s66, %s67
    %p71 = pneg %p65
    %p72 = scmp.eq.s32.totalorder %s16, 1
    %p73 = por %p71, %p72
    %p74 = scmp.ne.s32.totalorder %s66, %s69
    %p75 = scmp.eq.s32.totalorder %s16, 0
    %p76 = por %p74, %p75
    %p77 = scmp.ne.s32.totalorder %s66, %s69
    %p78 = scmp.eq.s32.totalorder %s21, 1
    %p79 = por %p77, %p78
    %p80 = scmp.ne.s32.totalorder %s69, %s70
    %p81 = scmp.eq.s32.totalorder %s21, 0
    %p82 = por %p80, %p81
    %p83 = scmp.ne.s32.totalorder %s69, %s70
    %p84 = scmp.eq.s32.totalorder %s22, 1
    %p85 = por %p83, %p84
    %p87 = scmp.ne.s32.totalorder %s70, %s86
    %p88 = scmp.eq.s32.totalorder %s22, 0
    %p89 = por %p87, %p88
    %s90 = ssub.s32 %s23, %s35
    %p91 = scmp.eq.s32.totalorder %s90, 0
    %s93 = sadd.s32 %s92, 1
    %s94 = scalar_select %p91, %s92, %s93
    %p97 = pneg %p91
    %p98 = scmp.eq.s32.totalorder %s16, 1
    %p99 = por %p97, %p98
    %p100 = scmp.ne.s32.totalorder %s92, %s95
    %p101 = scmp.eq.s32.totalorder %s16, 0
    %p102 = por %p100, %p101
    %p103 = scmp.ne.s32.totalorder %s92, %s95
    %p104 = scmp.eq.s32.totalorder %s21, 1
    %p105 = por %p103, %p104
    %p106 = scmp.ne.s32.totalorder %s95, %s96
    %p107 = scmp.eq.s32.totalorder %s21, 0
    %p108 = por %p106, %p107
    %p109 = scmp.ne.s32.totalorder %s95, %s96
    %p110 = scmp.eq.s32.totalorder %s22, 1
    %p111 = por %p109, %p110
    %p113 = scmp.ne.s32.totalorder %s96, %s112
    %p114 = scmp.eq.s32.totalorder %s22, 0
    %p115 = por %p113, %p114
    %s117 = sadd.s32 %s116, 1
    %p120 = scmp.eq.s32.totalorder %s16, 1
    %p121 = scmp.ne.s32.totalorder %s116, %s118
    %p122 = scmp.eq.s32.totalorder %s16, 0
    %p123 = por %p121, %p122
    %p124 = scmp.ne.s32.totalorder %s116, %s118
    %p125 = scmp.eq.s32.totalorder %s21, 1
    %p126 = por %p124, %p125
    %p127 = scmp.ne.s32.totalorder %s118, %s119
    %p128 = scmp.eq.s32.totalorder %s21, 0
    %p129 = por %p127, %p128
    %p130 = scmp.ne.s32.totalorder %s118, %s119
    %p131 = scmp.eq.s32.totalorder %s22, 1
    %p132 = por %p130, %p131
    %p134 = scmp.ne.s32.totalorder %s119, %s133
    %p135 = scmp.eq.s32.totalorder %s22, 0
    %p136 = por %p134, %p135
    %s138 = sadd.s32 %s137, 1
    %p141 = scmp.eq.s32.totalorder %s16, 1
    %p142 = scmp.ne.s32.totalorder %s137, %s139
    %p143 = scmp.eq.s32.totalorder %s16, 0
    %p144 = por %p142, %p143
    %p145 = scmp.ne.s32.totalorder %s137, %s139
    %p146 = scmp.eq.s32.totalorder %s21, 1
    %p147 = por %p145, %p146
    %p148 = scmp.ne.s32.totalorder %s139, %s140
    %p149 = scmp.eq.s32.totalorder %s21, 0
    %p150 = por %p148, %p149
    %p151 = scmp.ne.s32.totalorder %s139, %s140
    %p152 = scmp.eq.s32.totalorder %s22, 1
    %p153 = por %p151, %p152
    %p155 = scmp.ne.s32.totalorder %s140, %s154
    %p156 = scmp.eq.s32.totalorder %s22, 0
    %p157 = por %p155, %p156
    %s158 = ssub.s32 %s23, %s35
    %s159 = ssub.s32 %s24, %s31
    %s160 = sor.u32 %s158, %s159
    %p161 = scmp.eq.s32.totalorder %s160, 0
    %s163 = sadd.s32 %s162, 1
    %s164 = scalar_select %p161, %s162, %s163
    %p167 = pneg %p161
    %p168 = scmp.eq.s32.totalorder %s16, 1
    %p169 = por %p167, %p168
    %p170 = scmp.ne.s32.totalorder %s162, %s165
    %p171 = scmp.eq.s32.totalorder %s16, 0
    %p172 = por %p170, %p171
    %p173 = scmp.ne.s32.totalorder %s162, %s165
    %p174 = scmp.eq.s32.totalorder %s21, 1
    %p175 = por %p173, %p174
    %p176 = scmp.ne.s32.totalorder %s165, %s166
    %p177 = scmp.eq.s32.totalorder %s21, 0
    %p178 = por %p176, %p177
    %p179 = scmp.ne.s32.totalorder %s165, %s166
    %p180 = scmp.eq.s32.totalorder %s22, 1
    %p181 = por %p179, %p180
    %p183 = scmp.ne.s32.totalorder %s166, %s182
    %p184 = scmp.eq.s32.totalorder %s22, 0
    %p185 = por %p183, %p184
    %s187 = sadd.s32 %s186, 1
    %p190 = scmp.eq.s32.totalorder %s16, 1
    %p191 = scmp.ne.s32.totalorder %s186, %s188
    %p192 = scmp.eq.s32.totalorder %s16, 0
    %p193 = por %p191, %p192
    %p194 = scmp.ne.s32.totalorder %s186, %s188
    %p195 = scmp.eq.s32.totalorder %s21, 1
    %p196 = por %p194, %p195
    %p197 = scmp.ne.s32.totalorder %s188, %s189
    %p198 = scmp.eq.s32.totalorder %s21, 0
    %p199 = por %p197, %p198
    %p200 = scmp.ne.s32.totalorder %s188, %s189
    %p201 = scmp.eq.s32.totalorder %s22, 1
    %p202 = por %p200, %p201
    %p204 = scmp.ne.s32.totalorder %s189, %s203
    %p205 = scmp.eq.s32.totalorder %s22, 0
    %p206 = por %p204, %p205
    %s208 = sadd.s32 %s207, 1
    %p211 = scmp.eq.s32.totalorder %s16, 1
    %p212 = scmp.ne.s32.totalorder %s207, %s209
    %p213 = scmp.eq.s32.totalorder %s16, 0
    %p214 = por %p212, %p213
    %p215 = scmp.ne.s32.totalorder %s207, %s209
    %p216 = scmp.eq.s32.totalorder %s21, 1
    %p217 = por %p215, %p216
    %p218 = scmp.ne.s32.totalorder %s209, %s210
    %p219 = scmp.eq.s32.totalorder %s21, 0
    %p220 = por %p218, %p219
    %p221 = scmp.ne.s32.totalorder %s209, %s210
    %p222 = scmp.eq.s32.totalorder %s22, 1
    %p223 = por %p221, %p222
    %p225 = scmp.ne.s32.totalorder %s210, %s224
    %p226 = scmp.eq.s32.totalorder %s22, 0
    %p227 = por %p225, %p226
    %s228 = ssub.s32 %s23, %s35
    %s229 = ssub.s32 %s24, %s31
    %s230 = sor.u32 %s228, %s229
    %p231 = scmp.eq.s32.totalorder %s230, 0
    %s233 = sadd.s32 %s232, 1
    %s234 = scalar_select %p231, %s232, %s233
    %p237 = pneg %p231
    %p238 = scmp.eq.s32.totalorder %s16, 1
    %p239 = por %p237, %p238
    %p240 = scmp.ne.s32.totalorder %s232, %s235
    %p241 = scmp.eq.s32.totalorder %s16, 0
    %p242 = por %p240, %p241
    %p243 = scmp.ne.s32.totalorder %s232, %s235
    %p244 = scmp.eq.s32.totalorder %s21, 1
    %p245 = por %p243, %p244
    %p246 = scmp.ne.s32.totalorder %s235, %s236
    %p247 = scmp.eq.s32.totalorder %s21, 0
    %p248 = por %p246, %p247
    %p249 = scmp.ne.s32.totalorder %s235, %s236
    %p250 = scmp.eq.s32.totalorder %s22, 1
    %p251 = por %p249, %p250
    %p253 = scmp.ne.s32.totalorder %s236, %s252
    %p254 = scmp.eq.s32.totalorder %s22, 0
    %p255 = por %p253, %p254
    %s256 = ssub.s32 %s23, %s35
    %s257 = ssub.s32 %s24, %s31
    %s258 = sor.u32 %s256, %s257
    %p259 = scmp.eq.s32.totalorder %s258, 0
    %s261 = sadd.s32 %s260, 1
    %s262 = scalar_select %p259, %s260, %s261
    %p265 = pneg %p259
    %p266 = scmp.eq.s32.totalorder %s16, 1
    %p267 = por %p265, %p266
    %p268 = scmp.ne.s32.totalorder %s260, %s263
    %p269 = scmp.eq.s32.totalorder %s16, 0
    %p270 = por %p268, %p269
    %p271 = scmp.ne.s32.totalorder %s260, %s263
    %p272 = scmp.eq.s32.totalorder %s21, 1
    %p273 = por %p271, %p272
    %p274 = scmp.ne.s32.totalorder %s263, %s264
    %p275 = scmp.eq.s32.totalorder %s21, 0
    %p276 = por %p274, %p275
    %p277 = scmp.ne.s32.totalorder %s263, %s264
    %p278 = scmp.eq.s32.totalorder %s22, 1
    %p279 = por %p277, %p278
    %p281 = scmp.ne.s32.totalorder %s264, %s280
    %p282 = scmp.eq.s32.totalorder %s22, 0
    %p283 = por %p281, %p282
    %p284 = scmp.le.s32.totalorder 1, %s16
    %p285 = scmp.lt.s32.totalorder %s16, 3
    %p286 = pnand %p284, %p285
    %p287 = pneg %p286
    // Predicated region
    $region9: #{intr_forward.31} parent=5 // pred_check
      _
    $region10: #{intr_forward.31} parent=5 // pred_check_branch
      %289 = sbr.rel (%p286) target = $region12
    $region11: #{intr_forward.31} parent=5 // pred_region
      %s290 = ssub.s32 %s16, 1
      // Predicated region
      $region13: #{intr_forward.31} parent=11 // pred_check
        %p291 = pneg %p129
      $region14: #{intr_forward.31} parent=11 // pred_check_branch
        %293 = sbr.rel (%p291) target = $region16
      $region15: #{intr_forward.31} parent=11 // pred_region
        _
      $region16: #{intr_forward.31} parent=11 // pred_fallthru
        _
      // Predicated region
      $region17: #{intr_forward.31} parent=11 // pred_check
        %p294 = pneg %p150
      $region18: #{intr_forward.31} parent=11 // pred_check_branch
        %296 = sbr.rel (%p294) target = $region20
      $region19: #{intr_forward.31} parent=11 // pred_region
        _
      $region20: #{intr_forward.31} parent=11 // pred_fallthru
        _
      // Predicated region
      $region21: #{intr_forward.31} parent=11 // pred_check
        %p297 = pneg %p199
      $region22: #{intr_forward.31} parent=11 // pred_check_branch
        %299 = sbr.rel (%p297) target = $region24
      $region23: #{intr_forward.31} parent=11 // pred_region
        _
      $region24: #{intr_forward.31} parent=11 // pred_fallthru
        _
      // Predicated region
      $region25: #{intr_forward.31} parent=11 // pred_check
        %p300 = pneg %p220
      $region26: #{intr_forward.31} parent=11 // pred_check_branch
        %302 = sbr.rel (%p300) target = $region28
      $region27: #{intr_forward.31} parent=11 // pred_region
        _
      $region28: #{intr_forward.31} parent=11 // pred_fallthru
        _
    $region12: #{intr_forward.31} parent=5 // pred_fallthru
      _
    %p303 = scmp.lt.s32.totalorder %s16, 2
    // Predicated region
    $region29: #{intr_forward.31} parent=5 // pred_check
      %p304 = pneg %p303
    $region30: #{intr_forward.31} parent=5 // pred_check_branch
      %306 = sbr.rel (%p304) target = $region32
    $region31: #{intr_forward.31} parent=5 // pred_region
      // Predicated region
      $region33: #{intr_forward.31} parent=31 // pred_check
        %p307 = pneg %p50
      $region34: #{intr_forward.31} parent=31 // pred_check_branch
        %309 = sbr.rel (%p307) target = $region36
      $region35: #{intr_forward.31} parent=31 // pred_region
        %p310 = scmp.lt.s32.totalorder %s23, 1
        %s311 = scalar_select %p310, %s23, 1
        %p312 = scmp.lt.s32.totalorder %s24, 0
        %s313 = scalar_select %p312, %s24, 0
        %s314 = sadd.s32 %s313, %s311
        %s315 = smul.addr %s314, 4
        %s316 = scalar_lea.vmem %s0, %s315
      $region36: #{intr_forward.31} parent=31 // pred_fallthru
        _
      // Predicated region
      $region37: #{intr_forward.31} parent=31 // pred_check
        %p317 = pneg %p76
      $region38: #{intr_forward.31} parent=31 // pred_check_branch
        %319 = sbr.rel (%p317) target = $region40
      $region39: #{intr_forward.31} parent=31 // pred_region
        %p320 = scmp.lt.s32.totalorder %s23, 1
        %s321 = scalar_select %p320, %s23, 1
        %s322 = smul.addr %s321, 8
        %s323 = smul.addr %s322, 4
        %s324 = scalar_lea.vmem %s1, %s323
      $region40: #{intr_forward.31} parent=31 // pred_fallthru
        _
      // Predicated region
      $region41: #{intr_forward.31} parent=31 // pred_check
        %p325 = pneg %p102
      $region42: #{intr_forward.31} parent=31 // pred_check_branch
        %327 = sbr.rel (%p325) target = $region44
      $region43: #{intr_forward.31} parent=31 // pred_region
        %p328 = scmp.lt.s32.totalorder %s23, 1
        %s329 = scalar_select %p328, %s23, 1
        %s330 = smul.addr %s329, 8
        %s331 = smul.addr %s330, 4
        %s332 = scalar_lea.vmem %s2, %s331
      $region44: #{intr_forward.31} parent=31 // pred_fallthru
        _
      // Predicated region
      $region45: #{intr_forward.31} parent=31 // pred_check
        %p333 = pneg %p172
      $region46: #{intr_forward.31} parent=31 // pred_check_branch
        %335 = sbr.rel (%p333) target = $region48
      $region47: #{intr_forward.31} parent=31 // pred_region
        %p336 = scmp.lt.s32.totalorder %s23, 1
        %s337 = scalar_select %p336, %s23, 1
        %p338 = scmp.lt.s32.totalorder %s24, 0
        %s339 = scalar_select %p338, %s24, 0
        %s340 = sadd.s32 %s339, %s337
        %s341 = smul.addr %s340, 8
        %s342 = scalar_lea.vmem %s5, %s341
      $region48: #{intr_forward.31} parent=31 // pred_fallthru
        _
    $region32: #{intr_forward.31} parent=5 // pred_fallthru
      _
    %p343 = scmp.le.s32.totalorder 1, %s16
    %p344 = scmp.lt.s32.totalorder %s16, 3
    %p345 = pnand %p343, %p344
    %p346 = pneg %p345
    // Predicated region
    $region49: #{intr_forward.31} parent=5 // pred_check
      _
    $region50: #{intr_forward.31} parent=5 // pred_check_branch
      %348 = sbr.rel (%p345) target = $region52
    $region51: #{intr_forward.31} parent=5 // pred_region
      %s349 = ssub.s32 %s16, 1
      %p350 = scmp.lt.s32.totalorder %s25, 1
      %s351 = scalar_select %p350, %s25, 1
      %p352 = scmp.lt.s32.totalorder %s26, 0
      %s353 = scalar_select %p352, %s26, 0
      %s354 = sadd.s32 %s353, %s351
      %s355 = smul.addr %s354, 4
      %s356 = scalar_lea.vmem %s0, %s355
      %p357 = pneg %p56
      %p358 = pneg %p53
      %p359 = scmp.lt.s32.totalorder %s25, 1
      %s360 = scalar_select %p359, %s25, 1
      %s361 = smul.addr %s360, 8
      %s362 = smul.addr %s361, 4
      %s363 = scalar_lea.vmem %s1, %s362
      %p364 = pneg %p82
      %p365 = pneg %p79
      %p366 = scmp.lt.s32.totalorder %s25, 1
      %s367 = scalar_select %p366, %s25, 1
      %s368 = smul.addr %s367, 8
      %s369 = smul.addr %s368, 4
      %s370 = scalar_lea.vmem %s2, %s369
      %p371 = pneg %p108
      %p372 = pneg %p105
      %p373 = pneg %p129
      %p374 = pneg %p126
      %p375 = pneg %p150
      %p376 = pneg %p147
      %p377 = scmp.lt.s32.totalorder %s25, 1
      %s378 = scalar_select %p377, %s25, 1
      %p379 = scmp.lt.s32.totalorder %s26, 0
      %s380 = scalar_select %p379, %s26, 0
      %s381 = sadd.s32 %s380, %s378
      %s382 = smul.addr %s381, 8
      %s383 = scalar_lea.vmem %s5, %s382
      %p384 = pneg %p178
      %p385 = pneg %p175
      %p386 = pneg %p199
      %p387 = pneg %p196
      %p388 = pneg %p220
      %p389 = pneg %p217
      %p390 = pneg %p248
      %p391 = pneg %p245
      %p392 = scmp.lt.s32.totalorder %s25, 1
      %s393 = scalar_select %p392, %s25, 1
      %p394 = scmp.lt.s32.totalorder %s26, 0
      %s395 = scalar_select %p394, %s26, 0
      %s396 = sadd.s32 %s395, %s393
      %s397 = smul.addr %s396, 8
      %s398 = scalar_lea.vmem %s8, %s397
      %p399 = pneg %p276
      %p400 = pneg %p273
      %p401 = scmp.lt.s32.totalorder %s25, 1
      %s402 = scalar_select %p401, %s25, 1
      %p403 = scmp.lt.s32.totalorder %s26, 0
      %s404 = scalar_select %p403, %s26, 0
      %s405 = smul.addr %s402, 4
      %s406 = sadd.s32 %s404, %s405
      %s407 = smul.addr %s406, 8
      %s408 = scalar_lea.vmem %s9, %s407
      %p409 = scmp.lt.s32.totalorder %s25, 1
      %s410 = scalar_select %p409, %s25, 1
      %p411 = scmp.lt.s32.totalorder %s26, 0
      %s412 = scalar_select %p411, %s26, 0
      %s413 = sadd.s32 %s412, %s410
      %s414 = smul.addr %s413, 4
      %s415 = scalar_lea.vmem %s0, %s414
      %p416 = scmp.lt.s32.totalorder %s25, 1
      %s417 = scalar_select %p416, %s25, 1
      %s418 = smul.addr %s417, 8
      %s419 = smul.addr %s418, 4
      %s420 = scalar_lea.vmem %s1, %s419
      %p421 = scmp.lt.s32.totalorder %s25, 1
      %s422 = scalar_select %p421, %s25, 1
      %s423 = smul.addr %s422, 8
      %s424 = smul.addr %s423, 4
      %s425 = scalar_lea.vmem %s2, %s424
      %p426 = scmp.lt.s32.totalorder %s25, 1
      %s427 = scalar_select %p426, %s25, 1
      %p428 = scmp.lt.s32.totalorder %s26, 0
      %s429 = scalar_select %p428, %s26, 0
      %s430 = sadd.s32 %s429, %s427
      %s431 = smul.addr %s430, 8
      %s432 = scalar_lea.vmem %s5, %s431
      %p433 = scmp.lt.s32.totalorder %s25, 1
      %s434 = scalar_select %p433, %s25, 1
      %p435 = scmp.lt.s32.totalorder %s26, 0
      %s436 = scalar_select %p435, %s26, 0
      %s437 = sadd.s32 %s436, %s434
      %s438 = smul.addr %s437, 8
      %s439 = scalar_lea.vmem %s8, %s438
      %p440 = scmp.lt.s32.totalorder %s25, 1
      %s441 = scalar_select %p440, %s25, 1
      %p442 = scmp.lt.s32.totalorder %s26, 0
      %s443 = scalar_select %p442, %s26, 0
      %s444 = smul.addr %s441, 4
      %s445 = sadd.s32 %s443, %s444
      %s446 = smul.addr %s445, 8
      %s447 = scalar_lea.vmem %s9, %s446
      %v449 = vld [vmem:[%s415] sm:$0xf]
      %v450 = vld [vmem:[%s420] sm:$0xf]
      %v451 = vld [vmem:[%s420 + $0x4] sm:$0xf]
      %v452 = vld [vmem:[%s420 + $0x8] sm:$0xf]
      %v453 = vld [vmem:[%s420 + $0xc] sm:$0xf]
      %v454 = vld [vmem:[%s420 + $0x10] sm:$0xf]
      %v455 = vld [vmem:[%s420 + $0x14] sm:$0xf]
      %v456 = vld [vmem:[%s420 + $0x18] sm:$0xf]
      %v457 = vld [vmem:[%s420 + $0x1c] sm:$0xf]
      %v458 = vld [vmem:[%s425] sm:$0xf]
      %v459 = vld [vmem:[%s425 + $0x4] sm:$0xf]
      %v460 = vld [vmem:[%s425 + $0x8] sm:$0xf]
      %v461 = vld [vmem:[%s425 + $0xc] sm:$0xf]
      %v462 = vld [vmem:[%s425 + $0x10] sm:$0xf]
      %v463 = vld [vmem:[%s425 + $0x14] sm:$0xf]
      %v464 = vld [vmem:[%s425 + $0x18] sm:$0xf]
      %v465 = vld [vmem:[%s425 + $0x1c] sm:$0xf]
      %v474 = vunpack.c.l.b16 %v450
      %v475 = vunpack.c.l.b16 %v451
      %v476 = vunpack.c.l.b16 %v452
      %v477 = vunpack.c.l.b16 %v453
      %v478 = vunpack.c.l.b16 %v454
      %v479 = vunpack.c.l.b16 %v455
      %v480 = vunpack.c.l.b16 %v456
      %v481 = vunpack.c.l.b16 %v457
      %v482 = vpack.c.b16 %v475, %v474
      %v483 = vpack.c.b16 %v477, %v476
      %v484 = vpack.c.b16 %v479, %v478
      %v485 = vpack.c.b16 %v481, %v480
      %vm486 = vcmask 64512
      %v488 = vsel %vm486, %v449, 0
      %v491 = vsel %vm486, %v482, 0
      %v494 = vsel %vm486, %v483, 0
      %v497 = vsel %vm486, %v484, 0
      %v500 = vsel %vm486, %v485, 0
      %502 = vmatprep.subr.bf16.mxu0 0
      %503 = vmatpush1.bf16.xpose.msra.mxu0 0
      %504 = vmatprep.subr.bf16.mxu0 0
      %505 = vmatpush1.bf16.xpose.msra.mxu0 0
      %506 = vmatprep.subr.bf16.mxu0 0
      %507 = vmatpush1.bf16.xpose.msra.mxu0 0
      %508 = vmatprep.subr.bf16.mxu0 0
      %509 = vmatpush1.bf16.xpose.msra.mxu0 0
      %510 = vmatprep.subr.bf16.mxu0 0
      %511 = vmatpush1.bf16.xpose.msra.mxu0 %v500
      %512 = vmatprep.subr.bf16.mxu0 0
      %513 = vmatpush1.bf16.xpose.msra.mxu0 %v497
      %514 = vmatprep.subr.bf16.mxu0 0
      %515 = vmatpush1.bf16.xpose.msra.mxu0 %v494
      %516 = vmatprep.subr.bf16.mxu0 0
      %517 = vmatpush1.bf16.xpose.msra.mxu0 %v491
      %518 = vmatprep.subr.bf16.mxu0 0
      %519 = vmatpush2.bf16.xpose.msra.mxu0 0
      %520 = vmatprep.subr.bf16.mxu0 0
      %521 = vmatpush2.bf16.xpose.msra.mxu0 0
      %522 = vmatprep.subr.bf16.mxu0 0
      %523 = vmatpush2.bf16.xpose.msra.mxu0 0
      %524 = vmatprep.subr.bf16.mxu0 0
      %525 = vmatpush2.bf16.xpose.msra.mxu0 0
      %526 = vmatprep.subr.bf16.mxu0 0
      %527 = vmatpush2.bf16.xpose.msra.mxu0 0
      %528 = vmatprep.subr.bf16.mxu0 0
      %529 = vmatpush2.bf16.xpose.msra.mxu0 0
      %530 = vmatprep.subr.bf16.mxu0 0
      %531 = vmatpush2.bf16.xpose.msra.mxu0 0
      %532 = vmatprep.subr.bf16.mxu0 0
      %533 = vmatpush2.bf16.xpose.msra.mxu0 0
      %534 = vmatprep.mubr.bf16.mxu0 0
      %535 = vmatmul.mubr.bf16.gmra.mxu0 %v488
      %v536 = vpop.f32.mrf.mxu0
      %v537 = vadd.f32 0.0, %v536
      %v538 = vpop.f32.mrf.mxu0
      %v539 = vpop.f32.mrf.mxu0
      %v540 = vpop.f32.mrf.mxu0
      %541 = vdwg.mxu0
      %vm542 = vcmask 523264
      %v543 = vsel %vm542, %v537, -inf
      %544 = vmax.xlane.f32.xlu0 %v543
      %v545 = vpop.xlane.xlu0 %544
      %v546 = vsub.f32 %v537, %v545
      %v547 = vmul.f32 %v546, 1.442695
      %v548 = vpow.pop %v547
      %v549 = vsel %vm542, %v548, 0.0
      %550 = vadd.xlane.f32.xlu0 %v549
      %v551 = vpop.xlane.xlu0 %550
      %v552 = vrcp.pop %v551
      %v553 = vmul.f32 %v548, %v552
      %554 = vst.msk [vmem:[%s447] sm:$0xff] %vm542, %v553
      %v555 = vpack.c.bf16 %v553, %v553
      %v564 = vunpack.c.l.b16 %v458
      %v565 = vunpack.c.l.b16 %v459
      %v566 = vunpack.c.l.b16 %v460
      %v567 = vunpack.c.l.b16 %v461
      %v568 = vunpack.c.l.b16 %v462
      %v569 = vunpack.c.l.b16 %v463
      %v570 = vunpack.c.l.b16 %v464
      %v571 = vunpack.c.l.b16 %v465
      %v572 = vpack.c.b16 %v565, %v564
      %v573 = vpack.c.b16 %v567, %v566
      %v574 = vpack.c.b16 %v569, %v568
      %v575 = vpack.c.b16 %v571, %v570
      %v581 = vsel %vm542, %v555, 0
      %583 = vmatprep.subr.bf16.mxu0 0
      %584 = vmatpush1.bf16.msra.mxu0 0
      %585 = vmatprep.subr.bf16.mxu0 0
      %586 = vmatpush1.bf16.msra.mxu0 0
      %587 = vmatprep.subr.bf16.mxu0 0
      %588 = vmatpush1.bf16.msra.mxu0 0
      %589 = vmatprep.subr.bf16.mxu0 0
      %590 = vmatpush1.bf16.msra.mxu0 0
      %591 = vmatprep.subr.bf16.mxu0 0
      %592 = vmatpush1.bf16.msra.mxu0 %v575
      %593 = vmatprep.subr.bf16.mxu0 0
      %594 = vmatpush1.bf16.msra.mxu0 %v574
      %595 = vmatprep.subr.bf16.mxu0 0
      %596 = vmatpush1.bf16.msra.mxu0 %v573
      %597 = vmatprep.subr.bf16.mxu0 0
      %598 = vmatpush1.bf16.msra.mxu0 %v572
      %599 = vmatprep.subr.bf16.mxu0 0
      %600 = vmatpush2.bf16.msra.mxu0 0
      %601 = vmatprep.subr.bf16.mxu0 0
      %602 = vmatpush2.bf16.msra.mxu0 0
      %603 = vmatprep.subr.bf16.mxu0 0
      %604 = vmatpush2.bf16.msra.mxu0 0
      %605 = vmatprep.subr.bf16.mxu0 0
      %606 = vmatpush2.bf16.msra.mxu0 0
      %607 = vmatprep.subr.bf16.mxu0 0
      %608 = vmatpush2.bf16.msra.mxu0 0
      %609 = vmatprep.subr.bf16.mxu0 0
      %610 = vmatpush2.bf16.msra.mxu0 0
      %611 = vmatprep.subr.bf16.mxu0 0
      %612 = vmatpush2.bf16.msra.mxu0 0
      %613 = vmatprep.subr.bf16.mxu0 0
      %614 = vmatpush2.bf16.msra.mxu0 0
      %615 = vmatprep.mubr.bf16.mxu0 0
      %616 = vmatmul.mubr.bf16.gmra.mxu0 %v581
      %v617 = vpop.f32.mrf.mxu0
      %v618 = vadd.f32 0.0, %v617
      %v619 = vpop.f32.mrf.mxu0
      %v620 = vpop.f32.mrf.mxu0
      %v621 = vpop.f32.mrf.mxu0
      %622 = vdwg.mxu0
      %v624 = vunpack.c.l.b16 %v449
      %v625 = vpack.c.b16 %v624, %v624
      %626 = vrot.lane.b32.xlu0 %v625, 120
      %v627 = vpop.permute.xlu0 %626
      %628 = vrot.lane.b32.xlu0 %v482, 120
      %v629 = vpop.permute.xlu0 %628
      %630 = vrot.lane.b32.xlu0 %v483, 120
      %v631 = vpop.permute.xlu0 %630
      %632 = vrot.lane.b32.xlu0 %v484, 120
      %v633 = vpop.permute.xlu0 %632
      %634 = vrot.lane.b32.xlu0 %v485, 120
      %v635 = vpop.permute.xlu0 %634
      %v637 = vsel %vm486, %v627, 0
      %v640 = vsel %vm486, %v629, 0
      %v643 = vsel %vm486, %v631, 0
      %v646 = vsel %vm486, %v633, 0
      %v649 = vsel %vm486, %v635, 0
      %651 = vmatprep.subr.bf16.mxu0 0
      %652 = vmatpush1.bf16.xpose.msra.mxu0 0
      %653 = vmatprep.subr.bf16.mxu0 0
      %654 = vmatpush1.bf16.xpose.msra.mxu0 0
      %655 = vmatprep.subr.bf16.mxu0 0
      %656 = vmatpush1.bf16.xpose.msra.mxu0 0
      %657 = vmatprep.subr.bf16.mxu0 0
      %658 = vmatpush1.bf16.xpose.msra.mxu0 0
      %659 = vmatprep.subr.bf16.mxu0 0
      %660 = vmatpush1.bf16.xpose.msra.mxu0 %v649
      %661 = vmatprep.subr.bf16.mxu0 0
      %662 = vmatpush1.bf16.xpose.msra.mxu0 %v646
      %663 = vmatprep.subr.bf16.mxu0 0
      %664 = vmatpush1.bf16.xpose.msra.mxu0 %v643
      %665 = vmatprep.subr.bf16.mxu0 0
      %666 = vmatpush1.bf16.xpose.msra.mxu0 %v640
      %667 = vmatprep.subr.bf16.mxu0 0
      %668 = vmatpush2.bf16.xpose.msra.mxu0 0
      %669 = vmatprep.subr.bf16.mxu0 0
      %670 = vmatpush2.bf16.xpose.msra.mxu0 0
      %671 = vmatprep.subr.bf16.mxu0 0
      %672 = vmatpush2.bf16.xpose.msra.mxu0 0
      %673 = vmatprep.subr.bf16.mxu0 0
      %674 = vmatpush2.bf16.xpose.msra.mxu0 0
      %675 = vmatprep.subr.bf16.mxu0 0
      %676 = vmatpush2.bf16.xpose.msra.mxu0 0
      %677 = vmatprep.subr.bf16.mxu0 0
      %678 = vmatpush2.bf16.xpose.msra.mxu0 0
      %679 = vmatprep.subr.bf16.mxu0 0
      %680 = vmatpush2.bf16.xpose.msra.mxu0 0
      %681 = vmatprep.subr.bf16.mxu0 0
      %682 = vmatpush2.bf16.xpose.msra.mxu0 0
      %683 = vmatprep.mubr.bf16.mxu0 0
      %684 = vmatmul.mubr.bf16.gmra.mxu0 %v637
      %v685 = vpop.f32.mrf.mxu0
      %v686 = vadd.f32 0.0, %v685
      %v687 = vpop.f32.mrf.mxu0
      %v688 = vpop.f32.mrf.mxu0
      %v689 = vpop.f32.mrf.mxu0
      %690 = vdwg.mxu0
      %v691 = vsel %vm542, %v686, -inf
      %692 = vmax.xlane.f32.xlu0 %v691
      %v693 = vpop.xlane.xlu0 %692
      %v694 = vsub.f32 %v686, %v693
      %v695 = vmul.f32 %v694, 1.442695
      %v696 = vpow.pop %v695
      %v697 = vsel %vm542, %v696, 0.0
      %698 = vadd.xlane.f32.xlu0 %v697
      %v699 = vpop.xlane.xlu0 %698
      %v700 = vrcp.pop %v699
      %v701 = vmul.f32 %v696, %v700
      %s702 = scalar_lea.vmem %s447, 8
      %703 = vst.msk [vmem:[%s702] sm:$0xff] %vm542, %v701
      %v704 = vpack.c.bf16 %v701, %v701
      %705 = vrot.lane.b32.xlu0 %v572, 120
      %v706 = vpop.permute.xlu0 %705
      %707 = vrot.lane.b32.xlu0 %v573, 120
      %v708 = vpop.permute.xlu0 %707
      %709 = vrot.lane.b32.xlu0 %v574, 120
      %v710 = vpop.permute.xlu0 %709
      %711 = vrot.lane.b32.xlu0 %v575, 120
      %v712 = vpop.permute.xlu0 %711
      %v718 = vsel %vm542, %v704, 0
      %720 = vmatprep.subr.bf16.mxu0 0
      %721 = vmatpush1.bf16.msra.mxu0 0
      %722 = vmatprep.subr.bf16.mxu0 0
      %723 = vmatpush1.bf16.msra.mxu0 0
      %724 = vmatprep.subr.bf16.mxu0 0
      %725 = vmatpush1.bf16.msra.mxu0 0
      %726 = vmatprep.subr.bf16.mxu0 0
      %727 = vmatpush1.bf16.msra.mxu0 0
      %728 = vmatprep.subr.bf16.mxu0 0
      %729 = vmatpush1.bf16.msra.mxu0 %v712
      %730 = vmatprep.subr.bf16.mxu0 0
      %731 = vmatpush1.bf16.msra.mxu0 %v710
      %732 = vmatprep.subr.bf16.mxu0 0
      %733 = vmatpush1.bf16.msra.mxu0 %v708
      %734 = vmatprep.subr.bf16.mxu0 0
      %735 = vmatpush1.bf16.msra.mxu0 %v706
      %736 = vmatprep.subr.bf16.mxu0 0
      %737 = vmatpush2.bf16.msra.mxu0 0
      %738 = vmatprep.subr.bf16.mxu0 0
      %739 = vmatpush2.bf16.msra.mxu0 0
      %740 = vmatprep.subr.bf16.mxu0 0
      %741 = vmatpush2.bf16.msra.mxu0 0
      %742 = vmatprep.subr.bf16.mxu0 0
      %743 = vmatpush2.bf16.msra.mxu0 0
      %744 = vmatprep.subr.bf16.mxu0 0
      %745 = vmatpush2.bf16.msra.mxu0 0
      %746 = vmatprep.subr.bf16.mxu0 0
      %747 = vmatpush2.bf16.msra.mxu0 0
      %748 = vmatprep.subr.bf16.mxu0 0
      %749 = vmatpush2.bf16.msra.mxu0 0
      %750 = vmatprep.subr.bf16.mxu0 0
      %751 = vmatpush2.bf16.msra.mxu0 0
      %752 = vmatprep.mubr.bf16.mxu0 0
      %753 = vmatmul.mubr.bf16.gmra.mxu0 %v718
      %v754 = vpop.f32.mrf.mxu0
      %v755 = vadd.f32 0.0, %v754
      %v756 = vpop.f32.mrf.mxu0
      %v757 = vpop.f32.mrf.mxu0
      %v758 = vpop.f32.mrf.mxu0
      %759 = vdwg.mxu0
      %760 = vrot.lane.b32.xlu0 %v625, 112
      %v761 = vpop.permute.xlu0 %760
      %762 = vrot.lane.b32.xlu0 %v482, 112
      %v763 = vpop.permute.xlu0 %762
      %764 = vrot.lane.b32.xlu0 %v483, 112
      %v765 = vpop.permute.xlu0 %764
      %766 = vrot.lane.b32.xlu0 %v484, 112
      %v767 = vpop.permute.xlu0 %766
      %768 = vrot.lane.b32.xlu0 %v485, 112
      %v769 = vpop.permute.xlu0 %768
      %v771 = vsel %vm486, %v761, 0
      %v774 = vsel %vm486, %v763, 0
      %v777 = vsel %vm486, %v765, 0
      %v780 = vsel %vm486, %v767, 0
      %v783 = vsel %vm486, %v769, 0
      %785 = vmatprep.subr.bf16.mxu0 0
      %786 = vmatpush1.bf16.xpose.msra.mxu0 0
      %787 = vmatprep.subr.bf16.mxu0 0
      %788 = vmatpush1.bf16.xpose.msra.mxu0 0
      %789 = vmatprep.subr.bf16.mxu0 0
      %790 = vmatpush1.bf16.xpose.msra.mxu0 0
      %791 = vmatprep.subr.bf16.mxu0 0
      %792 = vmatpush1.bf16.xpose.msra.mxu0 0
      %793 = vmatprep.subr.bf16.mxu0 0
      %794 = vmatpush1.bf16.xpose.msra.mxu0 %v783
      %795 = vmatprep.subr.bf16.mxu0 0
      %796 = vmatpush1.bf16.xpose.msra.mxu0 %v780
      %797 = vmatprep.subr.bf16.mxu0 0
      %798 = vmatpush1.bf16.xpose.msra.mxu0 %v777
      %799 = vmatprep.subr.bf16.mxu0 0
      %800 = vmatpush1.bf16.xpose.msra.mxu0 %v774
      %801 = vmatprep.subr.bf16.mxu0 0
      %802 = vmatpush2.bf16.xpose.msra.mxu0 0
      %803 = vmatprep.subr.bf16.mxu0 0
      %804 = vmatpush2.bf16.xpose.msra.mxu0 0
      %805 = vmatprep.subr.bf16.mxu0 0
      %806 = vmatpush2.bf16.xpose.msra.mxu0 0
      %807 = vmatprep.subr.bf16.mxu0 0
      %808 = vmatpush2.bf16.xpose.msra.mxu0 0
      %809 = vmatprep.subr.bf16.mxu0 0
      %810 = vmatpush2.bf16.xpose.msra.mxu0 0
      %811 = vmatprep.subr.bf16.mxu0 0
      %812 = vmatpush2.bf16.xpose.msra.mxu0 0
      %813 = vmatprep.subr.bf16.mxu0 0
      %814 = vmatpush2.bf16.xpose.msra.mxu0 0
      %815 = vmatprep.subr.bf16.mxu0 0
      %816 = vmatpush2.bf16.xpose.msra.mxu0 0
      %817 = vmatprep.mubr.bf16.mxu0 0
      %818 = vmatmul.mubr.bf16.gmra.mxu0 %v771
      %v819 = vpop.f32.mrf.mxu0
      %v820 = vadd.f32 0.0, %v819
      %v821 = vpop.f32.mrf.mxu0
      %v822 = vpop.f32.mrf.mxu0
      %v823 = vpop.f32.mrf.mxu0
      %824 = vdwg.mxu0
      %v825 = vsel %vm542, %v820, -inf
      %826 = vmax.xlane.f32.xlu0 %v825
      %v827 = vpop.xlane.xlu0 %826
      %v828 = vsub.f32 %v820, %v827
      %v829 = vmul.f32 %v828, 1.442695
      %v830 = vpow.pop %v829
      %v831 = vsel %vm542, %v830, 0.0
      %832 = vadd.xlane.f32.xlu0 %v831
      %v833 = vpop.xlane.xlu0 %832
      %v834 = vrcp.pop %v833
      %v835 = vmul.f32 %v830, %v834
      %s836 = scalar_lea.vmem %s447, 16
      %837 = vst.msk [vmem:[%s836] sm:$0xff] %vm542, %v835
      %v838 = vpack.c.bf16 %v835, %v835
      %839 = vrot.lane.b32.xlu0 %v572, 112
      %v840 = vpop.permute.xlu0 %839
      %841 = vrot.lane.b32.xlu0 %v573, 112
      %v842 = vpop.permute.xlu0 %841
      %843 = vrot.lane.b32.xlu0 %v574, 112
      %v844 = vpop.permute.xlu0 %843
      %845 = vrot.lane.b32.xlu0 %v575, 112
      %v846 = vpop.permute.xlu0 %845
      %v852 = vsel %vm542, %v838, 0
      %854 = vmatprep.subr.bf16.mxu0 0
      %855 = vmatpush1.bf16.msra.mxu0 0
      %856 = vmatprep.subr.bf16.mxu0 0
      %857 = vmatpush1.bf16.msra.mxu0 0
      %858 = vmatprep.subr.bf16.mxu0 0
      %859 = vmatpush1.bf16.msra.mxu0 0
      %860 = vmatprep.subr.bf16.mxu0 0
      %861 = vmatpush1.bf16.msra.mxu0 0
      %862 = vmatprep.subr.bf16.mxu0 0
      %863 = vmatpush1.bf16.msra.mxu0 %v846
      %864 = vmatprep.subr.bf16.mxu0 0
      %865 = vmatpush1.bf16.msra.mxu0 %v844
      %866 = vmatprep.subr.bf16.mxu0 0
      %867 = vmatpush1.bf16.msra.mxu0 %v842
      %868 = vmatprep.subr.bf16.mxu0 0
      %869 = vmatpush1.bf16.msra.mxu0 %v840
      %870 = vmatprep.subr.bf16.mxu0 0
      %871 = vmatpush2.bf16.msra.mxu0 0
      %872 = vmatprep.subr.bf16.mxu0 0
      %873 = vmatpush2.bf16.msra.mxu0 0
      %874 = vmatprep.subr.bf16.mxu0 0
      %875 = vmatpush2.bf16.msra.mxu0 0
      %876 = vmatprep.subr.bf16.mxu0 0
      %877 = vmatpush2.bf16.msra.mxu0 0
      %878 = vmatprep.subr.bf16.mxu0 0
      %879 = vmatpush2.bf16.msra.mxu0 0
      %880 = vmatprep.subr.bf16.mxu0 0
      %881 = vmatpush2.bf16.msra.mxu0 0
      %882 = vmatprep.subr.bf16.mxu0 0
      %883 = vmatpush2.bf16.msra.mxu0 0
      %884 = vmatprep.subr.bf16.mxu0 0
      %885 = vmatpush2.bf16.msra.mxu0 0
      %886 = vmatprep.mubr.bf16.mxu0 0
      %887 = vmatmul.mubr.bf16.gmra.mxu0 %v852
      %v888 = vpop.f32.mrf.mxu0
      %v889 = vadd.f32 0.0, %v888
      %v890 = vpop.f32.mrf.mxu0
      %v891 = vpop.f32.mrf.mxu0
      %v892 = vpop.f32.mrf.mxu0
      %893 = vdwg.mxu0
      %894 = vrot.lane.b32.xlu0 %v625, 104
      %v895 = vpop.permute.xlu0 %894
      %896 = vrot.lane.b32.xlu0 %v482, 104
      %v897 = vpop.permute.xlu0 %896
      %898 = vrot.lane.b32.xlu0 %v483, 104
      %v899 = vpop.permute.xlu0 %898
      %900 = vrot.lane.b32.xlu0 %v484, 104
      %v901 = vpop.permute.xlu0 %900
      %902 = vrot.lane.b32.xlu0 %v485, 104
      %v903 = vpop.permute.xlu0 %902
      %v905 = vsel %vm486, %v895, 0
      %v908 = vsel %vm486, %v897, 0
      %v911 = vsel %vm486, %v899, 0
      %v914 = vsel %vm486, %v901, 0
      %v917 = vsel %vm486, %v903, 0
      %919 = vmatprep.subr.bf16.mxu0 0
      %920 = vmatpush1.bf16.xpose.msra.mxu0 0
      %921 = vmatprep.subr.bf16.mxu0 0
      %922 = vmatpush1.bf16.xpose.msra.mxu0 0
      %923 = vmatprep.subr.bf16.mxu0 0
      %924 = vmatpush1.bf16.xpose.msra.mxu0 0
      %925 = vmatprep.subr.bf16.mxu0 0
      %926 = vmatpush1.bf16.xpose.msra.mxu0 0
      %927 = vmatprep.subr.bf16.mxu0 0
      %928 = vmatpush1.bf16.xpose.msra.mxu0 %v917
      %929 = vmatprep.subr.bf16.mxu0 0
      %930 = vmatpush1.bf16.xpose.msra.mxu0 %v914
      %931 = vmatprep.subr.bf16.mxu0 0
      %932 = vmatpush1.bf16.xpose.msra.mxu0 %v911
      %933 = vmatprep.subr.bf16.mxu0 0
      %934 = vmatpush1.bf16.xpose.msra.mxu0 %v908
      %935 = vmatprep.subr.bf16.mxu0 0
      %936 = vmatpush2.bf16.xpose.msra.mxu0 0
      %937 = vmatprep.subr.bf16.mxu0 0
      %938 = vmatpush2.bf16.xpose.msra.mxu0 0
      %939 = vmatprep.subr.bf16.mxu0 0
      %940 = vmatpush2.bf16.xpose.msra.mxu0 0
      %941 = vmatprep.subr.bf16.mxu0 0
      %942 = vmatpush2.bf16.xpose.msra.mxu0 0
      %943 = vmatprep.subr.bf16.mxu0 0
      %944 = vmatpush2.bf16.xpose.msra.mxu0 0
      %945 = vmatprep.subr.bf16.mxu0 0
      %946 = vmatpush2.bf16.xpose.msra.mxu0 0
      %947 = vmatprep.subr.bf16.mxu0 0
      %948 = vmatpush2.bf16.xpose.msra.mxu0 0
      %949 = vmatprep.subr.bf16.mxu0 0
      %950 = vmatpush2.bf16.xpose.msra.mxu0 0
      %951 = vmatprep.mubr.bf16.mxu0 0
      %952 = vmatmul.mubr.bf16.gmra.mxu0 %v905
      %v953 = vpop.f32.mrf.mxu0
      %v954 = vadd.f32 0.0, %v953
      %v955 = vpop.f32.mrf.mxu0
      %v956 = vpop.f32.mrf.mxu0
      %v957 = vpop.f32.mrf.mxu0
      %958 = vdwg.mxu0
      %v959 = vsel %vm542, %v954, -inf
      %960 = vmax.xlane.f32.xlu0 %v959
      %v961 = vpop.xlane.xlu0 %960
      %v962 = vsub.f32 %v954, %v961
      %v963 = vmul.f32 %v962, 1.442695
      %v964 = vpow.pop %v963
      %v965 = vsel %vm542, %v964, 0.0
      %966 = vadd.xlane.f32.xlu0 %v965
      %v967 = vpop.xlane.xlu0 %966
      %v968 = vrcp.pop %v967
      %v969 = vmul.f32 %v964, %v968
      %s970 = scalar_lea.vmem %s447, 24
      %971 = vst.msk [vmem:[%s970] sm:$0xff] %vm542, %v969
      %v972 = vpack.c.bf16 %v969, %v969
      %973 = vrot.lane.b32.xlu0 %v572, 104
      %v974 = vpop.permute.xlu0 %973
      %975 = vrot.lane.b32.xlu0 %v573, 104
      %v976 = vpop.permute.xlu0 %975
      %977 = vrot.lane.b32.xlu0 %v574, 104
      %v978 = vpop.permute.xlu0 %977
      %979 = vrot.lane.b32.xlu0 %v575, 104
      %v980 = vpop.permute.xlu0 %979
      %v986 = vsel %vm542, %v972, 0
      %988 = vmatprep.subr.bf16.mxu0 0
      %989 = vmatpush1.bf16.msra.mxu0 0
      %990 = vmatprep.subr.bf16.mxu0 0
      %991 = vmatpush1.bf16.msra.mxu0 0
      %992 = vmatprep.subr.bf16.mxu0 0
      %993 = vmatpush1.bf16.msra.mxu0 0
      %994 = vmatprep.subr.bf16.mxu0 0
      %995 = vmatpush1.bf16.msra.mxu0 0
      %996 = vmatprep.subr.bf16.mxu0 0
      %997 = vmatpush1.bf16.msra.mxu0 %v980
      %998 = vmatprep.subr.bf16.mxu0 0
      %999 = vmatpush1.bf16.msra.mxu0 %v978
      %1000 = vmatprep.subr.bf16.mxu0 0
      %1001 = vmatpush1.bf16.msra.mxu0 %v976
      %1002 = vmatprep.subr.bf16.mxu0 0
      %1003 = vmatpush1.bf16.msra.mxu0 %v974
      %1004 = vmatprep.subr.bf16.mxu0 0
      %1005 = vmatpush2.bf16.msra.mxu0 0
      %1006 = vmatprep.subr.bf16.mxu0 0
      %1007 = vmatpush2.bf16.msra.mxu0 0
      %1008 = vmatprep.subr.bf16.mxu0 0
      %1009 = vmatpush2.bf16.msra.mxu0 0
      %1010 = vmatprep.subr.bf16.mxu0 0
      %1011 = vmatpush2.bf16.msra.mxu0 0
      %1012 = vmatprep.subr.bf16.mxu0 0
      %1013 = vmatpush2.bf16.msra.mxu0 0
      %1014 = vmatprep.subr.bf16.mxu0 0
      %1015 = vmatpush2.bf16.msra.mxu0 0
      %1016 = vmatprep.subr.bf16.mxu0 0
      %1017 = vmatpush2.bf16.msra.mxu0 0
      %1018 = vmatprep.subr.bf16.mxu0 0
      %1019 = vmatpush2.bf16.msra.mxu0 0
      %1020 = vmatprep.mubr.bf16.mxu0 0
      %1021 = vmatmul.mubr.bf16.gmra.mxu0 %v986
      %v1022 = vpop.f32.mrf.mxu0
      %v1023 = vadd.f32 0.0, %v1022
      %v1024 = vpop.f32.mrf.mxu0
      %v1025 = vpop.f32.mrf.mxu0
      %v1026 = vpop.f32.mrf.mxu0
      %1027 = vdwg.mxu0
      %1029 = vrot.lane.b32.xlu0 %v755, 8
      %v1030 = vpop.permute.xlu0 %1029
      %1033 = vrot.lane.b32.xlu0 %v889, 16
      %v1034 = vpop.permute.xlu0 %1033
      %1037 = vrot.lane.b32.xlu0 %v1023, 24
      %v1038 = vpop.permute.xlu0 %1037
      %v1040 = vsel %vm486, %v618, %v1030
      %vm1041 = vcmask 130048
      %v1042 = vsel %vm1041, %v1040, %v1034
      %vm1043 = vcmask 195584
      %v1044 = vsel %vm1043, %v1042, %v1038
      %v1045 = vpack.c.bf16 %v1044, %v1044
      %v1046 = vld [vmem:[%s3] sm:$0xf]
      %v1047 = vld [vmem:[%s3 + $0x4] sm:$0xf]
      %v1048 = vld [vmem:[%s3 + $0x8] sm:$0xf]
      %v1049 = vld [vmem:[%s3 + $0xc] sm:$0xf]
      %v1050 = vld [vmem:[%s4] sm:$0x1]
      %v1052 = vlaneseq
      %v1053 = vshrl.u32 %v1052, 7
      %v1054 = vsub.s32 0, %v1053
      %v1055 = vrot.slane %v1050, %v1054
      %v1061 = vunpack.c.l.b16 %v1046
      %v1062 = vunpack.c.l.b16 %v1047
      %v1063 = vunpack.c.l.b16 %v1048
      %v1064 = vunpack.c.l.b16 %v1049
      %v1065 = vpack.c.b16 %v1062, %v1061
      %v1066 = vpack.c.b16 %v1064, %v1063
      %vm1069 = vcmask 261120
      %v1071 = vsel %vm1069, %v1045, 0
      %1073 = vmatprep.subr.bf16.mxu0 0
      %1074 = vmatpush1.bf16.msra.mxu0 0
      %1075 = vmatprep.subr.bf16.mxu0 0
      %1076 = vmatpush1.bf16.msra.mxu0 0
      %1077 = vmatprep.subr.bf16.mxu0 0
      %1078 = vmatpush1.bf16.msra.mxu0 0
      %1079 = vmatprep.subr.bf16.mxu0 0
      %1080 = vmatpush1.bf16.msra.mxu0 0
      %1081 = vmatprep.subr.bf16.mxu0 0
      %1082 = vmatpush1.bf16.msra.mxu0 0
      %1083 = vmatprep.subr.bf16.mxu0 0
      %1084 = vmatpush1.bf16.msra.mxu0 0
      %1085 = vmatprep.subr.bf16.mxu0 0
      %1086 = vmatpush1.bf16.msra.mxu0 %v1066
      %1087 = vmatprep.subr.bf16.mxu0 0
      %1088 = vmatpush1.bf16.msra.mxu0 %v1065
      %1089 = vmatprep.subr.bf16.mxu0 0
      %1090 = vmatpush2.bf16.msra.mxu0 0
      %1091 = vmatprep.subr.bf16.mxu0 0
      %1092 = vmatpush2.bf16.msra.mxu0 0
      %1093 = vmatprep.subr.bf16.mxu0 0
      %1094 = vmatpush2.bf16.msra.mxu0 0
      %1095 = vmatprep.subr.bf16.mxu0 0
      %1096 = vmatpush2.bf16.msra.mxu0 0
      %1097 = vmatprep.subr.bf16.mxu0 0
      %1098 = vmatpush2.bf16.msra.mxu0 0
      %1099 = vmatprep.subr.bf16.mxu0 0
      %1100 = vmatpush2.bf16.msra.mxu0 0
      %1101 = vmatprep.subr.bf16.mxu0 0
      %1102 = vmatpush2.bf16.msra.mxu0 0
      %1103 = vmatprep.subr.bf16.mxu0 0
      %1104 = vmatpush2.bf16.msra.mxu0 0
      %1105 = vmatprep.mubr.bf16.mxu0 0
      %1106 = vmatmul.mubr.bf16.gmra.mxu0 %v1071
      %v1107 = vpop.f32.mrf.mxu0
      %v1108 = vadd.f32 %v1055, %v1107
      %v1109 = vpop.f32.mrf.mxu0
      %v1110 = vpop.f32.mrf.mxu0
      %v1111 = vpop.f32.mrf.mxu0
      %1112 = vdwg.mxu0
      %v1113 = vld [vmem:[%s432] sm:$0xff]
      %v1114 = vadd.f32 %v1113, %v1108
      %v1115 = vsel %vm1069, %v1114, 0.0
      %1116 = vadd.xlane.f32.xlu0 %v1115
      %v1117 = vpop.xlane.xlu0 %1116
      %v1118 = vrcp.pop 32.0
      %v1119 = vmul.f32 %v1117, %v1118
      %v1120 = vsub.f32 %v1114, %v1119
      %v1121 = vmul.f32 %v1120, %v1120
      %v1122 = vsel %vm1069, %v1121, 0.0
      %1123 = vadd.xlane.f32.xlu0 %v1122
      %v1124 = vpop.xlane.xlu0 %1123
      %v1125 = vmul.f32 %v1124, %v1118
      %v1126 = vadd.f32 %v1125, 1e-05
      %v1127 = vrsqrt.pop %v1126
      %v1128 = vmul.f32 %v1120, %v1127
      %v1129 = vld [vmem:[%s6] sm:$0x1]
      %v1131 = vlaneseq
      %v1132 = vshrl.u32 %v1131, 7
      %v1133 = vsub.s32 0, %v1132
      %v1134 = vrot.slane %v1129, %v1133
      %v1136 = vmul.f32 %v1128, %v1134
      %v1137 = vld [vmem:[%s7] sm:$0x1]
      %v1139 = vlaneseq
      %v1140 = vshrl.u32 %v1139, 7
      %v1141 = vsub.s32 0, %v1140
      %v1142 = vrot.slane %v1137, %v1141
      %v1144 = vadd.f32 %v1136, %v1142
      %1145 = vst.msk [vmem:[%s439] sm:$0xff] %vm1069, %v1144
      %p1146 = scmp.lt.s32.totalorder %s25, 1
      %s1147 = scalar_select %p1146, %s25, 1
      %p1148 = scmp.lt.s32.totalorder %s26, 0
      %s1149 = scalar_select %p1148, %s26, 0
      %s1150 = sadd.s32 %s1149, %s1147
      %s1151 = smul.addr %s1150, 8
      %s1152 = scalar_lea.vmem %s8, %s1151
      %p1153 = scmp.lt.s32.totalorder %s25, 1
      %s1154 = scalar_select %p1153, %s25, 1
      %p1155 = scmp.lt.s32.totalorder %s26, 0
      %s1156 = scalar_select %p1155, %s26, 0
      %s1157 = smul.addr %s1154, 4
      %s1158 = sadd.s32 %s1156, %s1157
      %s1159 = smul.addr %s1158, 8
      %s1160 = scalar_lea.vmem %s9, %s1159
      // Predicated region
      $region53: #{intr_forward.31} parent=51 // pred_check
        %p1161 = pneg %p245
      $region54: #{intr_forward.31} parent=51 // pred_check_branch
        %1163 = sbr.rel (%p1161) target = $region56
      $region55: #{intr_forward.31} parent=51 // pred_region
        _
      $region56: #{intr_forward.31} parent=51 // pred_fallthru
        _
      // Predicated region
      $region57: #{intr_forward.31} parent=51 // pred_check
        %p1164 = pneg %p273
      $region58: #{intr_forward.31} parent=51 // pred_check_branch
        %1166 = sbr.rel (%p1164) target = $region60
      $region59: #{intr_forward.31} parent=51 // pred_region
        _
      $region60: #{intr_forward.31} parent=51 // pred_fallthru
        _
    $region52: #{intr_forward.31} parent=5 // pred_fallthru
      _
    %p1167 = scmp.le.s32.totalorder 2, %s16
    // Predicated region
    $region61: #{intr_forward.31} parent=5 // pred_check
      %p1168 = pneg %p1167
    $region62: #{intr_forward.31} parent=5 // pred_check_branch
      %1170 = sbr.rel (%p1168) target = $region64
    $region63: #{intr_forward.31} parent=5 // pred_region
      %s1171 = ssub.s32 %s16, 2
      // Predicated region
      $region65: #{intr_forward.31} parent=63 // pred_check
        %p1172 = pneg %p251
      $region66: #{intr_forward.31} parent=63 // pred_check_branch
        %1174 = sbr.rel (%p1172) target = $region68
      $region67: #{intr_forward.31} parent=63 // pred_region
        %p1175 = scmp.lt.s32.totalorder %s27, 1
        %s1176 = scalar_select %p1175, %s27, 1
        %p1177 = scmp.lt.s32.totalorder %s28, 0
        %s1178 = scalar_select %p1177, %s28, 0
        %s1179 = sadd.s32 %s1178, %s1176
        %s1180 = smul.addr %s1179, 8
        %s1181 = scalar_lea.vmem %s8, %s1180
      $region68: #{intr_forward.31} parent=63 // pred_fallthru
        _
      // Predicated region
      $region69: #{intr_forward.31} parent=63 // pred_check
        %p1182 = pneg %p279
      $region70: #{intr_forward.31} parent=63 // pred_check_branch
        %1184 = sbr.rel (%p1182) target = $region72
      $region71: #{intr_forward.31} parent=63 // pred_region
        %p1185 = scmp.lt.s32.totalorder %s27, 1
        %s1186 = scalar_select %p1185, %s27, 1
        %p1187 = scmp.lt.s32.totalorder %s28, 0
        %s1188 = scalar_select %p1187, %s28, 0
        %s1189 = smul.addr %s1186, 4
        %s1190 = sadd.s32 %s1188, %s1189
        %s1191 = smul.addr %s1190, 8
        %s1192 = scalar_lea.vmem %s9, %s1191
      $region72: #{intr_forward.31} parent=63 // pred_fallthru
        _
    $region64: #{intr_forward.31} parent=5 // pred_fallthru
      _
  $region6: #{intr_forward.31} parent=0 // loop_footer
    %s20 = sadd.s32 1, %s16
  $region7: #{intr_forward.31} parent=0 // loop_footer_branch
    %15 = sbr.rel target = $region3
  $region8: #{intr_forward.31} parent=0 // loop_exit
    _

// kernel: intr_forward.39
$region0: #{intr_forward.39}
  #allocation0 [shape = 'u32[]', space=smem, size = 0x4, offset = 0x4, fixed_abs, tag = 'smem constant byte address 0x4 - core index']
  #allocation1 [shape = 'u32[144,128]{1,0:T(1,128)}', space=vmem, size = 0x12000, scoped, tag = 'internal scratch']
  %s0 = inlined_call_operand.vmem [shape: f32[16,32], index: 0, kind: input, shape index: {}]
  %s1 = inlined_call_operand.vmem [shape: bf16[32,64], index: 1, kind: input, shape index: {}]
  %s2 = inlined_call_operand.vmem [shape: f32[1,64], index: 2, kind: input, shape index: {}]
  %s3 = inlined_call_operand.vmem [shape: bf16[64,32], index: 3, kind: input, shape index: {}]
  %s4 = inlined_call_operand.vmem [shape: f32[1,32], index: 4, kind: input, shape index: {}]
  %s5 = inlined_call_operand.vmem [shape: f32[1,32], index: 5, kind: input, shape index: {}]
  %s6 = inlined_call_operand.vmem [shape: f32[1,32], index: 6, kind: input, shape index: {}]
  %s7 = inlined_call_operand.vmem [shape: f32[1,32], index: 7, kind: input, shape index: {}]
  %s8 = inlined_call_operand.vmem [shape: f32[1,32], index: 8, kind: input, shape index: {}]
  %s9 = inlined_call_operand.hbm [shape: f32[16,32], index: 9, kind: output, shape index: {0}]
  %s10 = inlined_call_operand.vmem [shape: f32[16,32], index: 10, kind: output, shape index: {1}]
  %11 = xla_tuple %s9, %s10
  %s12 = sld [smem:[#allocation0]]
  $region54: #{intr_forward.39} parent=0
    _
  %s14 = ssub.s32 1, %s12
  %s15 = scalar_select 0, %s14, %s12
  $region1: #{intr_forward.39} parent=0
    #allocation2 [shape = 'u8[8192]{0}', space=vmem, size = 0x2000, scoped, tag = 'output window, operand 0, single buffered']
    #allocation3 [shape = 's32[1]{0}', space=sflag, size = 0x4, scoped, tag = 'scoped memory for intr_forward.39']
    %16 = vsyncpa [#allocation3], 0
    // Predicated region
    $region2: #{intr_forward.39} parent=1 // pred_check
      _
    $region3: #{intr_forward.39} parent=1 // pred_check_branch
      %18 = sbr.rel (0) target = $region5
    $region4: #{intr_forward.39} parent=1 // pred_region
      _
    $region5: #{intr_forward.39} parent=1 // pred_fallthru
      _
    // Predicated region
    $region6: #{intr_forward.39} parent=1 // pred_check
      _
    $region7: #{intr_forward.39} parent=1 // pred_check_branch
      %20 = sbr.rel (0) target = $region9
    $region8: #{intr_forward.39} parent=1 // pred_region
      _
    $region9: #{intr_forward.39} parent=1 // pred_fallthru
      _
    // Predicated region
    $region10: #{intr_forward.39} parent=1 // pred_check
      _
    $region11: #{intr_forward.39} parent=1 // pred_check_branch
      %22 = sbr.rel (0) target = $region13
    $region12: #{intr_forward.39} parent=1 // pred_region
      _
    $region13: #{intr_forward.39} parent=1 // pred_fallthru
      _
    // Predicated region
    $region14: #{intr_forward.39} parent=1 // pred_check
      _
    $region15: #{intr_forward.39} parent=1 // pred_check_branch
      %24 = sbr.rel (0) target = $region17
    $region16: #{intr_forward.39} parent=1 // pred_region
      _
    $region17: #{intr_forward.39} parent=1 // pred_fallthru
      _
    // Predicated region
    $region18: #{intr_forward.39} parent=1 // pred_check
      _
    $region19: #{intr_forward.39} parent=1 // pred_check_branch
      %26 = sbr.rel (0) target = $region21
    $region20: #{intr_forward.39} parent=1 // pred_region
      _
    $region21: #{intr_forward.39} parent=1 // pred_fallthru
      _
    // Predicated region
    $region22: #{intr_forward.39} parent=1 // pred_check
      _
    $region23: #{intr_forward.39} parent=1 // pred_check_branch
      %28 = sbr.rel (0) target = $region25
    $region24: #{intr_forward.39} parent=1 // pred_region
      _
    $region25: #{intr_forward.39} parent=1 // pred_fallthru
      _
    // Predicated region
    $region26: #{intr_forward.39} parent=1 // pred_check
      _
    $region27: #{intr_forward.39} parent=1 // pred_check_branch
      %30 = sbr.rel (0) target = $region29
    $region28: #{intr_forward.39} parent=1 // pred_region
      _
    $region29: #{intr_forward.39} parent=1 // pred_fallthru
      _
    // Predicated region
    $region30: #{intr_forward.39} parent=1 // pred_check
      _
    $region31: #{intr_forward.39} parent=1 // pred_check_branch
      %32 = sbr.rel (0) target = $region33
    $region32: #{intr_forward.39} parent=1 // pred_region
      _
    $region33: #{intr_forward.39} parent=1 // pred_fallthru
      _
    // Predicated region
    $region34: #{intr_forward.39} parent=1 // pred_check
      _
    $region35: #{intr_forward.39} parent=1 // pred_check_branch
      %34 = sbr.rel (0) target = $region37
    $region36: #{intr_forward.39} parent=1 // pred_region
      _
    $region37: #{intr_forward.39} parent=1 // pred_fallthru
      _
    %v36 = vld [vmem:[%s0] sm:$0xff]
    %v37 = vld [vmem:[%s0 + $0x8] sm:$0xff]
    %v38 = vpack.c.bf16 %v37, %v36
    %v39 = vld [vmem:[%s1] sm:$0xf]
    %v40 = vld [vmem:[%s1 + $0x4] sm:$0xf]
    %v41 = vld [vmem:[%s1 + $0x8] sm:$0xf]
    %v42 = vld [vmem:[%s1 + $0xc] sm:$0xf]
    %v43 = vld [vmem:[%s2] sm:$0x1]
    %v45 = vlaneseq
    %v46 = vshrl.u32 %v45, 7
    %v47 = vsub.s32 0, %v46
    %v48 = vrot.slane %v43, %v47
    %v54 = vunpack.c.l.b16 %v39
    %v55 = vunpack.c.l.b16 %v40
    %v56 = vunpack.c.l.b16 %v41
    %v57 = vunpack.c.l.b16 %v42
    %v58 = vpack.c.b16 %v55, %v54
    %v59 = vpack.c.b16 %v57, %v56
    %vm62 = vcmask 261120
    %v64 = vsel %vm62, %v38, 0
    %66 = vmatprep.subr.bf16.mxu0 0
    %67 = vmatpush1.bf16.msra.mxu0 0
    %68 = vmatprep.subr.bf16.mxu0 0
    %69 = vmatpush1.bf16.msra.mxu0 0
    %70 = vmatprep.subr.bf16.mxu0 0
    %71 = vmatpush1.bf16.msra.mxu0 0
    %72 = vmatprep.subr.bf16.mxu0 0
    %73 = vmatpush1.bf16.msra.mxu0 0
    %74 = vmatprep.subr.bf16.mxu0 0
    %75 = vmatpush1.bf16.msra.mxu0 0
    %76 = vmatprep.subr.bf16.mxu0 0
    %77 = vmatpush1.bf16.msra.mxu0 0
    %78 = vmatprep.subr.bf16.mxu0 0
    %79 = vmatpush1.bf16.msra.mxu0 %v59
    %80 = vmatprep.subr.bf16.mxu0 0
    %81 = vmatpush1.bf16.msra.mxu0 %v58
    %82 = vmatprep.subr.bf16.mxu0 0
    %83 = vmatpush2.bf16.msra.mxu0 0
    %84 = vmatprep.subr.bf16.mxu0 0
    %85 = vmatpush2.bf16.msra.mxu0 0
    %86 = vmatprep.subr.bf16.mxu0 0
    %87 = vmatpush2.bf16.msra.mxu0 0
    %88 = vmatprep.subr.bf16.mxu0 0
    %89 = vmatpush2.bf16.msra.mxu0 0
    %90 = vmatprep.subr.bf16.mxu0 0
    %91 = vmatpush2.bf16.msra.mxu0 0
    %92 = vmatprep.subr.bf16.mxu0 0
    %93 = vmatpush2.bf16.msra.mxu0 0
    %94 = vmatprep.subr.bf16.mxu0 0
    %95 = vmatpush2.bf16.msra.mxu0 0
    %96 = vmatprep.subr.bf16.mxu0 0
    %97 = vmatpush2.bf16.msra.mxu0 0
    %98 = vmatprep.mubr.bf16.mxu0 0
    %99 = vmatmul.mubr.bf16.gmra.mxu0 %v64
    %v100 = vpop.f32.mrf.mxu0
    %v101 = vadd.f32 %v48, %v100
    %v102 = vpop.f32.mrf.mxu0
    %v103 = vpop.f32.mrf.mxu0
    %v104 = vadd.f32 %v48, %v103
    %v105 = vpop.f32.mrf.mxu0
    %106 = vdwg.mxu0
    %v107 = vmax.f32 %v101, 0.0
    %v108 = vmax.f32 %v104, 0.0
    %v109 = vpack.c.bf16 %v108, %v107
    %v110 = vld [vmem:[%s3] sm:$0xf]
    %v111 = vld [vmem:[%s3 + $0x4] sm:$0xf]
    %v112 = vld [vmem:[%s3 + $0x8] sm:$0xf]
    %v113 = vld [vmem:[%s3 + $0xc] sm:$0xf]
    %v114 = vld [vmem:[%s3 + $0x10] sm:$0xf]
    %v115 = vld [vmem:[%s3 + $0x14] sm:$0xf]
    %v116 = vld [vmem:[%s3 + $0x18] sm:$0xf]
    %v117 = vld [vmem:[%s3 + $0x1c] sm:$0xf]
    %v118 = vld [vmem:[%s4] sm:$0x1]
    %v120 = vlaneseq
    %v121 = vshrl.u32 %v120, 7
    %v122 = vsub.s32 0, %v121
    %v123 = vrot.slane %v118, %v122
    %v133 = vunpack.c.l.b16 %v110
    %v134 = vunpack.c.l.b16 %v111
    %v135 = vunpack.c.l.b16 %v112
    %v136 = vunpack.c.l.b16 %v113
    %v137 = vunpack.c.l.b16 %v114
    %v138 = vunpack.c.l.b16 %v115
    %v139 = vunpack.c.l.b16 %v116
    %v140 = vunpack.c.l.b16 %v117
    %v141 = vpack.c.b16 %v134, %v133
    %v142 = vpack.c.b16 %v136, %v135
    %v143 = vpack.c.b16 %v138, %v137
    %v144 = vpack.c.b16 %v140, %v139
    %vm149 = vcmask 523264
    %v151 = vsel %vm149, %v109, 0
    %153 = vmatprep.subr.bf16.mxu0 0
    %154 = vmatpush1.bf16.msra.mxu0 0
    %155 = vmatprep.subr.bf16.mxu0 0
    %156 = vmatpush1.bf16.msra.mxu0 0
    %157 = vmatprep.subr.bf16.mxu0 0
    %158 = vmatpush1.bf16.msra.mxu0 0
    %159 = vmatprep.subr.bf16.mxu0 0
    %160 = vmatpush1.bf16.msra.mxu0 0
    %161 = vmatprep.subr.bf16.mxu0 0
    %162 = vmatpush1.bf16.msra.mxu0 %v144
    %163 = vmatprep.subr.bf16.mxu0 0
    %164 = vmatpush1.bf16.msra.mxu0 %v143
    %165 = vmatprep.subr.bf16.mxu0 0
    %166 = vmatpush1.bf16.msra.mxu0 %v142
    %167 = vmatprep.subr.bf16.mxu0 0
    %168 = vmatpush1.bf16.msra.mxu0 %v141
    %169 = vmatprep.subr.bf16.mxu0 0
    %170 = vmatpush2.bf16.msra.mxu0 0
    %171 = vmatprep.subr.bf16.mxu0 0
    %172 = vmatpush2.bf16.msra.mxu0 0
    %173 = vmatprep.subr.bf16.mxu0 0
    %174 = vmatpush2.bf16.msra.mxu0 0
    %175 = vmatprep.subr.bf16.mxu0 0
    %176 = vmatpush2.bf16.msra.mxu0 0
    %177 = vmatprep.subr.bf16.mxu0 0
    %178 = vmatpush2.bf16.msra.mxu0 0
    %179 = vmatprep.subr.bf16.mxu0 0
    %180 = vmatpush2.bf16.msra.mxu0 0
    %181 = vmatprep.subr.bf16.mxu0 0
    %182 = vmatpush2.bf16.msra.mxu0 0
    %183 = vmatprep.subr.bf16.mxu0 0
    %184 = vmatpush2.bf16.msra.mxu0 0
    %185 = vmatprep.mubr.bf16.mxu0 0
    %186 = vmatmul.mubr.bf16.gmra.mxu0 %v151
    %v187 = vpop.f32.mrf.mxu0
    %v188 = vadd.f32 %v123, %v187
    %v189 = vpop.f32.mrf.mxu0
    %v190 = vpop.f32.mrf.mxu0
    %v191 = vadd.f32 %v123, %v190
    %v192 = vpop.f32.mrf.mxu0
    %193 = vdwg.mxu0
    %v194 = vadd.f32 %v36, %v188
    %v195 = vadd.f32 %v37, %v191
    %v196 = vsel %vm62, %v194, 0.0
    %197 = vadd.xlane.f32.xlu0 %v196
    %v198 = vpop.xlane.xlu0 %197
    %v199 = vsel %vm62, %v195, 0.0
    %200 = vadd.xlane.f32.xlu0 %v199
    %v201 = vpop.xlane.xlu0 %200
    %v202 = vrcp.pop 32.0
    %v203 = vmul.f32 %v198, %v202
    %v204 = vmul.f32 %v201, %v202
    %v205 = vsub.f32 %v194, %v203
    %v206 = vsub.f32 %v195, %v204
    %v207 = vmul.f32 %v205, %v205
    %v208 = vmul.f32 %v206, %v206
    %v209 = vsel %vm62, %v207, 0.0
    %210 = vadd.xlane.f32.xlu0 %v209
    %v211 = vpop.xlane.xlu0 %210
    %v212 = vsel %vm62, %v208, 0.0
    %213 = vadd.xlane.f32.xlu0 %v212
    %v214 = vpop.xlane.xlu0 %213
    %v215 = vmul.f32 %v211, %v202
    %v216 = vmul.f32 %v214, %v202
    %v217 = vadd.f32 %v215, 1e-05
    %v218 = vadd.f32 %v216, 1e-05
    %v219 = vrsqrt.pop %v217
    %v220 = vrsqrt.pop %v218
    %v221 = vmul.f32 %v205, %v219
    %v222 = vmul.f32 %v206, %v220
    %v223 = vld [vmem:[%s5] sm:$0x1]
    %v225 = vlaneseq
    %v226 = vshrl.u32 %v225, 7
    %v227 = vsub.s32 0, %v226
    %v228 = vrot.slane %v223, %v227
    %v230 = vmul.f32 %v221, %v228
    %v231 = vmul.f32 %v222, %v228
    %v232 = vld [vmem:[%s6] sm:$0x1]
    %v234 = vlaneseq
    %v235 = vshrl.u32 %v234, 7
    %v236 = vsub.s32 0, %v235
    %v237 = vrot.slane %v232, %v236
    %v239 = vadd.f32 %v230, %v237
    %v240 = vadd.f32 %v231, %v237
    %241 = vst.msk [vmem:[#allocation2] sm:$0xff] %vm62, %v239
    %242 = vst.msk [vmem:[#allocation2 + $0x8] sm:$0xff] %vm62, %v240
    %v243 = vsel %vm62, %v239, 0.0
    %244 = vadd.xlane.f32.xlu0 %v243
    %v245 = vpop.xlane.xlu0 %244
    %v246 = vsel %vm62, %v240, 0.0
    %247 = vadd.xlane.f32.xlu0 %v246
    %v248 = vpop.xlane.xlu0 %247
    %v249 = vmul.f32 %v245, %v202
    %v250 = vmul.f32 %v248, %v202
    %v251 = vsub.f32 %v239, %v249
    %v252 = vsub.f32 %v240, %v250
    %v253 = vmul.f32 %v251, %v251
    %v254 = vmul.f32 %v252, %v252
    %v255 = vsel %vm62, %v253, 0.0
    %256 = vadd.xlane.f32.xlu0 %v255
    %v257 = vpop.xlane.xlu0 %256
    %v258 = vsel %vm62, %v254, 0.0
    %259 = vadd.xlane.f32.xlu0 %v258
    %v260 = vpop.xlane.xlu0 %259
    %v261 = vmul.f32 %v257, %v202
    %v262 = vmul.f32 %v260, %v202
    %v263 = vadd.f32 %v261, 1e-05
    %v264 = vadd.f32 %v262, 1e-05
    %v265 = vrsqrt.pop %v263
    %v266 = vrsqrt.pop %v264
    %v267 = vmul.f32 %v251, %v265
    %v268 = vmul.f32 %v252, %v266
    %v269 = vld [vmem:[%s7] sm:$0x1]
    %v271 = vlaneseq
    %v272 = vshrl.u32 %v271, 7
    %v273 = vsub.s32 0, %v272
    %v274 = vrot.slane %v269, %v273
    %v276 = vmul.f32 %v267, %v274
    %v277 = vmul.f32 %v268, %v274
    %v278 = vld [vmem:[%s8] sm:$0x1]
    %v280 = vlaneseq
    %v281 = vshrl.u32 %v280, 7
    %v282 = vsub.s32 0, %v281
    %v283 = vrot.slane %v278, %v282
    %v285 = vadd.f32 %v276, %v283
    %v286 = vadd.f32 %v277, %v283
    %287 = vst.msk [vmem:[%s10] sm:$0xff] %vm62, %v285
    %288 = vst.msk [vmem:[%s10 + $0x8] sm:$0xff] %vm62, %v286
    // Predicated region
    $region38: #{intr_forward.39} parent=1 // pred_check
      _
    $region39: #{intr_forward.39} parent=1 // pred_check_branch
      %290 = sbr.rel (0) target = $region41
    $region40: #{intr_forward.39} parent=1 // pred_region
      %s292 = ssub.s32 256, 256
      %293 = vsyncadd [#allocation3], %s292
      %s294 = sshll.u32 [#allocation2], 4
      %s295 = int_to_ptr.vmem [resolvable:$true] %s294
      %300 = dma.vmem_to_hbm [thread:$0]  %s295, 256, %s9, [#allocation3], 128, 128, 8
    $region41: #{intr_forward.39} parent=1 // pred_fallthru
      _
    // Predicated region
    $region42: #{intr_forward.39} parent=1 // pred_check
      _
    $region43: #{intr_forward.39} parent=1 // pred_check_branch
      %302 = sbr.rel (0) target = $region45
    $region44: #{intr_forward.39} parent=1 // pred_region
      _
    $region45: #{intr_forward.39} parent=1 // pred_fallthru
      _
    // Predicated region
    $region46: #{intr_forward.39} parent=1 // pred_check
      _
    $region47: #{intr_forward.39} parent=1 // pred_check_branch
      %304 = sbr.rel (0) target = $region49
    $region48: #{intr_forward.39} parent=1 // pred_region
      %305 = dma.done [#allocation3], 256
    $region49: #{intr_forward.39} parent=1 // pred_fallthru
      _
    // Predicated region
    $region50: #{intr_forward.39} parent=1 // pred_check
      _
    $region51: #{intr_forward.39} parent=1 // pred_check_branch
      %307 = sbr.rel (0) target = $region53
    $region52: #{intr_forward.39} parent=1 // pred_region
      _
    $region53: #{intr_forward.39} parent=1 // pred_fallthru
      _
    %308 = vsyncpa [#allocation3], 1

</llo_original>
